<compile_context>
chip_gen: v7x
topology: tpu7x:2x2x1
jax: 0.10.0
libtpu: 0.0.40
codegen_flags: <defaults>
</compile_context>

<pallas_src>
import functools
import math

import jax
import jax.numpy as jnp
from jax.experimental import pallas as pl
from jax.experimental.pallas import tpu as pltpu


# ----------------------------- in-kernel helpers -----------------------------

def _erf(x):
    # Abramowitz & Stegun 7.1.26, |abs err| < 1.5e-7 -> float32-accurate exact GELU.
    # TODO(synk): switch to jax.lax.erf (EUP path) if/when Mosaic lowers erf_p directly.
    p = 0.3275911
    a1, a2, a3, a4, a5 = (0.254829592, -0.284496736, 1.421413741,
                          -1.453152027, 1.061405429)
    sgn = jnp.where(x >= 0.0, 1.0, -1.0)
    ax = jnp.abs(x)
    t = 1.0 / (1.0 + p * ax)
    poly = ((((a5 * t + a4) * t + a3) * t + a2) * t + a1) * t
    return sgn * (1.0 - poly * jnp.exp(-ax * ax))


def _gelu(x):
    # nn.GELU() / F.gelu default: exact (erf-based) GELU, kept in f32 on all chips.
    return 0.5 * x * (1.0 + _erf(x * 0.7071067811865476))


# --------------------------------- the kernel --------------------------------

def _down_kernel(nb, W, P, inv_n_mid, inv_n_out, mxu_dtype,
                 xp_ref, emb_ref, mask_ref, sel_ref, selT_ref,
                 w1a_ref, g1a_ref, b1a_ref,
                 w1b_ref, g1b_ref, b1b_ref,
                 w2a_ref, g2a_ref, b2a_ref,
                 w2b_ref, g2b_ref, b2b_ref,
                 o_ref):
    L = nb * P
    sel = sel_ref[...]                     # (L, nb)  per-sample lane-segment selector
    selT = selT_ref[...]                   # (nb, L)
    # Data-independent zero-pad boundary masks: loaded once, reused by all 4 convs.
    masks = [mask_ref[k] for k in range(9)]            # 9 x (1, L)

    # --- MaxPool2d(2): elementwise max of the 4 pre-gathered window candidates ---
    pooled = jnp.maximum(jnp.maximum(xp_ref[0], xp_ref[1]),
                         jnp.maximum(xp_ref[2], xp_ref[3]))       # (Cin_p, L) f32

    def conv3x3(y, w_ref):
        # Single im2col matmul per conv: (Cout, 9*C) x (9*C, L) on the MXU.
        ym = y.astype(mxu_dtype)
        taps = []
        for ky in range(3):
            for kx in range(3):
                k = ky * 3 + kx
                off = (ky - 1) * W + (kx - 1)
                sh = ym if off == 0 else pltpu.roll(ym, shift=(-off) % L, axis=1)
                taps.append(sh if k == 4 else sh * masks[k])      # center tap needs no mask
        col = jnp.concatenate(taps, axis=0)                       # (9*C, L)
        return jnp.dot(w_ref[...], col, preferred_element_type=jnp.float32)

    def gnorm(y, g_ref, b_ref, inv_n):
        # GroupNorm(num_groups=1), per sample, single fused reduction pass:
        # var = E[x^2] - mean^2 (mild cancellation risk, fine for activation ranges).
        # Selector matmuls keep stats per-sample although `nb` samples share lanes;
        # zero-padded channel rows contribute 0 to the sums and inv_n is the true count.
        s1 = jnp.dot(y, sel, preferred_element_type=jnp.float32)        # (C, nb)
        s2 = jnp.dot(y * y, sel, preferred_element_type=jnp.float32)    # (C, nb)
        m = jnp.sum(s1, axis=0, keepdims=True) * inv_n                  # (1, nb)
        var = jnp.sum(s2, axis=0, keepdims=True) * inv_n - m * m
        inv = jax.lax.rsqrt(var + 1e-5)                                 # (1, nb)
        m_l = jnp.dot(m, selT, preferred_element_type=jnp.float32)      # (1, L)
        s_l = jnp.dot(inv, selT, preferred_element_type=jnp.float32)    # (1, L)
        return (y - m_l) * (s_l * g_ref[...]) + b_ref[...]

    # --- DoubleConv(in, in, residual=True) ---
    h = conv3x3(pooled, w1a_ref)
    h = _gelu(gnorm(h, g1a_ref, b1a_ref, inv_n_mid))
    h = conv3x3(h, w1b_ref)
    h = gnorm(h, g1b_ref, b1b_ref, inv_n_mid)
    r = _gelu(pooled + h)

    # --- DoubleConv(in, out) ---
    h = conv3x3(r, w2a_ref)
    h = _gelu(gnorm(h, g2a_ref, b2a_ref, inv_n_out))
    h = conv3x3(h, w2b_ref)
    h = gnorm(h, g2b_ref, b2b_ref, inv_n_out)                           # (Cout_p, L)

    # --- + emb (Linear(SiLU(t)) precomputed in the wrapper), broadcast per sample ---
    o_ref[...] = h + jnp.dot(emb_ref[...], selT, preferred_element_type=jnp.float32)


# --------------------------------- wrapper ------------------------------------

def _round_up(x, m):
    return (x + m - 1) // m * m


def _device_kind():
    try:
        return jax.devices()[0].device_kind.lower()
    except Exception:
        return ""


@functools.partial(jax.jit, static_argnames=("nb", "use_bf16", "buffered", "vmem_mb"))
def _down_impl(x, t, params, *, nb, use_bf16, buffered, vmem_mb):
    B, Cin, Hin, Win = x.shape
    H, W = Hin // 2, Win // 2
    P = H * W
    Cout = params["w2a"].shape[0]
    G = B // nb
    L = nb * P
    mxu_dtype = jnp.bfloat16 if use_bf16 else jnp.float32
    # Channel padding to the native sublane tile: keeps the im2col concat and all matmul
    # dims aligned.  Padded rows/cols are exact zeros end to end and are sliced off.
    cmul = 16 if use_bf16 else 8
    Cin_p, Cout_p = _round_up(Cin, cmul), _round_up(Cout, cmul)
    f32 = jnp.float32

    # --- MaxPool2d(2) candidate pre-gather (pure layout glue, fused by XLA under jit).
    xp = x.astype(f32).reshape(G, nb, Cin, H, 2, W, 2)
    xp = xp.transpose(0, 4, 6, 2, 1, 3, 5).reshape(G, 4, Cin, L)
    xp = jnp.pad(xp, ((0, 0), (0, 0), (0, Cin_p - Cin), (0, 0)))

    # --- emb_layer hoisted out of the kernel: one batched GEMM for the whole batch.
    tf = t.astype(f32)
    silu = tf * jax.nn.sigmoid(tf)
    emb = silu @ params["we"].astype(f32).T + params["be"].astype(f32)     # (B, Cout)
    emb = emb.reshape(G, nb, Cout).transpose(0, 2, 1)                      # (G, Cout, nb)
    emb = jnp.pad(emb, ((0, 0), (0, Cout_p - Cout), (0, 0)))

    # --- precomputed 3x3 zero-padding boundary masks, tiled per sample: (9, 1, L).
    ii = jnp.arange(P, dtype=jnp.int32) // W
    jj = jnp.arange(P, dtype=jnp.int32) % W
    rows = []
    for ky in range(3):
        for kx in range(3):
            dy, dx = ky - 1, kx - 1
            rows.append((ii + dy >= 0) & (ii + dy < H) & (jj + dx >= 0) & (jj + dx < W))
    mask = jnp.stack(rows, 0).astype(mxu_dtype)            # (9, P)
    mask = jnp.tile(mask, (1, nb))[:, None, :]             # (9, 1, L)

    # --- per-sample lane-segment selector (GroupNorm stats + emb broadcast).
    seg = jnp.repeat(jnp.arange(nb, dtype=jnp.int32), P)
    sel = (seg[:, None] == jnp.arange(nb, dtype=jnp.int32)[None, :]).astype(f32)  # (L, nb)
    selT = jnp.transpose(sel)                                                     # (nb, L)

    def conv_w(w, co_p, ci_p):
        # PyTorch (Cout, Cin, 3, 3) -> folded lane-contiguous 2-D (co_p, 9*ci_p),
        # column order (ky*3+kx)*ci_p + cin matching the in-kernel im2col rows.
        co, ci = w.shape[0], w.shape[1]
        w2 = jnp.transpose(w.astype(f32), (0, 2, 3, 1))                 # (co, 3, 3, ci)
        w2 = jnp.pad(w2, ((0, co_p - co), (0, 0), (0, 0), (0, ci_p - ci)))
        return w2.reshape(co_p, 9 * ci_p).astype(mxu_dtype)

    def colv(v, c_p):  # (C,) -> zero-padded (c_p, 1) column (per-channel broadcast)
        return jnp.pad(v.astype(f32), (0, c_p - v.shape[0]))[:, None]

    args = (
        xp, emb, mask, sel, selT,
        conv_w(params["w1a"], Cin_p, Cin_p), colv(params["g1a"], Cin_p), colv(params["b1a"], Cin_p),
        conv_w(params["w1b"], Cin_p, Cin_p), colv(params["g1b"], Cin_p), colv(params["b1b"], Cin_p),
        conv_w(params["w2a"], Cout_p, Cin_p), colv(params["g2a"], Cout_p), colv(params["b2a"], Cout_p),
        conv_w(params["w2b"], Cout_p, Cout_p), colv(params["g2b"], Cout_p), colv(params["b2b"], Cout_p),
    )

    kernel = functools.partial(_down_kernel, nb, W, P,
                               1.0 / (Cin * P), 1.0 / (Cout * P), mxu_dtype)

    # Advisory cost estimate: 4 conv matmuls dominate; GELU exp is the transcendental load.
    flops = 2 * G * L * 9 * (2 * Cin_p * Cin_p + Cin_p * Cout_p + Cout_p * Cout_p)
    transcend = G * L * (2 * Cin_p + Cout_p)
    bytes_in = sum(int(a.size) * a.dtype.itemsize for a in args)
    cost = pl.CostEstimate(flops=int(flops), transcendentals=int(transcend),
                           bytes_accessed=int(bytes_in + G * Cout_p * L * 4))

    compiler_params = pltpu.CompilerParams(
        dimension_semantics=("parallel",),                  # batch shards across TCs (v7x)
        vmem_limit_bytes=vmem_mb * 1024 * 1024)

    def const_spec(a):
        if buffered:
            # Constant-index weight/mask blocks: single-buffered (halves their VMEM
            # footprint; matters at real UNet widths on v7x's 64 MiB VMEM).
            return pl.BlockSpec(a.shape, lambda g, _n=a.ndim: (0,) * _n,
                                pipeline_mode=pl.Buffered(1))
        return pl.BlockSpec(a.shape, lambda g, _n=a.ndim: (0,) * _n)

    in_specs = [
        pl.BlockSpec((None, 4, Cin_p, L), lambda g: (g, 0, 0, 0)),   # pooled candidates
        pl.BlockSpec((None, Cout_p, nb), lambda g: (g, 0, 0)),       # precomputed emb
    ] + [const_spec(a) for a in args[2:]]

    out = pl.pallas_call(
        kernel,
        out_shape=jax.ShapeDtypeStruct((G, Cout_p, L), jnp.float32),
        grid=(G,),
        in_specs=in_specs,
        out_specs=pl.BlockSpec((None, Cout_p, L), lambda g: (g, 0, 0)),
        compiler_params=compiler_params,
        cost_estimate=cost,
    )(*args)

    out = out[:, :Cout, :].reshape(G, Cout, nb, P).transpose(0, 2, 1, 3)
    return out.reshape(B, Cout, H, W).astype(x.dtype)        # NCHW, like PyTorch


_BUFFERED_OK = None   # probed once: does this jax build accept pipeline_mode=pl.Buffered(1)?


def down_forward(x, t, params, *, mxu_dtype=None):
    global _BUFFERED_OK
    B, Cin, Hin, Win = x.shape
    assert Hin % 2 == 0 and Win % 2 == 0, "MaxPool2d(2) requires even spatial dims"
    H, W = Hin // 2, Win // 2
    P = H * W
    Cout = params["w2a"].shape[0]
    assert params["we"].shape == (Cout, t.shape[1])

    kind = _device_kind()
    if mxu_dtype is None:
        # bf16 MXU inputs on v6e/v7x (native full-rate bf16); f32 on v5e and older.
        use_bf16 = ("v6" in kind) or ("v7" in kind) or ("7x" in kind)
    else:
        use_bf16 = jnp.dtype(mxu_dtype) == jnp.dtype(jnp.bfloat16)

    # Samples per grid step: make the lane (last) dim >=128 where possible
    # (lane-dense stores, full vregs, amortized per-grid-step overhead).
    if P >= 128:
        nb = 1
    else:
        nb = 1
        for d in range(1, min(B, max(1, 128 // P)) + 1):
            if B % d == 0:
                nb = d

    is_v7 = ("v7" in kind) or ("7x" in kind)
    vmem_mb = 40 if is_v7 else 64

    call = functools.partial(_down_impl, x, t, params,
                             nb=nb, use_bf16=use_bf16, vmem_mb=vmem_mb)
    if _BUFFERED_OK is None:
        try:
            out = call(buffered=True)
            jax.block_until_ready(out)     # surface compile/runtime failure inside the probe
            _BUFFERED_OK = True
            return out
        except Exception:
            _BUFFERED_OK = False           # fall back to default double buffering
    return call(buffered=_BUFFERED_OK)


# ----------------------------- parameter init ---------------------------------

def init_params(key, in_ch, out_ch, emb_dim):
    ks = jax.random.split(key, 6)

    def conv(k, co, ci):
        return jax.random.normal(k, (co, ci, 3, 3), jnp.float32) / math.sqrt(ci * 9)

    return {
        # DoubleConv(in, in, residual=True)
        "w1a": conv(ks[0], in_ch, in_ch),
        "g1a": jnp.ones((in_ch,), jnp.float32), "b1a": jnp.zeros((in_ch,), jnp.float32),
        "w1b": conv(ks[1], in_ch, in_ch),
        "g1b": jnp.ones((in_ch,), jnp.float32), "b1b": jnp.zeros((in_ch,), jnp.float32),
        # DoubleConv(in, out)
        "w2a": conv(ks[2], out_ch, in_ch),
        "g2a": jnp.ones((out_ch,), jnp.float32), "b2a": jnp.zeros((out_ch,), jnp.float32),
        "w2b": conv(ks[3], out_ch, out_ch),
        "g2b": jnp.ones((out_ch,), jnp.float32), "b2b": jnp.zeros((out_ch,), jnp.float32),
        # emb_layer: Linear(emb_dim, out_ch)
        "we": jax.random.normal(ks[4], (out_ch, emb_dim), jnp.float32) / math.sqrt(emb_dim),
        "be": jax.random.normal(ks[5], (out_ch,), jnp.float32) * 0.01,
    }


if __name__ == "__main__":
    key = jax.random.PRNGKey(0)
    kx, kt, kp = jax.random.split(key, 3)

    B, Cin, Cout, S, emb_dim = 2, 4, 8, 16, 256
    x = jax.random.normal(kx, (B, Cin, S, S), jnp.float32)   # NCHW, like PyTorch
    t = jax.random.normal(kt, (B, emb_dim), jnp.float32)
    params = init_params(kp, Cin, Cout, emb_dim)

    y = down_forward(x, t, params)
    jax.block_until_ready(y)
    assert y.shape == (B, Cout, S // 2, S // 2)
    print("KERNEL_OK")
</pallas_src>

<mosaic_0001>
module attributes {stable_mosaic.version = 11 : i64} {
  func.func @_down_kernel(%arg0: i32, %arg1: memref<1x4x8x128xf32, #tpu.memory_space<vmem>>, %arg2: memref<1x8x2xf32, #tpu.memory_space<vmem>>, %arg3: memref<9x1x128xf32, #tpu.memory_space<vmem>>, %arg4: memref<128x2xf32, #tpu.memory_space<vmem>>, %arg5: memref<2x128xf32, #tpu.memory_space<vmem>>, %arg6: memref<8x72xf32, #tpu.memory_space<vmem>>, %arg7: memref<8x1xf32, #tpu.memory_space<vmem>>, %arg8: memref<8x1xf32, #tpu.memory_space<vmem>>, %arg9: memref<8x72xf32, #tpu.memory_space<vmem>>, %arg10: memref<8x1xf32, #tpu.memory_space<vmem>>, %arg11: memref<8x1xf32, #tpu.memory_space<vmem>>, %arg12: memref<8x72xf32, #tpu.memory_space<vmem>>, %arg13: memref<8x1xf32, #tpu.memory_space<vmem>>, %arg14: memref<8x1xf32, #tpu.memory_space<vmem>>, %arg15: memref<8x72xf32, #tpu.memory_space<vmem>>, %arg16: memref<8x1xf32, #tpu.memory_space<vmem>>, %arg17: memref<8x1xf32, #tpu.memory_space<vmem>>, %arg18: memref<1x8x128xf32, #tpu.memory_space<vmem>>) attributes {dimension_semantics = [#tpu.dimension_semantics<parallel>], iteration_bounds = array<i64: 1>, scalar_prefetch = 0 : i64, scratch_operands = 0 : i64, tpu.core_type = #tpu.core_type<tc>, window_params = [{transform_indices = @transform_0, window_bounds = array<i64: 1, 4, 8, 128>}, {transform_indices = @transform_1, window_bounds = array<i64: 1, 8, 2>}, {pipeline_mode = #tpu.pipeline_mode<synchronous>, transform_indices = @transform_2, window_bounds = array<i64: 9, 1, 128>}, {pipeline_mode = #tpu.pipeline_mode<synchronous>, transform_indices = @transform_3, window_bounds = array<i64: 128, 2>}, {pipeline_mode = #tpu.pipeline_mode<synchronous>, transform_indices = @transform_4, window_bounds = array<i64: 2, 128>}, {pipeline_mode = #tpu.pipeline_mode<synchronous>, transform_indices = @transform_5, window_bounds = array<i64: 8, 72>}, {pipeline_mode = #tpu.pipeline_mode<synchronous>, transform_indices = @transform_6, window_bounds = array<i64: 8, 1>}, {pipeline_mode = #tpu.pipeline_mode<synchronous>, transform_indices = @transform_7, window_bounds = array<i64: 8, 1>}, {pipeline_mode = #tpu.pipeline_mode<synchronous>, transform_indices = @transform_8, window_bounds = array<i64: 8, 72>}, {pipeline_mode = #tpu.pipeline_mode<synchronous>, transform_indices = @transform_9, window_bounds = array<i64: 8, 1>}, {pipeline_mode = #tpu.pipeline_mode<synchronous>, transform_indices = @transform_10, window_bounds = array<i64: 8, 1>}, {pipeline_mode = #tpu.pipeline_mode<synchronous>, transform_indices = @transform_11, window_bounds = array<i64: 8, 72>}, {pipeline_mode = #tpu.pipeline_mode<synchronous>, transform_indices = @transform_12, window_bounds = array<i64: 8, 1>}, {pipeline_mode = #tpu.pipeline_mode<synchronous>, transform_indices = @transform_13, window_bounds = array<i64: 8, 1>}, {pipeline_mode = #tpu.pipeline_mode<synchronous>, transform_indices = @transform_14, window_bounds = array<i64: 8, 72>}, {pipeline_mode = #tpu.pipeline_mode<synchronous>, transform_indices = @transform_15, window_bounds = array<i64: 8, 1>}, {pipeline_mode = #tpu.pipeline_mode<synchronous>, transform_indices = @transform_16, window_bounds = array<i64: 8, 1>}, {transform_indices = @transform_17, window_bounds = array<i64: 1, 8, 128>}]} {
    %c0 = arith.constant 0 : index
    %c0_0 = arith.constant 0 : index
    %0 = vector.load %arg4[%c0, %c0_0] : memref<128x2xf32, #tpu.memory_space<vmem>>, vector<128x2xf32>
    %c0_1 = arith.constant 0 : index
    %c0_2 = arith.constant 0 : index
    %1 = vector.load %arg5[%c0_1, %c0_2] : memref<2x128xf32, #tpu.memory_space<vmem>>, vector<2x128xf32>
    %c0_3 = arith.constant 0 : index
    %c0_4 = arith.constant 0 : index
    %c0_5 = arith.constant 0 : index
    %2 = vector.load %arg3[%c0_3, %c0_4, %c0_5] : memref<9x1x128xf32, #tpu.memory_space<vmem>>, vector<1x1x128xf32>
    %3 = vector.shape_cast %2 : vector<1x1x128xf32> to vector<1x128xf32>
    %c1 = arith.constant 1 : index
    %c0_6 = arith.constant 0 : index
    %c0_7 = arith.constant 0 : index
    %4 = vector.load %arg3[%c1, %c0_6, %c0_7] : memref<9x1x128xf32, #tpu.memory_space<vmem>>, vector<1x1x128xf32>
    %5 = vector.shape_cast %4 : vector<1x1x128xf32> to vector<1x128xf32>
    %c2 = arith.constant 2 : index
    %c0_8 = arith.constant 0 : index
    %c0_9 = arith.constant 0 : index
    %6 = vector.load %arg3[%c2, %c0_8, %c0_9] : memref<9x1x128xf32, #tpu.memory_space<vmem>>, vector<1x1x128xf32>
    %7 = vector.shape_cast %6 : vector<1x1x128xf32> to vector<1x128xf32>
    %c3 = arith.constant 3 : index
    %c0_10 = arith.constant 0 : index
    %c0_11 = arith.constant 0 : index
    %8 = vector.load %arg3[%c3, %c0_10, %c0_11] : memref<9x1x128xf32, #tpu.memory_space<vmem>>, vector<1x1x128xf32>
    %9 = vector.shape_cast %8 : vector<1x1x128xf32> to vector<1x128xf32>
    %c5 = arith.constant 5 : index
    %c0_12 = arith.constant 0 : index
    %c0_13 = arith.constant 0 : index
    %10 = vector.load %arg3[%c5, %c0_12, %c0_13] : memref<9x1x128xf32, #tpu.memory_space<vmem>>, vector<1x1x128xf32>
    %11 = vector.shape_cast %10 : vector<1x1x128xf32> to vector<1x128xf32>
    %c6 = arith.constant 6 : index
    %c0_14 = arith.constant 0 : index
    %c0_15 = arith.constant 0 : index
    %12 = vector.load %arg3[%c6, %c0_14, %c0_15] : memref<9x1x128xf32, #tpu.memory_space<vmem>>, vector<1x1x128xf32>
    %13 = vector.shape_cast %12 : vector<1x1x128xf32> to vector<1x128xf32>
    %c7 = arith.constant 7 : index
    %c0_16 = arith.constant 0 : index
    %c0_17 = arith.constant 0 : index
    %14 = vector.load %arg3[%c7, %c0_16, %c0_17] : memref<9x1x128xf32, #tpu.memory_space<vmem>>, vector<1x1x128xf32>
    %15 = vector.shape_cast %14 : vector<1x1x128xf32> to vector<1x128xf32>
    %c8 = arith.constant 8 : index
    %c0_18 = arith.constant 0 : index
    %c0_19 = arith.constant 0 : index
    %16 = vector.load %arg3[%c8, %c0_18, %c0_19] : memref<9x1x128xf32, #tpu.memory_space<vmem>>, vector<1x1x128xf32>
    %17 = vector.shape_cast %16 : vector<1x1x128xf32> to vector<1x128xf32>
    %c0_20 = arith.constant 0 : index
    %c0_21 = arith.constant 0 : index
    %c0_22 = arith.constant 0 : index
    %c0_23 = arith.constant 0 : index
    %18 = vector.load %arg1[%c0_20, %c0_21, %c0_22, %c0_23] : memref<1x4x8x128xf32, #tpu.memory_space<vmem>>, vector<1x1x8x128xf32>
    %19 = vector.shape_cast %18 : vector<1x1x8x128xf32> to vector<8x128xf32>
    %c0_24 = arith.constant 0 : index
    %c1_25 = arith.constant 1 : index
    %c0_26 = arith.constant 0 : index
    %c0_27 = arith.constant 0 : index
    %20 = vector.load %arg1[%c0_24, %c1_25, %c0_26, %c0_27] : memref<1x4x8x128xf32, #tpu.memory_space<vmem>>, vector<1x1x8x128xf32>
    %21 = vector.shape_cast %20 : vector<1x1x8x128xf32> to vector<8x128xf32>
    %22 = arith.maximumf %19, %21 : vector<8x128xf32>
    %c0_28 = arith.constant 0 : index
    %c2_29 = arith.constant 2 : index
    %c0_30 = arith.constant 0 : index
    %c0_31 = arith.constant 0 : index
    %23 = vector.load %arg1[%c0_28, %c2_29, %c0_30, %c0_31] : memref<1x4x8x128xf32, #tpu.memory_space<vmem>>, vector<1x1x8x128xf32>
    %24 = vector.shape_cast %23 : vector<1x1x8x128xf32> to vector<8x128xf32>
    %c0_32 = arith.constant 0 : index
    %c3_33 = arith.constant 3 : index
    %c0_34 = arith.constant 0 : index
    %c0_35 = arith.constant 0 : index
    %25 = vector.load %arg1[%c0_32, %c3_33, %c0_34, %c0_35] : memref<1x4x8x128xf32, #tpu.memory_space<vmem>>, vector<1x1x8x128xf32>
    %26 = vector.shape_cast %25 : vector<1x1x8x128xf32> to vector<8x128xf32>
    %27 = arith.maximumf %24, %26 : vector<8x128xf32>
    %28 = arith.maximumf %22, %27 : vector<8x128xf32>
    %c9_i32 = arith.constant 9 : i32
    %29 = tpu.dynamic_rotate %28 by %c9_i32 dim 1 : vector<8x128xf32>, i32 -> vector<8x128xf32>
    %30 = vector.broadcast %3 : vector<1x128xf32> to vector<8x128xf32>
    %31 = arith.mulf %29, %30 : vector<8x128xf32>
    %c8_i32 = arith.constant 8 : i32
    %32 = tpu.dynamic_rotate %28 by %c8_i32 dim 1 : vector<8x128xf32>, i32 -> vector<8x128xf32>
    %33 = vector.broadcast %5 : vector<1x128xf32> to vector<8x128xf32>
    %34 = arith.mulf %32, %33 : vector<8x128xf32>
    %c7_i32 = arith.constant 7 : i32
    %35 = tpu.dynamic_rotate %28 by %c7_i32 dim 1 : vector<8x128xf32>, i32 -> vector<8x128xf32>
    %36 = vector.broadcast %7 : vector<1x128xf32> to vector<8x128xf32>
    %37 = arith.mulf %35, %36 : vector<8x128xf32>
    %c1_i32 = arith.constant 1 : i32
    %38 = tpu.dynamic_rotate %28 by %c1_i32 dim 1 : vector<8x128xf32>, i32 -> vector<8x128xf32>
    %39 = vector.broadcast %9 : vector<1x128xf32> to vector<8x128xf32>
    %40 = arith.mulf %38, %39 : vector<8x128xf32>
    %c127_i32 = arith.constant 127 : i32
    %41 = tpu.dynamic_rotate %28 by %c127_i32 dim 1 : vector<8x128xf32>, i32 -> vector<8x128xf32>
    %42 = vector.broadcast %11 : vector<1x128xf32> to vector<8x128xf32>
    %43 = arith.mulf %41, %42 : vector<8x128xf32>
    %c121_i32 = arith.constant 121 : i32
    %44 = tpu.dynamic_rotate %28 by %c121_i32 dim 1 : vector<8x128xf32>, i32 -> vector<8x128xf32>
    %45 = vector.broadcast %13 : vector<1x128xf32> to vector<8x128xf32>
    %46 = arith.mulf %44, %45 : vector<8x128xf32>
    %c120_i32 = arith.constant 120 : i32
    %47 = tpu.dynamic_rotate %28 by %c120_i32 dim 1 : vector<8x128xf32>, i32 -> vector<8x128xf32>
    %48 = vector.broadcast %15 : vector<1x128xf32> to vector<8x128xf32>
    %49 = arith.mulf %47, %48 : vector<8x128xf32>
    %c119_i32 = arith.constant 119 : i32
    %50 = tpu.dynamic_rotate %28 by %c119_i32 dim 1 : vector<8x128xf32>, i32 -> vector<8x128xf32>
    %51 = vector.broadcast %17 : vector<1x128xf32> to vector<8x128xf32>
    %52 = arith.mulf %50, %51 : vector<8x128xf32>
    %53 = tpu.concatenate %31, %34, %37, %40, %28, %43, %46, %49, %52 in 0 : vector<8x128xf32>, vector<8x128xf32>, vector<8x128xf32>, vector<8x128xf32>, vector<8x128xf32>, vector<8x128xf32>, vector<8x128xf32>, vector<8x128xf32>, vector<8x128xf32> -> vector<72x128xf32>
    %c0_36 = arith.constant 0 : index
    %c0_37 = arith.constant 0 : index
    %54 = vector.load %arg6[%c0_36, %c0_37] : memref<8x72xf32, #tpu.memory_space<vmem>>, vector<8x72xf32>
    %cst = arith.constant dense<0.000000e+00> : vector<8x128xf32>
    %55 = tpu.matmul %54, %53, %cst {dimension_numbers = #tpu.dot_dimension_numbers<[1], [0], [0], [1], [0, 0, 1, 1], [], []>} : vector<8x72xf32>, vector<72x128xf32>, vector<8x128xf32> -> vector<8x128xf32>
    %cst_38 = arith.constant dense<0.000000e+00> : vector<8x2xf32>
    %56 = tpu.matmul %55, %0, %cst_38 {dimension_numbers = #tpu.dot_dimension_numbers<[1], [0], [0], [1], [0, 0, 1, 1], [], []>} : vector<8x128xf32>, vector<128x2xf32>, vector<8x2xf32> -> vector<8x2xf32>
    %57 = arith.mulf %55, %55 : vector<8x128xf32>
    %cst_39 = arith.constant dense<0.000000e+00> : vector<8x2xf32>
    %58 = tpu.matmul %57, %0, %cst_39 {dimension_numbers = #tpu.dot_dimension_numbers<[1], [0], [0], [1], [0, 0, 1, 1], [], []>} : vector<8x128xf32>, vector<128x2xf32>, vector<8x2xf32> -> vector<8x2xf32>
    %cst_40 = arith.constant dense<0.000000e+00> : vector<2xf32>
    %59 = vector.multi_reduction <add>, %56, %cst_40 [0] : vector<8x2xf32> to vector<2xf32>
    %60 = vector.shape_cast %59 : vector<2xf32> to vector<1x2xf32>
    %cst_41 = arith.constant 3.906250e-03 : f32
    %61 = vector.broadcast %cst_41 : f32 to vector<1x2xf32>
    %62 = arith.mulf %60, %61 : vector<1x2xf32>
    %cst_42 = arith.constant dense<0.000000e+00> : vector<2xf32>
    %63 = vector.multi_reduction <add>, %58, %cst_42 [0] : vector<8x2xf32> to vector<2xf32>
    %64 = vector.shape_cast %63 : vector<2xf32> to vector<1x2xf32>
    %cst_43 = arith.constant 3.906250e-03 : f32
    %65 = vector.broadcast %cst_43 : f32 to vector<1x2xf32>
    %66 = arith.mulf %64, %65 : vector<1x2xf32>
    %67 = arith.mulf %62, %62 : vector<1x2xf32>
    %68 = arith.subf %66, %67 : vector<1x2xf32>
    %cst_44 = arith.constant 9.99999974E-6 : f32
    %69 = vector.broadcast %cst_44 : f32 to vector<1x2xf32>
    %70 = arith.addf %68, %69 : vector<1x2xf32>
    %71 = math.rsqrt %70 : vector<1x2xf32>
    %cst_45 = arith.constant dense<0.000000e+00> : vector<1x128xf32>
    %72 = tpu.matmul %62, %1, %cst_45 {dimension_numbers = #tpu.dot_dimension_numbers<[1], [0], [0], [1], [0, 0, 1, 1], [], []>} : vector<1x2xf32>, vector<2x128xf32>, vector<1x128xf32> -> vector<1x128xf32>
    %cst_46 = arith.constant dense<0.000000e+00> : vector<1x128xf32>
    %73 = tpu.matmul %71, %1, %cst_46 {dimension_numbers = #tpu.dot_dimension_numbers<[1], [0], [0], [1], [0, 0, 1, 1], [], []>} : vector<1x2xf32>, vector<2x128xf32>, vector<1x128xf32> -> vector<1x128xf32>
    %74 = vector.broadcast %72 : vector<1x128xf32> to vector<8x128xf32>
    %75 = arith.subf %55, %74 : vector<8x128xf32>
    %c0_47 = arith.constant 0 : index
    %c0_48 = arith.constant 0 : index
    %76 = vector.load %arg7[%c0_47, %c0_48] : memref<8x1xf32, #tpu.memory_space<vmem>>, vector<8x1xf32>
    %77 = vector.broadcast %73 : vector<1x128xf32> to vector<8x128xf32>
    %78 = vector.broadcast %76 : vector<8x1xf32> to vector<8x128xf32>
    %79 = arith.mulf %77, %78 : vector<8x128xf32>
    %80 = arith.mulf %75, %79 : vector<8x128xf32>
    %c0_49 = arith.constant 0 : index
    %c0_50 = arith.constant 0 : index
    %81 = vector.load %arg8[%c0_49, %c0_50] : memref<8x1xf32, #tpu.memory_space<vmem>>, vector<8x1xf32>
    %82 = vector.broadcast %81 : vector<8x1xf32> to vector<8x128xf32>
    %83 = arith.addf %80, %82 : vector<8x128xf32>
    %cst_51 = arith.constant 5.000000e-01 : f32
    %84 = vector.broadcast %cst_51 : f32 to vector<8x128xf32>
    %85 = arith.mulf %84, %83 : vector<8x128xf32>
    %cst_52 = arith.constant 0.707106769 : f32
    %86 = vector.broadcast %cst_52 : f32 to vector<8x128xf32>
    %87 = arith.mulf %83, %86 : vector<8x128xf32>
    %cst_53 = arith.constant 0.000000e+00 : f32
    %88 = vector.broadcast %cst_53 : f32 to vector<8x128xf32>
    %89 = arith.cmpf oge, %87, %88 : vector<8x128xf32>
    %cst_54 = arith.constant 1.000000e+00 : f32
    %cst_55 = arith.constant -1.000000e+00 : f32
    %90 = vector.broadcast %cst_54 : f32 to vector<8x128xf32>
    %91 = vector.broadcast %cst_55 : f32 to vector<8x128xf32>
    %92 = arith.select %89, %90, %91 : vector<8x128xi1>, vector<8x128xf32>
    %93 = math.absf %87 : vector<8x128xf32>
    %cst_56 = arith.constant 0.327591091 : f32
    %94 = vector.broadcast %cst_56 : f32 to vector<8x128xf32>
    %95 = arith.mulf %94, %93 : vector<8x128xf32>
    %cst_57 = arith.constant 1.000000e+00 : f32
    %96 = vector.broadcast %cst_57 : f32 to vector<8x128xf32>
    %97 = arith.addf %96, %95 : vector<8x128xf32>
    %cst_58 = arith.constant 1.000000e+00 : f32
    %98 = vector.broadcast %cst_58 : f32 to vector<8x128xf32>
    %99 = arith.divf %98, %97 : vector<8x128xf32>
    %cst_59 = arith.constant 1.06140542 : f32
    %100 = vector.broadcast %cst_59 : f32 to vector<8x128xf32>
    %101 = arith.mulf %100, %99 : vector<8x128xf32>
    %cst_60 = arith.constant -1.45315206 : f32
    %102 = vector.broadcast %cst_60 : f32 to vector<8x128xf32>
    %103 = arith.addf %101, %102 : vector<8x128xf32>
    %104 = arith.mulf %103, %99 : vector<8x128xf32>
    %cst_61 = arith.constant 1.42141378 : f32
    %105 = vector.broadcast %cst_61 : f32 to vector<8x128xf32>
    %106 = arith.addf %104, %105 : vector<8x128xf32>
    %107 = arith.mulf %106, %99 : vector<8x128xf32>
    %cst_62 = arith.constant -0.284496725 : f32
    %108 = vector.broadcast %cst_62 : f32 to vector<8x128xf32>
    %109 = arith.addf %107, %108 : vector<8x128xf32>
    %110 = arith.mulf %109, %99 : vector<8x128xf32>
    %cst_63 = arith.constant 0.254829586 : f32
    %111 = vector.broadcast %cst_63 : f32 to vector<8x128xf32>
    %112 = arith.addf %110, %111 : vector<8x128xf32>
    %113 = arith.mulf %112, %99 : vector<8x128xf32>
    %cst_64 = arith.constant 0.000000e+00 : f32
    %114 = vector.broadcast %cst_64 : f32 to vector<8x128xf32>
    %115 = arith.subf %114, %93 : vector<8x128xf32>
    %116 = arith.mulf %115, %93 : vector<8x128xf32>
    %117 = math.exp %116 : vector<8x128xf32>
    %118 = arith.mulf %113, %117 : vector<8x128xf32>
    %cst_65 = arith.constant 1.000000e+00 : f32
    %119 = vector.broadcast %cst_65 : f32 to vector<8x128xf32>
    %120 = arith.subf %119, %118 : vector<8x128xf32>
    %121 = arith.mulf %92, %120 : vector<8x128xf32>
    %cst_66 = arith.constant 1.000000e+00 : f32
    %122 = vector.broadcast %cst_66 : f32 to vector<8x128xf32>
    %123 = arith.addf %122, %121 : vector<8x128xf32>
    %124 = arith.mulf %85, %123 : vector<8x128xf32>
    %c9_i32_67 = arith.constant 9 : i32
    %125 = tpu.dynamic_rotate %124 by %c9_i32_67 dim 1 : vector<8x128xf32>, i32 -> vector<8x128xf32>
    %126 = vector.broadcast %3 : vector<1x128xf32> to vector<8x128xf32>
    %127 = arith.mulf %125, %126 : vector<8x128xf32>
    %c8_i32_68 = arith.constant 8 : i32
    %128 = tpu.dynamic_rotate %124 by %c8_i32_68 dim 1 : vector<8x128xf32>, i32 -> vector<8x128xf32>
    %129 = vector.broadcast %5 : vector<1x128xf32> to vector<8x128xf32>
    %130 = arith.mulf %128, %129 : vector<8x128xf32>
    %c7_i32_69 = arith.constant 7 : i32
    %131 = tpu.dynamic_rotate %124 by %c7_i32_69 dim 1 : vector<8x128xf32>, i32 -> vector<8x128xf32>
    %132 = vector.broadcast %7 : vector<1x128xf32> to vector<8x128xf32>
    %133 = arith.mulf %131, %132 : vector<8x128xf32>
    %c1_i32_70 = arith.constant 1 : i32
    %134 = tpu.dynamic_rotate %124 by %c1_i32_70 dim 1 : vector<8x128xf32>, i32 -> vector<8x128xf32>
    %135 = vector.broadcast %9 : vector<1x128xf32> to vector<8x128xf32>
    %136 = arith.mulf %134, %135 : vector<8x128xf32>
    %c127_i32_71 = arith.constant 127 : i32
    %137 = tpu.dynamic_rotate %124 by %c127_i32_71 dim 1 : vector<8x128xf32>, i32 -> vector<8x128xf32>
    %138 = vector.broadcast %11 : vector<1x128xf32> to vector<8x128xf32>
    %139 = arith.mulf %137, %138 : vector<8x128xf32>
    %c121_i32_72 = arith.constant 121 : i32
    %140 = tpu.dynamic_rotate %124 by %c121_i32_72 dim 1 : vector<8x128xf32>, i32 -> vector<8x128xf32>
    %141 = vector.broadcast %13 : vector<1x128xf32> to vector<8x128xf32>
    %142 = arith.mulf %140, %141 : vector<8x128xf32>
    %c120_i32_73 = arith.constant 120 : i32
    %143 = tpu.dynamic_rotate %124 by %c120_i32_73 dim 1 : vector<8x128xf32>, i32 -> vector<8x128xf32>
    %144 = vector.broadcast %15 : vector<1x128xf32> to vector<8x128xf32>
    %145 = arith.mulf %143, %144 : vector<8x128xf32>
    %c119_i32_74 = arith.constant 119 : i32
    %146 = tpu.dynamic_rotate %124 by %c119_i32_74 dim 1 : vector<8x128xf32>, i32 -> vector<8x128xf32>
    %147 = vector.broadcast %17 : vector<1x128xf32> to vector<8x128xf32>
    %148 = arith.mulf %146, %147 : vector<8x128xf32>
    %149 = tpu.concatenate %127, %130, %133, %136, %124, %139, %142, %145, %148 in 0 : vector<8x128xf32>, vector<8x128xf32>, vector<8x128xf32>, vector<8x128xf32>, vector<8x128xf32>, vector<8x128xf32>, vector<8x128xf32>, vector<8x128xf32>, vector<8x128xf32> -> vector<72x128xf32>
    %c0_75 = arith.constant 0 : index
    %c0_76 = arith.constant 0 : index
    %150 = vector.load %arg9[%c0_75, %c0_76] : memref<8x72xf32, #tpu.memory_space<vmem>>, vector<8x72xf32>
    %cst_77 = arith.constant dense<0.000000e+00> : vector<8x128xf32>
    %151 = tpu.matmul %150, %149, %cst_77 {dimension_numbers = #tpu.dot_dimension_numbers<[1], [0], [0], [1], [0, 0, 1, 1], [], []>} : vector<8x72xf32>, vector<72x128xf32>, vector<8x128xf32> -> vector<8x128xf32>
    %cst_78 = arith.constant dense<0.000000e+00> : vector<8x2xf32>
    %152 = tpu.matmul %151, %0, %cst_78 {dimension_numbers = #tpu.dot_dimension_numbers<[1], [0], [0], [1], [0, 0, 1, 1], [], []>} : vector<8x128xf32>, vector<128x2xf32>, vector<8x2xf32> -> vector<8x2xf32>
    %153 = arith.mulf %151, %151 : vector<8x128xf32>
    %cst_79 = arith.constant dense<0.000000e+00> : vector<8x2xf32>
    %154 = tpu.matmul %153, %0, %cst_79 {dimension_numbers = #tpu.dot_dimension_numbers<[1], [0], [0], [1], [0, 0, 1, 1], [], []>} : vector<8x128xf32>, vector<128x2xf32>, vector<8x2xf32> -> vector<8x2xf32>
    %cst_80 = arith.constant dense<0.000000e+00> : vector<2xf32>
    %155 = vector.multi_reduction <add>, %152, %cst_80 [0] : vector<8x2xf32> to vector<2xf32>
    %156 = vector.shape_cast %155 : vector<2xf32> to vector<1x2xf32>
    %cst_81 = arith.constant 3.906250e-03 : f32
    %157 = vector.broadcast %cst_81 : f32 to vector<1x2xf32>
    %158 = arith.mulf %156, %157 : vector<1x2xf32>
    %cst_82 = arith.constant dense<0.000000e+00> : vector<2xf32>
    %159 = vector.multi_reduction <add>, %154, %cst_82 [0] : vector<8x2xf32> to vector<2xf32>
    %160 = vector.shape_cast %159 : vector<2xf32> to vector<1x2xf32>
    %cst_83 = arith.constant 3.906250e-03 : f32
    %161 = vector.broadcast %cst_83 : f32 to vector<1x2xf32>
    %162 = arith.mulf %160, %161 : vector<1x2xf32>
    %163 = arith.mulf %158, %158 : vector<1x2xf32>
    %164 = arith.subf %162, %163 : vector<1x2xf32>
    %cst_84 = arith.constant 9.99999974E-6 : f32
    %165 = vector.broadcast %cst_84 : f32 to vector<1x2xf32>
    %166 = arith.addf %164, %165 : vector<1x2xf32>
    %167 = math.rsqrt %166 : vector<1x2xf32>
    %cst_85 = arith.constant dense<0.000000e+00> : vector<1x128xf32>
    %168 = tpu.matmul %158, %1, %cst_85 {dimension_numbers = #tpu.dot_dimension_numbers<[1], [0], [0], [1], [0, 0, 1, 1], [], []>} : vector<1x2xf32>, vector<2x128xf32>, vector<1x128xf32> -> vector<1x128xf32>
    %cst_86 = arith.constant dense<0.000000e+00> : vector<1x128xf32>
    %169 = tpu.matmul %167, %1, %cst_86 {dimension_numbers = #tpu.dot_dimension_numbers<[1], [0], [0], [1], [0, 0, 1, 1], [], []>} : vector<1x2xf32>, vector<2x128xf32>, vector<1x128xf32> -> vector<1x128xf32>
    %170 = vector.broadcast %168 : vector<1x128xf32> to vector<8x128xf32>
    %171 = arith.subf %151, %170 : vector<8x128xf32>
    %c0_87 = arith.constant 0 : index
    %c0_88 = arith.constant 0 : index
    %172 = vector.load %arg10[%c0_87, %c0_88] : memref<8x1xf32, #tpu.memory_space<vmem>>, vector<8x1xf32>
    %173 = vector.broadcast %169 : vector<1x128xf32> to vector<8x128xf32>
    %174 = vector.broadcast %172 : vector<8x1xf32> to vector<8x128xf32>
    %175 = arith.mulf %173, %174 : vector<8x128xf32>
    %176 = arith.mulf %171, %175 : vector<8x128xf32>
    %c0_89 = arith.constant 0 : index
    %c0_90 = arith.constant 0 : index
    %177 = vector.load %arg11[%c0_89, %c0_90] : memref<8x1xf32, #tpu.memory_space<vmem>>, vector<8x1xf32>
    %178 = vector.broadcast %177 : vector<8x1xf32> to vector<8x128xf32>
    %179 = arith.addf %176, %178 : vector<8x128xf32>
    %180 = arith.addf %28, %179 : vector<8x128xf32>
    %cst_91 = arith.constant 5.000000e-01 : f32
    %181 = vector.broadcast %cst_91 : f32 to vector<8x128xf32>
    %182 = arith.mulf %181, %180 : vector<8x128xf32>
    %cst_92 = arith.constant 0.707106769 : f32
    %183 = vector.broadcast %cst_92 : f32 to vector<8x128xf32>
    %184 = arith.mulf %180, %183 : vector<8x128xf32>
    %cst_93 = arith.constant 0.000000e+00 : f32
    %185 = vector.broadcast %cst_93 : f32 to vector<8x128xf32>
    %186 = arith.cmpf oge, %184, %185 : vector<8x128xf32>
    %cst_94 = arith.constant 1.000000e+00 : f32
    %cst_95 = arith.constant -1.000000e+00 : f32
    %187 = vector.broadcast %cst_94 : f32 to vector<8x128xf32>
    %188 = vector.broadcast %cst_95 : f32 to vector<8x128xf32>
    %189 = arith.select %186, %187, %188 : vector<8x128xi1>, vector<8x128xf32>
    %190 = math.absf %184 : vector<8x128xf32>
    %cst_96 = arith.constant 0.327591091 : f32
    %191 = vector.broadcast %cst_96 : f32 to vector<8x128xf32>
    %192 = arith.mulf %191, %190 : vector<8x128xf32>
    %cst_97 = arith.constant 1.000000e+00 : f32
    %193 = vector.broadcast %cst_97 : f32 to vector<8x128xf32>
    %194 = arith.addf %193, %192 : vector<8x128xf32>
    %cst_98 = arith.constant 1.000000e+00 : f32
    %195 = vector.broadcast %cst_98 : f32 to vector<8x128xf32>
    %196 = arith.divf %195, %194 : vector<8x128xf32>
    %cst_99 = arith.constant 1.06140542 : f32
    %197 = vector.broadcast %cst_99 : f32 to vector<8x128xf32>
    %198 = arith.mulf %197, %196 : vector<8x128xf32>
    %cst_100 = arith.constant -1.45315206 : f32
    %199 = vector.broadcast %cst_100 : f32 to vector<8x128xf32>
    %200 = arith.addf %198, %199 : vector<8x128xf32>
    %201 = arith.mulf %200, %196 : vector<8x128xf32>
    %cst_101 = arith.constant 1.42141378 : f32
    %202 = vector.broadcast %cst_101 : f32 to vector<8x128xf32>
    %203 = arith.addf %201, %202 : vector<8x128xf32>
    %204 = arith.mulf %203, %196 : vector<8x128xf32>
    %cst_102 = arith.constant -0.284496725 : f32
    %205 = vector.broadcast %cst_102 : f32 to vector<8x128xf32>
    %206 = arith.addf %204, %205 : vector<8x128xf32>
    %207 = arith.mulf %206, %196 : vector<8x128xf32>
    %cst_103 = arith.constant 0.254829586 : f32
    %208 = vector.broadcast %cst_103 : f32 to vector<8x128xf32>
    %209 = arith.addf %207, %208 : vector<8x128xf32>
    %210 = arith.mulf %209, %196 : vector<8x128xf32>
    %cst_104 = arith.constant 0.000000e+00 : f32
    %211 = vector.broadcast %cst_104 : f32 to vector<8x128xf32>
    %212 = arith.subf %211, %190 : vector<8x128xf32>
    %213 = arith.mulf %212, %190 : vector<8x128xf32>
    %214 = math.exp %213 : vector<8x128xf32>
    %215 = arith.mulf %210, %214 : vector<8x128xf32>
    %cst_105 = arith.constant 1.000000e+00 : f32
    %216 = vector.broadcast %cst_105 : f32 to vector<8x128xf32>
    %217 = arith.subf %216, %215 : vector<8x128xf32>
    %218 = arith.mulf %189, %217 : vector<8x128xf32>
    %cst_106 = arith.constant 1.000000e+00 : f32
    %219 = vector.broadcast %cst_106 : f32 to vector<8x128xf32>
    %220 = arith.addf %219, %218 : vector<8x128xf32>
    %221 = arith.mulf %182, %220 : vector<8x128xf32>
    %c9_i32_107 = arith.constant 9 : i32
    %222 = tpu.dynamic_rotate %221 by %c9_i32_107 dim 1 : vector<8x128xf32>, i32 -> vector<8x128xf32>
    %223 = vector.broadcast %3 : vector<1x128xf32> to vector<8x128xf32>
    %224 = arith.mulf %222, %223 : vector<8x128xf32>
    %c8_i32_108 = arith.constant 8 : i32
    %225 = tpu.dynamic_rotate %221 by %c8_i32_108 dim 1 : vector<8x128xf32>, i32 -> vector<8x128xf32>
    %226 = vector.broadcast %5 : vector<1x128xf32> to vector<8x128xf32>
    %227 = arith.mulf %225, %226 : vector<8x128xf32>
    %c7_i32_109 = arith.constant 7 : i32
    %228 = tpu.dynamic_rotate %221 by %c7_i32_109 dim 1 : vector<8x128xf32>, i32 -> vector<8x128xf32>
    %229 = vector.broadcast %7 : vector<1x128xf32> to vector<8x128xf32>
    %230 = arith.mulf %228, %229 : vector<8x128xf32>
    %c1_i32_110 = arith.constant 1 : i32
    %231 = tpu.dynamic_rotate %221 by %c1_i32_110 dim 1 : vector<8x128xf32>, i32 -> vector<8x128xf32>
    %232 = vector.broadcast %9 : vector<1x128xf32> to vector<8x128xf32>
    %233 = arith.mulf %231, %232 : vector<8x128xf32>
    %c127_i32_111 = arith.constant 127 : i32
    %234 = tpu.dynamic_rotate %221 by %c127_i32_111 dim 1 : vector<8x128xf32>, i32 -> vector<8x128xf32>
    %235 = vector.broadcast %11 : vector<1x128xf32> to vector<8x128xf32>
    %236 = arith.mulf %234, %235 : vector<8x128xf32>
    %c121_i32_112 = arith.constant 121 : i32
    %237 = tpu.dynamic_rotate %221 by %c121_i32_112 dim 1 : vector<8x128xf32>, i32 -> vector<8x128xf32>
    %238 = vector.broadcast %13 : vector<1x128xf32> to vector<8x128xf32>
    %239 = arith.mulf %237, %238 : vector<8x128xf32>
    %c120_i32_113 = arith.constant 120 : i32
    %240 = tpu.dynamic_rotate %221 by %c120_i32_113 dim 1 : vector<8x128xf32>, i32 -> vector<8x128xf32>
    %241 = vector.broadcast %15 : vector<1x128xf32> to vector<8x128xf32>
    %242 = arith.mulf %240, %241 : vector<8x128xf32>
    %c119_i32_114 = arith.constant 119 : i32
    %243 = tpu.dynamic_rotate %221 by %c119_i32_114 dim 1 : vector<8x128xf32>, i32 -> vector<8x128xf32>
    %244 = vector.broadcast %17 : vector<1x128xf32> to vector<8x128xf32>
    %245 = arith.mulf %243, %244 : vector<8x128xf32>
    %246 = tpu.concatenate %224, %227, %230, %233, %221, %236, %239, %242, %245 in 0 : vector<8x128xf32>, vector<8x128xf32>, vector<8x128xf32>, vector<8x128xf32>, vector<8x128xf32>, vector<8x128xf32>, vector<8x128xf32>, vector<8x128xf32>, vector<8x128xf32> -> vector<72x128xf32>
    %c0_115 = arith.constant 0 : index
    %c0_116 = arith.constant 0 : index
    %247 = vector.load %arg12[%c0_115, %c0_116] : memref<8x72xf32, #tpu.memory_space<vmem>>, vector<8x72xf32>
    %cst_117 = arith.constant dense<0.000000e+00> : vector<8x128xf32>
    %248 = tpu.matmul %247, %246, %cst_117 {dimension_numbers = #tpu.dot_dimension_numbers<[1], [0], [0], [1], [0, 0, 1, 1], [], []>} : vector<8x72xf32>, vector<72x128xf32>, vector<8x128xf32> -> vector<8x128xf32>
    %cst_118 = arith.constant dense<0.000000e+00> : vector<8x2xf32>
    %249 = tpu.matmul %248, %0, %cst_118 {dimension_numbers = #tpu.dot_dimension_numbers<[1], [0], [0], [1], [0, 0, 1, 1], [], []>} : vector<8x128xf32>, vector<128x2xf32>, vector<8x2xf32> -> vector<8x2xf32>
    %250 = arith.mulf %248, %248 : vector<8x128xf32>
    %cst_119 = arith.constant dense<0.000000e+00> : vector<8x2xf32>
    %251 = tpu.matmul %250, %0, %cst_119 {dimension_numbers = #tpu.dot_dimension_numbers<[1], [0], [0], [1], [0, 0, 1, 1], [], []>} : vector<8x128xf32>, vector<128x2xf32>, vector<8x2xf32> -> vector<8x2xf32>
    %cst_120 = arith.constant dense<0.000000e+00> : vector<2xf32>
    %252 = vector.multi_reduction <add>, %249, %cst_120 [0] : vector<8x2xf32> to vector<2xf32>
    %253 = vector.shape_cast %252 : vector<2xf32> to vector<1x2xf32>
    %cst_121 = arith.constant 0.001953125 : f32
    %254 = vector.broadcast %cst_121 : f32 to vector<1x2xf32>
    %255 = arith.mulf %253, %254 : vector<1x2xf32>
    %cst_122 = arith.constant dense<0.000000e+00> : vector<2xf32>
    %256 = vector.multi_reduction <add>, %251, %cst_122 [0] : vector<8x2xf32> to vector<2xf32>
    %257 = vector.shape_cast %256 : vector<2xf32> to vector<1x2xf32>
    %cst_123 = arith.constant 0.001953125 : f32
    %258 = vector.broadcast %cst_123 : f32 to vector<1x2xf32>
    %259 = arith.mulf %257, %258 : vector<1x2xf32>
    %260 = arith.mulf %255, %255 : vector<1x2xf32>
    %261 = arith.subf %259, %260 : vector<1x2xf32>
    %cst_124 = arith.constant 9.99999974E-6 : f32
    %262 = vector.broadcast %cst_124 : f32 to vector<1x2xf32>
    %263 = arith.addf %261, %262 : vector<1x2xf32>
    %264 = math.rsqrt %263 : vector<1x2xf32>
    %cst_125 = arith.constant dense<0.000000e+00> : vector<1x128xf32>
    %265 = tpu.matmul %255, %1, %cst_125 {dimension_numbers = #tpu.dot_dimension_numbers<[1], [0], [0], [1], [0, 0, 1, 1], [], []>} : vector<1x2xf32>, vector<2x128xf32>, vector<1x128xf32> -> vector<1x128xf32>
    %cst_126 = arith.constant dense<0.000000e+00> : vector<1x128xf32>
    %266 = tpu.matmul %264, %1, %cst_126 {dimension_numbers = #tpu.dot_dimension_numbers<[1], [0], [0], [1], [0, 0, 1, 1], [], []>} : vector<1x2xf32>, vector<2x128xf32>, vector<1x128xf32> -> vector<1x128xf32>
    %267 = vector.broadcast %265 : vector<1x128xf32> to vector<8x128xf32>
    %268 = arith.subf %248, %267 : vector<8x128xf32>
    %c0_127 = arith.constant 0 : index
    %c0_128 = arith.constant 0 : index
    %269 = vector.load %arg13[%c0_127, %c0_128] : memref<8x1xf32, #tpu.memory_space<vmem>>, vector<8x1xf32>
    %270 = vector.broadcast %266 : vector<1x128xf32> to vector<8x128xf32>
    %271 = vector.broadcast %269 : vector<8x1xf32> to vector<8x128xf32>
    %272 = arith.mulf %270, %271 : vector<8x128xf32>
    %273 = arith.mulf %268, %272 : vector<8x128xf32>
    %c0_129 = arith.constant 0 : index
    %c0_130 = arith.constant 0 : index
    %274 = vector.load %arg14[%c0_129, %c0_130] : memref<8x1xf32, #tpu.memory_space<vmem>>, vector<8x1xf32>
    %275 = vector.broadcast %274 : vector<8x1xf32> to vector<8x128xf32>
    %276 = arith.addf %273, %275 : vector<8x128xf32>
    %cst_131 = arith.constant 5.000000e-01 : f32
    %277 = vector.broadcast %cst_131 : f32 to vector<8x128xf32>
    %278 = arith.mulf %277, %276 : vector<8x128xf32>
    %cst_132 = arith.constant 0.707106769 : f32
    %279 = vector.broadcast %cst_132 : f32 to vector<8x128xf32>
    %280 = arith.mulf %276, %279 : vector<8x128xf32>
    %cst_133 = arith.constant 0.000000e+00 : f32
    %281 = vector.broadcast %cst_133 : f32 to vector<8x128xf32>
    %282 = arith.cmpf oge, %280, %281 : vector<8x128xf32>
    %cst_134 = arith.constant 1.000000e+00 : f32
    %cst_135 = arith.constant -1.000000e+00 : f32
    %283 = vector.broadcast %cst_134 : f32 to vector<8x128xf32>
    %284 = vector.broadcast %cst_135 : f32 to vector<8x128xf32>
    %285 = arith.select %282, %283, %284 : vector<8x128xi1>, vector<8x128xf32>
    %286 = math.absf %280 : vector<8x128xf32>
    %cst_136 = arith.constant 0.327591091 : f32
    %287 = vector.broadcast %cst_136 : f32 to vector<8x128xf32>
    %288 = arith.mulf %287, %286 : vector<8x128xf32>
    %cst_137 = arith.constant 1.000000e+00 : f32
    %289 = vector.broadcast %cst_137 : f32 to vector<8x128xf32>
    %290 = arith.addf %289, %288 : vector<8x128xf32>
    %cst_138 = arith.constant 1.000000e+00 : f32
    %291 = vector.broadcast %cst_138 : f32 to vector<8x128xf32>
    %292 = arith.divf %291, %290 : vector<8x128xf32>
    %cst_139 = arith.constant 1.06140542 : f32
    %293 = vector.broadcast %cst_139 : f32 to vector<8x128xf32>
    %294 = arith.mulf %293, %292 : vector<8x128xf32>
    %cst_140 = arith.constant -1.45315206 : f32
    %295 = vector.broadcast %cst_140 : f32 to vector<8x128xf32>
    %296 = arith.addf %294, %295 : vector<8x128xf32>
    %297 = arith.mulf %296, %292 : vector<8x128xf32>
    %cst_141 = arith.constant 1.42141378 : f32
    %298 = vector.broadcast %cst_141 : f32 to vector<8x128xf32>
    %299 = arith.addf %297, %298 : vector<8x128xf32>
    %300 = arith.mulf %299, %292 : vector<8x128xf32>
    %cst_142 = arith.constant -0.284496725 : f32
    %301 = vector.broadcast %cst_142 : f32 to vector<8x128xf32>
    %302 = arith.addf %300, %301 : vector<8x128xf32>
    %303 = arith.mulf %302, %292 : vector<8x128xf32>
    %cst_143 = arith.constant 0.254829586 : f32
    %304 = vector.broadcast %cst_143 : f32 to vector<8x128xf32>
    %305 = arith.addf %303, %304 : vector<8x128xf32>
    %306 = arith.mulf %305, %292 : vector<8x128xf32>
    %cst_144 = arith.constant 0.000000e+00 : f32
    %307 = vector.broadcast %cst_144 : f32 to vector<8x128xf32>
    %308 = arith.subf %307, %286 : vector<8x128xf32>
    %309 = arith.mulf %308, %286 : vector<8x128xf32>
    %310 = math.exp %309 : vector<8x128xf32>
    %311 = arith.mulf %306, %310 : vector<8x128xf32>
    %cst_145 = arith.constant 1.000000e+00 : f32
    %312 = vector.broadcast %cst_145 : f32 to vector<8x128xf32>
    %313 = arith.subf %312, %311 : vector<8x128xf32>
    %314 = arith.mulf %285, %313 : vector<8x128xf32>
    %cst_146 = arith.constant 1.000000e+00 : f32
    %315 = vector.broadcast %cst_146 : f32 to vector<8x128xf32>
    %316 = arith.addf %315, %314 : vector<8x128xf32>
    %317 = arith.mulf %278, %316 : vector<8x128xf32>
    %c9_i32_147 = arith.constant 9 : i32
    %318 = tpu.dynamic_rotate %317 by %c9_i32_147 dim 1 : vector<8x128xf32>, i32 -> vector<8x128xf32>
    %319 = vector.broadcast %3 : vector<1x128xf32> to vector<8x128xf32>
    %320 = arith.mulf %318, %319 : vector<8x128xf32>
    %c8_i32_148 = arith.constant 8 : i32
    %321 = tpu.dynamic_rotate %317 by %c8_i32_148 dim 1 : vector<8x128xf32>, i32 -> vector<8x128xf32>
    %322 = vector.broadcast %5 : vector<1x128xf32> to vector<8x128xf32>
    %323 = arith.mulf %321, %322 : vector<8x128xf32>
    %c7_i32_149 = arith.constant 7 : i32
    %324 = tpu.dynamic_rotate %317 by %c7_i32_149 dim 1 : vector<8x128xf32>, i32 -> vector<8x128xf32>
    %325 = vector.broadcast %7 : vector<1x128xf32> to vector<8x128xf32>
    %326 = arith.mulf %324, %325 : vector<8x128xf32>
    %c1_i32_150 = arith.constant 1 : i32
    %327 = tpu.dynamic_rotate %317 by %c1_i32_150 dim 1 : vector<8x128xf32>, i32 -> vector<8x128xf32>
    %328 = vector.broadcast %9 : vector<1x128xf32> to vector<8x128xf32>
    %329 = arith.mulf %327, %328 : vector<8x128xf32>
    %c127_i32_151 = arith.constant 127 : i32
    %330 = tpu.dynamic_rotate %317 by %c127_i32_151 dim 1 : vector<8x128xf32>, i32 -> vector<8x128xf32>
    %331 = vector.broadcast %11 : vector<1x128xf32> to vector<8x128xf32>
    %332 = arith.mulf %330, %331 : vector<8x128xf32>
    %c121_i32_152 = arith.constant 121 : i32
    %333 = tpu.dynamic_rotate %317 by %c121_i32_152 dim 1 : vector<8x128xf32>, i32 -> vector<8x128xf32>
    %334 = vector.broadcast %13 : vector<1x128xf32> to vector<8x128xf32>
    %335 = arith.mulf %333, %334 : vector<8x128xf32>
    %c120_i32_153 = arith.constant 120 : i32
    %336 = tpu.dynamic_rotate %317 by %c120_i32_153 dim 1 : vector<8x128xf32>, i32 -> vector<8x128xf32>
    %337 = vector.broadcast %15 : vector<1x128xf32> to vector<8x128xf32>
    %338 = arith.mulf %336, %337 : vector<8x128xf32>
    %c119_i32_154 = arith.constant 119 : i32
    %339 = tpu.dynamic_rotate %317 by %c119_i32_154 dim 1 : vector<8x128xf32>, i32 -> vector<8x128xf32>
    %340 = vector.broadcast %17 : vector<1x128xf32> to vector<8x128xf32>
    %341 = arith.mulf %339, %340 : vector<8x128xf32>
    %342 = tpu.concatenate %320, %323, %326, %329, %317, %332, %335, %338, %341 in 0 : vector<8x128xf32>, vector<8x128xf32>, vector<8x128xf32>, vector<8x128xf32>, vector<8x128xf32>, vector<8x128xf32>, vector<8x128xf32>, vector<8x128xf32>, vector<8x128xf32> -> vector<72x128xf32>
    %c0_155 = arith.constant 0 : index
    %c0_156 = arith.constant 0 : index
    %343 = vector.load %arg15[%c0_155, %c0_156] : memref<8x72xf32, #tpu.memory_space<vmem>>, vector<8x72xf32>
    %cst_157 = arith.constant dense<0.000000e+00> : vector<8x128xf32>
    %344 = tpu.matmul %343, %342, %cst_157 {dimension_numbers = #tpu.dot_dimension_numbers<[1], [0], [0], [1], [0, 0, 1, 1], [], []>} : vector<8x72xf32>, vector<72x128xf32>, vector<8x128xf32> -> vector<8x128xf32>
    %cst_158 = arith.constant dense<0.000000e+00> : vector<8x2xf32>
    %345 = tpu.matmul %344, %0, %cst_158 {dimension_numbers = #tpu.dot_dimension_numbers<[1], [0], [0], [1], [0, 0, 1, 1], [], []>} : vector<8x128xf32>, vector<128x2xf32>, vector<8x2xf32> -> vector<8x2xf32>
    %346 = arith.mulf %344, %344 : vector<8x128xf32>
    %cst_159 = arith.constant dense<0.000000e+00> : vector<8x2xf32>
    %347 = tpu.matmul %346, %0, %cst_159 {dimension_numbers = #tpu.dot_dimension_numbers<[1], [0], [0], [1], [0, 0, 1, 1], [], []>} : vector<8x128xf32>, vector<128x2xf32>, vector<8x2xf32> -> vector<8x2xf32>
    %cst_160 = arith.constant dense<0.000000e+00> : vector<2xf32>
    %348 = vector.multi_reduction <add>, %345, %cst_160 [0] : vector<8x2xf32> to vector<2xf32>
    %349 = vector.shape_cast %348 : vector<2xf32> to vector<1x2xf32>
    %cst_161 = arith.constant 0.001953125 : f32
    %350 = vector.broadcast %cst_161 : f32 to vector<1x2xf32>
    %351 = arith.mulf %349, %350 : vector<1x2xf32>
    %cst_162 = arith.constant dense<0.000000e+00> : vector<2xf32>
    %352 = vector.multi_reduction <add>, %347, %cst_162 [0] : vector<8x2xf32> to vector<2xf32>
    %353 = vector.shape_cast %352 : vector<2xf32> to vector<1x2xf32>
    %cst_163 = arith.constant 0.001953125 : f32
    %354 = vector.broadcast %cst_163 : f32 to vector<1x2xf32>
    %355 = arith.mulf %353, %354 : vector<1x2xf32>
    %356 = arith.mulf %351, %351 : vector<1x2xf32>
    %357 = arith.subf %355, %356 : vector<1x2xf32>
    %cst_164 = arith.constant 9.99999974E-6 : f32
    %358 = vector.broadcast %cst_164 : f32 to vector<1x2xf32>
    %359 = arith.addf %357, %358 : vector<1x2xf32>
    %360 = math.rsqrt %359 : vector<1x2xf32>
    %cst_165 = arith.constant dense<0.000000e+00> : vector<1x128xf32>
    %361 = tpu.matmul %351, %1, %cst_165 {dimension_numbers = #tpu.dot_dimension_numbers<[1], [0], [0], [1], [0, 0, 1, 1], [], []>} : vector<1x2xf32>, vector<2x128xf32>, vector<1x128xf32> -> vector<1x128xf32>
    %cst_166 = arith.constant dense<0.000000e+00> : vector<1x128xf32>
    %362 = tpu.matmul %360, %1, %cst_166 {dimension_numbers = #tpu.dot_dimension_numbers<[1], [0], [0], [1], [0, 0, 1, 1], [], []>} : vector<1x2xf32>, vector<2x128xf32>, vector<1x128xf32> -> vector<1x128xf32>
    %363 = vector.broadcast %361 : vector<1x128xf32> to vector<8x128xf32>
    %364 = arith.subf %344, %363 : vector<8x128xf32>
    %c0_167 = arith.constant 0 : index
    %c0_168 = arith.constant 0 : index
    %365 = vector.load %arg16[%c0_167, %c0_168] : memref<8x1xf32, #tpu.memory_space<vmem>>, vector<8x1xf32>
    %366 = vector.broadcast %362 : vector<1x128xf32> to vector<8x128xf32>
    %367 = vector.broadcast %365 : vector<8x1xf32> to vector<8x128xf32>
    %368 = arith.mulf %366, %367 : vector<8x128xf32>
    %369 = arith.mulf %364, %368 : vector<8x128xf32>
    %c0_169 = arith.constant 0 : index
    %c0_170 = arith.constant 0 : index
    %370 = vector.load %arg17[%c0_169, %c0_170] : memref<8x1xf32, #tpu.memory_space<vmem>>, vector<8x1xf32>
    %371 = vector.broadcast %370 : vector<8x1xf32> to vector<8x128xf32>
    %372 = arith.addf %369, %371 : vector<8x128xf32>
    %c0_171 = arith.constant 0 : index
    %c0_172 = arith.constant 0 : index
    %c0_173 = arith.constant 0 : index
    %373 = vector.load %arg2[%c0_171, %c0_172, %c0_173] : memref<1x8x2xf32, #tpu.memory_space<vmem>>, vector<1x8x2xf32>
    %374 = vector.shape_cast %373 : vector<1x8x2xf32> to vector<8x2xf32>
    %cst_174 = arith.constant dense<0.000000e+00> : vector<8x128xf32>
    %375 = tpu.matmul %374, %1, %cst_174 {dimension_numbers = #tpu.dot_dimension_numbers<[1], [0], [0], [1], [0, 0, 1, 1], [], []>} : vector<8x2xf32>, vector<2x128xf32>, vector<8x128xf32> -> vector<8x128xf32>
    %376 = arith.addf %372, %375 : vector<8x128xf32>
    %c0_175 = arith.constant 0 : index
    %c0_176 = arith.constant 0 : index
    %c0_177 = arith.constant 0 : index
    %377 = vector.load %arg18[%c0_175, %c0_176, %c0_177] : memref<1x8x128xf32, #tpu.memory_space<vmem>>, vector<1x8x128xf32>
    %378 = vector.shape_cast %377 : vector<1x8x128xf32> to vector<8x128xf32>
    %379 = vector.shape_cast %376 : vector<8x128xf32> to vector<1x8x128xf32>
    tpu.vector_store %arg18[%c0_175, %c0_176, %c0_177], %379 {strides = array<i32>} : memref<1x8x128xf32, #tpu.memory_space<vmem>>, vector<1x8x128xf32>,
    return
  }
  func.func @transform_0(%arg0: i32) -> (i32, i32, i32, i32) {
    %c0_i32 = arith.constant 0 : i32
    %c0_i32_0 = arith.constant 0 : i32
    %c0_i32_1 = arith.constant 0 : i32
    %c0_i32_2 = arith.constant 0 : i32
    return %arg0, %c0_i32, %c0_i32_0, %c0_i32_1 : i32, i32, i32, i32
  }
  func.func @transform_1(%arg0: i32) -> (i32, i32, i32) {
    %c0_i32 = arith.constant 0 : i32
    %c0_i32_0 = arith.constant 0 : i32
    %c0_i32_1 = arith.constant 0 : i32
    return %arg0, %c0_i32, %c0_i32_0 : i32, i32, i32
  }
  func.func @transform_2(%arg0: i32) -> (i32, i32, i32) {
    %c0_i32 = arith.constant 0 : i32
    %c0_i32_0 = arith.constant 0 : i32
    %c0_i32_1 = arith.constant 0 : i32
    %c0_i32_2 = arith.constant 0 : i32
    return %c0_i32, %c0_i32_0, %c0_i32_1 : i32, i32, i32
  }
  func.func @transform_3(%arg0: i32) -> (i32, i32) {
    %c0_i32 = arith.constant 0 : i32
    %c0_i32_0 = arith.constant 0 : i32
    %c0_i32_1 = arith.constant 0 : i32
    return %c0_i32, %c0_i32_0 : i32, i32
  }
  func.func @transform_4(%arg0: i32) -> (i32, i32) {
    %c0_i32 = arith.constant 0 : i32
    %c0_i32_0 = arith.constant 0 : i32
    %c0_i32_1 = arith.constant 0 : i32
    return %c0_i32, %c0_i32_0 : i32, i32
  }
  func.func @transform_5(%arg0: i32) -> (i32, i32) {
    %c0_i32 = arith.constant 0 : i32
    %c0_i32_0 = arith.constant 0 : i32
    %c0_i32_1 = arith.constant 0 : i32
    return %c0_i32, %c0_i32_0 : i32, i32
  }
  func.func @transform_6(%arg0: i32) -> (i32, i32) {
    %c0_i32 = arith.constant 0 : i32
    %c0_i32_0 = arith.constant 0 : i32
    %c0_i32_1 = arith.constant 0 : i32
    return %c0_i32, %c0_i32_0 : i32, i32
  }
  func.func @transform_7(%arg0: i32) -> (i32, i32) {
    %c0_i32 = arith.constant 0 : i32
    %c0_i32_0 = arith.constant 0 : i32
    %c0_i32_1 = arith.constant 0 : i32
    return %c0_i32, %c0_i32_0 : i32, i32
  }
  func.func @transform_8(%arg0: i32) -> (i32, i32) {
    %c0_i32 = arith.constant 0 : i32
    %c0_i32_0 = arith.constant 0 : i32
    %c0_i32_1 = arith.constant 0 : i32
    return %c0_i32, %c0_i32_0 : i32, i32
  }
  func.func @transform_9(%arg0: i32) -> (i32, i32) {
    %c0_i32 = arith.constant 0 : i32
    %c0_i32_0 = arith.constant 0 : i32
    %c0_i32_1 = arith.constant 0 : i32
    return %c0_i32, %c0_i32_0 : i32, i32
  }
  func.func @transform_10(%arg0: i32) -> (i32, i32) {
    %c0_i32 = arith.constant 0 : i32
    %c0_i32_0 = arith.constant 0 : i32
    %c0_i32_1 = arith.constant 0 : i32
    return %c0_i32, %c0_i32_0 : i32, i32
  }
  func.func @transform_11(%arg0: i32) -> (i32, i32) {
    %c0_i32 = arith.constant 0 : i32
    %c0_i32_0 = arith.constant 0 : i32
    %c0_i32_1 = arith.constant 0 : i32
    return %c0_i32, %c0_i32_0 : i32, i32
  }
  func.func @transform_12(%arg0: i32) -> (i32, i32) {
    %c0_i32 = arith.constant 0 : i32
    %c0_i32_0 = arith.constant 0 : i32
    %c0_i32_1 = arith.constant 0 : i32
    return %c0_i32, %c0_i32_0 : i32, i32
  }
  func.func @transform_13(%arg0: i32) -> (i32, i32) {
    %c0_i32 = arith.constant 0 : i32
    %c0_i32_0 = arith.constant 0 : i32
    %c0_i32_1 = arith.constant 0 : i32
    return %c0_i32, %c0_i32_0 : i32, i32
  }
  func.func @transform_14(%arg0: i32) -> (i32, i32) {
    %c0_i32 = arith.constant 0 : i32
    %c0_i32_0 = arith.constant 0 : i32
    %c0_i32_1 = arith.constant 0 : i32
    return %c0_i32, %c0_i32_0 : i32, i32
  }
  func.func @transform_15(%arg0: i32) -> (i32, i32) {
    %c0_i32 = arith.constant 0 : i32
    %c0_i32_0 = arith.constant 0 : i32
    %c0_i32_1 = arith.constant 0 : i32
    return %c0_i32, %c0_i32_0 : i32, i32
  }
  func.func @transform_16(%arg0: i32) -> (i32, i32) {
    %c0_i32 = arith.constant 0 : i32
    %c0_i32_0 = arith.constant 0 : i32
    %c0_i32_1 = arith.constant 0 : i32
    return %c0_i32, %c0_i32_0 : i32, i32
  }
  func.func @transform_17(%arg0: i32) -> (i32, i32, i32) {
    %c0_i32 = arith.constant 0 : i32
    %c0_i32_0 = arith.constant 0 : i32
    %c0_i32_1 = arith.constant 0 : i32
    return %arg0, %c0_i32, %c0_i32_0 : i32, i32, i32
  }
}

module attributes {stable_mosaic.version = 11 : i64} {
  func.func @_down_kernel(%arg0: i32, %arg1: memref<1x4x8x128xf32, #tpu.memory_space<vmem>>, %arg2: memref<1x8x2xf32, #tpu.memory_space<vmem>>, %arg3: memref<9x1x128xf32, #tpu.memory_space<vmem>>, %arg4: memref<128x2xf32, #tpu.memory_space<vmem>>, %arg5: memref<2x128xf32, #tpu.memory_space<vmem>>, %arg6: memref<8x72xf32, #tpu.memory_space<vmem>>, %arg7: memref<8x1xf32, #tpu.memory_space<vmem>>, %arg8: memref<8x1xf32, #tpu.memory_space<vmem>>, %arg9: memref<8x72xf32, #tpu.memory_space<vmem>>, %arg10: memref<8x1xf32, #tpu.memory_space<vmem>>, %arg11: memref<8x1xf32, #tpu.memory_space<vmem>>, %arg12: memref<8x72xf32, #tpu.memory_space<vmem>>, %arg13: memref<8x1xf32, #tpu.memory_space<vmem>>, %arg14: memref<8x1xf32, #tpu.memory_space<vmem>>, %arg15: memref<8x72xf32, #tpu.memory_space<vmem>>, %arg16: memref<8x1xf32, #tpu.memory_space<vmem>>, %arg17: memref<8x1xf32, #tpu.memory_space<vmem>>, %arg18: memref<1x8x128xf32, #tpu.memory_space<vmem>>) attributes {dimension_semantics = [#tpu.dimension_semantics<parallel>], iteration_bounds = array<i64: 1>, scalar_prefetch = 0 : i64, scratch_operands = 0 : i64, tpu.core_type = #tpu.core_type<tc>, window_params = [{transform_indices = @transform_0, window_bounds = array<i64: 1, 4, 8, 128>}, {transform_indices = @transform_1, window_bounds = array<i64: 1, 8, 2>}, {pipeline_mode = #tpu.pipeline_mode<synchronous>, transform_indices = @transform_2, window_bounds = array<i64: 9, 1, 128>}, {pipeline_mode = #tpu.pipeline_mode<synchronous>, transform_indices = @transform_3, window_bounds = array<i64: 128, 2>}, {pipeline_mode = #tpu.pipeline_mode<synchronous>, transform_indices = @transform_4, window_bounds = array<i64: 2, 128>}, {pipeline_mode = #tpu.pipeline_mode<synchronous>, transform_indices = @transform_5, window_bounds = array<i64: 8, 72>}, {pipeline_mode = #tpu.pipeline_mode<synchronous>, transform_indices = @transform_6, window_bounds = array<i64: 8, 1>}, {pipeline_mode = #tpu.pipeline_mode<synchronous>, transform_indices = @transform_7, window_bounds = array<i64: 8, 1>}, {pipeline_mode = #tpu.pipeline_mode<synchronous>, transform_indices = @transform_8, window_bounds = array<i64: 8, 72>}, {pipeline_mode = #tpu.pipeline_mode<synchronous>, transform_indices = @transform_9, window_bounds = array<i64: 8, 1>}, {pipeline_mode = #tpu.pipeline_mode<synchronous>, transform_indices = @transform_10, window_bounds = array<i64: 8, 1>}, {pipeline_mode = #tpu.pipeline_mode<synchronous>, transform_indices = @transform_11, window_bounds = array<i64: 8, 72>}, {pipeline_mode = #tpu.pipeline_mode<synchronous>, transform_indices = @transform_12, window_bounds = array<i64: 8, 1>}, {pipeline_mode = #tpu.pipeline_mode<synchronous>, transform_indices = @transform_13, window_bounds = array<i64: 8, 1>}, {pipeline_mode = #tpu.pipeline_mode<synchronous>, transform_indices = @transform_14, window_bounds = array<i64: 8, 72>}, {pipeline_mode = #tpu.pipeline_mode<synchronous>, transform_indices = @transform_15, window_bounds = array<i64: 8, 1>}, {pipeline_mode = #tpu.pipeline_mode<synchronous>, transform_indices = @transform_16, window_bounds = array<i64: 8, 1>}, {transform_indices = @transform_17, window_bounds = array<i64: 1, 8, 128>}]} {
    %c0 = arith.constant 0 : index
    %c0_0 = arith.constant 0 : index
    %0 = vector.load %arg4[%c0, %c0_0] : memref<128x2xf32, #tpu.memory_space<vmem>>, vector<128x2xf32>
    %c0_1 = arith.constant 0 : index
    %c0_2 = arith.constant 0 : index
    %1 = vector.load %arg5[%c0_1, %c0_2] : memref<2x128xf32, #tpu.memory_space<vmem>>, vector<2x128xf32>
    %c0_3 = arith.constant 0 : index
    %c0_4 = arith.constant 0 : index
    %c0_5 = arith.constant 0 : index
    %2 = vector.load %arg3[%c0_3, %c0_4, %c0_5] : memref<9x1x128xf32, #tpu.memory_space<vmem>>, vector<1x1x128xf32>
    %3 = vector.shape_cast %2 : vector<1x1x128xf32> to vector<1x128xf32>
    %c1 = arith.constant 1 : index
    %c0_6 = arith.constant 0 : index
    %c0_7 = arith.constant 0 : index
    %4 = vector.load %arg3[%c1, %c0_6, %c0_7] : memref<9x1x128xf32, #tpu.memory_space<vmem>>, vector<1x1x128xf32>
    %5 = vector.shape_cast %4 : vector<1x1x128xf32> to vector<1x128xf32>
    %c2 = arith.constant 2 : index
    %c0_8 = arith.constant 0 : index
    %c0_9 = arith.constant 0 : index
    %6 = vector.load %arg3[%c2, %c0_8, %c0_9] : memref<9x1x128xf32, #tpu.memory_space<vmem>>, vector<1x1x128xf32>
    %7 = vector.shape_cast %6 : vector<1x1x128xf32> to vector<1x128xf32>
    %c3 = arith.constant 3 : index
    %c0_10 = arith.constant 0 : index
    %c0_11 = arith.constant 0 : index
    %8 = vector.load %arg3[%c3, %c0_10, %c0_11] : memref<9x1x128xf32, #tpu.memory_space<vmem>>, vector<1x1x128xf32>
    %9 = vector.shape_cast %8 : vector<1x1x128xf32> to vector<1x128xf32>
    %c5 = arith.constant 5 : index
    %c0_12 = arith.constant 0 : index
    %c0_13 = arith.constant 0 : index
    %10 = vector.load %arg3[%c5, %c0_12, %c0_13] : memref<9x1x128xf32, #tpu.memory_space<vmem>>, vector<1x1x128xf32>
    %11 = vector.shape_cast %10 : vector<1x1x128xf32> to vector<1x128xf32>
    %c6 = arith.constant 6 : index
    %c0_14 = arith.constant 0 : index
    %c0_15 = arith.constant 0 : index
    %12 = vector.load %arg3[%c6, %c0_14, %c0_15] : memref<9x1x128xf32, #tpu.memory_space<vmem>>, vector<1x1x128xf32>
    %13 = vector.shape_cast %12 : vector<1x1x128xf32> to vector<1x128xf32>
    %c7 = arith.constant 7 : index
    %c0_16 = arith.constant 0 : index
    %c0_17 = arith.constant 0 : index
    %14 = vector.load %arg3[%c7, %c0_16, %c0_17] : memref<9x1x128xf32, #tpu.memory_space<vmem>>, vector<1x1x128xf32>
    %15 = vector.shape_cast %14 : vector<1x1x128xf32> to vector<1x128xf32>
    %c8 = arith.constant 8 : index
    %c0_18 = arith.constant 0 : index
    %c0_19 = arith.constant 0 : index
    %16 = vector.load %arg3[%c8, %c0_18, %c0_19] : memref<9x1x128xf32, #tpu.memory_space<vmem>>, vector<1x1x128xf32>
    %17 = vector.shape_cast %16 : vector<1x1x128xf32> to vector<1x128xf32>
    %c0_20 = arith.constant 0 : index
    %c0_21 = arith.constant 0 : index
    %c0_22 = arith.constant 0 : index
    %c0_23 = arith.constant 0 : index
    %18 = vector.load %arg1[%c0_20, %c0_21, %c0_22, %c0_23] : memref<1x4x8x128xf32, #tpu.memory_space<vmem>>, vector<1x1x8x128xf32>
    %19 = vector.shape_cast %18 : vector<1x1x8x128xf32> to vector<8x128xf32>
    %c0_24 = arith.constant 0 : index
    %c1_25 = arith.constant 1 : index
    %c0_26 = arith.constant 0 : index
    %c0_27 = arith.constant 0 : index
    %20 = vector.load %arg1[%c0_24, %c1_25, %c0_26, %c0_27] : memref<1x4x8x128xf32, #tpu.memory_space<vmem>>, vector<1x1x8x128xf32>
    %21 = vector.shape_cast %20 : vector<1x1x8x128xf32> to vector<8x128xf32>
    %22 = arith.maximumf %19, %21 : vector<8x128xf32>
    %c0_28 = arith.constant 0 : index
    %c2_29 = arith.constant 2 : index
    %c0_30 = arith.constant 0 : index
    %c0_31 = arith.constant 0 : index
    %23 = vector.load %arg1[%c0_28, %c2_29, %c0_30, %c0_31] : memref<1x4x8x128xf32, #tpu.memory_space<vmem>>, vector<1x1x8x128xf32>
    %24 = vector.shape_cast %23 : vector<1x1x8x128xf32> to vector<8x128xf32>
    %c0_32 = arith.constant 0 : index
    %c3_33 = arith.constant 3 : index
    %c0_34 = arith.constant 0 : index
    %c0_35 = arith.constant 0 : index
    %25 = vector.load %arg1[%c0_32, %c3_33, %c0_34, %c0_35] : memref<1x4x8x128xf32, #tpu.memory_space<vmem>>, vector<1x1x8x128xf32>
    %26 = vector.shape_cast %25 : vector<1x1x8x128xf32> to vector<8x128xf32>
    %27 = arith.maximumf %24, %26 : vector<8x128xf32>
    %28 = arith.maximumf %22, %27 : vector<8x128xf32>
    %c9_i32 = arith.constant 9 : i32
    %29 = tpu.dynamic_rotate %28 by %c9_i32 dim 1 : vector<8x128xf32>, i32 -> vector<8x128xf32>
    %30 = vector.broadcast %3 : vector<1x128xf32> to vector<8x128xf32>
    %31 = arith.mulf %29, %30 : vector<8x128xf32>
    %c8_i32 = arith.constant 8 : i32
    %32 = tpu.dynamic_rotate %28 by %c8_i32 dim 1 : vector<8x128xf32>, i32 -> vector<8x128xf32>
    %33 = vector.broadcast %5 : vector<1x128xf32> to vector<8x128xf32>
    %34 = arith.mulf %32, %33 : vector<8x128xf32>
    %c7_i32 = arith.constant 7 : i32
    %35 = tpu.dynamic_rotate %28 by %c7_i32 dim 1 : vector<8x128xf32>, i32 -> vector<8x128xf32>
    %36 = vector.broadcast %7 : vector<1x128xf32> to vector<8x128xf32>
    %37 = arith.mulf %35, %36 : vector<8x128xf32>
    %c1_i32 = arith.constant 1 : i32
    %38 = tpu.dynamic_rotate %28 by %c1_i32 dim 1 : vector<8x128xf32>, i32 -> vector<8x128xf32>
    %39 = vector.broadcast %9 : vector<1x128xf32> to vector<8x128xf32>
    %40 = arith.mulf %38, %39 : vector<8x128xf32>
    %c127_i32 = arith.constant 127 : i32
    %41 = tpu.dynamic_rotate %28 by %c127_i32 dim 1 : vector<8x128xf32>, i32 -> vector<8x128xf32>
    %42 = vector.broadcast %11 : vector<1x128xf32> to vector<8x128xf32>
    %43 = arith.mulf %41, %42 : vector<8x128xf32>
    %c121_i32 = arith.constant 121 : i32
    %44 = tpu.dynamic_rotate %28 by %c121_i32 dim 1 : vector<8x128xf32>, i32 -> vector<8x128xf32>
    %45 = vector.broadcast %13 : vector<1x128xf32> to vector<8x128xf32>
    %46 = arith.mulf %44, %45 : vector<8x128xf32>
    %c120_i32 = arith.constant 120 : i32
    %47 = tpu.dynamic_rotate %28 by %c120_i32 dim 1 : vector<8x128xf32>, i32 -> vector<8x128xf32>
    %48 = vector.broadcast %15 : vector<1x128xf32> to vector<8x128xf32>
    %49 = arith.mulf %47, %48 : vector<8x128xf32>
    %c119_i32 = arith.constant 119 : i32
    %50 = tpu.dynamic_rotate %28 by %c119_i32 dim 1 : vector<8x128xf32>, i32 -> vector<8x128xf32>
    %51 = vector.broadcast %17 : vector<1x128xf32> to vector<8x128xf32>
    %52 = arith.mulf %50, %51 : vector<8x128xf32>
    %53 = tpu.concatenate %31, %34, %37, %40, %28, %43, %46, %49, %52 in 0 : vector<8x128xf32>, vector<8x128xf32>, vector<8x128xf32>, vector<8x128xf32>, vector<8x128xf32>, vector<8x128xf32>, vector<8x128xf32>, vector<8x128xf32>, vector<8x128xf32> -> vector<72x128xf32>
    %c0_36 = arith.constant 0 : index
    %c0_37 = arith.constant 0 : index
    %54 = vector.load %arg6[%c0_36, %c0_37] : memref<8x72xf32, #tpu.memory_space<vmem>>, vector<8x72xf32>
    %cst = arith.constant dense<0.000000e+00> : vector<8x128xf32>
    %55 = tpu.matmul %54, %53, %cst {dimension_numbers = #tpu.dot_dimension_numbers<[1], [0], [0], [1], [0, 0, 1, 1], [], []>} : vector<8x72xf32>, vector<72x128xf32>, vector<8x128xf32> -> vector<8x128xf32>
    %cst_38 = arith.constant dense<0.000000e+00> : vector<8x2xf32>
    %56 = tpu.matmul %55, %0, %cst_38 {dimension_numbers = #tpu.dot_dimension_numbers<[1], [0], [0], [1], [0, 0, 1, 1], [], []>} : vector<8x128xf32>, vector<128x2xf32>, vector<8x2xf32> -> vector<8x2xf32>
    %57 = arith.mulf %55, %55 : vector<8x128xf32>
    %cst_39 = arith.constant dense<0.000000e+00> : vector<8x2xf32>
    %58 = tpu.matmul %57, %0, %cst_39 {dimension_numbers = #tpu.dot_dimension_numbers<[1], [0], [0], [1], [0, 0, 1, 1], [], []>} : vector<8x128xf32>, vector<128x2xf32>, vector<8x2xf32> -> vector<8x2xf32>
    %cst_40 = arith.constant dense<0.000000e+00> : vector<2xf32>
    %59 = vector.multi_reduction <add>, %56, %cst_40 [0] : vector<8x2xf32> to vector<2xf32>
    %60 = vector.shape_cast %59 : vector<2xf32> to vector<1x2xf32>
    %cst_41 = arith.constant 3.906250e-03 : f32
    %61 = vector.broadcast %cst_41 : f32 to vector<1x2xf32>
    %62 = arith.mulf %60, %61 : vector<1x2xf32>
    %cst_42 = arith.constant dense<0.000000e+00> : vector<2xf32>
    %63 = vector.multi_reduction <add>, %58, %cst_42 [0] : vector<8x2xf32> to vector<2xf32>
    %64 = vector.shape_cast %63 : vector<2xf32> to vector<1x2xf32>
    %cst_43 = arith.constant 3.906250e-03 : f32
    %65 = vector.broadcast %cst_43 : f32 to vector<1x2xf32>
    %66 = arith.mulf %64, %65 : vector<1x2xf32>
    %67 = arith.mulf %62, %62 : vector<1x2xf32>
    %68 = arith.subf %66, %67 : vector<1x2xf32>
    %cst_44 = arith.constant 9.99999974E-6 : f32
    %69 = vector.broadcast %cst_44 : f32 to vector<1x2xf32>
    %70 = arith.addf %68, %69 : vector<1x2xf32>
    %71 = math.rsqrt %70 : vector<1x2xf32>
    %cst_45 = arith.constant dense<0.000000e+00> : vector<1x128xf32>
    %72 = tpu.matmul %62, %1, %cst_45 {dimension_numbers = #tpu.dot_dimension_numbers<[1], [0], [0], [1], [0, 0, 1, 1], [], []>} : vector<1x2xf32>, vector<2x128xf32>, vector<1x128xf32> -> vector<1x128xf32>
    %cst_46 = arith.constant dense<0.000000e+00> : vector<1x128xf32>
    %73 = tpu.matmul %71, %1, %cst_46 {dimension_numbers = #tpu.dot_dimension_numbers<[1], [0], [0], [1], [0, 0, 1, 1], [], []>} : vector<1x2xf32>, vector<2x128xf32>, vector<1x128xf32> -> vector<1x128xf32>
    %74 = vector.broadcast %72 : vector<1x128xf32> to vector<8x128xf32>
    %75 = arith.subf %55, %74 : vector<8x128xf32>
    %c0_47 = arith.constant 0 : index
    %c0_48 = arith.constant 0 : index
    %76 = vector.load %arg7[%c0_47, %c0_48] : memref<8x1xf32, #tpu.memory_space<vmem>>, vector<8x1xf32>
    %77 = vector.broadcast %73 : vector<1x128xf32> to vector<8x128xf32>
    %78 = vector.broadcast %76 : vector<8x1xf32> to vector<8x128xf32>
    %79 = arith.mulf %77, %78 : vector<8x128xf32>
    %80 = arith.mulf %75, %79 : vector<8x128xf32>
    %c0_49 = arith.constant 0 : index
    %c0_50 = arith.constant 0 : index
    %81 = vector.load %arg8[%c0_49, %c0_50] : memref<8x1xf32, #tpu.memory_space<vmem>>, vector<8x1xf32>
    %82 = vector.broadcast %81 : vector<8x1xf32> to vector<8x128xf32>
    %83 = arith.addf %80, %82 : vector<8x128xf32>
    %cst_51 = arith.constant 5.000000e-01 : f32
    %84 = vector.broadcast %cst_51 : f32 to vector<8x128xf32>
    %85 = arith.mulf %84, %83 : vector<8x128xf32>
    %cst_52 = arith.constant 0.707106769 : f32
    %86 = vector.broadcast %cst_52 : f32 to vector<8x128xf32>
    %87 = arith.mulf %83, %86 : vector<8x128xf32>
    %cst_53 = arith.constant 0.000000e+00 : f32
    %88 = vector.broadcast %cst_53 : f32 to vector<8x128xf32>
    %89 = arith.cmpf oge, %87, %88 : vector<8x128xf32>
    %cst_54 = arith.constant 1.000000e+00 : f32
    %cst_55 = arith.constant -1.000000e+00 : f32
    %90 = vector.broadcast %cst_54 : f32 to vector<8x128xf32>
    %91 = vector.broadcast %cst_55 : f32 to vector<8x128xf32>
    %92 = arith.select %89, %90, %91 : vector<8x128xi1>, vector<8x128xf32>
    %93 = math.absf %87 : vector<8x128xf32>
    %cst_56 = arith.constant 0.327591091 : f32
    %94 = vector.broadcast %cst_56 : f32 to vector<8x128xf32>
    %95 = arith.mulf %94, %93 : vector<8x128xf32>
    %cst_57 = arith.constant 1.000000e+00 : f32
    %96 = vector.broadcast %cst_57 : f32 to vector<8x128xf32>
    %97 = arith.addf %96, %95 : vector<8x128xf32>
    %cst_58 = arith.constant 1.000000e+00 : f32
    %98 = vector.broadcast %cst_58 : f32 to vector<8x128xf32>
    %99 = arith.divf %98, %97 : vector<8x128xf32>
    %cst_59 = arith.constant 1.06140542 : f32
    %100 = vector.broadcast %cst_59 : f32 to vector<8x128xf32>
    %101 = arith.mulf %100, %99 : vector<8x128xf32>
    %cst_60 = arith.constant -1.45315206 : f32
    %102 = vector.broadcast %cst_60 : f32 to vector<8x128xf32>
    %103 = arith.addf %101, %102 : vector<8x128xf32>
    %104 = arith.mulf %103, %99 : vector<8x128xf32>
    %cst_61 = arith.constant 1.42141378 : f32
    %105 = vector.broadcast %cst_61 : f32 to vector<8x128xf32>
    %106 = arith.addf %104, %105 : vector<8x128xf32>
    %107 = arith.mulf %106, %99 : vector<8x128xf32>
    %cst_62 = arith.constant -0.284496725 : f32
    %108 = vector.broadcast %cst_62 : f32 to vector<8x128xf32>
    %109 = arith.addf %107, %108 : vector<8x128xf32>
    %110 = arith.mulf %109, %99 : vector<8x128xf32>
    %cst_63 = arith.constant 0.254829586 : f32
    %111 = vector.broadcast %cst_63 : f32 to vector<8x128xf32>
    %112 = arith.addf %110, %111 : vector<8x128xf32>
    %113 = arith.mulf %112, %99 : vector<8x128xf32>
    %cst_64 = arith.constant 0.000000e+00 : f32
    %114 = vector.broadcast %cst_64 : f32 to vector<8x128xf32>
    %115 = arith.subf %114, %93 : vector<8x128xf32>
    %116 = arith.mulf %115, %93 : vector<8x128xf32>
    %117 = math.exp %116 : vector<8x128xf32>
    %118 = arith.mulf %113, %117 : vector<8x128xf32>
    %cst_65 = arith.constant 1.000000e+00 : f32
    %119 = vector.broadcast %cst_65 : f32 to vector<8x128xf32>
    %120 = arith.subf %119, %118 : vector<8x128xf32>
    %121 = arith.mulf %92, %120 : vector<8x128xf32>
    %cst_66 = arith.constant 1.000000e+00 : f32
    %122 = vector.broadcast %cst_66 : f32 to vector<8x128xf32>
    %123 = arith.addf %122, %121 : vector<8x128xf32>
    %124 = arith.mulf %85, %123 : vector<8x128xf32>
    %c9_i32_67 = arith.constant 9 : i32
    %125 = tpu.dynamic_rotate %124 by %c9_i32_67 dim 1 : vector<8x128xf32>, i32 -> vector<8x128xf32>
    %126 = vector.broadcast %3 : vector<1x128xf32> to vector<8x128xf32>
    %127 = arith.mulf %125, %126 : vector<8x128xf32>
    %c8_i32_68 = arith.constant 8 : i32
    %128 = tpu.dynamic_rotate %124 by %c8_i32_68 dim 1 : vector<8x128xf32>, i32 -> vector<8x128xf32>
    %129 = vector.broadcast %5 : vector<1x128xf32> to vector<8x128xf32>
    %130 = arith.mulf %128, %129 : vector<8x128xf32>
    %c7_i32_69 = arith.constant 7 : i32
    %131 = tpu.dynamic_rotate %124 by %c7_i32_69 dim 1 : vector<8x128xf32>, i32 -> vector<8x128xf32>
    %132 = vector.broadcast %7 : vector<1x128xf32> to vector<8x128xf32>
    %133 = arith.mulf %131, %132 : vector<8x128xf32>
    %c1_i32_70 = arith.constant 1 : i32
    %134 = tpu.dynamic_rotate %124 by %c1_i32_70 dim 1 : vector<8x128xf32>, i32 -> vector<8x128xf32>
    %135 = vector.broadcast %9 : vector<1x128xf32> to vector<8x128xf32>
    %136 = arith.mulf %134, %135 : vector<8x128xf32>
    %c127_i32_71 = arith.constant 127 : i32
    %137 = tpu.dynamic_rotate %124 by %c127_i32_71 dim 1 : vector<8x128xf32>, i32 -> vector<8x128xf32>
    %138 = vector.broadcast %11 : vector<1x128xf32> to vector<8x128xf32>
    %139 = arith.mulf %137, %138 : vector<8x128xf32>
    %c121_i32_72 = arith.constant 121 : i32
    %140 = tpu.dynamic_rotate %124 by %c121_i32_72 dim 1 : vector<8x128xf32>, i32 -> vector<8x128xf32>
    %141 = vector.broadcast %13 : vector<1x128xf32> to vector<8x128xf32>
    %142 = arith.mulf %140, %141 : vector<8x128xf32>
    %c120_i32_73 = arith.constant 120 : i32
    %143 = tpu.dynamic_rotate %124 by %c120_i32_73 dim 1 : vector<8x128xf32>, i32 -> vector<8x128xf32>
    %144 = vector.broadcast %15 : vector<1x128xf32> to vector<8x128xf32>
    %145 = arith.mulf %143, %144 : vector<8x128xf32>
    %c119_i32_74 = arith.constant 119 : i32
    %146 = tpu.dynamic_rotate %124 by %c119_i32_74 dim 1 : vector<8x128xf32>, i32 -> vector<8x128xf32>
    %147 = vector.broadcast %17 : vector<1x128xf32> to vector<8x128xf32>
    %148 = arith.mulf %146, %147 : vector<8x128xf32>
    %149 = tpu.concatenate %127, %130, %133, %136, %124, %139, %142, %145, %148 in 0 : vector<8x128xf32>, vector<8x128xf32>, vector<8x128xf32>, vector<8x128xf32>, vector<8x128xf32>, vector<8x128xf32>, vector<8x128xf32>, vector<8x128xf32>, vector<8x128xf32> -> vector<72x128xf32>
    %c0_75 = arith.constant 0 : index
    %c0_76 = arith.constant 0 : index
    %150 = vector.load %arg9[%c0_75, %c0_76] : memref<8x72xf32, #tpu.memory_space<vmem>>, vector<8x72xf32>
    %cst_77 = arith.constant dense<0.000000e+00> : vector<8x128xf32>
    %151 = tpu.matmul %150, %149, %cst_77 {dimension_numbers = #tpu.dot_dimension_numbers<[1], [0], [0], [1], [0, 0, 1, 1], [], []>} : vector<8x72xf32>, vector<72x128xf32>, vector<8x128xf32> -> vector<8x128xf32>
    %cst_78 = arith.constant dense<0.000000e+00> : vector<8x2xf32>
    %152 = tpu.matmul %151, %0, %cst_78 {dimension_numbers = #tpu.dot_dimension_numbers<[1], [0], [0], [1], [0, 0, 1, 1], [], []>} : vector<8x128xf32>, vector<128x2xf32>, vector<8x2xf32> -> vector<8x2xf32>
    %153 = arith.mulf %151, %151 : vector<8x128xf32>
    %cst_79 = arith.constant dense<0.000000e+00> : vector<8x2xf32>
    %154 = tpu.matmul %153, %0, %cst_79 {dimension_numbers = #tpu.dot_dimension_numbers<[1], [0], [0], [1], [0, 0, 1, 1], [], []>} : vector<8x128xf32>, vector<128x2xf32>, vector<8x2xf32> -> vector<8x2xf32>
    %cst_80 = arith.constant dense<0.000000e+00> : vector<2xf32>
    %155 = vector.multi_reduction <add>, %152, %cst_80 [0] : vector<8x2xf32> to vector<2xf32>
    %156 = vector.shape_cast %155 : vector<2xf32> to vector<1x2xf32>
    %cst_81 = arith.constant 3.906250e-03 : f32
    %157 = vector.broadcast %cst_81 : f32 to vector<1x2xf32>
    %158 = arith.mulf %156, %157 : vector<1x2xf32>
    %cst_82 = arith.constant dense<0.000000e+00> : vector<2xf32>
    %159 = vector.multi_reduction <add>, %154, %cst_82 [0] : vector<8x2xf32> to vector<2xf32>
    %160 = vector.shape_cast %159 : vector<2xf32> to vector<1x2xf32>
    %cst_83 = arith.constant 3.906250e-03 : f32
    %161 = vector.broadcast %cst_83 : f32 to vector<1x2xf32>
    %162 = arith.mulf %160, %161 : vector<1x2xf32>
    %163 = arith.mulf %158, %158 : vector<1x2xf32>
    %164 = arith.subf %162, %163 : vector<1x2xf32>
    %cst_84 = arith.constant 9.99999974E-6 : f32
    %165 = vector.broadcast %cst_84 : f32 to vector<1x2xf32>
    %166 = arith.addf %164, %165 : vector<1x2xf32>
    %167 = math.rsqrt %166 : vector<1x2xf32>
    %cst_85 = arith.constant dense<0.000000e+00> : vector<1x128xf32>
    %168 = tpu.matmul %158, %1, %cst_85 {dimension_numbers = #tpu.dot_dimension_numbers<[1], [0], [0], [1], [0, 0, 1, 1], [], []>} : vector<1x2xf32>, vector<2x128xf32>, vector<1x128xf32> -> vector<1x128xf32>
    %cst_86 = arith.constant dense<0.000000e+00> : vector<1x128xf32>
    %169 = tpu.matmul %167, %1, %cst_86 {dimension_numbers = #tpu.dot_dimension_numbers<[1], [0], [0], [1], [0, 0, 1, 1], [], []>} : vector<1x2xf32>, vector<2x128xf32>, vector<1x128xf32> -> vector<1x128xf32>
    %170 = vector.broadcast %168 : vector<1x128xf32> to vector<8x128xf32>
    %171 = arith.subf %151, %170 : vector<8x128xf32>
    %c0_87 = arith.constant 0 : index
    %c0_88 = arith.constant 0 : index
    %172 = vector.load %arg10[%c0_87, %c0_88] : memref<8x1xf32, #tpu.memory_space<vmem>>, vector<8x1xf32>
    %173 = vector.broadcast %169 : vector<1x128xf32> to vector<8x128xf32>
    %174 = vector.broadcast %172 : vector<8x1xf32> to vector<8x128xf32>
    %175 = arith.mulf %173, %174 : vector<8x128xf32>
    %176 = arith.mulf %171, %175 : vector<8x128xf32>
    %c0_89 = arith.constant 0 : index
    %c0_90 = arith.constant 0 : index
    %177 = vector.load %arg11[%c0_89, %c0_90] : memref<8x1xf32, #tpu.memory_space<vmem>>, vector<8x1xf32>
    %178 = vector.broadcast %177 : vector<8x1xf32> to vector<8x128xf32>
    %179 = arith.addf %176, %178 : vector<8x128xf32>
    %180 = arith.addf %28, %179 : vector<8x128xf32>
    %cst_91 = arith.constant 5.000000e-01 : f32
    %181 = vector.broadcast %cst_91 : f32 to vector<8x128xf32>
    %182 = arith.mulf %181, %180 : vector<8x128xf32>
    %cst_92 = arith.constant 0.707106769 : f32
    %183 = vector.broadcast %cst_92 : f32 to vector<8x128xf32>
    %184 = arith.mulf %180, %183 : vector<8x128xf32>
    %cst_93 = arith.constant 0.000000e+00 : f32
    %185 = vector.broadcast %cst_93 : f32 to vector<8x128xf32>
    %186 = arith.cmpf oge, %184, %185 : vector<8x128xf32>
    %cst_94 = arith.constant 1.000000e+00 : f32
    %cst_95 = arith.constant -1.000000e+00 : f32
    %187 = vector.broadcast %cst_94 : f32 to vector<8x128xf32>
    %188 = vector.broadcast %cst_95 : f32 to vector<8x128xf32>
    %189 = arith.select %186, %187, %188 : vector<8x128xi1>, vector<8x128xf32>
    %190 = math.absf %184 : vector<8x128xf32>
    %cst_96 = arith.constant 0.327591091 : f32
    %191 = vector.broadcast %cst_96 : f32 to vector<8x128xf32>
    %192 = arith.mulf %191, %190 : vector<8x128xf32>
    %cst_97 = arith.constant 1.000000e+00 : f32
    %193 = vector.broadcast %cst_97 : f32 to vector<8x128xf32>
    %194 = arith.addf %193, %192 : vector<8x128xf32>
    %cst_98 = arith.constant 1.000000e+00 : f32
    %195 = vector.broadcast %cst_98 : f32 to vector<8x128xf32>
    %196 = arith.divf %195, %194 : vector<8x128xf32>
    %cst_99 = arith.constant 1.06140542 : f32
    %197 = vector.broadcast %cst_99 : f32 to vector<8x128xf32>
    %198 = arith.mulf %197, %196 : vector<8x128xf32>
    %cst_100 = arith.constant -1.45315206 : f32
    %199 = vector.broadcast %cst_100 : f32 to vector<8x128xf32>
    %200 = arith.addf %198, %199 : vector<8x128xf32>
    %201 = arith.mulf %200, %196 : vector<8x128xf32>
    %cst_101 = arith.constant 1.42141378 : f32
    %202 = vector.broadcast %cst_101 : f32 to vector<8x128xf32>
    %203 = arith.addf %201, %202 : vector<8x128xf32>
    %204 = arith.mulf %203, %196 : vector<8x128xf32>
    %cst_102 = arith.constant -0.284496725 : f32
    %205 = vector.broadcast %cst_102 : f32 to vector<8x128xf32>
    %206 = arith.addf %204, %205 : vector<8x128xf32>
    %207 = arith.mulf %206, %196 : vector<8x128xf32>
    %cst_103 = arith.constant 0.254829586 : f32
    %208 = vector.broadcast %cst_103 : f32 to vector<8x128xf32>
    %209 = arith.addf %207, %208 : vector<8x128xf32>
    %210 = arith.mulf %209, %196 : vector<8x128xf32>
    %cst_104 = arith.constant 0.000000e+00 : f32
    %211 = vector.broadcast %cst_104 : f32 to vector<8x128xf32>
    %212 = arith.subf %211, %190 : vector<8x128xf32>
    %213 = arith.mulf %212, %190 : vector<8x128xf32>
    %214 = math.exp %213 : vector<8x128xf32>
    %215 = arith.mulf %210, %214 : vector<8x128xf32>
    %cst_105 = arith.constant 1.000000e+00 : f32
    %216 = vector.broadcast %cst_105 : f32 to vector<8x128xf32>
    %217 = arith.subf %216, %215 : vector<8x128xf32>
    %218 = arith.mulf %189, %217 : vector<8x128xf32>
    %cst_106 = arith.constant 1.000000e+00 : f32
    %219 = vector.broadcast %cst_106 : f32 to vector<8x128xf32>
    %220 = arith.addf %219, %218 : vector<8x128xf32>
    %221 = arith.mulf %182, %220 : vector<8x128xf32>
    %c9_i32_107 = arith.constant 9 : i32
    %222 = tpu.dynamic_rotate %221 by %c9_i32_107 dim 1 : vector<8x128xf32>, i32 -> vector<8x128xf32>
    %223 = vector.broadcast %3 : vector<1x128xf32> to vector<8x128xf32>
    %224 = arith.mulf %222, %223 : vector<8x128xf32>
    %c8_i32_108 = arith.constant 8 : i32
    %225 = tpu.dynamic_rotate %221 by %c8_i32_108 dim 1 : vector<8x128xf32>, i32 -> vector<8x128xf32>
    %226 = vector.broadcast %5 : vector<1x128xf32> to vector<8x128xf32>
    %227 = arith.mulf %225, %226 : vector<8x128xf32>
    %c7_i32_109 = arith.constant 7 : i32
    %228 = tpu.dynamic_rotate %221 by %c7_i32_109 dim 1 : vector<8x128xf32>, i32 -> vector<8x128xf32>
    %229 = vector.broadcast %7 : vector<1x128xf32> to vector<8x128xf32>
    %230 = arith.mulf %228, %229 : vector<8x128xf32>
    %c1_i32_110 = arith.constant 1 : i32
    %231 = tpu.dynamic_rotate %221 by %c1_i32_110 dim 1 : vector<8x128xf32>, i32 -> vector<8x128xf32>
    %232 = vector.broadcast %9 : vector<1x128xf32> to vector<8x128xf32>
    %233 = arith.mulf %231, %232 : vector<8x128xf32>
    %c127_i32_111 = arith.constant 127 : i32
    %234 = tpu.dynamic_rotate %221 by %c127_i32_111 dim 1 : vector<8x128xf32>, i32 -> vector<8x128xf32>
    %235 = vector.broadcast %11 : vector<1x128xf32> to vector<8x128xf32>
    %236 = arith.mulf %234, %235 : vector<8x128xf32>
    %c121_i32_112 = arith.constant 121 : i32
    %237 = tpu.dynamic_rotate %221 by %c121_i32_112 dim 1 : vector<8x128xf32>, i32 -> vector<8x128xf32>
    %238 = vector.broadcast %13 : vector<1x128xf32> to vector<8x128xf32>
    %239 = arith.mulf %237, %238 : vector<8x128xf32>
    %c120_i32_113 = arith.constant 120 : i32
    %240 = tpu.dynamic_rotate %221 by %c120_i32_113 dim 1 : vector<8x128xf32>, i32 -> vector<8x128xf32>
    %241 = vector.broadcast %15 : vector<1x128xf32> to vector<8x128xf32>
    %242 = arith.mulf %240, %241 : vector<8x128xf32>
    %c119_i32_114 = arith.constant 119 : i32
    %243 = tpu.dynamic_rotate %221 by %c119_i32_114 dim 1 : vector<8x128xf32>, i32 -> vector<8x128xf32>
    %244 = vector.broadcast %17 : vector<1x128xf32> to vector<8x128xf32>
    %245 = arith.mulf %243, %244 : vector<8x128xf32>
    %246 = tpu.concatenate %224, %227, %230, %233, %221, %236, %239, %242, %245 in 0 : vector<8x128xf32>, vector<8x128xf32>, vector<8x128xf32>, vector<8x128xf32>, vector<8x128xf32>, vector<8x128xf32>, vector<8x128xf32>, vector<8x128xf32>, vector<8x128xf32> -> vector<72x128xf32>
    %c0_115 = arith.constant 0 : index
    %c0_116 = arith.constant 0 : index
    %247 = vector.load %arg12[%c0_115, %c0_116] : memref<8x72xf32, #tpu.memory_space<vmem>>, vector<8x72xf32>
    %cst_117 = arith.constant dense<0.000000e+00> : vector<8x128xf32>
    %248 = tpu.matmul %247, %246, %cst_117 {dimension_numbers = #tpu.dot_dimension_numbers<[1], [0], [0], [1], [0, 0, 1, 1], [], []>} : vector<8x72xf32>, vector<72x128xf32>, vector<8x128xf32> -> vector<8x128xf32>
    %cst_118 = arith.constant dense<0.000000e+00> : vector<8x2xf32>
    %249 = tpu.matmul %248, %0, %cst_118 {dimension_numbers = #tpu.dot_dimension_numbers<[1], [0], [0], [1], [0, 0, 1, 1], [], []>} : vector<8x128xf32>, vector<128x2xf32>, vector<8x2xf32> -> vector<8x2xf32>
    %250 = arith.mulf %248, %248 : vector<8x128xf32>
    %cst_119 = arith.constant dense<0.000000e+00> : vector<8x2xf32>
    %251 = tpu.matmul %250, %0, %cst_119 {dimension_numbers = #tpu.dot_dimension_numbers<[1], [0], [0], [1], [0, 0, 1, 1], [], []>} : vector<8x128xf32>, vector<128x2xf32>, vector<8x2xf32> -> vector<8x2xf32>
    %cst_120 = arith.constant dense<0.000000e+00> : vector<2xf32>
    %252 = vector.multi_reduction <add>, %249, %cst_120 [0] : vector<8x2xf32> to vector<2xf32>
    %253 = vector.shape_cast %252 : vector<2xf32> to vector<1x2xf32>
    %cst_121 = arith.constant 0.001953125 : f32
    %254 = vector.broadcast %cst_121 : f32 to vector<1x2xf32>
    %255 = arith.mulf %253, %254 : vector<1x2xf32>
    %cst_122 = arith.constant dense<0.000000e+00> : vector<2xf32>
    %256 = vector.multi_reduction <add>, %251, %cst_122 [0] : vector<8x2xf32> to vector<2xf32>
    %257 = vector.shape_cast %256 : vector<2xf32> to vector<1x2xf32>
    %cst_123 = arith.constant 0.001953125 : f32
    %258 = vector.broadcast %cst_123 : f32 to vector<1x2xf32>
    %259 = arith.mulf %257, %258 : vector<1x2xf32>
    %260 = arith.mulf %255, %255 : vector<1x2xf32>
    %261 = arith.subf %259, %260 : vector<1x2xf32>
    %cst_124 = arith.constant 9.99999974E-6 : f32
    %262 = vector.broadcast %cst_124 : f32 to vector<1x2xf32>
    %263 = arith.addf %261, %262 : vector<1x2xf32>
    %264 = math.rsqrt %263 : vector<1x2xf32>
    %cst_125 = arith.constant dense<0.000000e+00> : vector<1x128xf32>
    %265 = tpu.matmul %255, %1, %cst_125 {dimension_numbers = #tpu.dot_dimension_numbers<[1], [0], [0], [1], [0, 0, 1, 1], [], []>} : vector<1x2xf32>, vector<2x128xf32>, vector<1x128xf32> -> vector<1x128xf32>
    %cst_126 = arith.constant dense<0.000000e+00> : vector<1x128xf32>
    %266 = tpu.matmul %264, %1, %cst_126 {dimension_numbers = #tpu.dot_dimension_numbers<[1], [0], [0], [1], [0, 0, 1, 1], [], []>} : vector<1x2xf32>, vector<2x128xf32>, vector<1x128xf32> -> vector<1x128xf32>
    %267 = vector.broadcast %265 : vector<1x128xf32> to vector<8x128xf32>
    %268 = arith.subf %248, %267 : vector<8x128xf32>
    %c0_127 = arith.constant 0 : index
    %c0_128 = arith.constant 0 : index
    %269 = vector.load %arg13[%c0_127, %c0_128] : memref<8x1xf32, #tpu.memory_space<vmem>>, vector<8x1xf32>
    %270 = vector.broadcast %266 : vector<1x128xf32> to vector<8x128xf32>
    %271 = vector.broadcast %269 : vector<8x1xf32> to vector<8x128xf32>
    %272 = arith.mulf %270, %271 : vector<8x128xf32>
    %273 = arith.mulf %268, %272 : vector<8x128xf32>
    %c0_129 = arith.constant 0 : index
    %c0_130 = arith.constant 0 : index
    %274 = vector.load %arg14[%c0_129, %c0_130] : memref<8x1xf32, #tpu.memory_space<vmem>>, vector<8x1xf32>
    %275 = vector.broadcast %274 : vector<8x1xf32> to vector<8x128xf32>
    %276 = arith.addf %273, %275 : vector<8x128xf32>
    %cst_131 = arith.constant 5.000000e-01 : f32
    %277 = vector.broadcast %cst_131 : f32 to vector<8x128xf32>
    %278 = arith.mulf %277, %276 : vector<8x128xf32>
    %cst_132 = arith.constant 0.707106769 : f32
    %279 = vector.broadcast %cst_132 : f32 to vector<8x128xf32>
    %280 = arith.mulf %276, %279 : vector<8x128xf32>
    %cst_133 = arith.constant 0.000000e+00 : f32
    %281 = vector.broadcast %cst_133 : f32 to vector<8x128xf32>
    %282 = arith.cmpf oge, %280, %281 : vector<8x128xf32>
    %cst_134 = arith.constant 1.000000e+00 : f32
    %cst_135 = arith.constant -1.000000e+00 : f32
    %283 = vector.broadcast %cst_134 : f32 to vector<8x128xf32>
    %284 = vector.broadcast %cst_135 : f32 to vector<8x128xf32>
    %285 = arith.select %282, %283, %284 : vector<8x128xi1>, vector<8x128xf32>
    %286 = math.absf %280 : vector<8x128xf32>
    %cst_136 = arith.constant 0.327591091 : f32
    %287 = vector.broadcast %cst_136 : f32 to vector<8x128xf32>
    %288 = arith.mulf %287, %286 : vector<8x128xf32>
    %cst_137 = arith.constant 1.000000e+00 : f32
    %289 = vector.broadcast %cst_137 : f32 to vector<8x128xf32>
    %290 = arith.addf %289, %288 : vector<8x128xf32>
    %cst_138 = arith.constant 1.000000e+00 : f32
    %291 = vector.broadcast %cst_138 : f32 to vector<8x128xf32>
    %292 = arith.divf %291, %290 : vector<8x128xf32>
    %cst_139 = arith.constant 1.06140542 : f32
    %293 = vector.broadcast %cst_139 : f32 to vector<8x128xf32>
    %294 = arith.mulf %293, %292 : vector<8x128xf32>
    %cst_140 = arith.constant -1.45315206 : f32
    %295 = vector.broadcast %cst_140 : f32 to vector<8x128xf32>
    %296 = arith.addf %294, %295 : vector<8x128xf32>
    %297 = arith.mulf %296, %292 : vector<8x128xf32>
    %cst_141 = arith.constant 1.42141378 : f32
    %298 = vector.broadcast %cst_141 : f32 to vector<8x128xf32>
    %299 = arith.addf %297, %298 : vector<8x128xf32>
    %300 = arith.mulf %299, %292 : vector<8x128xf32>
    %cst_142 = arith.constant -0.284496725 : f32
    %301 = vector.broadcast %cst_142 : f32 to vector<8x128xf32>
    %302 = arith.addf %300, %301 : vector<8x128xf32>
    %303 = arith.mulf %302, %292 : vector<8x128xf32>
    %cst_143 = arith.constant 0.254829586 : f32
    %304 = vector.broadcast %cst_143 : f32 to vector<8x128xf32>
    %305 = arith.addf %303, %304 : vector<8x128xf32>
    %306 = arith.mulf %305, %292 : vector<8x128xf32>
    %cst_144 = arith.constant 0.000000e+00 : f32
    %307 = vector.broadcast %cst_144 : f32 to vector<8x128xf32>
    %308 = arith.subf %307, %286 : vector<8x128xf32>
    %309 = arith.mulf %308, %286 : vector<8x128xf32>
    %310 = math.exp %309 : vector<8x128xf32>
    %311 = arith.mulf %306, %310 : vector<8x128xf32>
    %cst_145 = arith.constant 1.000000e+00 : f32
    %312 = vector.broadcast %cst_145 : f32 to vector<8x128xf32>
    %313 = arith.subf %312, %311 : vector<8x128xf32>
    %314 = arith.mulf %285, %313 : vector<8x128xf32>
    %cst_146 = arith.constant 1.000000e+00 : f32
    %315 = vector.broadcast %cst_146 : f32 to vector<8x128xf32>
    %316 = arith.addf %315, %314 : vector<8x128xf32>
    %317 = arith.mulf %278, %316 : vector<8x128xf32>
    %c9_i32_147 = arith.constant 9 : i32
    %318 = tpu.dynamic_rotate %317 by %c9_i32_147 dim 1 : vector<8x128xf32>, i32 -> vector<8x128xf32>
    %319 = vector.broadcast %3 : vector<1x128xf32> to vector<8x128xf32>
    %320 = arith.mulf %318, %319 : vector<8x128xf32>
    %c8_i32_148 = arith.constant 8 : i32
    %321 = tpu.dynamic_rotate %317 by %c8_i32_148 dim 1 : vector<8x128xf32>, i32 -> vector<8x128xf32>
    %322 = vector.broadcast %5 : vector<1x128xf32> to vector<8x128xf32>
    %323 = arith.mulf %321, %322 : vector<8x128xf32>
    %c7_i32_149 = arith.constant 7 : i32
    %324 = tpu.dynamic_rotate %317 by %c7_i32_149 dim 1 : vector<8x128xf32>, i32 -> vector<8x128xf32>
    %325 = vector.broadcast %7 : vector<1x128xf32> to vector<8x128xf32>
    %326 = arith.mulf %324, %325 : vector<8x128xf32>
    %c1_i32_150 = arith.constant 1 : i32
    %327 = tpu.dynamic_rotate %317 by %c1_i32_150 dim 1 : vector<8x128xf32>, i32 -> vector<8x128xf32>
    %328 = vector.broadcast %9 : vector<1x128xf32> to vector<8x128xf32>
    %329 = arith.mulf %327, %328 : vector<8x128xf32>
    %c127_i32_151 = arith.constant 127 : i32
    %330 = tpu.dynamic_rotate %317 by %c127_i32_151 dim 1 : vector<8x128xf32>, i32 -> vector<8x128xf32>
    %331 = vector.broadcast %11 : vector<1x128xf32> to vector<8x128xf32>
    %332 = arith.mulf %330, %331 : vector<8x128xf32>
    %c121_i32_152 = arith.constant 121 : i32
    %333 = tpu.dynamic_rotate %317 by %c121_i32_152 dim 1 : vector<8x128xf32>, i32 -> vector<8x128xf32>
    %334 = vector.broadcast %13 : vector<1x128xf32> to vector<8x128xf32>
    %335 = arith.mulf %333, %334 : vector<8x128xf32>
    %c120_i32_153 = arith.constant 120 : i32
    %336 = tpu.dynamic_rotate %317 by %c120_i32_153 dim 1 : vector<8x128xf32>, i32 -> vector<8x128xf32>
    %337 = vector.broadcast %15 : vector<1x128xf32> to vector<8x128xf32>
    %338 = arith.mulf %336, %337 : vector<8x128xf32>
    %c119_i32_154 = arith.constant 119 : i32
    %339 = tpu.dynamic_rotate %317 by %c119_i32_154 dim 1 : vector<8x128xf32>, i32 -> vector<8x128xf32>
    %340 = vector.broadcast %17 : vector<1x128xf32> to vector<8x128xf32>
    %341 = arith.mulf %339, %340 : vector<8x128xf32>
    %342 = tpu.concatenate %320, %323, %326, %329, %317, %332, %335, %338, %341 in 0 : vector<8x128xf32>, vector<8x128xf32>, vector<8x128xf32>, vector<8x128xf32>, vector<8x128xf32>, vector<8x128xf32>, vector<8x128xf32>, vector<8x128xf32>, vector<8x128xf32> -> vector<72x128xf32>
    %c0_155 = arith.constant 0 : index
    %c0_156 = arith.constant 0 : index
    %343 = vector.load %arg15[%c0_155, %c0_156] : memref<8x72xf32, #tpu.memory_space<vmem>>, vector<8x72xf32>
    %cst_157 = arith.constant dense<0.000000e+00> : vector<8x128xf32>
    %344 = tpu.matmul %343, %342, %cst_157 {dimension_numbers = #tpu.dot_dimension_numbers<[1], [0], [0], [1], [0, 0, 1, 1], [], []>} : vector<8x72xf32>, vector<72x128xf32>, vector<8x128xf32> -> vector<8x128xf32>
    %cst_158 = arith.constant dense<0.000000e+00> : vector<8x2xf32>
    %345 = tpu.matmul %344, %0, %cst_158 {dimension_numbers = #tpu.dot_dimension_numbers<[1], [0], [0], [1], [0, 0, 1, 1], [], []>} : vector<8x128xf32>, vector<128x2xf32>, vector<8x2xf32> -> vector<8x2xf32>
    %346 = arith.mulf %344, %344 : vector<8x128xf32>
    %cst_159 = arith.constant dense<0.000000e+00> : vector<8x2xf32>
    %347 = tpu.matmul %346, %0, %cst_159 {dimension_numbers = #tpu.dot_dimension_numbers<[1], [0], [0], [1], [0, 0, 1, 1], [], []>} : vector<8x128xf32>, vector<128x2xf32>, vector<8x2xf32> -> vector<8x2xf32>
    %cst_160 = arith.constant dense<0.000000e+00> : vector<2xf32>
    %348 = vector.multi_reduction <add>, %345, %cst_160 [0] : vector<8x2xf32> to vector<2xf32>
    %349 = vector.shape_cast %348 : vector<2xf32> to vector<1x2xf32>
    %cst_161 = arith.constant 0.001953125 : f32
    %350 = vector.broadcast %cst_161 : f32 to vector<1x2xf32>
    %351 = arith.mulf %349, %350 : vector<1x2xf32>
    %cst_162 = arith.constant dense<0.000000e+00> : vector<2xf32>
    %352 = vector.multi_reduction <add>, %347, %cst_162 [0] : vector<8x2xf32> to vector<2xf32>
    %353 = vector.shape_cast %352 : vector<2xf32> to vector<1x2xf32>
    %cst_163 = arith.constant 0.001953125 : f32
    %354 = vector.broadcast %cst_163 : f32 to vector<1x2xf32>
    %355 = arith.mulf %353, %354 : vector<1x2xf32>
    %356 = arith.mulf %351, %351 : vector<1x2xf32>
    %357 = arith.subf %355, %356 : vector<1x2xf32>
    %cst_164 = arith.constant 9.99999974E-6 : f32
    %358 = vector.broadcast %cst_164 : f32 to vector<1x2xf32>
    %359 = arith.addf %357, %358 : vector<1x2xf32>
    %360 = math.rsqrt %359 : vector<1x2xf32>
    %cst_165 = arith.constant dense<0.000000e+00> : vector<1x128xf32>
    %361 = tpu.matmul %351, %1, %cst_165 {dimension_numbers = #tpu.dot_dimension_numbers<[1], [0], [0], [1], [0, 0, 1, 1], [], []>} : vector<1x2xf32>, vector<2x128xf32>, vector<1x128xf32> -> vector<1x128xf32>
    %cst_166 = arith.constant dense<0.000000e+00> : vector<1x128xf32>
    %362 = tpu.matmul %360, %1, %cst_166 {dimension_numbers = #tpu.dot_dimension_numbers<[1], [0], [0], [1], [0, 0, 1, 1], [], []>} : vector<1x2xf32>, vector<2x128xf32>, vector<1x128xf32> -> vector<1x128xf32>
    %363 = vector.broadcast %361 : vector<1x128xf32> to vector<8x128xf32>
    %364 = arith.subf %344, %363 : vector<8x128xf32>
    %c0_167 = arith.constant 0 : index
    %c0_168 = arith.constant 0 : index
    %365 = vector.load %arg16[%c0_167, %c0_168] : memref<8x1xf32, #tpu.memory_space<vmem>>, vector<8x1xf32>
    %366 = vector.broadcast %362 : vector<1x128xf32> to vector<8x128xf32>
    %367 = vector.broadcast %365 : vector<8x1xf32> to vector<8x128xf32>
    %368 = arith.mulf %366, %367 : vector<8x128xf32>
    %369 = arith.mulf %364, %368 : vector<8x128xf32>
    %c0_169 = arith.constant 0 : index
    %c0_170 = arith.constant 0 : index
    %370 = vector.load %arg17[%c0_169, %c0_170] : memref<8x1xf32, #tpu.memory_space<vmem>>, vector<8x1xf32>
    %371 = vector.broadcast %370 : vector<8x1xf32> to vector<8x128xf32>
    %372 = arith.addf %369, %371 : vector<8x128xf32>
    %c0_171 = arith.constant 0 : index
    %c0_172 = arith.constant 0 : index
    %c0_173 = arith.constant 0 : index
    %373 = vector.load %arg2[%c0_171, %c0_172, %c0_173] : memref<1x8x2xf32, #tpu.memory_space<vmem>>, vector<1x8x2xf32>
    %374 = vector.shape_cast %373 : vector<1x8x2xf32> to vector<8x2xf32>
    %cst_174 = arith.constant dense<0.000000e+00> : vector<8x128xf32>
    %375 = tpu.matmul %374, %1, %cst_174 {dimension_numbers = #tpu.dot_dimension_numbers<[1], [0], [0], [1], [0, 0, 1, 1], [], []>} : vector<8x2xf32>, vector<2x128xf32>, vector<8x128xf32> -> vector<8x128xf32>
    %376 = arith.addf %372, %375 : vector<8x128xf32>
    %c0_175 = arith.constant 0 : index
    %c0_176 = arith.constant 0 : index
    %c0_177 = arith.constant 0 : index
    %377 = vector.load %arg18[%c0_175, %c0_176, %c0_177] : memref<1x8x128xf32, #tpu.memory_space<vmem>>, vector<1x8x128xf32>
    %378 = vector.shape_cast %377 : vector<1x8x128xf32> to vector<8x128xf32>
    %379 = vector.shape_cast %376 : vector<8x128xf32> to vector<1x8x128xf32>
    tpu.vector_store %arg18[%c0_175, %c0_176, %c0_177], %379 {strides = array<i32>} : memref<1x8x128xf32, #tpu.memory_space<vmem>>, vector<1x8x128xf32>,
    return
  }
  func.func @transform_0(%arg0: i32) -> (i32, i32, i32, i32) {
    %c0_i32 = arith.constant 0 : i32
    %c0_i32_0 = arith.constant 0 : i32
    %c0_i32_1 = arith.constant 0 : i32
    %c0_i32_2 = arith.constant 0 : i32
    return %arg0, %c0_i32, %c0_i32_0, %c0_i32_1 : i32, i32, i32, i32
  }
  func.func @transform_1(%arg0: i32) -> (i32, i32, i32) {
    %c0_i32 = arith.constant 0 : i32
    %c0_i32_0 = arith.constant 0 : i32
    %c0_i32_1 = arith.constant 0 : i32
    return %arg0, %c0_i32, %c0_i32_0 : i32, i32, i32
  }
  func.func @transform_2(%arg0: i32) -> (i32, i32, i32) {
    %c0_i32 = arith.constant 0 : i32
    %c0_i32_0 = arith.constant 0 : i32
    %c0_i32_1 = arith.constant 0 : i32
    %c0_i32_2 = arith.constant 0 : i32
    return %c0_i32, %c0_i32_0, %c0_i32_1 : i32, i32, i32
  }
  func.func @transform_3(%arg0: i32) -> (i32, i32) {
    %c0_i32 = arith.constant 0 : i32
    %c0_i32_0 = arith.constant 0 : i32
    %c0_i32_1 = arith.constant 0 : i32
    return %c0_i32, %c0_i32_0 : i32, i32
  }
  func.func @transform_4(%arg0: i32) -> (i32, i32) {
    %c0_i32 = arith.constant 0 : i32
    %c0_i32_0 = arith.constant 0 : i32
    %c0_i32_1 = arith.constant 0 : i32
    return %c0_i32, %c0_i32_0 : i32, i32
  }
  func.func @transform_5(%arg0: i32) -> (i32, i32) {
    %c0_i32 = arith.constant 0 : i32
    %c0_i32_0 = arith.constant 0 : i32
    %c0_i32_1 = arith.constant 0 : i32
    return %c0_i32, %c0_i32_0 : i32, i32
  }
  func.func @transform_6(%arg0: i32) -> (i32, i32) {
    %c0_i32 = arith.constant 0 : i32
    %c0_i32_0 = arith.constant 0 : i32
    %c0_i32_1 = arith.constant 0 : i32
    return %c0_i32, %c0_i32_0 : i32, i32
  }
  func.func @transform_7(%arg0: i32) -> (i32, i32) {
    %c0_i32 = arith.constant 0 : i32
    %c0_i32_0 = arith.constant 0 : i32
    %c0_i32_1 = arith.constant 0 : i32
    return %c0_i32, %c0_i32_0 : i32, i32
  }
  func.func @transform_8(%arg0: i32) -> (i32, i32) {
    %c0_i32 = arith.constant 0 : i32
    %c0_i32_0 = arith.constant 0 : i32
    %c0_i32_1 = arith.constant 0 : i32
    return %c0_i32, %c0_i32_0 : i32, i32
  }
  func.func @transform_9(%arg0: i32) -> (i32, i32) {
    %c0_i32 = arith.constant 0 : i32
    %c0_i32_0 = arith.constant 0 : i32
    %c0_i32_1 = arith.constant 0 : i32
    return %c0_i32, %c0_i32_0 : i32, i32
  }
  func.func @transform_10(%arg0: i32) -> (i32, i32) {
    %c0_i32 = arith.constant 0 : i32
    %c0_i32_0 = arith.constant 0 : i32
    %c0_i32_1 = arith.constant 0 : i32
    return %c0_i32, %c0_i32_0 : i32, i32
  }
  func.func @transform_11(%arg0: i32) -> (i32, i32) {
    %c0_i32 = arith.constant 0 : i32
    %c0_i32_0 = arith.constant 0 : i32
    %c0_i32_1 = arith.constant 0 : i32
    return %c0_i32, %c0_i32_0 : i32, i32
  }
  func.func @transform_12(%arg0: i32) -> (i32, i32) {
    %c0_i32 = arith.constant 0 : i32
    %c0_i32_0 = arith.constant 0 : i32
    %c0_i32_1 = arith.constant 0 : i32
    return %c0_i32, %c0_i32_0 : i32, i32
  }
  func.func @transform_13(%arg0: i32) -> (i32, i32) {
    %c0_i32 = arith.constant 0 : i32
    %c0_i32_0 = arith.constant 0 : i32
    %c0_i32_1 = arith.constant 0 : i32
    return %c0_i32, %c0_i32_0 : i32, i32
  }
  func.func @transform_14(%arg0: i32) -> (i32, i32) {
    %c0_i32 = arith.constant 0 : i32
    %c0_i32_0 = arith.constant 0 : i32
    %c0_i32_1 = arith.constant 0 : i32
    return %c0_i32, %c0_i32_0 : i32, i32
  }
  func.func @transform_15(%arg0: i32) -> (i32, i32) {
    %c0_i32 = arith.constant 0 : i32
    %c0_i32_0 = arith.constant 0 : i32
    %c0_i32_1 = arith.constant 0 : i32
    return %c0_i32, %c0_i32_0 : i32, i32
  }
  func.func @transform_16(%arg0: i32) -> (i32, i32) {
    %c0_i32 = arith.constant 0 : i32
    %c0_i32_0 = arith.constant 0 : i32
    %c0_i32_1 = arith.constant 0 : i32
    return %c0_i32, %c0_i32_0 : i32, i32
  }
  func.func @transform_17(%arg0: i32) -> (i32, i32, i32) {
    %c0_i32 = arith.constant 0 : i32
    %c0_i32_0 = arith.constant 0 : i32
    %c0_i32_1 = arith.constant 0 : i32
    return %arg0, %c0_i32, %c0_i32_0 : i32, i32, i32
  }
}

</mosaic_0001>

<llo_original>
// kernel: eq.10
$region0: #{eq.10}
  %s0 = inlined_call_operand.vmem [shape: s32[2,64], index: 0, kind: input, shape index: {}]
  %s1 = inlined_call_operand.vmem [shape: s32[128], index: 1, kind: output, shape index: {}]
  $region1: #{eq.10} parent=0
    #allocation0 [shape = 'u8[4096]{0}', space=vmem, size = 0x1000, scoped, tag = 'scoped mem for output reshape']
    #allocation1 [shape = 'u8[4096]{0}', space=vmem, size = 0x1000, scoped, tag = 'scoped mem for input reshape']
    %s3 = sshllo.u32 0, 2
    %v4 = vld [vmem:[%s0] sm:%s3]
    %5 = vst [vmem:[#allocation1] sm:%s3] %v4
    %v6 = vld [vmem:[#allocation1] sm:$0x1]
    %vm7 = vcmask 523264
    %8 = vst.msk [vmem:[#allocation0] sm:$0x1] %vm7, %v6
    %s9 = scalar_lea.vmem [#allocation1], 1
    %v10 = vld [vmem:[%s9] sm:$0x1]
    %11 = vrot.lane.b32.xlu0 %v10, 64
    %v12 = vpop.permute.xlu0 %11
    %vm13 = vcmask 1048064
    %14 = vst.msk [vmem:[#allocation0] sm:$0x1] %vm13, %v12
    %s16 = sshllo.u32 0, 1
    %v18 = vld [vmem:[#allocation0] sm:%s16]
    %s19 = sshllo.u32 0, 1
    %20 = vst [vmem:[%s1] sm:%s19] %v18

// kernel: _down_impl.1
$region0: #{_down_impl.1}
  #allocation0 [shape = 'u32[]', space=smem, size = 0x4, offset = 0x4, fixed_abs, tag = 'smem constant byte address 0x4 - core index']
  #allocation1 [shape = 'u32[144,128]{1,0:T(1,128)}', space=vmem, size = 0x12000, scoped, tag = 'internal scratch']
  %s0 = inlined_call_operand.hbm [shape: f32[1,4,8,128], index: 0, kind: input, shape index: {}]
  %s1 = inlined_call_operand.hbm [shape: f32[1,8,2], index: 1, kind: input, shape index: {}]
  %s2 = inlined_call_operand.hbm [shape: f32[9,1,128], index: 2, kind: input, shape index: {}]
  %s3 = inlined_call_operand.hbm [shape: f32[128,2], index: 3, kind: input, shape index: {}]
  %s4 = inlined_call_operand.hbm [shape: f32[2,128], index: 4, kind: input, shape index: {}]
  %s5 = inlined_call_operand.hbm [shape: f32[8,72], index: 5, kind: input, shape index: {}]
  %s6 = inlined_call_operand.hbm [shape: f32[8,1], index: 6, kind: input, shape index: {}]
  %s7 = inlined_call_operand.hbm [shape: f32[8,1], index: 7, kind: input, shape index: {}]
  %s8 = inlined_call_operand.hbm [shape: f32[8,72], index: 8, kind: input, shape index: {}]
  %s9 = inlined_call_operand.hbm [shape: f32[8,1], index: 9, kind: input, shape index: {}]
  %s10 = inlined_call_operand.hbm [shape: f32[8,1], index: 10, kind: input, shape index: {}]
  %s11 = inlined_call_operand.hbm [shape: f32[8,72], index: 11, kind: input, shape index: {}]
  %s12 = inlined_call_operand.hbm [shape: f32[8,1], index: 12, kind: input, shape index: {}]
  %s13 = inlined_call_operand.hbm [shape: f32[8,1], index: 13, kind: input, shape index: {}]
  %s14 = inlined_call_operand.hbm [shape: f32[8,72], index: 14, kind: input, shape index: {}]
  %s15 = inlined_call_operand.hbm [shape: f32[8,1], index: 15, kind: input, shape index: {}]
  %s16 = inlined_call_operand.hbm [shape: f32[8,1], index: 16, kind: input, shape index: {}]
  %s17 = inlined_call_operand.hbm [shape: f32[1,8,128], index: 17, kind: output, shape index: {}]
  %s18 = sld [smem:[#allocation0]]
  $region146: #{_down_impl.1} parent=0
    _
  %s20 = ssub.s32 1, %s18
  %s21 = scalar_select 0, %s20, %s18
  $region1: #{_down_impl.1} parent=0
    #allocation2 [shape = 'u8[16384]{0}', space=vmem, size = 0x4000, scoped, tag = 'input window, operand 0, single buffered']
    #allocation3 [shape = 's32[1]{0}', space=sflag, size = 0x4, scoped, tag = 'scoped memory for _down_impl.1']
    #allocation4 [shape = 's32[1]{0}', space=sflag, size = 0x4, scoped, tag = 'scoped memory for _down_impl.1']
    #allocation5 [shape = 'u8[4096]{0}', space=vmem, size = 0x1000, scoped, tag = 'input window, operand 1, single buffered']
    #allocation6 [shape = 's32[1]{0}', space=sflag, size = 0x4, scoped, tag = 'scoped memory for _down_impl.1']
    #allocation7 [shape = 'u8[4608]{0}', space=vmem, size = 0x1400, scoped, tag = 'input window, operand 2, single buffered']
    #allocation8 [shape = 'u8[65536]{0}', space=vmem, size = 0x10000, scoped, tag = 'input window, operand 3, single buffered']
    #allocation9 [shape = 's32[1]{0}', space=sflag, size = 0x4, scoped, tag = 'scoped memory for _down_impl.1']
    #allocation10 [shape = 'u8[1024]{0}', space=vmem, size = 0x400, scoped, tag = 'input window, operand 4, single buffered']
    #allocation11 [shape = 'u8[4096]{0}', space=vmem, size = 0x1000, scoped, tag = 'input window, operand 5, single buffered']
    #allocation12 [shape = 's32[1]{0}', space=sflag, size = 0x4, scoped, tag = 'scoped memory for _down_impl.1']
    #allocation13 [shape = 'u8[4096]{0}', space=vmem, size = 0x1000, scoped, tag = 'input window, operand 6, single buffered']
    #allocation14 [shape = 'u8[4096]{0}', space=vmem, size = 0x1000, scoped, tag = 'input window, operand 7, single buffered']
    #allocation15 [shape = 's32[1]{0}', space=sflag, size = 0x4, scoped, tag = 'scoped memory for _down_impl.1']
    #allocation16 [shape = 'u8[4096]{0}', space=vmem, size = 0x1000, scoped, tag = 'input window, operand 8, single buffered']
    #allocation17 [shape = 'u8[4096]{0}', space=vmem, size = 0x1000, scoped, tag = 'input window, operand 9, single buffered']
    #allocation18 [shape = 's32[1]{0}', space=sflag, size = 0x4, scoped, tag = 'scoped memory for _down_impl.1']
    #allocation19 [shape = 'u8[4096]{0}', space=vmem, size = 0x1000, scoped, tag = 'input window, operand 10, single buffered']
    #allocation20 [shape = 'u8[4096]{0}', space=vmem, size = 0x1000, scoped, tag = 'input window, operand 11, single buffered']
    #allocation21 [shape = 's32[1]{0}', space=sflag, size = 0x4, scoped, tag = 'scoped memory for _down_impl.1']
    #allocation22 [shape = 'u8[4096]{0}', space=vmem, size = 0x1000, scoped, tag = 'input window, operand 12, single buffered']
    #allocation23 [shape = 'u8[4096]{0}', space=vmem, size = 0x1000, scoped, tag = 'input window, operand 13, single buffered']
    #allocation24 [shape = 's32[1]{0}', space=sflag, size = 0x4, scoped, tag = 'scoped memory for _down_impl.1']
    #allocation25 [shape = 'u8[4096]{0}', space=vmem, size = 0x1000, scoped, tag = 'input window, operand 14, single buffered']
    #allocation26 [shape = 'u8[4096]{0}', space=vmem, size = 0x1000, scoped, tag = 'input window, operand 15, single buffered']
    #allocation27 [shape = 's32[1]{0}', space=sflag, size = 0x4, scoped, tag = 'scoped memory for _down_impl.1']
    #allocation28 [shape = 'u8[4096]{0}', space=vmem, size = 0x1000, scoped, tag = 'input window, operand 16, single buffered']
    #allocation29 [shape = 'u8[4096]{0}', space=vmem, size = 0x1000, scoped, tag = 'output window, operand 0, single buffered']
    %22 = vsyncpa [#allocation3], 0
    %23 = vsyncpa [#allocation6], 0
    %24 = vsyncpa [#allocation9], 0
    %25 = vsyncpa [#allocation12], 0
    %26 = vsyncpa [#allocation15], 0
    %27 = vsyncpa [#allocation18], 0
    %28 = vsyncpa [#allocation21], 0
    %29 = vsyncpa [#allocation24], 0
    %30 = vsyncpa [#allocation27], 0
    %31 = vsyncpa [#allocation4], 0
    // Predicated region
    $region2: #{_down_impl.1} parent=1 // pred_check
      _
    $region3: #{_down_impl.1} parent=1 // pred_check_branch
      %33 = sbr.rel (0) target = $region5
    $region4: #{_down_impl.1} parent=1 // pred_region
      %s35 = ssub.s32 512, 512
      %36 = vsyncadd [#allocation3], %s35
      %s37 = sshll.u32 [#allocation2], 4
      %s38 = int_to_ptr.vmem [resolvable:$true] %s37
      %43 = dma.hbm_to_vmem [thread:$0]  %s0, 512, %s38, [#allocation3], 128, 128, 8
    $region5: #{_down_impl.1} parent=1 // pred_fallthru
      _
    // Predicated region
    $region6: #{_down_impl.1} parent=1 // pred_check
      _
    $region7: #{_down_impl.1} parent=1 // pred_check_branch
      %45 = sbr.rel (0) target = $region9
    $region8: #{_down_impl.1} parent=1 // pred_region
      %s47 = ssub.s32 128, 128
      %48 = vsyncadd [#allocation6], %s47
      %s50 = sshll.u32 [#allocation5], 4
      %s51 = int_to_ptr.vmem [resolvable:$true] %s50
      %53 = dma.hbm_to_vmem [thread:$0]  %s1, 128, %s51, [#allocation6]
    $region9: #{_down_impl.1} parent=1 // pred_fallthru
      _
    // Predicated region
    $region10: #{_down_impl.1} parent=1 // pred_check
      _
    $region11: #{_down_impl.1} parent=1 // pred_check_branch
      %55 = sbr.rel (0) target = $region13
    $region12: #{_down_impl.1} parent=1 // pred_region
      %s57 = ssub.s32 144, 144
      %58 = vsyncadd [#allocation6], %s57
      %s59 = sshll.u32 [#allocation7], 4
      %s60 = int_to_ptr.vmem [resolvable:$true] %s59
      %65 = dma.hbm_to_vmem [thread:$0]  %s2, 144, %s60, [#allocation6], 16, 16, 1
    $region13: #{_down_impl.1} parent=1 // pred_fallthru
      _
    // Predicated region
    $region14: #{_down_impl.1} parent=1 // pred_check
      _
    $region15: #{_down_impl.1} parent=1 // pred_check_branch
      %67 = sbr.rel (0) target = $region17
    $region16: #{_down_impl.1} parent=1 // pred_region
      %s69 = ssub.s32 2048, 2048
      %70 = vsyncadd [#allocation9], %s69
      %s71 = sshll.u32 [#allocation8], 4
      %s72 = int_to_ptr.vmem [resolvable:$true] %s71
      %77 = dma.hbm_to_vmem [thread:$0]  %s3, 2048, %s72, [#allocation9], 128, 128, 8
    $region17: #{_down_impl.1} parent=1 // pred_fallthru
      _
    // Predicated region
    $region18: #{_down_impl.1} parent=1 // pred_check
      _
    $region19: #{_down_impl.1} parent=1 // pred_check_branch
      %79 = sbr.rel (0) target = $region21
    $region20: #{_down_impl.1} parent=1 // pred_region
      %s81 = ssub.s32 32, 32
      %82 = vsyncadd [#allocation9], %s81
      %s84 = sshll.u32 [#allocation10], 4
      %s85 = int_to_ptr.vmem [resolvable:$true] %s84
      %87 = dma.hbm_to_vmem [thread:$0]  %s4, 32, %s85, [#allocation9]
    $region21: #{_down_impl.1} parent=1 // pred_fallthru
      _
    // Predicated region
    $region22: #{_down_impl.1} parent=1 // pred_check
      _
    $region23: #{_down_impl.1} parent=1 // pred_check_branch
      %89 = sbr.rel (0) target = $region25
    $region24: #{_down_impl.1} parent=1 // pred_region
      %s91 = ssub.s32 128, 128
      %92 = vsyncadd [#allocation12], %s91
      %s94 = sshll.u32 [#allocation11], 4
      %s95 = int_to_ptr.vmem [resolvable:$true] %s94
      %97 = dma.hbm_to_vmem [thread:$0]  %s5, 128, %s95, [#allocation12]
    $region25: #{_down_impl.1} parent=1 // pred_fallthru
      _
    // Predicated region
    $region26: #{_down_impl.1} parent=1 // pred_check
      _
    $region27: #{_down_impl.1} parent=1 // pred_check_branch
      %99 = sbr.rel (0) target = $region29
    $region28: #{_down_impl.1} parent=1 // pred_region
      %s101 = ssub.s32 128, 128
      %102 = vsyncadd [#allocation12], %s101
      %s104 = sshll.u32 [#allocation13], 4
      %s105 = int_to_ptr.vmem [resolvable:$true] %s104
      %107 = dma.hbm_to_vmem [thread:$0]  %s6, 128, %s105, [#allocation12]
    $region29: #{_down_impl.1} parent=1 // pred_fallthru
      _
    // Predicated region
    $region30: #{_down_impl.1} parent=1 // pred_check
      _
    $region31: #{_down_impl.1} parent=1 // pred_check_branch
      %109 = sbr.rel (0) target = $region33
    $region32: #{_down_impl.1} parent=1 // pred_region
      %s111 = ssub.s32 128, 128
      %112 = vsyncadd [#allocation15], %s111
      %s114 = sshll.u32 [#allocation14], 4
      %s115 = int_to_ptr.vmem [resolvable:$true] %s114
      %117 = dma.hbm_to_vmem [thread:$0]  %s7, 128, %s115, [#allocation15]
    $region33: #{_down_impl.1} parent=1 // pred_fallthru
      _
    // Predicated region
    $region34: #{_down_impl.1} parent=1 // pred_check
      _
    $region35: #{_down_impl.1} parent=1 // pred_check_branch
      %119 = sbr.rel (0) target = $region37
    $region36: #{_down_impl.1} parent=1 // pred_region
      %s121 = ssub.s32 128, 128
      %122 = vsyncadd [#allocation15], %s121
      %s124 = sshll.u32 [#allocation16], 4
      %s125 = int_to_ptr.vmem [resolvable:$true] %s124
      %127 = dma.hbm_to_vmem [thread:$0]  %s8, 128, %s125, [#allocation15]
    $region37: #{_down_impl.1} parent=1 // pred_fallthru
      _
    // Predicated region
    $region38: #{_down_impl.1} parent=1 // pred_check
      _
    $region39: #{_down_impl.1} parent=1 // pred_check_branch
      %129 = sbr.rel (0) target = $region41
    $region40: #{_down_impl.1} parent=1 // pred_region
      %s131 = ssub.s32 128, 128
      %132 = vsyncadd [#allocation18], %s131
      %s134 = sshll.u32 [#allocation17], 4
      %s135 = int_to_ptr.vmem [resolvable:$true] %s134
      %137 = dma.hbm_to_vmem [thread:$0]  %s9, 128, %s135, [#allocation18]
    $region41: #{_down_impl.1} parent=1 // pred_fallthru
      _
    // Predicated region
    $region42: #{_down_impl.1} parent=1 // pred_check
      _
    $region43: #{_down_impl.1} parent=1 // pred_check_branch
      %139 = sbr.rel (0) target = $region45
    $region44: #{_down_impl.1} parent=1 // pred_region
      %s141 = ssub.s32 128, 128
      %142 = vsyncadd [#allocation18], %s141
      %s144 = sshll.u32 [#allocation19], 4
      %s145 = int_to_ptr.vmem [resolvable:$true] %s144
      %147 = dma.hbm_to_vmem [thread:$0]  %s10, 128, %s145, [#allocation18]
    $region45: #{_down_impl.1} parent=1 // pred_fallthru
      _
    // Predicated region
    $region46: #{_down_impl.1} parent=1 // pred_check
      _
    $region47: #{_down_impl.1} parent=1 // pred_check_branch
      %149 = sbr.rel (0) target = $region49
    $region48: #{_down_impl.1} parent=1 // pred_region
      %s151 = ssub.s32 128, 128
      %152 = vsyncadd [#allocation21], %s151
      %s154 = sshll.u32 [#allocation20], 4
      %s155 = int_to_ptr.vmem [resolvable:$true] %s154
      %157 = dma.hbm_to_vmem [thread:$0]  %s11, 128, %s155, [#allocation21]
    $region49: #{_down_impl.1} parent=1 // pred_fallthru
      _
    // Predicated region
    $region50: #{_down_impl.1} parent=1 // pred_check
      _
    $region51: #{_down_impl.1} parent=1 // pred_check_branch
      %159 = sbr.rel (0) target = $region53
    $region52: #{_down_impl.1} parent=1 // pred_region
      %s161 = ssub.s32 128, 128
      %162 = vsyncadd [#allocation21], %s161
      %s164 = sshll.u32 [#allocation22], 4
      %s165 = int_to_ptr.vmem [resolvable:$true] %s164
      %167 = dma.hbm_to_vmem [thread:$0]  %s12, 128, %s165, [#allocation21]
    $region53: #{_down_impl.1} parent=1 // pred_fallthru
      _
    // Predicated region
    $region54: #{_down_impl.1} parent=1 // pred_check
      _
    $region55: #{_down_impl.1} parent=1 // pred_check_branch
      %169 = sbr.rel (0) target = $region57
    $region56: #{_down_impl.1} parent=1 // pred_region
      %s171 = ssub.s32 128, 128
      %172 = vsyncadd [#allocation24], %s171
      %s174 = sshll.u32 [#allocation23], 4
      %s175 = int_to_ptr.vmem [resolvable:$true] %s174
      %177 = dma.hbm_to_vmem [thread:$0]  %s13, 128, %s175, [#allocation24]
    $region57: #{_down_impl.1} parent=1 // pred_fallthru
      _
    // Predicated region
    $region58: #{_down_impl.1} parent=1 // pred_check
      _
    $region59: #{_down_impl.1} parent=1 // pred_check_branch
      %179 = sbr.rel (0) target = $region61
    $region60: #{_down_impl.1} parent=1 // pred_region
      %s181 = ssub.s32 128, 128
      %182 = vsyncadd [#allocation24], %s181
      %s184 = sshll.u32 [#allocation25], 4
      %s185 = int_to_ptr.vmem [resolvable:$true] %s184
      %187 = dma.hbm_to_vmem [thread:$0]  %s14, 128, %s185, [#allocation24]
    $region61: #{_down_impl.1} parent=1 // pred_fallthru
      _
    // Predicated region
    $region62: #{_down_impl.1} parent=1 // pred_check
      _
    $region63: #{_down_impl.1} parent=1 // pred_check_branch
      %189 = sbr.rel (0) target = $region65
    $region64: #{_down_impl.1} parent=1 // pred_region
      %s191 = ssub.s32 128, 128
      %192 = vsyncadd [#allocation27], %s191
      %s194 = sshll.u32 [#allocation26], 4
      %s195 = int_to_ptr.vmem [resolvable:$true] %s194
      %197 = dma.hbm_to_vmem [thread:$0]  %s15, 128, %s195, [#allocation27]
    $region65: #{_down_impl.1} parent=1 // pred_fallthru
      _
    // Predicated region
    $region66: #{_down_impl.1} parent=1 // pred_check
      _
    $region67: #{_down_impl.1} parent=1 // pred_check_branch
      %199 = sbr.rel (0) target = $region69
    $region68: #{_down_impl.1} parent=1 // pred_region
      %s201 = ssub.s32 128, 128
      %202 = vsyncadd [#allocation27], %s201
      %s204 = sshll.u32 [#allocation28], 4
      %s205 = int_to_ptr.vmem [resolvable:$true] %s204
      %207 = dma.hbm_to_vmem [thread:$0]  %s16, 128, %s205, [#allocation27]
    $region69: #{_down_impl.1} parent=1 // pred_fallthru
      _
    // Predicated region
    $region70: #{_down_impl.1} parent=1 // pred_check
      _
    $region71: #{_down_impl.1} parent=1 // pred_check_branch
      %209 = sbr.rel (0) target = $region73
    $region72: #{_down_impl.1} parent=1 // pred_region
      %210 = dma.done [#allocation3], 512
    $region73: #{_down_impl.1} parent=1 // pred_fallthru
      _
    // Predicated region
    $region74: #{_down_impl.1} parent=1 // pred_check
      _
    $region75: #{_down_impl.1} parent=1 // pred_check_branch
      %212 = sbr.rel (0) target = $region77
    $region76: #{_down_impl.1} parent=1 // pred_region
      %213 = dma.done [#allocation6], 128
    $region77: #{_down_impl.1} parent=1 // pred_fallthru
      _
    // Predicated region
    $region78: #{_down_impl.1} parent=1 // pred_check
      _
    $region79: #{_down_impl.1} parent=1 // pred_check_branch
      %215 = sbr.rel (0) target = $region81
    $region80: #{_down_impl.1} parent=1 // pred_region
      %216 = dma.done [#allocation6], 144
    $region81: #{_down_impl.1} parent=1 // pred_fallthru
      _
    // Predicated region
    $region82: #{_down_impl.1} parent=1 // pred_check
      _
    $region83: #{_down_impl.1} parent=1 // pred_check_branch
      %218 = sbr.rel (0) target = $region85
    $region84: #{_down_impl.1} parent=1 // pred_region
      %219 = dma.done [#allocation9], 2048
    $region85: #{_down_impl.1} parent=1 // pred_fallthru
      _
    // Predicated region
    $region86: #{_down_impl.1} parent=1 // pred_check
      _
    $region87: #{_down_impl.1} parent=1 // pred_check_branch
      %221 = sbr.rel (0) target = $region89
    $region88: #{_down_impl.1} parent=1 // pred_region
      %222 = dma.done [#allocation9], 32
    $region89: #{_down_impl.1} parent=1 // pred_fallthru
      _
    // Predicated region
    $region90: #{_down_impl.1} parent=1 // pred_check
      _
    $region91: #{_down_impl.1} parent=1 // pred_check_branch
      %224 = sbr.rel (0) target = $region93
    $region92: #{_down_impl.1} parent=1 // pred_region
      %225 = dma.done [#allocation12], 128
    $region93: #{_down_impl.1} parent=1 // pred_fallthru
      _
    // Predicated region
    $region94: #{_down_impl.1} parent=1 // pred_check
      _
    $region95: #{_down_impl.1} parent=1 // pred_check_branch
      %227 = sbr.rel (0) target = $region97
    $region96: #{_down_impl.1} parent=1 // pred_region
      %228 = dma.done [#allocation12], 128
    $region97: #{_down_impl.1} parent=1 // pred_fallthru
      _
    // Predicated region
    $region98: #{_down_impl.1} parent=1 // pred_check
      _
    $region99: #{_down_impl.1} parent=1 // pred_check_branch
      %230 = sbr.rel (0) target = $region101
    $region100: #{_down_impl.1} parent=1 // pred_region
      %231 = dma.done [#allocation15], 128
    $region101: #{_down_impl.1} parent=1 // pred_fallthru
      _
    // Predicated region
    $region102: #{_down_impl.1} parent=1 // pred_check
      _
    $region103: #{_down_impl.1} parent=1 // pred_check_branch
      %233 = sbr.rel (0) target = $region105
    $region104: #{_down_impl.1} parent=1 // pred_region
      %234 = dma.done [#allocation15], 128
    $region105: #{_down_impl.1} parent=1 // pred_fallthru
      _
    // Predicated region
    $region106: #{_down_impl.1} parent=1 // pred_check
      _
    $region107: #{_down_impl.1} parent=1 // pred_check_branch
      %236 = sbr.rel (0) target = $region109
    $region108: #{_down_impl.1} parent=1 // pred_region
      %237 = dma.done [#allocation18], 128
    $region109: #{_down_impl.1} parent=1 // pred_fallthru
      _
    // Predicated region
    $region110: #{_down_impl.1} parent=1 // pred_check
      _
    $region111: #{_down_impl.1} parent=1 // pred_check_branch
      %239 = sbr.rel (0) target = $region113
    $region112: #{_down_impl.1} parent=1 // pred_region
      %240 = dma.done [#allocation18], 128
    $region113: #{_down_impl.1} parent=1 // pred_fallthru
      _
    // Predicated region
    $region114: #{_down_impl.1} parent=1 // pred_check
      _
    $region115: #{_down_impl.1} parent=1 // pred_check_branch
      %242 = sbr.rel (0) target = $region117
    $region116: #{_down_impl.1} parent=1 // pred_region
      %243 = dma.done [#allocation21], 128
    $region117: #{_down_impl.1} parent=1 // pred_fallthru
      _
    // Predicated region
    $region118: #{_down_impl.1} parent=1 // pred_check
      _
    $region119: #{_down_impl.1} parent=1 // pred_check_branch
      %245 = sbr.rel (0) target = $region121
    $region120: #{_down_impl.1} parent=1 // pred_region
      %246 = dma.done [#allocation21], 128
    $region121: #{_down_impl.1} parent=1 // pred_fallthru
      _
    // Predicated region
    $region122: #{_down_impl.1} parent=1 // pred_check
      _
    $region123: #{_down_impl.1} parent=1 // pred_check_branch
      %248 = sbr.rel (0) target = $region125
    $region124: #{_down_impl.1} parent=1 // pred_region
      %249 = dma.done [#allocation24], 128
    $region125: #{_down_impl.1} parent=1 // pred_fallthru
      _
    // Predicated region
    $region126: #{_down_impl.1} parent=1 // pred_check
      _
    $region127: #{_down_impl.1} parent=1 // pred_check_branch
      %251 = sbr.rel (0) target = $region129
    $region128: #{_down_impl.1} parent=1 // pred_region
      %252 = dma.done [#allocation24], 128
    $region129: #{_down_impl.1} parent=1 // pred_fallthru
      _
    // Predicated region
    $region130: #{_down_impl.1} parent=1 // pred_check
      _
    $region131: #{_down_impl.1} parent=1 // pred_check_branch
      %254 = sbr.rel (0) target = $region133
    $region132: #{_down_impl.1} parent=1 // pred_region
      %255 = dma.done [#allocation27], 128
    $region133: #{_down_impl.1} parent=1 // pred_fallthru
      _
    // Predicated region
    $region134: #{_down_impl.1} parent=1 // pred_check
      _
    $region135: #{_down_impl.1} parent=1 // pred_check_branch
      %257 = sbr.rel (0) target = $region137
    $region136: #{_down_impl.1} parent=1 // pred_region
      %258 = dma.done [#allocation27], 128
    $region137: #{_down_impl.1} parent=1 // pred_fallthru
      _
    %v259 = vld [vmem:[#allocation8] sm:$0xff]
    %v260 = vld [vmem:[#allocation8 + $0x8] sm:$0xff]
    %v261 = vld [vmem:[#allocation8 + $0x10] sm:$0xff]
    %v262 = vld [vmem:[#allocation8 + $0x18] sm:$0xff]
    %v263 = vld [vmem:[#allocation8 + $0x20] sm:$0xff]
    %v264 = vld [vmem:[#allocation8 + $0x28] sm:$0xff]
    %v265 = vld [vmem:[#allocation8 + $0x30] sm:$0xff]
    %v266 = vld [vmem:[#allocation8 + $0x38] sm:$0xff]
    %v267 = vld [vmem:[#allocation8 + $0x40] sm:$0xff]
    %v268 = vld [vmem:[#allocation8 + $0x48] sm:$0xff]
    %v269 = vld [vmem:[#allocation8 + $0x50] sm:$0xff]
    %v270 = vld [vmem:[#allocation8 + $0x58] sm:$0xff]
    %v271 = vld [vmem:[#allocation8 + $0x60] sm:$0xff]
    %v272 = vld [vmem:[#allocation8 + $0x68] sm:$0xff]
    %v273 = vld [vmem:[#allocation8 + $0x70] sm:$0xff]
    %v274 = vld [vmem:[#allocation8 + $0x78] sm:$0xff]
    %v275 = vld [vmem:[#allocation10] sm:$0x3]
    %v276 = vld [vmem:[#allocation7] sm:$0x1]
    %s277 = scalar_lea.vmem [#allocation7], 1
    %v278 = vld [vmem:[%s277] sm:$0x1]
    %s279 = scalar_lea.vmem [#allocation7], 2
    %v280 = vld [vmem:[%s279] sm:$0x1]
    %s281 = scalar_lea.vmem [#allocation7], 3
    %v282 = vld [vmem:[%s281] sm:$0x1]
    %s283 = scalar_lea.vmem [#allocation7], 5
    %v284 = vld [vmem:[%s283] sm:$0x1]
    %s285 = scalar_lea.vmem [#allocation7], 6
    %v286 = vld [vmem:[%s285] sm:$0x1]
    %s287 = scalar_lea.vmem [#allocation7], 7
    %v288 = vld [vmem:[%s287] sm:$0x1]
    %s289 = scalar_lea.vmem [#allocation7], 8
    %v290 = vld [vmem:[%s289] sm:$0x1]
    %v291 = vld [vmem:[#allocation2] sm:$0xff]
    %s292 = scalar_lea.vmem [#allocation2], 8
    %v293 = vld [vmem:[%s292] sm:$0xff]
    %v294 = vmax.f32 %v291, %v293
    %s295 = scalar_lea.vmem [#allocation2], 16
    %v296 = vld [vmem:[%s295] sm:$0xff]
    %s297 = scalar_lea.vmem [#allocation2], 24
    %v298 = vld [vmem:[%s297] sm:$0xff]
    %v299 = vmax.f32 %v296, %v298
    %v300 = vmax.f32 %v294, %v299
    %301 = vrot.lane.b32.xlu0 %v300, 9
    %v302 = vpop.permute.xlu0 %301
    %v304 = vlaneseq
    %v305 = vshrl.u32 %v304, 7
    %v306 = vsub.s32 0, %v305
    %v307 = vrot.slane %v276, %v306
    %v309 = vmul.f32 %v302, %v307
    %310 = vrot.lane.b32.xlu0 %v300, 8
    %v311 = vpop.permute.xlu0 %310
    %v313 = vlaneseq
    %v314 = vshrl.u32 %v313, 7
    %v315 = vsub.s32 0, %v314
    %v316 = vrot.slane %v278, %v315
    %v318 = vmul.f32 %v311, %v316
    %319 = vrot.lane.b32.xlu0 %v300, 7
    %v320 = vpop.permute.xlu0 %319
    %v322 = vlaneseq
    %v323 = vshrl.u32 %v322, 7
    %v324 = vsub.s32 0, %v323
    %v325 = vrot.slane %v280, %v324
    %v327 = vmul.f32 %v320, %v325
    %328 = vrot.lane.b32.xlu0 %v300, 1
    %v329 = vpop.permute.xlu0 %328
    %v331 = vlaneseq
    %v332 = vshrl.u32 %v331, 7
    %v333 = vsub.s32 0, %v332
    %v334 = vrot.slane %v282, %v333
    %v336 = vmul.f32 %v329, %v334
    %337 = vrot.lane.b32.xlu0 %v300, 127
    %v338 = vpop.permute.xlu0 %337
    %v340 = vlaneseq
    %v341 = vshrl.u32 %v340, 7
    %v342 = vsub.s32 0, %v341
    %v343 = vrot.slane %v284, %v342
    %v345 = vmul.f32 %v338, %v343
    %346 = vrot.lane.b32.xlu0 %v300, 121
    %v347 = vpop.permute.xlu0 %346
    %v349 = vlaneseq
    %v350 = vshrl.u32 %v349, 7
    %v351 = vsub.s32 0, %v350
    %v352 = vrot.slane %v286, %v351
    %v354 = vmul.f32 %v347, %v352
    %355 = vrot.lane.b32.xlu0 %v300, 120
    %v356 = vpop.permute.xlu0 %355
    %v358 = vlaneseq
    %v359 = vshrl.u32 %v358, 7
    %v360 = vsub.s32 0, %v359
    %v361 = vrot.slane %v288, %v360
    %v363 = vmul.f32 %v356, %v361
    %364 = vrot.lane.b32.xlu0 %v300, 119
    %v365 = vpop.permute.xlu0 %364
    %v367 = vlaneseq
    %v368 = vshrl.u32 %v367, 7
    %v369 = vsub.s32 0, %v368
    %v370 = vrot.slane %v290, %v369
    %v372 = vmul.f32 %v365, %v370
    %v373 = vld [vmem:[#allocation11] sm:$0xff]
    %vm374 = vcmask 588800
    %v376 = vsel %vm374, %v373, 0
    %378 = vmatprep.subr.mxu0 0.0
    %379 = vmatpush1.msra.mxu0 %v309
    %380 = vmatprep.subr.mxu0 0.0
    %381 = vmatpush1.msra.mxu0 %v318
    %382 = vmatprep.subr.mxu0 0.0
    %383 = vmatpush1.msra.mxu0 %v327
    %384 = vmatprep.subr.mxu0 0.0
    %385 = vmatpush1.msra.mxu0 %v336
    %386 = vmatprep.subr.mxu0 0.0
    %387 = vmatpush1.msra.mxu0 %v300
    %388 = vmatprep.subr.mxu0 0.0
    %389 = vmatpush1.msra.mxu0 %v345
    %390 = vmatprep.subr.mxu0 0.0
    %391 = vmatpush1.msra.mxu0 %v354
    %392 = vmatprep.subr.mxu0 0.0
    %393 = vmatpush1.msra.mxu0 %v363
    %394 = vmatprep.subr.mxu0 0.0
    %395 = vmatpush1.msra.mxu0 %v372
    %396 = vmatprep.subr.mxu0 0.0
    %397 = vmatpush1.msra.mxu0 0.0
    %398 = vmatprep.subr.mxu0 0.0
    %399 = vmatpush1.msra.mxu0 0.0
    %400 = vmatprep.subr.mxu0 0.0
    %401 = vmatpush1.msra.mxu0 0.0
    %402 = vmatprep.subr.mxu0 0.0
    %403 = vmatpush1.msra.mxu0 0.0
    %404 = vmatprep.subr.mxu0 0.0
    %405 = vmatpush1.msra.mxu0 0.0
    %406 = vmatprep.subr.mxu0 0.0
    %407 = vmatpush1.msra.mxu0 0.0
    %408 = vmatprep.subr.mxu0 0.0
    %409 = vmatpush1.msra.mxu0 0.0
    %410 = vmatprep.subr.mxu0 0.0
    %411 = vmatpush1.msra.mxu0 0.0
    %412 = vmatprep.subr.mxu0 0.0
    %413 = vmatpush1.msra.mxu0 0.0
    %414 = vmatprep.subr.mxu0 0.0
    %415 = vmatpush1.msra.mxu0 0.0
    %416 = vmatprep.subr.mxu0 0.0
    %417 = vmatpush1.msra.mxu0 0.0
    %418 = vmatprep.subr.mxu0 0.0
    %419 = vmatpush1.msra.mxu0 0.0
    %420 = vmatprep.subr.mxu0 0.0
    %421 = vmatpush1.msra.mxu0 0.0
    %422 = vmatprep.subr.mxu0 0.0
    %423 = vmatpush1.msra.mxu0 0.0
    %424 = vmatprep.subr.mxu0 0.0
    %425 = vmatpush1.msra.mxu0 0.0
    %426 = vmatprep.subr.mxu0 0.0
    %427 = vmatpush1.msra.mxu0 0.0
    %428 = vmatprep.subr.mxu0 0.0
    %429 = vmatpush1.msra.mxu0 0.0
    %430 = vmatprep.subr.mxu0 0.0
    %431 = vmatpush1.msra.mxu0 0.0
    %432 = vmatprep.subr.mxu0 0.0
    %433 = vmatpush1.msra.mxu0 0.0
    %434 = vmatprep.subr.mxu0 0.0
    %435 = vmatpush1.msra.mxu0 0.0
    %436 = vmatprep.subr.mxu0 0.0
    %437 = vmatpush1.msra.mxu0 0.0
    %438 = vmatprep.subr.mxu0 0.0
    %439 = vmatpush1.msra.mxu0 0.0
    %440 = vmatprep.subr.mxu0 0.0
    %441 = vmatpush1.msra.mxu0 0.0
    %442 = vmatprep.mubr.f32.mxu0 0.0
    %443 = vmatmul.mubr.f32.gmra.mrb[0].mxu0 %v376
    %v444 = vpop.f32.mrb[0].mxu0
    %v445 = vadd.f32 0.0, %v444
    %v446 = vpop.f32.mrb[0].mxu0
    %447 = vdwg.mxu0
    %448 = vmatprep.subr.mxu0 0.0
    %449 = vmatpush1.msra.mxu0 %v259
    %450 = vmatprep.subr.mxu0 0.0
    %451 = vmatpush1.msra.mxu0 %v260
    %452 = vmatprep.subr.mxu0 0.0
    %453 = vmatpush1.msra.mxu0 %v261
    %454 = vmatprep.subr.mxu0 0.0
    %455 = vmatpush1.msra.mxu0 %v262
    %456 = vmatprep.subr.mxu0 0.0
    %457 = vmatpush1.msra.mxu0 %v263
    %458 = vmatprep.subr.mxu0 0.0
    %459 = vmatpush1.msra.mxu0 %v264
    %460 = vmatprep.subr.mxu0 0.0
    %461 = vmatpush1.msra.mxu0 %v265
    %462 = vmatprep.subr.mxu0 0.0
    %463 = vmatpush1.msra.mxu0 %v266
    %464 = vmatprep.subr.mxu0 0.0
    %465 = vmatpush1.msra.mxu0 %v267
    %466 = vmatprep.subr.mxu0 0.0
    %467 = vmatpush1.msra.mxu0 %v268
    %468 = vmatprep.subr.mxu0 0.0
    %469 = vmatpush1.msra.mxu0 %v269
    %470 = vmatprep.subr.mxu0 0.0
    %471 = vmatpush1.msra.mxu0 %v270
    %472 = vmatprep.subr.mxu0 0.0
    %473 = vmatpush1.msra.mxu0 %v271
    %474 = vmatprep.subr.mxu0 0.0
    %475 = vmatpush1.msra.mxu0 %v272
    %476 = vmatprep.subr.mxu0 0.0
    %477 = vmatpush1.msra.mxu0 %v273
    %478 = vmatprep.subr.mxu0 0.0
    %479 = vmatpush1.msra.mxu0 %v274
    %480 = vmatprep.subr.mxu0 0.0
    %481 = vmatpush1.msra.mxu0 0.0
    %482 = vmatprep.subr.mxu0 0.0
    %483 = vmatpush1.msra.mxu0 0.0
    %484 = vmatprep.subr.mxu0 0.0
    %485 = vmatpush1.msra.mxu0 0.0
    %486 = vmatprep.subr.mxu0 0.0
    %487 = vmatpush1.msra.mxu0 0.0
    %488 = vmatprep.subr.mxu0 0.0
    %489 = vmatpush1.msra.mxu0 0.0
    %490 = vmatprep.subr.mxu0 0.0
    %491 = vmatpush1.msra.mxu0 0.0
    %492 = vmatprep.subr.mxu0 0.0
    %493 = vmatpush1.msra.mxu0 0.0
    %494 = vmatprep.subr.mxu0 0.0
    %495 = vmatpush1.msra.mxu0 0.0
    %496 = vmatprep.subr.mxu0 0.0
    %497 = vmatpush1.msra.mxu0 0.0
    %498 = vmatprep.subr.mxu0 0.0
    %499 = vmatpush1.msra.mxu0 0.0
    %500 = vmatprep.subr.mxu0 0.0
    %501 = vmatpush1.msra.mxu0 0.0
    %502 = vmatprep.subr.mxu0 0.0
    %503 = vmatpush1.msra.mxu0 0.0
    %504 = vmatprep.subr.mxu0 0.0
    %505 = vmatpush1.msra.mxu0 0.0
    %506 = vmatprep.subr.mxu0 0.0
    %507 = vmatpush1.msra.mxu0 0.0
    %508 = vmatprep.subr.mxu0 0.0
    %509 = vmatpush1.msra.mxu0 0.0
    %510 = vmatprep.subr.mxu0 0.0
    %511 = vmatpush1.msra.mxu0 0.0
    %512 = vmatprep.mubr.f32.mxu0 0.0
    %513 = vmatmul.mubr.f32.gmra.mrb[0].mxu0 %v445
    %v514 = vpop.f32.mrb[0].mxu0
    %v515 = vadd.f32 0.0, %v514
    %v516 = vpop.f32.mrb[0].mxu0
    %517 = vdwg.mxu0
    %v518 = vmul.f32 %v445, %v445
    %519 = vmatprep.subr.mxu0 0.0
    %520 = vmatpush1.msra.mxu0 %v259
    %521 = vmatprep.subr.mxu0 0.0
    %522 = vmatpush1.msra.mxu0 %v260
    %523 = vmatprep.subr.mxu0 0.0
    %524 = vmatpush1.msra.mxu0 %v261
    %525 = vmatprep.subr.mxu0 0.0
    %526 = vmatpush1.msra.mxu0 %v262
    %527 = vmatprep.subr.mxu0 0.0
    %528 = vmatpush1.msra.mxu0 %v263
    %529 = vmatprep.subr.mxu0 0.0
    %530 = vmatpush1.msra.mxu0 %v264
    %531 = vmatprep.subr.mxu0 0.0
    %532 = vmatpush1.msra.mxu0 %v265
    %533 = vmatprep.subr.mxu0 0.0
    %534 = vmatpush1.msra.mxu0 %v266
    %535 = vmatprep.subr.mxu0 0.0
    %536 = vmatpush1.msra.mxu0 %v267
    %537 = vmatprep.subr.mxu0 0.0
    %538 = vmatpush1.msra.mxu0 %v268
    %539 = vmatprep.subr.mxu0 0.0
    %540 = vmatpush1.msra.mxu0 %v269
    %541 = vmatprep.subr.mxu0 0.0
    %542 = vmatpush1.msra.mxu0 %v270
    %543 = vmatprep.subr.mxu0 0.0
    %544 = vmatpush1.msra.mxu0 %v271
    %545 = vmatprep.subr.mxu0 0.0
    %546 = vmatpush1.msra.mxu0 %v272
    %547 = vmatprep.subr.mxu0 0.0
    %548 = vmatpush1.msra.mxu0 %v273
    %549 = vmatprep.subr.mxu0 0.0
    %550 = vmatpush1.msra.mxu0 %v274
    %551 = vmatprep.subr.mxu0 0.0
    %552 = vmatpush1.msra.mxu0 0.0
    %553 = vmatprep.subr.mxu0 0.0
    %554 = vmatpush1.msra.mxu0 0.0
    %555 = vmatprep.subr.mxu0 0.0
    %556 = vmatpush1.msra.mxu0 0.0
    %557 = vmatprep.subr.mxu0 0.0
    %558 = vmatpush1.msra.mxu0 0.0
    %559 = vmatprep.subr.mxu0 0.0
    %560 = vmatpush1.msra.mxu0 0.0
    %561 = vmatprep.subr.mxu0 0.0
    %562 = vmatpush1.msra.mxu0 0.0
    %563 = vmatprep.subr.mxu0 0.0
    %564 = vmatpush1.msra.mxu0 0.0
    %565 = vmatprep.subr.mxu0 0.0
    %566 = vmatpush1.msra.mxu0 0.0
    %567 = vmatprep.subr.mxu0 0.0
    %568 = vmatpush1.msra.mxu0 0.0
    %569 = vmatprep.subr.mxu0 0.0
    %570 = vmatpush1.msra.mxu0 0.0
    %571 = vmatprep.subr.mxu0 0.0
    %572 = vmatpush1.msra.mxu0 0.0
    %573 = vmatprep.subr.mxu0 0.0
    %574 = vmatpush1.msra.mxu0 0.0
    %575 = vmatprep.subr.mxu0 0.0
    %576 = vmatpush1.msra.mxu0 0.0
    %577 = vmatprep.subr.mxu0 0.0
    %578 = vmatpush1.msra.mxu0 0.0
    %579 = vmatprep.subr.mxu0 0.0
    %580 = vmatpush1.msra.mxu0 0.0
    %581 = vmatprep.subr.mxu0 0.0
    %582 = vmatpush1.msra.mxu0 0.0
    %583 = vmatprep.mubr.f32.mxu0 0.0
    %584 = vmatmul.mubr.f32.gmra.mrb[0].mxu0 %v518
    %v585 = vpop.f32.mrb[0].mxu0
    %v586 = vadd.f32 0.0, %v585
    %v587 = vpop.f32.mrb[0].mxu0
    %588 = vdwg.mxu0
    %vm589 = vcmask 15360
    %v590 = vsel %vm589, %v515, 0.0
    %v591 = vrot.slane %v590, 4
    %v592 = vadd.f32 %v590, %v591
    %v593 = vrot.slane %v592, 2
    %v594 = vadd.f32 %v592, %v593
    %v595 = vrot.slane %v594, 1
    %v596 = vadd.f32 %v594, %v595
    %v597 = vmul.f32 %v596, 0.00390625
    %v598 = vsel %vm589, %v586, 0.0
    %v599 = vrot.slane %v598, 4
    %v600 = vadd.f32 %v598, %v599
    %v601 = vrot.slane %v600, 2
    %v602 = vadd.f32 %v600, %v601
    %v603 = vrot.slane %v602, 1
    %v604 = vadd.f32 %v602, %v603
    %v605 = vmul.f32 %v604, 0.00390625
    %v606 = vmul.f32 %v597, %v597
    %v607 = vsub.f32 %v605, %v606
    %v608 = vadd.f32 %v607, 1e-05
    %v609 = vrsqrt.pop %v608
    %v611 = vsel %vm589, %v597, 0
    %vm613 = vcmask 1041408
    %v615 = vsel %vm613, %v275, 0
    %617 = vmatprep.subr.mxu0 0.0
    %618 = vmatpush1.msra.mxu0 %v615
    %619 = vmatprep.subr.mxu0 0.0
    %620 = vmatpush1.msra.mxu0 0.0
    %621 = vmatprep.subr.mxu0 0.0
    %622 = vmatpush1.msra.mxu0 0.0
    %623 = vmatprep.subr.mxu0 0.0
    %624 = vmatpush1.msra.mxu0 0.0
    %625 = vmatprep.subr.mxu0 0.0
    %626 = vmatpush1.msra.mxu0 0.0
    %627 = vmatprep.subr.mxu0 0.0
    %628 = vmatpush1.msra.mxu0 0.0
    %629 = vmatprep.subr.mxu0 0.0
    %630 = vmatpush1.msra.mxu0 0.0
    %631 = vmatprep.subr.mxu0 0.0
    %632 = vmatpush1.msra.mxu0 0.0
    %633 = vmatprep.subr.mxu0 0.0
    %634 = vmatpush1.msra.mxu0 0.0
    %635 = vmatprep.subr.mxu0 0.0
    %636 = vmatpush1.msra.mxu0 0.0
    %637 = vmatprep.subr.mxu0 0.0
    %638 = vmatpush1.msra.mxu0 0.0
    %639 = vmatprep.subr.mxu0 0.0
    %640 = vmatpush1.msra.mxu0 0.0
    %641 = vmatprep.subr.mxu0 0.0
    %642 = vmatpush1.msra.mxu0 0.0
    %643 = vmatprep.subr.mxu0 0.0
    %644 = vmatpush1.msra.mxu0 0.0
    %645 = vmatprep.subr.mxu0 0.0
    %646 = vmatpush1.msra.mxu0 0.0
    %647 = vmatprep.subr.mxu0 0.0
    %648 = vmatpush1.msra.mxu0 0.0
    %649 = vmatprep.subr.mxu0 0.0
    %650 = vmatpush1.msra.mxu0 0.0
    %651 = vmatprep.subr.mxu0 0.0
    %652 = vmatpush1.msra.mxu0 0.0
    %653 = vmatprep.subr.mxu0 0.0
    %654 = vmatpush1.msra.mxu0 0.0
    %655 = vmatprep.subr.mxu0 0.0
    %656 = vmatpush1.msra.mxu0 0.0
    %657 = vmatprep.subr.mxu0 0.0
    %658 = vmatpush1.msra.mxu0 0.0
    %659 = vmatprep.subr.mxu0 0.0
    %660 = vmatpush1.msra.mxu0 0.0
    %661 = vmatprep.subr.mxu0 0.0
    %662 = vmatpush1.msra.mxu0 0.0
    %663 = vmatprep.subr.mxu0 0.0
    %664 = vmatpush1.msra.mxu0 0.0
    %665 = vmatprep.subr.mxu0 0.0
    %666 = vmatpush1.msra.mxu0 0.0
    %667 = vmatprep.subr.mxu0 0.0
    %668 = vmatpush1.msra.mxu0 0.0
    %669 = vmatprep.subr.mxu0 0.0
    %670 = vmatpush1.msra.mxu0 0.0
    %671 = vmatprep.subr.mxu0 0.0
    %672 = vmatpush1.msra.mxu0 0.0
    %673 = vmatprep.subr.mxu0 0.0
    %674 = vmatpush1.msra.mxu0 0.0
    %675 = vmatprep.subr.mxu0 0.0
    %676 = vmatpush1.msra.mxu0 0.0
    %677 = vmatprep.subr.mxu0 0.0
    %678 = vmatpush1.msra.mxu0 0.0
    %679 = vmatprep.subr.mxu0 0.0
    %680 = vmatpush1.msra.mxu0 0.0
    %681 = vmatprep.mubr.f32.mxu0 0.0
    %682 = vmatmul.mubr.f32.gmra.mrb[0].mxu0 %v611
    %v683 = vpop.f32.mrb[0].mxu0
    %v684 = vadd.f32 0.0, %v683
    %v685 = vpop.f32.mrb[0].mxu0
    %686 = vdwg.mxu0
    %v688 = vsel %vm589, %v609, 0
    %690 = vmatprep.subr.mxu0 0.0
    %691 = vmatpush1.msra.mxu0 %v615
    %692 = vmatprep.subr.mxu0 0.0
    %693 = vmatpush1.msra.mxu0 0.0
    %694 = vmatprep.subr.mxu0 0.0
    %695 = vmatpush1.msra.mxu0 0.0
    %696 = vmatprep.subr.mxu0 0.0
    %697 = vmatpush1.msra.mxu0 0.0
    %698 = vmatprep.subr.mxu0 0.0
    %699 = vmatpush1.msra.mxu0 0.0
    %700 = vmatprep.subr.mxu0 0.0
    %701 = vmatpush1.msra.mxu0 0.0
    %702 = vmatprep.subr.mxu0 0.0
    %703 = vmatpush1.msra.mxu0 0.0
    %704 = vmatprep.subr.mxu0 0.0
    %705 = vmatpush1.msra.mxu0 0.0
    %706 = vmatprep.subr.mxu0 0.0
    %707 = vmatpush1.msra.mxu0 0.0
    %708 = vmatprep.subr.mxu0 0.0
    %709 = vmatpush1.msra.mxu0 0.0
    %710 = vmatprep.subr.mxu0 0.0
    %711 = vmatpush1.msra.mxu0 0.0
    %712 = vmatprep.subr.mxu0 0.0
    %713 = vmatpush1.msra.mxu0 0.0
    %714 = vmatprep.subr.mxu0 0.0
    %715 = vmatpush1.msra.mxu0 0.0
    %716 = vmatprep.subr.mxu0 0.0
    %717 = vmatpush1.msra.mxu0 0.0
    %718 = vmatprep.subr.mxu0 0.0
    %719 = vmatpush1.msra.mxu0 0.0
    %720 = vmatprep.subr.mxu0 0.0
    %721 = vmatpush1.msra.mxu0 0.0
    %722 = vmatprep.subr.mxu0 0.0
    %723 = vmatpush1.msra.mxu0 0.0
    %724 = vmatprep.subr.mxu0 0.0
    %725 = vmatpush1.msra.mxu0 0.0
    %726 = vmatprep.subr.mxu0 0.0
    %727 = vmatpush1.msra.mxu0 0.0
    %728 = vmatprep.subr.mxu0 0.0
    %729 = vmatpush1.msra.mxu0 0.0
    %730 = vmatprep.subr.mxu0 0.0
    %731 = vmatpush1.msra.mxu0 0.0
    %732 = vmatprep.subr.mxu0 0.0
    %733 = vmatpush1.msra.mxu0 0.0
    %734 = vmatprep.subr.mxu0 0.0
    %735 = vmatpush1.msra.mxu0 0.0
    %736 = vmatprep.subr.mxu0 0.0
    %737 = vmatpush1.msra.mxu0 0.0
    %738 = vmatprep.subr.mxu0 0.0
    %739 = vmatpush1.msra.mxu0 0.0
    %740 = vmatprep.subr.mxu0 0.0
    %741 = vmatpush1.msra.mxu0 0.0
    %742 = vmatprep.subr.mxu0 0.0
    %743 = vmatpush1.msra.mxu0 0.0
    %744 = vmatprep.subr.mxu0 0.0
    %745 = vmatpush1.msra.mxu0 0.0
    %746 = vmatprep.subr.mxu0 0.0
    %747 = vmatpush1.msra.mxu0 0.0
    %748 = vmatprep.subr.mxu0 0.0
    %749 = vmatpush1.msra.mxu0 0.0
    %750 = vmatprep.subr.mxu0 0.0
    %751 = vmatpush1.msra.mxu0 0.0
    %752 = vmatprep.subr.mxu0 0.0
    %753 = vmatpush1.msra.mxu0 0.0
    %754 = vmatprep.mubr.f32.mxu0 0.0
    %755 = vmatmul.mubr.f32.gmra.mrb[0].mxu0 %v688
    %v756 = vpop.f32.mrb[0].mxu0
    %v757 = vadd.f32 0.0, %v756
    %v758 = vpop.f32.mrb[0].mxu0
    %759 = vdwg.mxu0
    %v760 = vlaneseq
    %v761 = vshrl.u32 %v760, 7
    %v762 = vsub.s32 0, %v761
    %v763 = vrot.slane %v684, %v762
    %v764 = vsub.f32 %v445, %v763
    %v765 = vld [vmem:[#allocation13] sm:$0xff]
    %v766 = vlaneseq
    %v767 = vshrl.u32 %v766, 7
    %v768 = vsub.s32 0, %v767
    %v769 = vrot.slane %v757, %v768
    %771 = vset.pattern.permute.xlu0 0
    %772 = vperm.xlu0 %771, %v765
    %v773 = vpop.permute.xlu0 %772
    %v775 = vmul.f32 %v769, %v773
    %v776 = vmul.f32 %v764, %v775
    %v777 = vld [vmem:[#allocation14] sm:$0xff]
    %779 = vset.pattern.permute.xlu0 0
    %780 = vperm.xlu0 %779, %v777
    %v781 = vpop.permute.xlu0 %780
    %v783 = vadd.f32 %v776, %v781
    %v784 = vmul.f32 %v783, 0.5
    %v785 = vmul.f32 %v783, 0.70710677
    %vm786 = vcmp.ge.f32.partialorder %v785, 0.0
    %v787 = vsel %vm786, 1.0, -1.0
    %v788 = vand.u32 2147483647, %v785
    %v789 = vmul.f32 %v788, 0.3275911
    %v790 = vadd.f32 %v789, 1.0
    %v791 = vrcp.pop %v790
    %v792 = vmul.f32 1.0, %v791
    %v793 = vmul.f32 %v792, 1.0614054
    %v794 = vadd.f32 %v793, -1.4531521
    %v795 = vmul.f32 %v794, %v792
    %v796 = vadd.f32 %v795, 1.4214138
    %v797 = vmul.f32 %v796, %v792
    %v798 = vadd.f32 %v797, -0.28449672
    %v799 = vmul.f32 %v798, %v792
    %v800 = vadd.f32 %v799, 0.2548296
    %v801 = vmul.f32 %v800, %v792
    %v802 = vsub.f32 0.0, %v788
    %v803 = vmul.f32 %v802, %v788
    %v804 = vmul.f32 %v803, 1.442695
    %v805 = vpow.pop %v804
    %v806 = vmul.f32 %v801, %v805
    %v807 = vsub.f32 1.0, %v806
    %v808 = vmul.f32 %v787, %v807
    %v809 = vadd.f32 %v808, 1.0
    %v810 = vmul.f32 %v784, %v809
    %811 = vrot.lane.b32.xlu0 %v810, 9
    %v812 = vpop.permute.xlu0 %811
    %v813 = vmul.f32 %v812, %v307
    %814 = vrot.lane.b32.xlu0 %v810, 8
    %v815 = vpop.permute.xlu0 %814
    %v816 = vmul.f32 %v815, %v316
    %817 = vrot.lane.b32.xlu0 %v810, 7
    %v818 = vpop.permute.xlu0 %817
    %v819 = vmul.f32 %v818, %v325
    %820 = vrot.lane.b32.xlu0 %v810, 1
    %v821 = vpop.permute.xlu0 %820
    %v822 = vmul.f32 %v821, %v334
    %823 = vrot.lane.b32.xlu0 %v810, 127
    %v824 = vpop.permute.xlu0 %823
    %v825 = vmul.f32 %v824, %v343
    %826 = vrot.lane.b32.xlu0 %v810, 121
    %v827 = vpop.permute.xlu0 %826
    %v828 = vmul.f32 %v827, %v352
    %829 = vrot.lane.b32.xlu0 %v810, 120
    %v830 = vpop.permute.xlu0 %829
    %v831 = vmul.f32 %v830, %v361
    %832 = vrot.lane.b32.xlu0 %v810, 119
    %v833 = vpop.permute.xlu0 %832
    %v834 = vmul.f32 %v833, %v370
    %v835 = vld [vmem:[#allocation16] sm:$0xff]
    %v837 = vsel %vm374, %v835, 0
    %839 = vmatprep.subr.mxu0 0.0
    %840 = vmatpush1.msra.mxu0 %v813
    %841 = vmatprep.subr.mxu0 0.0
    %842 = vmatpush1.msra.mxu0 %v816
    %843 = vmatprep.subr.mxu0 0.0
    %844 = vmatpush1.msra.mxu0 %v819
    %845 = vmatprep.subr.mxu0 0.0
    %846 = vmatpush1.msra.mxu0 %v822
    %847 = vmatprep.subr.mxu0 0.0
    %848 = vmatpush1.msra.mxu0 %v810
    %849 = vmatprep.subr.mxu0 0.0
    %850 = vmatpush1.msra.mxu0 %v825
    %851 = vmatprep.subr.mxu0 0.0
    %852 = vmatpush1.msra.mxu0 %v828
    %853 = vmatprep.subr.mxu0 0.0
    %854 = vmatpush1.msra.mxu0 %v831
    %855 = vmatprep.subr.mxu0 0.0
    %856 = vmatpush1.msra.mxu0 %v834
    %857 = vmatprep.subr.mxu0 0.0
    %858 = vmatpush1.msra.mxu0 0.0
    %859 = vmatprep.subr.mxu0 0.0
    %860 = vmatpush1.msra.mxu0 0.0
    %861 = vmatprep.subr.mxu0 0.0
    %862 = vmatpush1.msra.mxu0 0.0
    %863 = vmatprep.subr.mxu0 0.0
    %864 = vmatpush1.msra.mxu0 0.0
    %865 = vmatprep.subr.mxu0 0.0
    %866 = vmatpush1.msra.mxu0 0.0
    %867 = vmatprep.subr.mxu0 0.0
    %868 = vmatpush1.msra.mxu0 0.0
    %869 = vmatprep.subr.mxu0 0.0
    %870 = vmatpush1.msra.mxu0 0.0
    %871 = vmatprep.subr.mxu0 0.0
    %872 = vmatpush1.msra.mxu0 0.0
    %873 = vmatprep.subr.mxu0 0.0
    %874 = vmatpush1.msra.mxu0 0.0
    %875 = vmatprep.subr.mxu0 0.0
    %876 = vmatpush1.msra.mxu0 0.0
    %877 = vmatprep.subr.mxu0 0.0
    %878 = vmatpush1.msra.mxu0 0.0
    %879 = vmatprep.subr.mxu0 0.0
    %880 = vmatpush1.msra.mxu0 0.0
    %881 = vmatprep.subr.mxu0 0.0
    %882 = vmatpush1.msra.mxu0 0.0
    %883 = vmatprep.subr.mxu0 0.0
    %884 = vmatpush1.msra.mxu0 0.0
    %885 = vmatprep.subr.mxu0 0.0
    %886 = vmatpush1.msra.mxu0 0.0
    %887 = vmatprep.subr.mxu0 0.0
    %888 = vmatpush1.msra.mxu0 0.0
    %889 = vmatprep.subr.mxu0 0.0
    %890 = vmatpush1.msra.mxu0 0.0
    %891 = vmatprep.subr.mxu0 0.0
    %892 = vmatpush1.msra.mxu0 0.0
    %893 = vmatprep.subr.mxu0 0.0
    %894 = vmatpush1.msra.mxu0 0.0
    %895 = vmatprep.subr.mxu0 0.0
    %896 = vmatpush1.msra.mxu0 0.0
    %897 = vmatprep.subr.mxu0 0.0
    %898 = vmatpush1.msra.mxu0 0.0
    %899 = vmatprep.subr.mxu0 0.0
    %900 = vmatpush1.msra.mxu0 0.0
    %901 = vmatprep.subr.mxu0 0.0
    %902 = vmatpush1.msra.mxu0 0.0
    %903 = vmatprep.mubr.f32.mxu0 0.0
    %904 = vmatmul.mubr.f32.gmra.mrb[0].mxu0 %v837
    %v905 = vpop.f32.mrb[0].mxu0
    %v906 = vadd.f32 0.0, %v905
    %v907 = vpop.f32.mrb[0].mxu0
    %908 = vdwg.mxu0
    %909 = vmatprep.subr.mxu0 0.0
    %910 = vmatpush1.msra.mxu0 %v259
    %911 = vmatprep.subr.mxu0 0.0
    %912 = vmatpush1.msra.mxu0 %v260
    %913 = vmatprep.subr.mxu0 0.0
    %914 = vmatpush1.msra.mxu0 %v261
    %915 = vmatprep.subr.mxu0 0.0
    %916 = vmatpush1.msra.mxu0 %v262
    %917 = vmatprep.subr.mxu0 0.0
    %918 = vmatpush1.msra.mxu0 %v263
    %919 = vmatprep.subr.mxu0 0.0
    %920 = vmatpush1.msra.mxu0 %v264
    %921 = vmatprep.subr.mxu0 0.0
    %922 = vmatpush1.msra.mxu0 %v265
    %923 = vmatprep.subr.mxu0 0.0
    %924 = vmatpush1.msra.mxu0 %v266
    %925 = vmatprep.subr.mxu0 0.0
    %926 = vmatpush1.msra.mxu0 %v267
    %927 = vmatprep.subr.mxu0 0.0
    %928 = vmatpush1.msra.mxu0 %v268
    %929 = vmatprep.subr.mxu0 0.0
    %930 = vmatpush1.msra.mxu0 %v269
    %931 = vmatprep.subr.mxu0 0.0
    %932 = vmatpush1.msra.mxu0 %v270
    %933 = vmatprep.subr.mxu0 0.0
    %934 = vmatpush1.msra.mxu0 %v271
    %935 = vmatprep.subr.mxu0 0.0
    %936 = vmatpush1.msra.mxu0 %v272
    %937 = vmatprep.subr.mxu0 0.0
    %938 = vmatpush1.msra.mxu0 %v273
    %939 = vmatprep.subr.mxu0 0.0
    %940 = vmatpush1.msra.mxu0 %v274
    %941 = vmatprep.subr.mxu0 0.0
    %942 = vmatpush1.msra.mxu0 0.0
    %943 = vmatprep.subr.mxu0 0.0
    %944 = vmatpush1.msra.mxu0 0.0
    %945 = vmatprep.subr.mxu0 0.0
    %946 = vmatpush1.msra.mxu0 0.0
    %947 = vmatprep.subr.mxu0 0.0
    %948 = vmatpush1.msra.mxu0 0.0
    %949 = vmatprep.subr.mxu0 0.0
    %950 = vmatpush1.msra.mxu0 0.0
    %951 = vmatprep.subr.mxu0 0.0
    %952 = vmatpush1.msra.mxu0 0.0
    %953 = vmatprep.subr.mxu0 0.0
    %954 = vmatpush1.msra.mxu0 0.0
    %955 = vmatprep.subr.mxu0 0.0
    %956 = vmatpush1.msra.mxu0 0.0
    %957 = vmatprep.subr.mxu0 0.0
    %958 = vmatpush1.msra.mxu0 0.0
    %959 = vmatprep.subr.mxu0 0.0
    %960 = vmatpush1.msra.mxu0 0.0
    %961 = vmatprep.subr.mxu0 0.0
    %962 = vmatpush1.msra.mxu0 0.0
    %963 = vmatprep.subr.mxu0 0.0
    %964 = vmatpush1.msra.mxu0 0.0
    %965 = vmatprep.subr.mxu0 0.0
    %966 = vmatpush1.msra.mxu0 0.0
    %967 = vmatprep.subr.mxu0 0.0
    %968 = vmatpush1.msra.mxu0 0.0
    %969 = vmatprep.subr.mxu0 0.0
    %970 = vmatpush1.msra.mxu0 0.0
    %971 = vmatprep.subr.mxu0 0.0
    %972 = vmatpush1.msra.mxu0 0.0
    %973 = vmatprep.mubr.f32.mxu0 0.0
    %974 = vmatmul.mubr.f32.gmra.mrb[0].mxu0 %v906
    %v975 = vpop.f32.mrb[0].mxu0
    %v976 = vadd.f32 0.0, %v975
    %v977 = vpop.f32.mrb[0].mxu0
    %978 = vdwg.mxu0
    %v979 = vmul.f32 %v906, %v906
    %980 = vmatprep.subr.mxu0 0.0
    %981 = vmatpush1.msra.mxu0 %v259
    %982 = vmatprep.subr.mxu0 0.0
    %983 = vmatpush1.msra.mxu0 %v260
    %984 = vmatprep.subr.mxu0 0.0
    %985 = vmatpush1.msra.mxu0 %v261
    %986 = vmatprep.subr.mxu0 0.0
    %987 = vmatpush1.msra.mxu0 %v262
    %988 = vmatprep.subr.mxu0 0.0
    %989 = vmatpush1.msra.mxu0 %v263
    %990 = vmatprep.subr.mxu0 0.0
    %991 = vmatpush1.msra.mxu0 %v264
    %992 = vmatprep.subr.mxu0 0.0
    %993 = vmatpush1.msra.mxu0 %v265
    %994 = vmatprep.subr.mxu0 0.0
    %995 = vmatpush1.msra.mxu0 %v266
    %996 = vmatprep.subr.mxu0 0.0
    %997 = vmatpush1.msra.mxu0 %v267
    %998 = vmatprep.subr.mxu0 0.0
    %999 = vmatpush1.msra.mxu0 %v268
    %1000 = vmatprep.subr.mxu0 0.0
    %1001 = vmatpush1.msra.mxu0 %v269
    %1002 = vmatprep.subr.mxu0 0.0
    %1003 = vmatpush1.msra.mxu0 %v270
    %1004 = vmatprep.subr.mxu0 0.0
    %1005 = vmatpush1.msra.mxu0 %v271
    %1006 = vmatprep.subr.mxu0 0.0
    %1007 = vmatpush1.msra.mxu0 %v272
    %1008 = vmatprep.subr.mxu0 0.0
    %1009 = vmatpush1.msra.mxu0 %v273
    %1010 = vmatprep.subr.mxu0 0.0
    %1011 = vmatpush1.msra.mxu0 %v274
    %1012 = vmatprep.subr.mxu0 0.0
    %1013 = vmatpush1.msra.mxu0 0.0
    %1014 = vmatprep.subr.mxu0 0.0
    %1015 = vmatpush1.msra.mxu0 0.0
    %1016 = vmatprep.subr.mxu0 0.0
    %1017 = vmatpush1.msra.mxu0 0.0
    %1018 = vmatprep.subr.mxu0 0.0
    %1019 = vmatpush1.msra.mxu0 0.0
    %1020 = vmatprep.subr.mxu0 0.0
    %1021 = vmatpush1.msra.mxu0 0.0
    %1022 = vmatprep.subr.mxu0 0.0
    %1023 = vmatpush1.msra.mxu0 0.0
    %1024 = vmatprep.subr.mxu0 0.0
    %1025 = vmatpush1.msra.mxu0 0.0
    %1026 = vmatprep.subr.mxu0 0.0
    %1027 = vmatpush1.msra.mxu0 0.0
    %1028 = vmatprep.subr.mxu0 0.0
    %1029 = vmatpush1.msra.mxu0 0.0
    %1030 = vmatprep.subr.mxu0 0.0
    %1031 = vmatpush1.msra.mxu0 0.0
    %1032 = vmatprep.subr.mxu0 0.0
    %1033 = vmatpush1.msra.mxu0 0.0
    %1034 = vmatprep.subr.mxu0 0.0
    %1035 = vmatpush1.msra.mxu0 0.0
    %1036 = vmatprep.subr.mxu0 0.0
    %1037 = vmatpush1.msra.mxu0 0.0
    %1038 = vmatprep.subr.mxu0 0.0
    %1039 = vmatpush1.msra.mxu0 0.0
    %1040 = vmatprep.subr.mxu0 0.0
    %1041 = vmatpush1.msra.mxu0 0.0
    %1042 = vmatprep.subr.mxu0 0.0
    %1043 = vmatpush1.msra.mxu0 0.0
    %1044 = vmatprep.mubr.f32.mxu0 0.0
    %1045 = vmatmul.mubr.f32.gmra.mrb[0].mxu0 %v979
    %v1046 = vpop.f32.mrb[0].mxu0
    %v1047 = vadd.f32 0.0, %v1046
    %v1048 = vpop.f32.mrb[0].mxu0
    %1049 = vdwg.mxu0
    %v1050 = vsel %vm589, %v976, 0.0
    %v1051 = vrot.slane %v1050, 4
    %v1052 = vadd.f32 %v1050, %v1051
    %v1053 = vrot.slane %v1052, 2
    %v1054 = vadd.f32 %v1052, %v1053
    %v1055 = vrot.slane %v1054, 1
    %v1056 = vadd.f32 %v1054, %v1055
    %v1057 = vmul.f32 %v1056, 0.00390625
    %v1058 = vsel %vm589, %v1047, 0.0
    %v1059 = vrot.slane %v1058, 4
    %v1060 = vadd.f32 %v1058, %v1059
    %v1061 = vrot.slane %v1060, 2
    %v1062 = vadd.f32 %v1060, %v1061
    %v1063 = vrot.slane %v1062, 1
    %v1064 = vadd.f32 %v1062, %v1063
    %v1065 = vmul.f32 %v1064, 0.00390625
    %v1066 = vmul.f32 %v1057, %v1057
    %v1067 = vsub.f32 %v1065, %v1066
    %v1068 = vadd.f32 %v1067, 1e-05
    %v1069 = vrsqrt.pop %v1068
    %v1071 = vsel %vm589, %v1057, 0
    %1073 = vmatprep.subr.mxu0 0.0
    %1074 = vmatpush1.msra.mxu0 %v615
    %1075 = vmatprep.subr.mxu0 0.0
    %1076 = vmatpush1.msra.mxu0 0.0
    %1077 = vmatprep.subr.mxu0 0.0
    %1078 = vmatpush1.msra.mxu0 0.0
    %1079 = vmatprep.subr.mxu0 0.0
    %1080 = vmatpush1.msra.mxu0 0.0
    %1081 = vmatprep.subr.mxu0 0.0
    %1082 = vmatpush1.msra.mxu0 0.0
    %1083 = vmatprep.subr.mxu0 0.0
    %1084 = vmatpush1.msra.mxu0 0.0
    %1085 = vmatprep.subr.mxu0 0.0
    %1086 = vmatpush1.msra.mxu0 0.0
    %1087 = vmatprep.subr.mxu0 0.0
    %1088 = vmatpush1.msra.mxu0 0.0
    %1089 = vmatprep.subr.mxu0 0.0
    %1090 = vmatpush1.msra.mxu0 0.0
    %1091 = vmatprep.subr.mxu0 0.0
    %1092 = vmatpush1.msra.mxu0 0.0
    %1093 = vmatprep.subr.mxu0 0.0
    %1094 = vmatpush1.msra.mxu0 0.0
    %1095 = vmatprep.subr.mxu0 0.0
    %1096 = vmatpush1.msra.mxu0 0.0
    %1097 = vmatprep.subr.mxu0 0.0
    %1098 = vmatpush1.msra.mxu0 0.0
    %1099 = vmatprep.subr.mxu0 0.0
    %1100 = vmatpush1.msra.mxu0 0.0
    %1101 = vmatprep.subr.mxu0 0.0
    %1102 = vmatpush1.msra.mxu0 0.0
    %1103 = vmatprep.subr.mxu0 0.0
    %1104 = vmatpush1.msra.mxu0 0.0
    %1105 = vmatprep.subr.mxu0 0.0
    %1106 = vmatpush1.msra.mxu0 0.0
    %1107 = vmatprep.subr.mxu0 0.0
    %1108 = vmatpush1.msra.mxu0 0.0
    %1109 = vmatprep.subr.mxu0 0.0
    %1110 = vmatpush1.msra.mxu0 0.0
    %1111 = vmatprep.subr.mxu0 0.0
    %1112 = vmatpush1.msra.mxu0 0.0
    %1113 = vmatprep.subr.mxu0 0.0
    %1114 = vmatpush1.msra.mxu0 0.0
    %1115 = vmatprep.subr.mxu0 0.0
    %1116 = vmatpush1.msra.mxu0 0.0
    %1117 = vmatprep.subr.mxu0 0.0
    %1118 = vmatpush1.msra.mxu0 0.0
    %1119 = vmatprep.subr.mxu0 0.0
    %1120 = vmatpush1.msra.mxu0 0.0
    %1121 = vmatprep.subr.mxu0 0.0
    %1122 = vmatpush1.msra.mxu0 0.0
    %1123 = vmatprep.subr.mxu0 0.0
    %1124 = vmatpush1.msra.mxu0 0.0
    %1125 = vmatprep.subr.mxu0 0.0
    %1126 = vmatpush1.msra.mxu0 0.0
    %1127 = vmatprep.subr.mxu0 0.0
    %1128 = vmatpush1.msra.mxu0 0.0
    %1129 = vmatprep.subr.mxu0 0.0
    %1130 = vmatpush1.msra.mxu0 0.0
    %1131 = vmatprep.subr.mxu0 0.0
    %1132 = vmatpush1.msra.mxu0 0.0
    %1133 = vmatprep.subr.mxu0 0.0
    %1134 = vmatpush1.msra.mxu0 0.0
    %1135 = vmatprep.subr.mxu0 0.0
    %1136 = vmatpush1.msra.mxu0 0.0
    %1137 = vmatprep.mubr.f32.mxu0 0.0
    %1138 = vmatmul.mubr.f32.gmra.mrb[0].mxu0 %v1071
    %v1139 = vpop.f32.mrb[0].mxu0
    %v1140 = vadd.f32 0.0, %v1139
    %v1141 = vpop.f32.mrb[0].mxu0
    %1142 = vdwg.mxu0
    %v1144 = vsel %vm589, %v1069, 0
    %1146 = vmatprep.subr.mxu0 0.0
    %1147 = vmatpush1.msra.mxu0 %v615
    %1148 = vmatprep.subr.mxu0 0.0
    %1149 = vmatpush1.msra.mxu0 0.0
    %1150 = vmatprep.subr.mxu0 0.0
    %1151 = vmatpush1.msra.mxu0 0.0
    %1152 = vmatprep.subr.mxu0 0.0
    %1153 = vmatpush1.msra.mxu0 0.0
    %1154 = vmatprep.subr.mxu0 0.0
    %1155 = vmatpush1.msra.mxu0 0.0
    %1156 = vmatprep.subr.mxu0 0.0
    %1157 = vmatpush1.msra.mxu0 0.0
    %1158 = vmatprep.subr.mxu0 0.0
    %1159 = vmatpush1.msra.mxu0 0.0
    %1160 = vmatprep.subr.mxu0 0.0
    %1161 = vmatpush1.msra.mxu0 0.0
    %1162 = vmatprep.subr.mxu0 0.0
    %1163 = vmatpush1.msra.mxu0 0.0
    %1164 = vmatprep.subr.mxu0 0.0
    %1165 = vmatpush1.msra.mxu0 0.0
    %1166 = vmatprep.subr.mxu0 0.0
    %1167 = vmatpush1.msra.mxu0 0.0
    %1168 = vmatprep.subr.mxu0 0.0
    %1169 = vmatpush1.msra.mxu0 0.0
    %1170 = vmatprep.subr.mxu0 0.0
    %1171 = vmatpush1.msra.mxu0 0.0
    %1172 = vmatprep.subr.mxu0 0.0
    %1173 = vmatpush1.msra.mxu0 0.0
    %1174 = vmatprep.subr.mxu0 0.0
    %1175 = vmatpush1.msra.mxu0 0.0
    %1176 = vmatprep.subr.mxu0 0.0
    %1177 = vmatpush1.msra.mxu0 0.0
    %1178 = vmatprep.subr.mxu0 0.0
    %1179 = vmatpush1.msra.mxu0 0.0
    %1180 = vmatprep.subr.mxu0 0.0
    %1181 = vmatpush1.msra.mxu0 0.0
    %1182 = vmatprep.subr.mxu0 0.0
    %1183 = vmatpush1.msra.mxu0 0.0
    %1184 = vmatprep.subr.mxu0 0.0
    %1185 = vmatpush1.msra.mxu0 0.0
    %1186 = vmatprep.subr.mxu0 0.0
    %1187 = vmatpush1.msra.mxu0 0.0
    %1188 = vmatprep.subr.mxu0 0.0
    %1189 = vmatpush1.msra.mxu0 0.0
    %1190 = vmatprep.subr.mxu0 0.0
    %1191 = vmatpush1.msra.mxu0 0.0
    %1192 = vmatprep.subr.mxu0 0.0
    %1193 = vmatpush1.msra.mxu0 0.0
    %1194 = vmatprep.subr.mxu0 0.0
    %1195 = vmatpush1.msra.mxu0 0.0
    %1196 = vmatprep.subr.mxu0 0.0
    %1197 = vmatpush1.msra.mxu0 0.0
    %1198 = vmatprep.subr.mxu0 0.0
    %1199 = vmatpush1.msra.mxu0 0.0
    %1200 = vmatprep.subr.mxu0 0.0
    %1201 = vmatpush1.msra.mxu0 0.0
    %1202 = vmatprep.subr.mxu0 0.0
    %1203 = vmatpush1.msra.mxu0 0.0
    %1204 = vmatprep.subr.mxu0 0.0
    %1205 = vmatpush1.msra.mxu0 0.0
    %1206 = vmatprep.subr.mxu0 0.0
    %1207 = vmatpush1.msra.mxu0 0.0
    %1208 = vmatprep.subr.mxu0 0.0
    %1209 = vmatpush1.msra.mxu0 0.0
    %1210 = vmatprep.mubr.f32.mxu0 0.0
    %1211 = vmatmul.mubr.f32.gmra.mrb[0].mxu0 %v1144
    %v1212 = vpop.f32.mrb[0].mxu0
    %v1213 = vadd.f32 0.0, %v1212
    %v1214 = vpop.f32.mrb[0].mxu0
    %1215 = vdwg.mxu0
    %v1216 = vlaneseq
    %v1217 = vshrl.u32 %v1216, 7
    %v1218 = vsub.s32 0, %v1217
    %v1219 = vrot.slane %v1140, %v1218
    %v1220 = vsub.f32 %v906, %v1219
    %v1221 = vld [vmem:[#allocation17] sm:$0xff]
    %v1222 = vlaneseq
    %v1223 = vshrl.u32 %v1222, 7
    %v1224 = vsub.s32 0, %v1223
    %v1225 = vrot.slane %v1213, %v1224
    %1227 = vset.pattern.permute.xlu0 0
    %1228 = vperm.xlu0 %1227, %v1221
    %v1229 = vpop.permute.xlu0 %1228
    %v1231 = vmul.f32 %v1225, %v1229
    %v1232 = vmul.f32 %v1220, %v1231
    %v1233 = vld [vmem:[#allocation19] sm:$0xff]
    %1235 = vset.pattern.permute.xlu0 0
    %1236 = vperm.xlu0 %1235, %v1233
    %v1237 = vpop.permute.xlu0 %1236
    %v1239 = vadd.f32 %v1232, %v1237
    %v1240 = vadd.f32 %v300, %v1239
    %v1241 = vmul.f32 %v1240, 0.5
    %v1242 = vmul.f32 %v1240, 0.70710677
    %vm1243 = vcmp.ge.f32.partialorder %v1242, 0.0
    %v1244 = vsel %vm1243, 1.0, -1.0
    %v1245 = vand.u32 2147483647, %v1242
    %v1246 = vmul.f32 %v1245, 0.3275911
    %v1247 = vadd.f32 %v1246, 1.0
    %v1248 = vrcp.pop %v1247
    %v1249 = vmul.f32 1.0, %v1248
    %v1250 = vmul.f32 %v1249, 1.0614054
    %v1251 = vadd.f32 %v1250, -1.4531521
    %v1252 = vmul.f32 %v1251, %v1249
    %v1253 = vadd.f32 %v1252, 1.4214138
    %v1254 = vmul.f32 %v1253, %v1249
    %v1255 = vadd.f32 %v1254, -0.28449672
    %v1256 = vmul.f32 %v1255, %v1249
    %v1257 = vadd.f32 %v1256, 0.2548296
    %v1258 = vmul.f32 %v1257, %v1249
    %v1259 = vsub.f32 0.0, %v1245
    %v1260 = vmul.f32 %v1259, %v1245
    %v1261 = vmul.f32 %v1260, 1.442695
    %v1262 = vpow.pop %v1261
    %v1263 = vmul.f32 %v1258, %v1262
    %v1264 = vsub.f32 1.0, %v1263
    %v1265 = vmul.f32 %v1244, %v1264
    %v1266 = vadd.f32 %v1265, 1.0
    %v1267 = vmul.f32 %v1241, %v1266
    %1268 = vrot.lane.b32.xlu0 %v1267, 9
    %v1269 = vpop.permute.xlu0 %1268
    %v1270 = vmul.f32 %v1269, %v307
    %1271 = vrot.lane.b32.xlu0 %v1267, 8
    %v1272 = vpop.permute.xlu0 %1271
    %v1273 = vmul.f32 %v1272, %v316
    %1274 = vrot.lane.b32.xlu0 %v1267, 7
    %v1275 = vpop.permute.xlu0 %1274
    %v1276 = vmul.f32 %v1275, %v325
    %1277 = vrot.lane.b32.xlu0 %v1267, 1
    %v1278 = vpop.permute.xlu0 %1277
    %v1279 = vmul.f32 %v1278, %v334
    %1280 = vrot.lane.b32.xlu0 %v1267, 127
    %v1281 = vpop.permute.xlu0 %1280
    %v1282 = vmul.f32 %v1281, %v343
    %1283 = vrot.lane.b32.xlu0 %v1267, 121
    %v1284 = vpop.permute.xlu0 %1283
    %v1285 = vmul.f32 %v1284, %v352
    %1286 = vrot.lane.b32.xlu0 %v1267, 120
    %v1287 = vpop.permute.xlu0 %1286
    %v1288 = vmul.f32 %v1287, %v361
    %1289 = vrot.lane.b32.xlu0 %v1267, 119
    %v1290 = vpop.permute.xlu0 %1289
    %v1291 = vmul.f32 %v1290, %v370
    %v1292 = vld [vmem:[#allocation20] sm:$0xff]
    %v1294 = vsel %vm374, %v1292, 0
    %1296 = vmatprep.subr.mxu0 0.0
    %1297 = vmatpush1.msra.mxu0 %v1270
    %1298 = vmatprep.subr.mxu0 0.0
    %1299 = vmatpush1.msra.mxu0 %v1273
    %1300 = vmatprep.subr.mxu0 0.0
    %1301 = vmatpush1.msra.mxu0 %v1276
    %1302 = vmatprep.subr.mxu0 0.0
    %1303 = vmatpush1.msra.mxu0 %v1279
    %1304 = vmatprep.subr.mxu0 0.0
    %1305 = vmatpush1.msra.mxu0 %v1267
    %1306 = vmatprep.subr.mxu0 0.0
    %1307 = vmatpush1.msra.mxu0 %v1282
    %1308 = vmatprep.subr.mxu0 0.0
    %1309 = vmatpush1.msra.mxu0 %v1285
    %1310 = vmatprep.subr.mxu0 0.0
    %1311 = vmatpush1.msra.mxu0 %v1288
    %1312 = vmatprep.subr.mxu0 0.0
    %1313 = vmatpush1.msra.mxu0 %v1291
    %1314 = vmatprep.subr.mxu0 0.0
    %1315 = vmatpush1.msra.mxu0 0.0
    %1316 = vmatprep.subr.mxu0 0.0
    %1317 = vmatpush1.msra.mxu0 0.0
    %1318 = vmatprep.subr.mxu0 0.0
    %1319 = vmatpush1.msra.mxu0 0.0
    %1320 = vmatprep.subr.mxu0 0.0
    %1321 = vmatpush1.msra.mxu0 0.0
    %1322 = vmatprep.subr.mxu0 0.0
    %1323 = vmatpush1.msra.mxu0 0.0
    %1324 = vmatprep.subr.mxu0 0.0
    %1325 = vmatpush1.msra.mxu0 0.0
    %1326 = vmatprep.subr.mxu0 0.0
    %1327 = vmatpush1.msra.mxu0 0.0
    %1328 = vmatprep.subr.mxu0 0.0
    %1329 = vmatpush1.msra.mxu0 0.0
    %1330 = vmatprep.subr.mxu0 0.0
    %1331 = vmatpush1.msra.mxu0 0.0
    %1332 = vmatprep.subr.mxu0 0.0
    %1333 = vmatpush1.msra.mxu0 0.0
    %1334 = vmatprep.subr.mxu0 0.0
    %1335 = vmatpush1.msra.mxu0 0.0
    %1336 = vmatprep.subr.mxu0 0.0
    %1337 = vmatpush1.msra.mxu0 0.0
    %1338 = vmatprep.subr.mxu0 0.0
    %1339 = vmatpush1.msra.mxu0 0.0
    %1340 = vmatprep.subr.mxu0 0.0
    %1341 = vmatpush1.msra.mxu0 0.0
    %1342 = vmatprep.subr.mxu0 0.0
    %1343 = vmatpush1.msra.mxu0 0.0
    %1344 = vmatprep.subr.mxu0 0.0
    %1345 = vmatpush1.msra.mxu0 0.0
    %1346 = vmatprep.subr.mxu0 0.0
    %1347 = vmatpush1.msra.mxu0 0.0
    %1348 = vmatprep.subr.mxu0 0.0
    %1349 = vmatpush1.msra.mxu0 0.0
    %1350 = vmatprep.subr.mxu0 0.0
    %1351 = vmatpush1.msra.mxu0 0.0
    %1352 = vmatprep.subr.mxu0 0.0
    %1353 = vmatpush1.msra.mxu0 0.0
    %1354 = vmatprep.subr.mxu0 0.0
    %1355 = vmatpush1.msra.mxu0 0.0
    %1356 = vmatprep.subr.mxu0 0.0
    %1357 = vmatpush1.msra.mxu0 0.0
    %1358 = vmatprep.subr.mxu0 0.0
    %1359 = vmatpush1.msra.mxu0 0.0
    %1360 = vmatprep.mubr.f32.mxu0 0.0
    %1361 = vmatmul.mubr.f32.gmra.mrb[0].mxu0 %v1294
    %v1362 = vpop.f32.mrb[0].mxu0
    %v1363 = vadd.f32 0.0, %v1362
    %v1364 = vpop.f32.mrb[0].mxu0
    %1365 = vdwg.mxu0
    %1366 = vmatprep.subr.mxu0 0.0
    %1367 = vmatpush1.msra.mxu0 %v259
    %1368 = vmatprep.subr.mxu0 0.0
    %1369 = vmatpush1.msra.mxu0 %v260
    %1370 = vmatprep.subr.mxu0 0.0
    %1371 = vmatpush1.msra.mxu0 %v261
    %1372 = vmatprep.subr.mxu0 0.0
    %1373 = vmatpush1.msra.mxu0 %v262
    %1374 = vmatprep.subr.mxu0 0.0
    %1375 = vmatpush1.msra.mxu0 %v263
    %1376 = vmatprep.subr.mxu0 0.0
    %1377 = vmatpush1.msra.mxu0 %v264
    %1378 = vmatprep.subr.mxu0 0.0
    %1379 = vmatpush1.msra.mxu0 %v265
    %1380 = vmatprep.subr.mxu0 0.0
    %1381 = vmatpush1.msra.mxu0 %v266
    %1382 = vmatprep.subr.mxu0 0.0
    %1383 = vmatpush1.msra.mxu0 %v267
    %1384 = vmatprep.subr.mxu0 0.0
    %1385 = vmatpush1.msra.mxu0 %v268
    %1386 = vmatprep.subr.mxu0 0.0
    %1387 = vmatpush1.msra.mxu0 %v269
    %1388 = vmatprep.subr.mxu0 0.0
    %1389 = vmatpush1.msra.mxu0 %v270
    %1390 = vmatprep.subr.mxu0 0.0
    %1391 = vmatpush1.msra.mxu0 %v271
    %1392 = vmatprep.subr.mxu0 0.0
    %1393 = vmatpush1.msra.mxu0 %v272
    %1394 = vmatprep.subr.mxu0 0.0
    %1395 = vmatpush1.msra.mxu0 %v273
    %1396 = vmatprep.subr.mxu0 0.0
    %1397 = vmatpush1.msra.mxu0 %v274
    %1398 = vmatprep.subr.mxu0 0.0
    %1399 = vmatpush1.msra.mxu0 0.0
    %1400 = vmatprep.subr.mxu0 0.0
    %1401 = vmatpush1.msra.mxu0 0.0
    %1402 = vmatprep.subr.mxu0 0.0
    %1403 = vmatpush1.msra.mxu0 0.0
    %1404 = vmatprep.subr.mxu0 0.0
    %1405 = vmatpush1.msra.mxu0 0.0
    %1406 = vmatprep.subr.mxu0 0.0
    %1407 = vmatpush1.msra.mxu0 0.0
    %1408 = vmatprep.subr.mxu0 0.0
    %1409 = vmatpush1.msra.mxu0 0.0
    %1410 = vmatprep.subr.mxu0 0.0
    %1411 = vmatpush1.msra.mxu0 0.0
    %1412 = vmatprep.subr.mxu0 0.0
    %1413 = vmatpush1.msra.mxu0 0.0
    %1414 = vmatprep.subr.mxu0 0.0
    %1415 = vmatpush1.msra.mxu0 0.0
    %1416 = vmatprep.subr.mxu0 0.0
    %1417 = vmatpush1.msra.mxu0 0.0
    %1418 = vmatprep.subr.mxu0 0.0
    %1419 = vmatpush1.msra.mxu0 0.0
    %1420 = vmatprep.subr.mxu0 0.0
    %1421 = vmatpush1.msra.mxu0 0.0
    %1422 = vmatprep.subr.mxu0 0.0
    %1423 = vmatpush1.msra.mxu0 0.0
    %1424 = vmatprep.subr.mxu0 0.0
    %1425 = vmatpush1.msra.mxu0 0.0
    %1426 = vmatprep.subr.mxu0 0.0
    %1427 = vmatpush1.msra.mxu0 0.0
    %1428 = vmatprep.subr.mxu0 0.0
    %1429 = vmatpush1.msra.mxu0 0.0
    %1430 = vmatprep.mubr.f32.mxu0 0.0
    %1431 = vmatmul.mubr.f32.gmra.mrb[0].mxu0 %v1363
    %v1432 = vpop.f32.mrb[0].mxu0
    %v1433 = vadd.f32 0.0, %v1432
    %v1434 = vpop.f32.mrb[0].mxu0
    %1435 = vdwg.mxu0
    %v1436 = vmul.f32 %v1363, %v1363
    %1437 = vmatprep.subr.mxu0 0.0
    %1438 = vmatpush1.msra.mxu0 %v259
    %1439 = vmatprep.subr.mxu0 0.0
    %1440 = vmatpush1.msra.mxu0 %v260
    %1441 = vmatprep.subr.mxu0 0.0
    %1442 = vmatpush1.msra.mxu0 %v261
    %1443 = vmatprep.subr.mxu0 0.0
    %1444 = vmatpush1.msra.mxu0 %v262
    %1445 = vmatprep.subr.mxu0 0.0
    %1446 = vmatpush1.msra.mxu0 %v263
    %1447 = vmatprep.subr.mxu0 0.0
    %1448 = vmatpush1.msra.mxu0 %v264
    %1449 = vmatprep.subr.mxu0 0.0
    %1450 = vmatpush1.msra.mxu0 %v265
    %1451 = vmatprep.subr.mxu0 0.0
    %1452 = vmatpush1.msra.mxu0 %v266
    %1453 = vmatprep.subr.mxu0 0.0
    %1454 = vmatpush1.msra.mxu0 %v267
    %1455 = vmatprep.subr.mxu0 0.0
    %1456 = vmatpush1.msra.mxu0 %v268
    %1457 = vmatprep.subr.mxu0 0.0
    %1458 = vmatpush1.msra.mxu0 %v269
    %1459 = vmatprep.subr.mxu0 0.0
    %1460 = vmatpush1.msra.mxu0 %v270
    %1461 = vmatprep.subr.mxu0 0.0
    %1462 = vmatpush1.msra.mxu0 %v271
    %1463 = vmatprep.subr.mxu0 0.0
    %1464 = vmatpush1.msra.mxu0 %v272
    %1465 = vmatprep.subr.mxu0 0.0
    %1466 = vmatpush1.msra.mxu0 %v273
    %1467 = vmatprep.subr.mxu0 0.0
    %1468 = vmatpush1.msra.mxu0 %v274
    %1469 = vmatprep.subr.mxu0 0.0
    %1470 = vmatpush1.msra.mxu0 0.0
    %1471 = vmatprep.subr.mxu0 0.0
    %1472 = vmatpush1.msra.mxu0 0.0
    %1473 = vmatprep.subr.mxu0 0.0
    %1474 = vmatpush1.msra.mxu0 0.0
    %1475 = vmatprep.subr.mxu0 0.0
    %1476 = vmatpush1.msra.mxu0 0.0
    %1477 = vmatprep.subr.mxu0 0.0
    %1478 = vmatpush1.msra.mxu0 0.0
    %1479 = vmatprep.subr.mxu0 0.0
    %1480 = vmatpush1.msra.mxu0 0.0
    %1481 = vmatprep.subr.mxu0 0.0
    %1482 = vmatpush1.msra.mxu0 0.0
    %1483 = vmatprep.subr.mxu0 0.0
    %1484 = vmatpush1.msra.mxu0 0.0
    %1485 = vmatprep.subr.mxu0 0.0
    %1486 = vmatpush1.msra.mxu0 0.0
    %1487 = vmatprep.subr.mxu0 0.0
    %1488 = vmatpush1.msra.mxu0 0.0
    %1489 = vmatprep.subr.mxu0 0.0
    %1490 = vmatpush1.msra.mxu0 0.0
    %1491 = vmatprep.subr.mxu0 0.0
    %1492 = vmatpush1.msra.mxu0 0.0
    %1493 = vmatprep.subr.mxu0 0.0
    %1494 = vmatpush1.msra.mxu0 0.0
    %1495 = vmatprep.subr.mxu0 0.0
    %1496 = vmatpush1.msra.mxu0 0.0
    %1497 = vmatprep.subr.mxu0 0.0
    %1498 = vmatpush1.msra.mxu0 0.0
    %1499 = vmatprep.subr.mxu0 0.0
    %1500 = vmatpush1.msra.mxu0 0.0
    %1501 = vmatprep.mubr.f32.mxu0 0.0
    %1502 = vmatmul.mubr.f32.gmra.mrb[0].mxu0 %v1436
    %v1503 = vpop.f32.mrb[0].mxu0
    %v1504 = vadd.f32 0.0, %v1503
    %v1505 = vpop.f32.mrb[0].mxu0
    %1506 = vdwg.mxu0
    %v1507 = vsel %vm589, %v1433, 0.0
    %v1508 = vrot.slane %v1507, 4
    %v1509 = vadd.f32 %v1507, %v1508
    %v1510 = vrot.slane %v1509, 2
    %v1511 = vadd.f32 %v1509, %v1510
    %v1512 = vrot.slane %v1511, 1
    %v1513 = vadd.f32 %v1511, %v1512
    %v1514 = vmul.f32 %v1513, 0.001953125
    %v1515 = vsel %vm589, %v1504, 0.0
    %v1516 = vrot.slane %v1515, 4
    %v1517 = vadd.f32 %v1515, %v1516
    %v1518 = vrot.slane %v1517, 2
    %v1519 = vadd.f32 %v1517, %v1518
    %v1520 = vrot.slane %v1519, 1
    %v1521 = vadd.f32 %v1519, %v1520
    %v1522 = vmul.f32 %v1521, 0.001953125
    %v1523 = vmul.f32 %v1514, %v1514
    %v1524 = vsub.f32 %v1522, %v1523
    %v1525 = vadd.f32 %v1524, 1e-05
    %v1526 = vrsqrt.pop %v1525
    %v1528 = vsel %vm589, %v1514, 0
    %1530 = vmatprep.subr.mxu0 0.0
    %1531 = vmatpush1.msra.mxu0 %v615
    %1532 = vmatprep.subr.mxu0 0.0
    %1533 = vmatpush1.msra.mxu0 0.0
    %1534 = vmatprep.subr.mxu0 0.0
    %1535 = vmatpush1.msra.mxu0 0.0
    %1536 = vmatprep.subr.mxu0 0.0
    %1537 = vmatpush1.msra.mxu0 0.0
    %1538 = vmatprep.subr.mxu0 0.0
    %1539 = vmatpush1.msra.mxu0 0.0
    %1540 = vmatprep.subr.mxu0 0.0
    %1541 = vmatpush1.msra.mxu0 0.0
    %1542 = vmatprep.subr.mxu0 0.0
    %1543 = vmatpush1.msra.mxu0 0.0
    %1544 = vmatprep.subr.mxu0 0.0
    %1545 = vmatpush1.msra.mxu0 0.0
    %1546 = vmatprep.subr.mxu0 0.0
    %1547 = vmatpush1.msra.mxu0 0.0
    %1548 = vmatprep.subr.mxu0 0.0
    %1549 = vmatpush1.msra.mxu0 0.0
    %1550 = vmatprep.subr.mxu0 0.0
    %1551 = vmatpush1.msra.mxu0 0.0
    %1552 = vmatprep.subr.mxu0 0.0
    %1553 = vmatpush1.msra.mxu0 0.0
    %1554 = vmatprep.subr.mxu0 0.0
    %1555 = vmatpush1.msra.mxu0 0.0
    %1556 = vmatprep.subr.mxu0 0.0
    %1557 = vmatpush1.msra.mxu0 0.0
    %1558 = vmatprep.subr.mxu0 0.0
    %1559 = vmatpush1.msra.mxu0 0.0
    %1560 = vmatprep.subr.mxu0 0.0
    %1561 = vmatpush1.msra.mxu0 0.0
    %1562 = vmatprep.subr.mxu0 0.0
    %1563 = vmatpush1.msra.mxu0 0.0
    %1564 = vmatprep.subr.mxu0 0.0
    %1565 = vmatpush1.msra.mxu0 0.0
    %1566 = vmatprep.subr.mxu0 0.0
    %1567 = vmatpush1.msra.mxu0 0.0
    %1568 = vmatprep.subr.mxu0 0.0
    %1569 = vmatpush1.msra.mxu0 0.0
    %1570 = vmatprep.subr.mxu0 0.0
    %1571 = vmatpush1.msra.mxu0 0.0
    %1572 = vmatprep.subr.mxu0 0.0
    %1573 = vmatpush1.msra.mxu0 0.0
    %1574 = vmatprep.subr.mxu0 0.0
    %1575 = vmatpush1.msra.mxu0 0.0
    %1576 = vmatprep.subr.mxu0 0.0
    %1577 = vmatpush1.msra.mxu0 0.0
    %1578 = vmatprep.subr.mxu0 0.0
    %1579 = vmatpush1.msra.mxu0 0.0
    %1580 = vmatprep.subr.mxu0 0.0
    %1581 = vmatpush1.msra.mxu0 0.0
    %1582 = vmatprep.subr.mxu0 0.0
    %1583 = vmatpush1.msra.mxu0 0.0
    %1584 = vmatprep.subr.mxu0 0.0
    %1585 = vmatpush1.msra.mxu0 0.0
    %1586 = vmatprep.subr.mxu0 0.0
    %1587 = vmatpush1.msra.mxu0 0.0
    %1588 = vmatprep.subr.mxu0 0.0
    %1589 = vmatpush1.msra.mxu0 0.0
    %1590 = vmatprep.subr.mxu0 0.0
    %1591 = vmatpush1.msra.mxu0 0.0
    %1592 = vmatprep.subr.mxu0 0.0
    %1593 = vmatpush1.msra.mxu0 0.0
    %1594 = vmatprep.mubr.f32.mxu0 0.0
    %1595 = vmatmul.mubr.f32.gmra.mrb[0].mxu0 %v1528
    %v1596 = vpop.f32.mrb[0].mxu0
    %v1597 = vadd.f32 0.0, %v1596
    %v1598 = vpop.f32.mrb[0].mxu0
    %1599 = vdwg.mxu0
    %v1601 = vsel %vm589, %v1526, 0
    %1603 = vmatprep.subr.mxu0 0.0
    %1604 = vmatpush1.msra.mxu0 %v615
    %1605 = vmatprep.subr.mxu0 0.0
    %1606 = vmatpush1.msra.mxu0 0.0
    %1607 = vmatprep.subr.mxu0 0.0
    %1608 = vmatpush1.msra.mxu0 0.0
    %1609 = vmatprep.subr.mxu0 0.0
    %1610 = vmatpush1.msra.mxu0 0.0
    %1611 = vmatprep.subr.mxu0 0.0
    %1612 = vmatpush1.msra.mxu0 0.0
    %1613 = vmatprep.subr.mxu0 0.0
    %1614 = vmatpush1.msra.mxu0 0.0
    %1615 = vmatprep.subr.mxu0 0.0
    %1616 = vmatpush1.msra.mxu0 0.0
    %1617 = vmatprep.subr.mxu0 0.0
    %1618 = vmatpush1.msra.mxu0 0.0
    %1619 = vmatprep.subr.mxu0 0.0
    %1620 = vmatpush1.msra.mxu0 0.0
    %1621 = vmatprep.subr.mxu0 0.0
    %1622 = vmatpush1.msra.mxu0 0.0
    %1623 = vmatprep.subr.mxu0 0.0
    %1624 = vmatpush1.msra.mxu0 0.0
    %1625 = vmatprep.subr.mxu0 0.0
    %1626 = vmatpush1.msra.mxu0 0.0
    %1627 = vmatprep.subr.mxu0 0.0
    %1628 = vmatpush1.msra.mxu0 0.0
    %1629 = vmatprep.subr.mxu0 0.0
    %1630 = vmatpush1.msra.mxu0 0.0
    %1631 = vmatprep.subr.mxu0 0.0
    %1632 = vmatpush1.msra.mxu0 0.0
    %1633 = vmatprep.subr.mxu0 0.0
    %1634 = vmatpush1.msra.mxu0 0.0
    %1635 = vmatprep.subr.mxu0 0.0
    %1636 = vmatpush1.msra.mxu0 0.0
    %1637 = vmatprep.subr.mxu0 0.0
    %1638 = vmatpush1.msra.mxu0 0.0
    %1639 = vmatprep.subr.mxu0 0.0
    %1640 = vmatpush1.msra.mxu0 0.0
    %1641 = vmatprep.subr.mxu0 0.0
    %1642 = vmatpush1.msra.mxu0 0.0
    %1643 = vmatprep.subr.mxu0 0.0
    %1644 = vmatpush1.msra.mxu0 0.0
    %1645 = vmatprep.subr.mxu0 0.0
    %1646 = vmatpush1.msra.mxu0 0.0
    %1647 = vmatprep.subr.mxu0 0.0
    %1648 = vmatpush1.msra.mxu0 0.0
    %1649 = vmatprep.subr.mxu0 0.0
    %1650 = vmatpush1.msra.mxu0 0.0
    %1651 = vmatprep.subr.mxu0 0.0
    %1652 = vmatpush1.msra.mxu0 0.0
    %1653 = vmatprep.subr.mxu0 0.0
    %1654 = vmatpush1.msra.mxu0 0.0
    %1655 = vmatprep.subr.mxu0 0.0
    %1656 = vmatpush1.msra.mxu0 0.0
    %1657 = vmatprep.subr.mxu0 0.0
    %1658 = vmatpush1.msra.mxu0 0.0
    %1659 = vmatprep.subr.mxu0 0.0
    %1660 = vmatpush1.msra.mxu0 0.0
    %1661 = vmatprep.subr.mxu0 0.0
    %1662 = vmatpush1.msra.mxu0 0.0
    %1663 = vmatprep.subr.mxu0 0.0
    %1664 = vmatpush1.msra.mxu0 0.0
    %1665 = vmatprep.subr.mxu0 0.0
    %1666 = vmatpush1.msra.mxu0 0.0
    %1667 = vmatprep.mubr.f32.mxu0 0.0
    %1668 = vmatmul.mubr.f32.gmra.mrb[0].mxu0 %v1601
    %v1669 = vpop.f32.mrb[0].mxu0
    %v1670 = vadd.f32 0.0, %v1669
    %v1671 = vpop.f32.mrb[0].mxu0
    %1672 = vdwg.mxu0
    %v1673 = vlaneseq
    %v1674 = vshrl.u32 %v1673, 7
    %v1675 = vsub.s32 0, %v1674
    %v1676 = vrot.slane %v1597, %v1675
    %v1677 = vsub.f32 %v1363, %v1676
    %v1678 = vld [vmem:[#allocation22] sm:$0xff]
    %v1679 = vlaneseq
    %v1680 = vshrl.u32 %v1679, 7
    %v1681 = vsub.s32 0, %v1680
    %v1682 = vrot.slane %v1670, %v1681
    %1684 = vset.pattern.permute.xlu0 0
    %1685 = vperm.xlu0 %1684, %v1678
    %v1686 = vpop.permute.xlu0 %1685
    %v1688 = vmul.f32 %v1682, %v1686
    %v1689 = vmul.f32 %v1677, %v1688
    %v1690 = vld [vmem:[#allocation23] sm:$0xff]
    %1692 = vset.pattern.permute.xlu0 0
    %1693 = vperm.xlu0 %1692, %v1690
    %v1694 = vpop.permute.xlu0 %1693
    %v1696 = vadd.f32 %v1689, %v1694
    %v1697 = vmul.f32 %v1696, 0.5
    %v1698 = vmul.f32 %v1696, 0.70710677
    %vm1699 = vcmp.ge.f32.partialorder %v1698, 0.0
    %v1700 = vsel %vm1699, 1.0, -1.0
    %v1701 = vand.u32 2147483647, %v1698
    %v1702 = vmul.f32 %v1701, 0.3275911
    %v1703 = vadd.f32 %v1702, 1.0
    %v1704 = vrcp.pop %v1703
    %v1705 = vmul.f32 1.0, %v1704
    %v1706 = vmul.f32 %v1705, 1.0614054
    %v1707 = vadd.f32 %v1706, -1.4531521
    %v1708 = vmul.f32 %v1707, %v1705
    %v1709 = vadd.f32 %v1708, 1.4214138
    %v1710 = vmul.f32 %v1709, %v1705
    %v1711 = vadd.f32 %v1710, -0.28449672
    %v1712 = vmul.f32 %v1711, %v1705
    %v1713 = vadd.f32 %v1712, 0.2548296
    %v1714 = vmul.f32 %v1713, %v1705
    %v1715 = vsub.f32 0.0, %v1701
    %v1716 = vmul.f32 %v1715, %v1701
    %v1717 = vmul.f32 %v1716, 1.442695
    %v1718 = vpow.pop %v1717
    %v1719 = vmul.f32 %v1714, %v1718
    %v1720 = vsub.f32 1.0, %v1719
    %v1721 = vmul.f32 %v1700, %v1720
    %v1722 = vadd.f32 %v1721, 1.0
    %v1723 = vmul.f32 %v1697, %v1722
    %1724 = vrot.lane.b32.xlu0 %v1723, 9
    %v1725 = vpop.permute.xlu0 %1724
    %v1726 = vmul.f32 %v1725, %v307
    %1727 = vrot.lane.b32.xlu0 %v1723, 8
    %v1728 = vpop.permute.xlu0 %1727
    %v1729 = vmul.f32 %v1728, %v316
    %1730 = vrot.lane.b32.xlu0 %v1723, 7
    %v1731 = vpop.permute.xlu0 %1730
    %v1732 = vmul.f32 %v1731, %v325
    %1733 = vrot.lane.b32.xlu0 %v1723, 1
    %v1734 = vpop.permute.xlu0 %1733
    %v1735 = vmul.f32 %v1734, %v334
    %1736 = vrot.lane.b32.xlu0 %v1723, 127
    %v1737 = vpop.permute.xlu0 %1736
    %v1738 = vmul.f32 %v1737, %v343
    %1739 = vrot.lane.b32.xlu0 %v1723, 121
    %v1740 = vpop.permute.xlu0 %1739
    %v1741 = vmul.f32 %v1740, %v352
    %1742 = vrot.lane.b32.xlu0 %v1723, 120
    %v1743 = vpop.permute.xlu0 %1742
    %v1744 = vmul.f32 %v1743, %v361
    %1745 = vrot.lane.b32.xlu0 %v1723, 119
    %v1746 = vpop.permute.xlu0 %1745
    %v1747 = vmul.f32 %v1746, %v370
    %v1748 = vld [vmem:[#allocation25] sm:$0xff]
    %v1750 = vsel %vm374, %v1748, 0
    %1752 = vmatprep.subr.mxu0 0.0
    %1753 = vmatpush1.msra.mxu0 %v1726
    %1754 = vmatprep.subr.mxu0 0.0
    %1755 = vmatpush1.msra.mxu0 %v1729
    %1756 = vmatprep.subr.mxu0 0.0
    %1757 = vmatpush1.msra.mxu0 %v1732
    %1758 = vmatprep.subr.mxu0 0.0
    %1759 = vmatpush1.msra.mxu0 %v1735
    %1760 = vmatprep.subr.mxu0 0.0
    %1761 = vmatpush1.msra.mxu0 %v1723
    %1762 = vmatprep.subr.mxu0 0.0
    %1763 = vmatpush1.msra.mxu0 %v1738
    %1764 = vmatprep.subr.mxu0 0.0
    %1765 = vmatpush1.msra.mxu0 %v1741
    %1766 = vmatprep.subr.mxu0 0.0
    %1767 = vmatpush1.msra.mxu0 %v1744
    %1768 = vmatprep.subr.mxu0 0.0
    %1769 = vmatpush1.msra.mxu0 %v1747
    %1770 = vmatprep.subr.mxu0 0.0
    %1771 = vmatpush1.msra.mxu0 0.0
    %1772 = vmatprep.subr.mxu0 0.0
    %1773 = vmatpush1.msra.mxu0 0.0
    %1774 = vmatprep.subr.mxu0 0.0
    %1775 = vmatpush1.msra.mxu0 0.0
    %1776 = vmatprep.subr.mxu0 0.0
    %1777 = vmatpush1.msra.mxu0 0.0
    %1778 = vmatprep.subr.mxu0 0.0
    %1779 = vmatpush1.msra.mxu0 0.0
    %1780 = vmatprep.subr.mxu0 0.0
    %1781 = vmatpush1.msra.mxu0 0.0
    %1782 = vmatprep.subr.mxu0 0.0
    %1783 = vmatpush1.msra.mxu0 0.0
    %1784 = vmatprep.subr.mxu0 0.0
    %1785 = vmatpush1.msra.mxu0 0.0
    %1786 = vmatprep.subr.mxu0 0.0
    %1787 = vmatpush1.msra.mxu0 0.0
    %1788 = vmatprep.subr.mxu0 0.0
    %1789 = vmatpush1.msra.mxu0 0.0
    %1790 = vmatprep.subr.mxu0 0.0
    %1791 = vmatpush1.msra.mxu0 0.0
    %1792 = vmatprep.subr.mxu0 0.0
    %1793 = vmatpush1.msra.mxu0 0.0
    %1794 = vmatprep.subr.mxu0 0.0
    %1795 = vmatpush1.msra.mxu0 0.0
    %1796 = vmatprep.subr.mxu0 0.0
    %1797 = vmatpush1.msra.mxu0 0.0
    %1798 = vmatprep.subr.mxu0 0.0
    %1799 = vmatpush1.msra.mxu0 0.0
    %1800 = vmatprep.subr.mxu0 0.0
    %1801 = vmatpush1.msra.mxu0 0.0
    %1802 = vmatprep.subr.mxu0 0.0
    %1803 = vmatpush1.msra.mxu0 0.0
    %1804 = vmatprep.subr.mxu0 0.0
    %1805 = vmatpush1.msra.mxu0 0.0
    %1806 = vmatprep.subr.mxu0 0.0
    %1807 = vmatpush1.msra.mxu0 0.0
    %1808 = vmatprep.subr.mxu0 0.0
    %1809 = vmatpush1.msra.mxu0 0.0
    %1810 = vmatprep.subr.mxu0 0.0
    %1811 = vmatpush1.msra.mxu0 0.0
    %1812 = vmatprep.subr.mxu0 0.0
    %1813 = vmatpush1.msra.mxu0 0.0
    %1814 = vmatprep.subr.mxu0 0.0
    %1815 = vmatpush1.msra.mxu0 0.0
    %1816 = vmatprep.mubr.f32.mxu0 0.0
    %1817 = vmatmul.mubr.f32.gmra.mrb[0].mxu0 %v1750
    %v1818 = vpop.f32.mrb[0].mxu0
    %v1819 = vadd.f32 0.0, %v1818
    %v1820 = vpop.f32.mrb[0].mxu0
    %1821 = vdwg.mxu0
    %1822 = vmatprep.subr.mxu0 0.0
    %1823 = vmatpush1.msra.mxu0 %v259
    %1824 = vmatprep.subr.mxu0 0.0
    %1825 = vmatpush1.msra.mxu0 %v260
    %1826 = vmatprep.subr.mxu0 0.0
    %1827 = vmatpush1.msra.mxu0 %v261
    %1828 = vmatprep.subr.mxu0 0.0
    %1829 = vmatpush1.msra.mxu0 %v262
    %1830 = vmatprep.subr.mxu0 0.0
    %1831 = vmatpush1.msra.mxu0 %v263
    %1832 = vmatprep.subr.mxu0 0.0
    %1833 = vmatpush1.msra.mxu0 %v264
    %1834 = vmatprep.subr.mxu0 0.0
    %1835 = vmatpush1.msra.mxu0 %v265
    %1836 = vmatprep.subr.mxu0 0.0
    %1837 = vmatpush1.msra.mxu0 %v266
    %1838 = vmatprep.subr.mxu0 0.0
    %1839 = vmatpush1.msra.mxu0 %v267
    %1840 = vmatprep.subr.mxu0 0.0
    %1841 = vmatpush1.msra.mxu0 %v268
    %1842 = vmatprep.subr.mxu0 0.0
    %1843 = vmatpush1.msra.mxu0 %v269
    %1844 = vmatprep.subr.mxu0 0.0
    %1845 = vmatpush1.msra.mxu0 %v270
    %1846 = vmatprep.subr.mxu0 0.0
    %1847 = vmatpush1.msra.mxu0 %v271
    %1848 = vmatprep.subr.mxu0 0.0
    %1849 = vmatpush1.msra.mxu0 %v272
    %1850 = vmatprep.subr.mxu0 0.0
    %1851 = vmatpush1.msra.mxu0 %v273
    %1852 = vmatprep.subr.mxu0 0.0
    %1853 = vmatpush1.msra.mxu0 %v274
    %1854 = vmatprep.subr.mxu0 0.0
    %1855 = vmatpush1.msra.mxu0 0.0
    %1856 = vmatprep.subr.mxu0 0.0
    %1857 = vmatpush1.msra.mxu0 0.0
    %1858 = vmatprep.subr.mxu0 0.0
    %1859 = vmatpush1.msra.mxu0 0.0
    %1860 = vmatprep.subr.mxu0 0.0
    %1861 = vmatpush1.msra.mxu0 0.0
    %1862 = vmatprep.subr.mxu0 0.0
    %1863 = vmatpush1.msra.mxu0 0.0
    %1864 = vmatprep.subr.mxu0 0.0
    %1865 = vmatpush1.msra.mxu0 0.0
    %1866 = vmatprep.subr.mxu0 0.0
    %1867 = vmatpush1.msra.mxu0 0.0
    %1868 = vmatprep.subr.mxu0 0.0
    %1869 = vmatpush1.msra.mxu0 0.0
    %1870 = vmatprep.subr.mxu0 0.0
    %1871 = vmatpush1.msra.mxu0 0.0
    %1872 = vmatprep.subr.mxu0 0.0
    %1873 = vmatpush1.msra.mxu0 0.0
    %1874 = vmatprep.subr.mxu0 0.0
    %1875 = vmatpush1.msra.mxu0 0.0
    %1876 = vmatprep.subr.mxu0 0.0
    %1877 = vmatpush1.msra.mxu0 0.0
    %1878 = vmatprep.subr.mxu0 0.0
    %1879 = vmatpush1.msra.mxu0 0.0
    %1880 = vmatprep.subr.mxu0 0.0
    %1881 = vmatpush1.msra.mxu0 0.0
    %1882 = vmatprep.subr.mxu0 0.0
    %1883 = vmatpush1.msra.mxu0 0.0
    %1884 = vmatprep.subr.mxu0 0.0
    %1885 = vmatpush1.msra.mxu0 0.0
    %1886 = vmatprep.mubr.f32.mxu0 0.0
    %1887 = vmatmul.mubr.f32.gmra.mrb[0].mxu0 %v1819
    %v1888 = vpop.f32.mrb[0].mxu0
    %v1889 = vadd.f32 0.0, %v1888
    %v1890 = vpop.f32.mrb[0].mxu0
    %1891 = vdwg.mxu0
    %v1892 = vmul.f32 %v1819, %v1819
    %1893 = vmatprep.subr.mxu0 0.0
    %1894 = vmatpush1.msra.mxu0 %v259
    %1895 = vmatprep.subr.mxu0 0.0
    %1896 = vmatpush1.msra.mxu0 %v260
    %1897 = vmatprep.subr.mxu0 0.0
    %1898 = vmatpush1.msra.mxu0 %v261
    %1899 = vmatprep.subr.mxu0 0.0
    %1900 = vmatpush1.msra.mxu0 %v262
    %1901 = vmatprep.subr.mxu0 0.0
    %1902 = vmatpush1.msra.mxu0 %v263
    %1903 = vmatprep.subr.mxu0 0.0
    %1904 = vmatpush1.msra.mxu0 %v264
    %1905 = vmatprep.subr.mxu0 0.0
    %1906 = vmatpush1.msra.mxu0 %v265
    %1907 = vmatprep.subr.mxu0 0.0
    %1908 = vmatpush1.msra.mxu0 %v266
    %1909 = vmatprep.subr.mxu0 0.0
    %1910 = vmatpush1.msra.mxu0 %v267
    %1911 = vmatprep.subr.mxu0 0.0
    %1912 = vmatpush1.msra.mxu0 %v268
    %1913 = vmatprep.subr.mxu0 0.0
    %1914 = vmatpush1.msra.mxu0 %v269
    %1915 = vmatprep.subr.mxu0 0.0
    %1916 = vmatpush1.msra.mxu0 %v270
    %1917 = vmatprep.subr.mxu0 0.0
    %1918 = vmatpush1.msra.mxu0 %v271
    %1919 = vmatprep.subr.mxu0 0.0
    %1920 = vmatpush1.msra.mxu0 %v272
    %1921 = vmatprep.subr.mxu0 0.0
    %1922 = vmatpush1.msra.mxu0 %v273
    %1923 = vmatprep.subr.mxu0 0.0
    %1924 = vmatpush1.msra.mxu0 %v274
    %1925 = vmatprep.subr.mxu0 0.0
    %1926 = vmatpush1.msra.mxu0 0.0
    %1927 = vmatprep.subr.mxu0 0.0
    %1928 = vmatpush1.msra.mxu0 0.0
    %1929 = vmatprep.subr.mxu0 0.0
    %1930 = vmatpush1.msra.mxu0 0.0
    %1931 = vmatprep.subr.mxu0 0.0
    %1932 = vmatpush1.msra.mxu0 0.0
    %1933 = vmatprep.subr.mxu0 0.0
    %1934 = vmatpush1.msra.mxu0 0.0
    %1935 = vmatprep.subr.mxu0 0.0
    %1936 = vmatpush1.msra.mxu0 0.0
    %1937 = vmatprep.subr.mxu0 0.0
    %1938 = vmatpush1.msra.mxu0 0.0
    %1939 = vmatprep.subr.mxu0 0.0
    %1940 = vmatpush1.msra.mxu0 0.0
    %1941 = vmatprep.subr.mxu0 0.0
    %1942 = vmatpush1.msra.mxu0 0.0
    %1943 = vmatprep.subr.mxu0 0.0
    %1944 = vmatpush1.msra.mxu0 0.0
    %1945 = vmatprep.subr.mxu0 0.0
    %1946 = vmatpush1.msra.mxu0 0.0
    %1947 = vmatprep.subr.mxu0 0.0
    %1948 = vmatpush1.msra.mxu0 0.0
    %1949 = vmatprep.subr.mxu0 0.0
    %1950 = vmatpush1.msra.mxu0 0.0
    %1951 = vmatprep.subr.mxu0 0.0
    %1952 = vmatpush1.msra.mxu0 0.0
    %1953 = vmatprep.subr.mxu0 0.0
    %1954 = vmatpush1.msra.mxu0 0.0
    %1955 = vmatprep.subr.mxu0 0.0
    %1956 = vmatpush1.msra.mxu0 0.0
    %1957 = vmatprep.mubr.f32.mxu0 0.0
    %1958 = vmatmul.mubr.f32.gmra.mrb[0].mxu0 %v1892
    %v1959 = vpop.f32.mrb[0].mxu0
    %v1960 = vadd.f32 0.0, %v1959
    %v1961 = vpop.f32.mrb[0].mxu0
    %1962 = vdwg.mxu0
    %v1963 = vsel %vm589, %v1889, 0.0
    %v1964 = vrot.slane %v1963, 4
    %v1965 = vadd.f32 %v1963, %v1964
    %v1966 = vrot.slane %v1965, 2
    %v1967 = vadd.f32 %v1965, %v1966
    %v1968 = vrot.slane %v1967, 1
    %v1969 = vadd.f32 %v1967, %v1968
    %v1970 = vmul.f32 %v1969, 0.001953125
    %v1971 = vsel %vm589, %v1960, 0.0
    %v1972 = vrot.slane %v1971, 4
    %v1973 = vadd.f32 %v1971, %v1972
    %v1974 = vrot.slane %v1973, 2
    %v1975 = vadd.f32 %v1973, %v1974
    %v1976 = vrot.slane %v1975, 1
    %v1977 = vadd.f32 %v1975, %v1976
    %v1978 = vmul.f32 %v1977, 0.001953125
    %v1979 = vmul.f32 %v1970, %v1970
    %v1980 = vsub.f32 %v1978, %v1979
    %v1981 = vadd.f32 %v1980, 1e-05
    %v1982 = vrsqrt.pop %v1981
    %v1984 = vsel %vm589, %v1970, 0
    %1986 = vmatprep.subr.mxu0 0.0
    %1987 = vmatpush1.msra.mxu0 %v615
    %1988 = vmatprep.subr.mxu0 0.0
    %1989 = vmatpush1.msra.mxu0 0.0
    %1990 = vmatprep.subr.mxu0 0.0
    %1991 = vmatpush1.msra.mxu0 0.0
    %1992 = vmatprep.subr.mxu0 0.0
    %1993 = vmatpush1.msra.mxu0 0.0
    %1994 = vmatprep.subr.mxu0 0.0
    %1995 = vmatpush1.msra.mxu0 0.0
    %1996 = vmatprep.subr.mxu0 0.0
    %1997 = vmatpush1.msra.mxu0 0.0
    %1998 = vmatprep.subr.mxu0 0.0
    %1999 = vmatpush1.msra.mxu0 0.0
    %2000 = vmatprep.subr.mxu0 0.0
    %2001 = vmatpush1.msra.mxu0 0.0
    %2002 = vmatprep.subr.mxu0 0.0
    %2003 = vmatpush1.msra.mxu0 0.0
    %2004 = vmatprep.subr.mxu0 0.0
    %2005 = vmatpush1.msra.mxu0 0.0
    %2006 = vmatprep.subr.mxu0 0.0
    %2007 = vmatpush1.msra.mxu0 0.0
    %2008 = vmatprep.subr.mxu0 0.0
    %2009 = vmatpush1.msra.mxu0 0.0
    %2010 = vmatprep.subr.mxu0 0.0
    %2011 = vmatpush1.msra.mxu0 0.0
    %2012 = vmatprep.subr.mxu0 0.0
    %2013 = vmatpush1.msra.mxu0 0.0
    %2014 = vmatprep.subr.mxu0 0.0
    %2015 = vmatpush1.msra.mxu0 0.0
    %2016 = vmatprep.subr.mxu0 0.0
    %2017 = vmatpush1.msra.mxu0 0.0
    %2018 = vmatprep.subr.mxu0 0.0
    %2019 = vmatpush1.msra.mxu0 0.0
    %2020 = vmatprep.subr.mxu0 0.0
    %2021 = vmatpush1.msra.mxu0 0.0
    %2022 = vmatprep.subr.mxu0 0.0
    %2023 = vmatpush1.msra.mxu0 0.0
    %2024 = vmatprep.subr.mxu0 0.0
    %2025 = vmatpush1.msra.mxu0 0.0
    %2026 = vmatprep.subr.mxu0 0.0
    %2027 = vmatpush1.msra.mxu0 0.0
    %2028 = vmatprep.subr.mxu0 0.0
    %2029 = vmatpush1.msra.mxu0 0.0
    %2030 = vmatprep.subr.mxu0 0.0
    %2031 = vmatpush1.msra.mxu0 0.0
    %2032 = vmatprep.subr.mxu0 0.0
    %2033 = vmatpush1.msra.mxu0 0.0
    %2034 = vmatprep.subr.mxu0 0.0
    %2035 = vmatpush1.msra.mxu0 0.0
    %2036 = vmatprep.subr.mxu0 0.0
    %2037 = vmatpush1.msra.mxu0 0.0
    %2038 = vmatprep.subr.mxu0 0.0
    %2039 = vmatpush1.msra.mxu0 0.0
    %2040 = vmatprep.subr.mxu0 0.0
    %2041 = vmatpush1.msra.mxu0 0.0
    %2042 = vmatprep.subr.mxu0 0.0
    %2043 = vmatpush1.msra.mxu0 0.0
    %2044 = vmatprep.subr.mxu0 0.0
    %2045 = vmatpush1.msra.mxu0 0.0
    %2046 = vmatprep.subr.mxu0 0.0
    %2047 = vmatpush1.msra.mxu0 0.0
    %2048 = vmatprep.subr.mxu0 0.0
    %2049 = vmatpush1.msra.mxu0 0.0
    %2050 = vmatprep.mubr.f32.mxu0 0.0
    %2051 = vmatmul.mubr.f32.gmra.mrb[0].mxu0 %v1984
    %v2052 = vpop.f32.mrb[0].mxu0
    %v2053 = vadd.f32 0.0, %v2052
    %v2054 = vpop.f32.mrb[0].mxu0
    %2055 = vdwg.mxu0
    %v2057 = vsel %vm589, %v1982, 0
    %2059 = vmatprep.subr.mxu0 0.0
    %2060 = vmatpush1.msra.mxu0 %v615
    %2061 = vmatprep.subr.mxu0 0.0
    %2062 = vmatpush1.msra.mxu0 0.0
    %2063 = vmatprep.subr.mxu0 0.0
    %2064 = vmatpush1.msra.mxu0 0.0
    %2065 = vmatprep.subr.mxu0 0.0
    %2066 = vmatpush1.msra.mxu0 0.0
    %2067 = vmatprep.subr.mxu0 0.0
    %2068 = vmatpush1.msra.mxu0 0.0
    %2069 = vmatprep.subr.mxu0 0.0
    %2070 = vmatpush1.msra.mxu0 0.0
    %2071 = vmatprep.subr.mxu0 0.0
    %2072 = vmatpush1.msra.mxu0 0.0
    %2073 = vmatprep.subr.mxu0 0.0
    %2074 = vmatpush1.msra.mxu0 0.0
    %2075 = vmatprep.subr.mxu0 0.0
    %2076 = vmatpush1.msra.mxu0 0.0
    %2077 = vmatprep.subr.mxu0 0.0
    %2078 = vmatpush1.msra.mxu0 0.0
    %2079 = vmatprep.subr.mxu0 0.0
    %2080 = vmatpush1.msra.mxu0 0.0
    %2081 = vmatprep.subr.mxu0 0.0
    %2082 = vmatpush1.msra.mxu0 0.0
    %2083 = vmatprep.subr.mxu0 0.0
    %2084 = vmatpush1.msra.mxu0 0.0
    %2085 = vmatprep.subr.mxu0 0.0
    %2086 = vmatpush1.msra.mxu0 0.0
    %2087 = vmatprep.subr.mxu0 0.0
    %2088 = vmatpush1.msra.mxu0 0.0
    %2089 = vmatprep.subr.mxu0 0.0
    %2090 = vmatpush1.msra.mxu0 0.0
    %2091 = vmatprep.subr.mxu0 0.0
    %2092 = vmatpush1.msra.mxu0 0.0
    %2093 = vmatprep.subr.mxu0 0.0
    %2094 = vmatpush1.msra.mxu0 0.0
    %2095 = vmatprep.subr.mxu0 0.0
    %2096 = vmatpush1.msra.mxu0 0.0
    %2097 = vmatprep.subr.mxu0 0.0
    %2098 = vmatpush1.msra.mxu0 0.0
    %2099 = vmatprep.subr.mxu0 0.0
    %2100 = vmatpush1.msra.mxu0 0.0
    %2101 = vmatprep.subr.mxu0 0.0
    %2102 = vmatpush1.msra.mxu0 0.0
    %2103 = vmatprep.subr.mxu0 0.0
    %2104 = vmatpush1.msra.mxu0 0.0
    %2105 = vmatprep.subr.mxu0 0.0
    %2106 = vmatpush1.msra.mxu0 0.0
    %2107 = vmatprep.subr.mxu0 0.0
    %2108 = vmatpush1.msra.mxu0 0.0
    %2109 = vmatprep.subr.mxu0 0.0
    %2110 = vmatpush1.msra.mxu0 0.0
    %2111 = vmatprep.subr.mxu0 0.0
    %2112 = vmatpush1.msra.mxu0 0.0
    %2113 = vmatprep.subr.mxu0 0.0
    %2114 = vmatpush1.msra.mxu0 0.0
    %2115 = vmatprep.subr.mxu0 0.0
    %2116 = vmatpush1.msra.mxu0 0.0
    %2117 = vmatprep.subr.mxu0 0.0
    %2118 = vmatpush1.msra.mxu0 0.0
    %2119 = vmatprep.subr.mxu0 0.0
    %2120 = vmatpush1.msra.mxu0 0.0
    %2121 = vmatprep.subr.mxu0 0.0
    %2122 = vmatpush1.msra.mxu0 0.0
    %2123 = vmatprep.mubr.f32.mxu0 0.0
    %2124 = vmatmul.mubr.f32.gmra.mrb[0].mxu0 %v2057
    %v2125 = vpop.f32.mrb[0].mxu0
    %v2126 = vadd.f32 0.0, %v2125
    %v2127 = vpop.f32.mrb[0].mxu0
    %2128 = vdwg.mxu0
    %v2129 = vlaneseq
    %v2130 = vshrl.u32 %v2129, 7
    %v2131 = vsub.s32 0, %v2130
    %v2132 = vrot.slane %v2053, %v2131
    %v2133 = vsub.f32 %v1819, %v2132
    %v2134 = vld [vmem:[#allocation26] sm:$0xff]
    %v2135 = vlaneseq
    %v2136 = vshrl.u32 %v2135, 7
    %v2137 = vsub.s32 0, %v2136
    %v2138 = vrot.slane %v2126, %v2137
    %2140 = vset.pattern.permute.xlu0 0
    %2141 = vperm.xlu0 %2140, %v2134
    %v2142 = vpop.permute.xlu0 %2141
    %v2144 = vmul.f32 %v2138, %v2142
    %v2145 = vmul.f32 %v2133, %v2144
    %v2146 = vld [vmem:[#allocation28] sm:$0xff]
    %2148 = vset.pattern.permute.xlu0 0
    %2149 = vperm.xlu0 %2148, %v2146
    %v2150 = vpop.permute.xlu0 %2149
    %v2152 = vadd.f32 %v2145, %v2150
    %v2153 = vld [vmem:[#allocation5] sm:$0xff]
    %v2155 = vsel %vm589, %v2153, 0
    %2157 = vmatprep.subr.mxu0 0.0
    %2158 = vmatpush1.msra.mxu0 %v615
    %2159 = vmatprep.subr.mxu0 0.0
    %2160 = vmatpush1.msra.mxu0 0.0
    %2161 = vmatprep.subr.mxu0 0.0
    %2162 = vmatpush1.msra.mxu0 0.0
    %2163 = vmatprep.subr.mxu0 0.0
    %2164 = vmatpush1.msra.mxu0 0.0
    %2165 = vmatprep.subr.mxu0 0.0
    %2166 = vmatpush1.msra.mxu0 0.0
    %2167 = vmatprep.subr.mxu0 0.0
    %2168 = vmatpush1.msra.mxu0 0.0
    %2169 = vmatprep.subr.mxu0 0.0
    %2170 = vmatpush1.msra.mxu0 0.0
    %2171 = vmatprep.subr.mxu0 0.0
    %2172 = vmatpush1.msra.mxu0 0.0
    %2173 = vmatprep.subr.mxu0 0.0
    %2174 = vmatpush1.msra.mxu0 0.0
    %2175 = vmatprep.subr.mxu0 0.0
    %2176 = vmatpush1.msra.mxu0 0.0
    %2177 = vmatprep.subr.mxu0 0.0
    %2178 = vmatpush1.msra.mxu0 0.0
    %2179 = vmatprep.subr.mxu0 0.0
    %2180 = vmatpush1.msra.mxu0 0.0
    %2181 = vmatprep.subr.mxu0 0.0
    %2182 = vmatpush1.msra.mxu0 0.0
    %2183 = vmatprep.subr.mxu0 0.0
    %2184 = vmatpush1.msra.mxu0 0.0
    %2185 = vmatprep.subr.mxu0 0.0
    %2186 = vmatpush1.msra.mxu0 0.0
    %2187 = vmatprep.subr.mxu0 0.0
    %2188 = vmatpush1.msra.mxu0 0.0
    %2189 = vmatprep.subr.mxu0 0.0
    %2190 = vmatpush1.msra.mxu0 0.0
    %2191 = vmatprep.subr.mxu0 0.0
    %2192 = vmatpush1.msra.mxu0 0.0
    %2193 = vmatprep.subr.mxu0 0.0
    %2194 = vmatpush1.msra.mxu0 0.0
    %2195 = vmatprep.subr.mxu0 0.0
    %2196 = vmatpush1.msra.mxu0 0.0
    %2197 = vmatprep.subr.mxu0 0.0
    %2198 = vmatpush1.msra.mxu0 0.0
    %2199 = vmatprep.subr.mxu0 0.0
    %2200 = vmatpush1.msra.mxu0 0.0
    %2201 = vmatprep.subr.mxu0 0.0
    %2202 = vmatpush1.msra.mxu0 0.0
    %2203 = vmatprep.subr.mxu0 0.0
    %2204 = vmatpush1.msra.mxu0 0.0
    %2205 = vmatprep.subr.mxu0 0.0
    %2206 = vmatpush1.msra.mxu0 0.0
    %2207 = vmatprep.subr.mxu0 0.0
    %2208 = vmatpush1.msra.mxu0 0.0
    %2209 = vmatprep.subr.mxu0 0.0
    %2210 = vmatpush1.msra.mxu0 0.0
    %2211 = vmatprep.subr.mxu0 0.0
    %2212 = vmatpush1.msra.mxu0 0.0
    %2213 = vmatprep.subr.mxu0 0.0
    %2214 = vmatpush1.msra.mxu0 0.0
    %2215 = vmatprep.subr.mxu0 0.0
    %2216 = vmatpush1.msra.mxu0 0.0
    %2217 = vmatprep.subr.mxu0 0.0
    %2218 = vmatpush1.msra.mxu0 0.0
    %2219 = vmatprep.subr.mxu0 0.0
    %2220 = vmatpush1.msra.mxu0 0.0
    %2221 = vmatprep.mubr.f32.mxu0 0.0
    %2222 = vmatmul.mubr.f32.gmra.mrb[0].mxu0 %v2155
    %v2223 = vpop.f32.mrb[0].mxu0
    %v2224 = vadd.f32 0.0, %v2223
    %v2225 = vpop.f32.mrb[0].mxu0
    %2226 = vdwg.mxu0
    %v2227 = vadd.f32 %v2152, %v2224
    %2228 = vst [vmem:[#allocation29] sm:$0xff] %v2227
    // Predicated region
    $region138: #{_down_impl.1} parent=1 // pred_check
      _
    $region139: #{_down_impl.1} parent=1 // pred_check_branch
      %2230 = sbr.rel (0) target = $region141
    $region140: #{_down_impl.1} parent=1 // pred_region
      %s2232 = ssub.s32 128, 128
      %2233 = vsyncadd [#allocation4], %s2232
      %s2235 = sshll.u32 [#allocation29], 4
      %s2236 = int_to_ptr.vmem [resolvable:$true] %s2235
      %2238 = dma.vmem_to_hbm [thread:$0]  %s2236, 128, %s17, [#allocation4]
    $region141: #{_down_impl.1} parent=1 // pred_fallthru
      _
    // Predicated region
    $region142: #{_down_impl.1} parent=1 // pred_check
      _
    $region143: #{_down_impl.1} parent=1 // pred_check_branch
      %2240 = sbr.rel (0) target = $region145
    $region144: #{_down_impl.1} parent=1 // pred_region
      %2241 = dma.done [#allocation4], 128
    $region145: #{_down_impl.1} parent=1 // pred_fallthru
      _
    %2242 = vsyncpa [#allocation3], 1
    %2243 = vsyncpa [#allocation6], 1
    %2244 = vsyncpa [#allocation9], 1
    %2245 = vsyncpa [#allocation12], 1
    %2246 = vsyncpa [#allocation15], 1
    %2247 = vsyncpa [#allocation18], 1
    %2248 = vsyncpa [#allocation21], 1
    %2249 = vsyncpa [#allocation24], 1
    %2250 = vsyncpa [#allocation27], 1
    %2251 = vsyncpa [#allocation4], 1

// kernel: eq.10
$region0: #{eq.10}
  %s0 = inlined_call_operand.vmem [shape: s32[2,64], index: 0, kind: input, shape index: {}]
  %s1 = inlined_call_operand.vmem [shape: s32[128], index: 1, kind: output, shape index: {}]
  $region1: #{eq.10} parent=0
    #allocation0 [shape = 'u8[4096]{0}', space=vmem, size = 0x1000, scoped, tag = 'scoped mem for output reshape']
    #allocation1 [shape = 'u8[4096]{0}', space=vmem, size = 0x1000, scoped, tag = 'scoped mem for input reshape']
    %s3 = sshllo.u32 0, 2
    %v4 = vld [vmem:[%s0] sm:%s3]
    %5 = vst [vmem:[#allocation1] sm:%s3] %v4
    %v6 = vld [vmem:[#allocation1] sm:$0x1]
    %vm7 = vcmask 523264
    %8 = vst.msk [vmem:[#allocation0] sm:$0x1] %vm7, %v6
    %s9 = scalar_lea.vmem [#allocation1], 1
    %v10 = vld [vmem:[%s9] sm:$0x1]
    %11 = vrot.lane.b32.xlu0 %v10, 64
    %v12 = vpop.permute.xlu0 %11
    %vm13 = vcmask 1048064
    %14 = vst.msk [vmem:[#allocation0] sm:$0x1] %vm13, %v12
    %s16 = sshllo.u32 0, 1
    %v18 = vld [vmem:[#allocation0] sm:%s16]
    %s19 = sshllo.u32 0, 1
    %20 = vst [vmem:[%s1] sm:%s19] %v18

// kernel: _down_impl.1
$region0: #{_down_impl.1}
  #allocation0 [shape = 'u32[]', space=smem, size = 0x4, offset = 0x4, fixed_abs, tag = 'smem constant byte address 0x4 - core index']
  #allocation1 [shape = 'u32[144,128]{1,0:T(1,128)}', space=vmem, size = 0x12000, scoped, tag = 'internal scratch']
  %s0 = inlined_call_operand.hbm [shape: f32[1,4,8,128], index: 0, kind: input, shape index: {}]
  %s1 = inlined_call_operand.hbm [shape: f32[1,8,2], index: 1, kind: input, shape index: {}]
  %s2 = inlined_call_operand.hbm [shape: f32[9,1,128], index: 2, kind: input, shape index: {}]
  %s3 = inlined_call_operand.hbm [shape: f32[128,2], index: 3, kind: input, shape index: {}]
  %s4 = inlined_call_operand.hbm [shape: f32[2,128], index: 4, kind: input, shape index: {}]
  %s5 = inlined_call_operand.hbm [shape: f32[8,72], index: 5, kind: input, shape index: {}]
  %s6 = inlined_call_operand.hbm [shape: f32[8,1], index: 6, kind: input, shape index: {}]
  %s7 = inlined_call_operand.hbm [shape: f32[8,1], index: 7, kind: input, shape index: {}]
  %s8 = inlined_call_operand.hbm [shape: f32[8,72], index: 8, kind: input, shape index: {}]
  %s9 = inlined_call_operand.hbm [shape: f32[8,1], index: 9, kind: input, shape index: {}]
  %s10 = inlined_call_operand.hbm [shape: f32[8,1], index: 10, kind: input, shape index: {}]
  %s11 = inlined_call_operand.hbm [shape: f32[8,72], index: 11, kind: input, shape index: {}]
  %s12 = inlined_call_operand.hbm [shape: f32[8,1], index: 12, kind: input, shape index: {}]
  %s13 = inlined_call_operand.hbm [shape: f32[8,1], index: 13, kind: input, shape index: {}]
  %s14 = inlined_call_operand.hbm [shape: f32[8,72], index: 14, kind: input, shape index: {}]
  %s15 = inlined_call_operand.hbm [shape: f32[8,1], index: 15, kind: input, shape index: {}]
  %s16 = inlined_call_operand.hbm [shape: f32[8,1], index: 16, kind: input, shape index: {}]
  %s17 = inlined_call_operand.hbm [shape: f32[1,8,128], index: 17, kind: output, shape index: {}]
  %s18 = sld [smem:[#allocation0]]
  $region146: #{_down_impl.1} parent=0
    _
  %s20 = ssub.s32 1, %s18
  %s21 = scalar_select 0, %s20, %s18
  $region1: #{_down_impl.1} parent=0
    #allocation2 [shape = 'u8[16384]{0}', space=vmem, size = 0x4000, scoped, tag = 'input window, operand 0, single buffered']
    #allocation3 [shape = 's32[1]{0}', space=sflag, size = 0x4, scoped, tag = 'scoped memory for _down_impl.1']
    #allocation4 [shape = 's32[1]{0}', space=sflag, size = 0x4, scoped, tag = 'scoped memory for _down_impl.1']
    #allocation5 [shape = 'u8[4096]{0}', space=vmem, size = 0x1000, scoped, tag = 'input window, operand 1, single buffered']
    #allocation6 [shape = 's32[1]{0}', space=sflag, size = 0x4, scoped, tag = 'scoped memory for _down_impl.1']
    #allocation7 [shape = 'u8[4608]{0}', space=vmem, size = 0x1400, scoped, tag = 'input window, operand 2, single buffered']
    #allocation8 [shape = 'u8[65536]{0}', space=vmem, size = 0x10000, scoped, tag = 'input window, operand 3, single buffered']
    #allocation9 [shape = 's32[1]{0}', space=sflag, size = 0x4, scoped, tag = 'scoped memory for _down_impl.1']
    #allocation10 [shape = 'u8[1024]{0}', space=vmem, size = 0x400, scoped, tag = 'input window, operand 4, single buffered']
    #allocation11 [shape = 'u8[4096]{0}', space=vmem, size = 0x1000, scoped, tag = 'input window, operand 5, single buffered']
    #allocation12 [shape = 's32[1]{0}', space=sflag, size = 0x4, scoped, tag = 'scoped memory for _down_impl.1']
    #allocation13 [shape = 'u8[4096]{0}', space=vmem, size = 0x1000, scoped, tag = 'input window, operand 6, single buffered']
    #allocation14 [shape = 'u8[4096]{0}', space=vmem, size = 0x1000, scoped, tag = 'input window, operand 7, single buffered']
    #allocation15 [shape = 's32[1]{0}', space=sflag, size = 0x4, scoped, tag = 'scoped memory for _down_impl.1']
    #allocation16 [shape = 'u8[4096]{0}', space=vmem, size = 0x1000, scoped, tag = 'input window, operand 8, single buffered']
    #allocation17 [shape = 'u8[4096]{0}', space=vmem, size = 0x1000, scoped, tag = 'input window, operand 9, single buffered']
    #allocation18 [shape = 's32[1]{0}', space=sflag, size = 0x4, scoped, tag = 'scoped memory for _down_impl.1']
    #allocation19 [shape = 'u8[4096]{0}', space=vmem, size = 0x1000, scoped, tag = 'input window, operand 10, single buffered']
    #allocation20 [shape = 'u8[4096]{0}', space=vmem, size = 0x1000, scoped, tag = 'input window, operand 11, single buffered']
    #allocation21 [shape = 's32[1]{0}', space=sflag, size = 0x4, scoped, tag = 'scoped memory for _down_impl.1']
    #allocation22 [shape = 'u8[4096]{0}', space=vmem, size = 0x1000, scoped, tag = 'input window, operand 12, single buffered']
    #allocation23 [shape = 'u8[4096]{0}', space=vmem, size = 0x1000, scoped, tag = 'input window, operand 13, single buffered']
    #allocation24 [shape = 's32[1]{0}', space=sflag, size = 0x4, scoped, tag = 'scoped memory for _down_impl.1']
    #allocation25 [shape = 'u8[4096]{0}', space=vmem, size = 0x1000, scoped, tag = 'input window, operand 14, single buffered']
    #allocation26 [shape = 'u8[4096]{0}', space=vmem, size = 0x1000, scoped, tag = 'input window, operand 15, single buffered']
    #allocation27 [shape = 's32[1]{0}', space=sflag, size = 0x4, scoped, tag = 'scoped memory for _down_impl.1']
    #allocation28 [shape = 'u8[4096]{0}', space=vmem, size = 0x1000, scoped, tag = 'input window, operand 16, single buffered']
    #allocation29 [shape = 'u8[4096]{0}', space=vmem, size = 0x1000, scoped, tag = 'output window, operand 0, single buffered']
    %22 = vsyncpa [#allocation3], 0
    %23 = vsyncpa [#allocation6], 0
    %24 = vsyncpa [#allocation9], 0
    %25 = vsyncpa [#allocation12], 0
    %26 = vsyncpa [#allocation15], 0
    %27 = vsyncpa [#allocation18], 0
    %28 = vsyncpa [#allocation21], 0
    %29 = vsyncpa [#allocation24], 0
    %30 = vsyncpa [#allocation27], 0
    %31 = vsyncpa [#allocation4], 0
    // Predicated region
    $region2: #{_down_impl.1} parent=1 // pred_check
      _
    $region3: #{_down_impl.1} parent=1 // pred_check_branch
      %33 = sbr.rel (0) target = $region5
    $region4: #{_down_impl.1} parent=1 // pred_region
      %s35 = ssub.s32 512, 512
      %36 = vsyncadd [#allocation3], %s35
      %s37 = sshll.u32 [#allocation2], 4
      %s38 = int_to_ptr.vmem [resolvable:$true] %s37
      %43 = dma.hbm_to_vmem [thread:$0]  %s0, 512, %s38, [#allocation3], 128, 128, 8
    $region5: #{_down_impl.1} parent=1 // pred_fallthru
      _
    // Predicated region
    $region6: #{_down_impl.1} parent=1 // pred_check
      _
    $region7: #{_down_impl.1} parent=1 // pred_check_branch
      %45 = sbr.rel (0) target = $region9
    $region8: #{_down_impl.1} parent=1 // pred_region
      %s47 = ssub.s32 128, 128
      %48 = vsyncadd [#allocation6], %s47
      %s50 = sshll.u32 [#allocation5], 4
      %s51 = int_to_ptr.vmem [resolvable:$true] %s50
      %53 = dma.hbm_to_vmem [thread:$0]  %s1, 128, %s51, [#allocation6]
    $region9: #{_down_impl.1} parent=1 // pred_fallthru
      _
    // Predicated region
    $region10: #{_down_impl.1} parent=1 // pred_check
      _
    $region11: #{_down_impl.1} parent=1 // pred_check_branch
      %55 = sbr.rel (0) target = $region13
    $region12: #{_down_impl.1} parent=1 // pred_region
      %s57 = ssub.s32 144, 144
      %58 = vsyncadd [#allocation6], %s57
      %s59 = sshll.u32 [#allocation7], 4
      %s60 = int_to_ptr.vmem [resolvable:$true] %s59
      %65 = dma.hbm_to_vmem [thread:$0]  %s2, 144, %s60, [#allocation6], 16, 16, 1
    $region13: #{_down_impl.1} parent=1 // pred_fallthru
      _
    // Predicated region
    $region14: #{_down_impl.1} parent=1 // pred_check
      _
    $region15: #{_down_impl.1} parent=1 // pred_check_branch
      %67 = sbr.rel (0) target = $region17
    $region16: #{_down_impl.1} parent=1 // pred_region
      %s69 = ssub.s32 2048, 2048
      %70 = vsyncadd [#allocation9], %s69
      %s71 = sshll.u32 [#allocation8], 4
      %s72 = int_to_ptr.vmem [resolvable:$true] %s71
      %77 = dma.hbm_to_vmem [thread:$0]  %s3, 2048, %s72, [#allocation9], 128, 128, 8
    $region17: #{_down_impl.1} parent=1 // pred_fallthru
      _
    // Predicated region
    $region18: #{_down_impl.1} parent=1 // pred_check
      _
    $region19: #{_down_impl.1} parent=1 // pred_check_branch
      %79 = sbr.rel (0) target = $region21
    $region20: #{_down_impl.1} parent=1 // pred_region
      %s81 = ssub.s32 32, 32
      %82 = vsyncadd [#allocation9], %s81
      %s84 = sshll.u32 [#allocation10], 4
      %s85 = int_to_ptr.vmem [resolvable:$true] %s84
      %87 = dma.hbm_to_vmem [thread:$0]  %s4, 32, %s85, [#allocation9]
    $region21: #{_down_impl.1} parent=1 // pred_fallthru
      _
    // Predicated region
    $region22: #{_down_impl.1} parent=1 // pred_check
      _
    $region23: #{_down_impl.1} parent=1 // pred_check_branch
      %89 = sbr.rel (0) target = $region25
    $region24: #{_down_impl.1} parent=1 // pred_region
      %s91 = ssub.s32 128, 128
      %92 = vsyncadd [#allocation12], %s91
      %s94 = sshll.u32 [#allocation11], 4
      %s95 = int_to_ptr.vmem [resolvable:$true] %s94
      %97 = dma.hbm_to_vmem [thread:$0]  %s5, 128, %s95, [#allocation12]
    $region25: #{_down_impl.1} parent=1 // pred_fallthru
      _
    // Predicated region
    $region26: #{_down_impl.1} parent=1 // pred_check
      _
    $region27: #{_down_impl.1} parent=1 // pred_check_branch
      %99 = sbr.rel (0) target = $region29
    $region28: #{_down_impl.1} parent=1 // pred_region
      %s101 = ssub.s32 128, 128
      %102 = vsyncadd [#allocation12], %s101
      %s104 = sshll.u32 [#allocation13], 4
      %s105 = int_to_ptr.vmem [resolvable:$true] %s104
      %107 = dma.hbm_to_vmem [thread:$0]  %s6, 128, %s105, [#allocation12]
    $region29: #{_down_impl.1} parent=1 // pred_fallthru
      _
    // Predicated region
    $region30: #{_down_impl.1} parent=1 // pred_check
      _
    $region31: #{_down_impl.1} parent=1 // pred_check_branch
      %109 = sbr.rel (0) target = $region33
    $region32: #{_down_impl.1} parent=1 // pred_region
      %s111 = ssub.s32 128, 128
      %112 = vsyncadd [#allocation15], %s111
      %s114 = sshll.u32 [#allocation14], 4
      %s115 = int_to_ptr.vmem [resolvable:$true] %s114
      %117 = dma.hbm_to_vmem [thread:$0]  %s7, 128, %s115, [#allocation15]
    $region33: #{_down_impl.1} parent=1 // pred_fallthru
      _
    // Predicated region
    $region34: #{_down_impl.1} parent=1 // pred_check
      _
    $region35: #{_down_impl.1} parent=1 // pred_check_branch
      %119 = sbr.rel (0) target = $region37
    $region36: #{_down_impl.1} parent=1 // pred_region
      %s121 = ssub.s32 128, 128
      %122 = vsyncadd [#allocation15], %s121
      %s124 = sshll.u32 [#allocation16], 4
      %s125 = int_to_ptr.vmem [resolvable:$true] %s124
      %127 = dma.hbm_to_vmem [thread:$0]  %s8, 128, %s125, [#allocation15]
    $region37: #{_down_impl.1} parent=1 // pred_fallthru
      _
    // Predicated region
    $region38: #{_down_impl.1} parent=1 // pred_check
      _
    $region39: #{_down_impl.1} parent=1 // pred_check_branch
      %129 = sbr.rel (0) target = $region41
    $region40: #{_down_impl.1} parent=1 // pred_region
      %s131 = ssub.s32 128, 128
      %132 = vsyncadd [#allocation18], %s131
      %s134 = sshll.u32 [#allocation17], 4
      %s135 = int_to_ptr.vmem [resolvable:$true] %s134
      %137 = dma.hbm_to_vmem [thread:$0]  %s9, 128, %s135, [#allocation18]
    $region41: #{_down_impl.1} parent=1 // pred_fallthru
      _
    // Predicated region
    $region42: #{_down_impl.1} parent=1 // pred_check
      _
    $region43: #{_down_impl.1} parent=1 // pred_check_branch
      %139 = sbr.rel (0) target = $region45
    $region44: #{_down_impl.1} parent=1 // pred_region
      %s141 = ssub.s32 128, 128
      %142 = vsyncadd [#allocation18], %s141
      %s144 = sshll.u32 [#allocation19], 4
      %s145 = int_to_ptr.vmem [resolvable:$true] %s144
      %147 = dma.hbm_to_vmem [thread:$0]  %s10, 128, %s145, [#allocation18]
    $region45: #{_down_impl.1} parent=1 // pred_fallthru
      _
    // Predicated region
    $region46: #{_down_impl.1} parent=1 // pred_check
      _
    $region47: #{_down_impl.1} parent=1 // pred_check_branch
      %149 = sbr.rel (0) target = $region49
    $region48: #{_down_impl.1} parent=1 // pred_region
      %s151 = ssub.s32 128, 128
      %152 = vsyncadd [#allocation21], %s151
      %s154 = sshll.u32 [#allocation20], 4
      %s155 = int_to_ptr.vmem [resolvable:$true] %s154
      %157 = dma.hbm_to_vmem [thread:$0]  %s11, 128, %s155, [#allocation21]
    $region49: #{_down_impl.1} parent=1 // pred_fallthru
      _
    // Predicated region
    $region50: #{_down_impl.1} parent=1 // pred_check
      _
    $region51: #{_down_impl.1} parent=1 // pred_check_branch
      %159 = sbr.rel (0) target = $region53
    $region52: #{_down_impl.1} parent=1 // pred_region
      %s161 = ssub.s32 128, 128
      %162 = vsyncadd [#allocation21], %s161
      %s164 = sshll.u32 [#allocation22], 4
      %s165 = int_to_ptr.vmem [resolvable:$true] %s164
      %167 = dma.hbm_to_vmem [thread:$0]  %s12, 128, %s165, [#allocation21]
    $region53: #{_down_impl.1} parent=1 // pred_fallthru
      _
    // Predicated region
    $region54: #{_down_impl.1} parent=1 // pred_check
      _
    $region55: #{_down_impl.1} parent=1 // pred_check_branch
      %169 = sbr.rel (0) target = $region57
    $region56: #{_down_impl.1} parent=1 // pred_region
      %s171 = ssub.s32 128, 128
      %172 = vsyncadd [#allocation24], %s171
      %s174 = sshll.u32 [#allocation23], 4
      %s175 = int_to_ptr.vmem [resolvable:$true] %s174
      %177 = dma.hbm_to_vmem [thread:$0]  %s13, 128, %s175, [#allocation24]
    $region57: #{_down_impl.1} parent=1 // pred_fallthru
      _
    // Predicated region
    $region58: #{_down_impl.1} parent=1 // pred_check
      _
    $region59: #{_down_impl.1} parent=1 // pred_check_branch
      %179 = sbr.rel (0) target = $region61
    $region60: #{_down_impl.1} parent=1 // pred_region
      %s181 = ssub.s32 128, 128
      %182 = vsyncadd [#allocation24], %s181
      %s184 = sshll.u32 [#allocation25], 4
      %s185 = int_to_ptr.vmem [resolvable:$true] %s184
      %187 = dma.hbm_to_vmem [thread:$0]  %s14, 128, %s185, [#allocation24]
    $region61: #{_down_impl.1} parent=1 // pred_fallthru
      _
    // Predicated region
    $region62: #{_down_impl.1} parent=1 // pred_check
      _
    $region63: #{_down_impl.1} parent=1 // pred_check_branch
      %189 = sbr.rel (0) target = $region65
    $region64: #{_down_impl.1} parent=1 // pred_region
      %s191 = ssub.s32 128, 128
      %192 = vsyncadd [#allocation27], %s191
      %s194 = sshll.u32 [#allocation26], 4
      %s195 = int_to_ptr.vmem [resolvable:$true] %s194
      %197 = dma.hbm_to_vmem [thread:$0]  %s15, 128, %s195, [#allocation27]
    $region65: #{_down_impl.1} parent=1 // pred_fallthru
      _
    // Predicated region
    $region66: #{_down_impl.1} parent=1 // pred_check
      _
    $region67: #{_down_impl.1} parent=1 // pred_check_branch
      %199 = sbr.rel (0) target = $region69
    $region68: #{_down_impl.1} parent=1 // pred_region
      %s201 = ssub.s32 128, 128
      %202 = vsyncadd [#allocation27], %s201
      %s204 = sshll.u32 [#allocation28], 4
      %s205 = int_to_ptr.vmem [resolvable:$true] %s204
      %207 = dma.hbm_to_vmem [thread:$0]  %s16, 128, %s205, [#allocation27]
    $region69: #{_down_impl.1} parent=1 // pred_fallthru
      _
    // Predicated region
    $region70: #{_down_impl.1} parent=1 // pred_check
      _
    $region71: #{_down_impl.1} parent=1 // pred_check_branch
      %209 = sbr.rel (0) target = $region73
    $region72: #{_down_impl.1} parent=1 // pred_region
      %210 = dma.done [#allocation3], 512
    $region73: #{_down_impl.1} parent=1 // pred_fallthru
      _
    // Predicated region
    $region74: #{_down_impl.1} parent=1 // pred_check
      _
    $region75: #{_down_impl.1} parent=1 // pred_check_branch
      %212 = sbr.rel (0) target = $region77
    $region76: #{_down_impl.1} parent=1 // pred_region
      %213 = dma.done [#allocation6], 128
    $region77: #{_down_impl.1} parent=1 // pred_fallthru
      _
    // Predicated region
    $region78: #{_down_impl.1} parent=1 // pred_check
      _
    $region79: #{_down_impl.1} parent=1 // pred_check_branch
      %215 = sbr.rel (0) target = $region81
    $region80: #{_down_impl.1} parent=1 // pred_region
      %216 = dma.done [#allocation6], 144
    $region81: #{_down_impl.1} parent=1 // pred_fallthru
      _
    // Predicated region
    $region82: #{_down_impl.1} parent=1 // pred_check
      _
    $region83: #{_down_impl.1} parent=1 // pred_check_branch
      %218 = sbr.rel (0) target = $region85
    $region84: #{_down_impl.1} parent=1 // pred_region
      %219 = dma.done [#allocation9], 2048
    $region85: #{_down_impl.1} parent=1 // pred_fallthru
      _
    // Predicated region
    $region86: #{_down_impl.1} parent=1 // pred_check
      _
    $region87: #{_down_impl.1} parent=1 // pred_check_branch
      %221 = sbr.rel (0) target = $region89
    $region88: #{_down_impl.1} parent=1 // pred_region
      %222 = dma.done [#allocation9], 32
    $region89: #{_down_impl.1} parent=1 // pred_fallthru
      _
    // Predicated region
    $region90: #{_down_impl.1} parent=1 // pred_check
      _
    $region91: #{_down_impl.1} parent=1 // pred_check_branch
      %224 = sbr.rel (0) target = $region93
    $region92: #{_down_impl.1} parent=1 // pred_region
      %225 = dma.done [#allocation12], 128
    $region93: #{_down_impl.1} parent=1 // pred_fallthru
      _
    // Predicated region
    $region94: #{_down_impl.1} parent=1 // pred_check
      _
    $region95: #{_down_impl.1} parent=1 // pred_check_branch
      %227 = sbr.rel (0) target = $region97
    $region96: #{_down_impl.1} parent=1 // pred_region
      %228 = dma.done [#allocation12], 128
    $region97: #{_down_impl.1} parent=1 // pred_fallthru
      _
    // Predicated region
    $region98: #{_down_impl.1} parent=1 // pred_check
      _
    $region99: #{_down_impl.1} parent=1 // pred_check_branch
      %230 = sbr.rel (0) target = $region101
    $region100: #{_down_impl.1} parent=1 // pred_region
      %231 = dma.done [#allocation15], 128
    $region101: #{_down_impl.1} parent=1 // pred_fallthru
      _
    // Predicated region
    $region102: #{_down_impl.1} parent=1 // pred_check
      _
    $region103: #{_down_impl.1} parent=1 // pred_check_branch
      %233 = sbr.rel (0) target = $region105
    $region104: #{_down_impl.1} parent=1 // pred_region
      %234 = dma.done [#allocation15], 128
    $region105: #{_down_impl.1} parent=1 // pred_fallthru
      _
    // Predicated region
    $region106: #{_down_impl.1} parent=1 // pred_check
      _
    $region107: #{_down_impl.1} parent=1 // pred_check_branch
      %236 = sbr.rel (0) target = $region109
    $region108: #{_down_impl.1} parent=1 // pred_region
      %237 = dma.done [#allocation18], 128
    $region109: #{_down_impl.1} parent=1 // pred_fallthru
      _
    // Predicated region
    $region110: #{_down_impl.1} parent=1 // pred_check
      _
    $region111: #{_down_impl.1} parent=1 // pred_check_branch
      %239 = sbr.rel (0) target = $region113
    $region112: #{_down_impl.1} parent=1 // pred_region
      %240 = dma.done [#allocation18], 128
    $region113: #{_down_impl.1} parent=1 // pred_fallthru
      _
    // Predicated region
    $region114: #{_down_impl.1} parent=1 // pred_check
      _
    $region115: #{_down_impl.1} parent=1 // pred_check_branch
      %242 = sbr.rel (0) target = $region117
    $region116: #{_down_impl.1} parent=1 // pred_region
      %243 = dma.done [#allocation21], 128
    $region117: #{_down_impl.1} parent=1 // pred_fallthru
      _
    // Predicated region
    $region118: #{_down_impl.1} parent=1 // pred_check
      _
    $region119: #{_down_impl.1} parent=1 // pred_check_branch
      %245 = sbr.rel (0) target = $region121
    $region120: #{_down_impl.1} parent=1 // pred_region
      %246 = dma.done [#allocation21], 128
    $region121: #{_down_impl.1} parent=1 // pred_fallthru
      _
    // Predicated region
    $region122: #{_down_impl.1} parent=1 // pred_check
      _
    $region123: #{_down_impl.1} parent=1 // pred_check_branch
      %248 = sbr.rel (0) target = $region125
    $region124: #{_down_impl.1} parent=1 // pred_region
      %249 = dma.done [#allocation24], 128
    $region125: #{_down_impl.1} parent=1 // pred_fallthru
      _
    // Predicated region
    $region126: #{_down_impl.1} parent=1 // pred_check
      _
    $region127: #{_down_impl.1} parent=1 // pred_check_branch
      %251 = sbr.rel (0) target = $region129
    $region128: #{_down_impl.1} parent=1 // pred_region
      %252 = dma.done [#allocation24], 128
    $region129: #{_down_impl.1} parent=1 // pred_fallthru
      _
    // Predicated region
    $region130: #{_down_impl.1} parent=1 // pred_check
      _
    $region131: #{_down_impl.1} parent=1 // pred_check_branch
      %254 = sbr.rel (0) target = $region133
    $region132: #{_down_impl.1} parent=1 // pred_region
      %255 = dma.done [#allocation27], 128
    $region133: #{_down_impl.1} parent=1 // pred_fallthru
      _
    // Predicated region
    $region134: #{_down_impl.1} parent=1 // pred_check
      _
    $region135: #{_down_impl.1} parent=1 // pred_check_branch
      %257 = sbr.rel (0) target = $region137
    $region136: #{_down_impl.1} parent=1 // pred_region
      %258 = dma.done [#allocation27], 128
    $region137: #{_down_impl.1} parent=1 // pred_fallthru
      _
    %v259 = vld [vmem:[#allocation8] sm:$0xff]
    %v260 = vld [vmem:[#allocation8 + $0x8] sm:$0xff]
    %v261 = vld [vmem:[#allocation8 + $0x10] sm:$0xff]
    %v262 = vld [vmem:[#allocation8 + $0x18] sm:$0xff]
    %v263 = vld [vmem:[#allocation8 + $0x20] sm:$0xff]
    %v264 = vld [vmem:[#allocation8 + $0x28] sm:$0xff]
    %v265 = vld [vmem:[#allocation8 + $0x30] sm:$0xff]
    %v266 = vld [vmem:[#allocation8 + $0x38] sm:$0xff]
    %v267 = vld [vmem:[#allocation8 + $0x40] sm:$0xff]
    %v268 = vld [vmem:[#allocation8 + $0x48] sm:$0xff]
    %v269 = vld [vmem:[#allocation8 + $0x50] sm:$0xff]
    %v270 = vld [vmem:[#allocation8 + $0x58] sm:$0xff]
    %v271 = vld [vmem:[#allocation8 + $0x60] sm:$0xff]
    %v272 = vld [vmem:[#allocation8 + $0x68] sm:$0xff]
    %v273 = vld [vmem:[#allocation8 + $0x70] sm:$0xff]
    %v274 = vld [vmem:[#allocation8 + $0x78] sm:$0xff]
    %v275 = vld [vmem:[#allocation10] sm:$0x3]
    %v276 = vld [vmem:[#allocation7] sm:$0x1]
    %s277 = scalar_lea.vmem [#allocation7], 1
    %v278 = vld [vmem:[%s277] sm:$0x1]
    %s279 = scalar_lea.vmem [#allocation7], 2
    %v280 = vld [vmem:[%s279] sm:$0x1]
    %s281 = scalar_lea.vmem [#allocation7], 3
    %v282 = vld [vmem:[%s281] sm:$0x1]
    %s283 = scalar_lea.vmem [#allocation7], 5
    %v284 = vld [vmem:[%s283] sm:$0x1]
    %s285 = scalar_lea.vmem [#allocation7], 6
    %v286 = vld [vmem:[%s285] sm:$0x1]
    %s287 = scalar_lea.vmem [#allocation7], 7
    %v288 = vld [vmem:[%s287] sm:$0x1]
    %s289 = scalar_lea.vmem [#allocation7], 8
    %v290 = vld [vmem:[%s289] sm:$0x1]
    %v291 = vld [vmem:[#allocation2] sm:$0xff]
    %s292 = scalar_lea.vmem [#allocation2], 8
    %v293 = vld [vmem:[%s292] sm:$0xff]
    %v294 = vmax.f32 %v291, %v293
    %s295 = scalar_lea.vmem [#allocation2], 16
    %v296 = vld [vmem:[%s295] sm:$0xff]
    %s297 = scalar_lea.vmem [#allocation2], 24
    %v298 = vld [vmem:[%s297] sm:$0xff]
    %v299 = vmax.f32 %v296, %v298
    %v300 = vmax.f32 %v294, %v299
    %301 = vrot.lane.b32.xlu0 %v300, 9
    %v302 = vpop.permute.xlu0 %301
    %v304 = vlaneseq
    %v305 = vshrl.u32 %v304, 7
    %v306 = vsub.s32 0, %v305
    %v307 = vrot.slane %v276, %v306
    %v309 = vmul.f32 %v302, %v307
    %310 = vrot.lane.b32.xlu0 %v300, 8
    %v311 = vpop.permute.xlu0 %310
    %v313 = vlaneseq
    %v314 = vshrl.u32 %v313, 7
    %v315 = vsub.s32 0, %v314
    %v316 = vrot.slane %v278, %v315
    %v318 = vmul.f32 %v311, %v316
    %319 = vrot.lane.b32.xlu0 %v300, 7
    %v320 = vpop.permute.xlu0 %319
    %v322 = vlaneseq
    %v323 = vshrl.u32 %v322, 7
    %v324 = vsub.s32 0, %v323
    %v325 = vrot.slane %v280, %v324
    %v327 = vmul.f32 %v320, %v325
    %328 = vrot.lane.b32.xlu0 %v300, 1
    %v329 = vpop.permute.xlu0 %328
    %v331 = vlaneseq
    %v332 = vshrl.u32 %v331, 7
    %v333 = vsub.s32 0, %v332
    %v334 = vrot.slane %v282, %v333
    %v336 = vmul.f32 %v329, %v334
    %337 = vrot.lane.b32.xlu0 %v300, 127
    %v338 = vpop.permute.xlu0 %337
    %v340 = vlaneseq
    %v341 = vshrl.u32 %v340, 7
    %v342 = vsub.s32 0, %v341
    %v343 = vrot.slane %v284, %v342
    %v345 = vmul.f32 %v338, %v343
    %346 = vrot.lane.b32.xlu0 %v300, 121
    %v347 = vpop.permute.xlu0 %346
    %v349 = vlaneseq
    %v350 = vshrl.u32 %v349, 7
    %v351 = vsub.s32 0, %v350
    %v352 = vrot.slane %v286, %v351
    %v354 = vmul.f32 %v347, %v352
    %355 = vrot.lane.b32.xlu0 %v300, 120
    %v356 = vpop.permute.xlu0 %355
    %v358 = vlaneseq
    %v359 = vshrl.u32 %v358, 7
    %v360 = vsub.s32 0, %v359
    %v361 = vrot.slane %v288, %v360
    %v363 = vmul.f32 %v356, %v361
    %364 = vrot.lane.b32.xlu0 %v300, 119
    %v365 = vpop.permute.xlu0 %364
    %v367 = vlaneseq
    %v368 = vshrl.u32 %v367, 7
    %v369 = vsub.s32 0, %v368
    %v370 = vrot.slane %v290, %v369
    %v372 = vmul.f32 %v365, %v370
    %v373 = vld [vmem:[#allocation11] sm:$0xff]
    %vm374 = vcmask 588800
    %v376 = vsel %vm374, %v373, 0
    %378 = vmatprep.subr.mxu0 0.0
    %379 = vmatpush1.msra.mxu0 %v309
    %380 = vmatprep.subr.mxu0 0.0
    %381 = vmatpush1.msra.mxu0 %v318
    %382 = vmatprep.subr.mxu0 0.0
    %383 = vmatpush1.msra.mxu0 %v327
    %384 = vmatprep.subr.mxu0 0.0
    %385 = vmatpush1.msra.mxu0 %v336
    %386 = vmatprep.subr.mxu0 0.0
    %387 = vmatpush1.msra.mxu0 %v300
    %388 = vmatprep.subr.mxu0 0.0
    %389 = vmatpush1.msra.mxu0 %v345
    %390 = vmatprep.subr.mxu0 0.0
    %391 = vmatpush1.msra.mxu0 %v354
    %392 = vmatprep.subr.mxu0 0.0
    %393 = vmatpush1.msra.mxu0 %v363
    %394 = vmatprep.subr.mxu0 0.0
    %395 = vmatpush1.msra.mxu0 %v372
    %396 = vmatprep.subr.mxu0 0.0
    %397 = vmatpush1.msra.mxu0 0.0
    %398 = vmatprep.subr.mxu0 0.0
    %399 = vmatpush1.msra.mxu0 0.0
    %400 = vmatprep.subr.mxu0 0.0
    %401 = vmatpush1.msra.mxu0 0.0
    %402 = vmatprep.subr.mxu0 0.0
    %403 = vmatpush1.msra.mxu0 0.0
    %404 = vmatprep.subr.mxu0 0.0
    %405 = vmatpush1.msra.mxu0 0.0
    %406 = vmatprep.subr.mxu0 0.0
    %407 = vmatpush1.msra.mxu0 0.0
    %408 = vmatprep.subr.mxu0 0.0
    %409 = vmatpush1.msra.mxu0 0.0
    %410 = vmatprep.subr.mxu0 0.0
    %411 = vmatpush1.msra.mxu0 0.0
    %412 = vmatprep.subr.mxu0 0.0
    %413 = vmatpush1.msra.mxu0 0.0
    %414 = vmatprep.subr.mxu0 0.0
    %415 = vmatpush1.msra.mxu0 0.0
    %416 = vmatprep.subr.mxu0 0.0
    %417 = vmatpush1.msra.mxu0 0.0
    %418 = vmatprep.subr.mxu0 0.0
    %419 = vmatpush1.msra.mxu0 0.0
    %420 = vmatprep.subr.mxu0 0.0
    %421 = vmatpush1.msra.mxu0 0.0
    %422 = vmatprep.subr.mxu0 0.0
    %423 = vmatpush1.msra.mxu0 0.0
    %424 = vmatprep.subr.mxu0 0.0
    %425 = vmatpush1.msra.mxu0 0.0
    %426 = vmatprep.subr.mxu0 0.0
    %427 = vmatpush1.msra.mxu0 0.0
    %428 = vmatprep.subr.mxu0 0.0
    %429 = vmatpush1.msra.mxu0 0.0
    %430 = vmatprep.subr.mxu0 0.0
    %431 = vmatpush1.msra.mxu0 0.0
    %432 = vmatprep.subr.mxu0 0.0
    %433 = vmatpush1.msra.mxu0 0.0
    %434 = vmatprep.subr.mxu0 0.0
    %435 = vmatpush1.msra.mxu0 0.0
    %436 = vmatprep.subr.mxu0 0.0
    %437 = vmatpush1.msra.mxu0 0.0
    %438 = vmatprep.subr.mxu0 0.0
    %439 = vmatpush1.msra.mxu0 0.0
    %440 = vmatprep.subr.mxu0 0.0
    %441 = vmatpush1.msra.mxu0 0.0
    %442 = vmatprep.mubr.f32.mxu0 0.0
    %443 = vmatmul.mubr.f32.gmra.mrb[0].mxu0 %v376
    %v444 = vpop.f32.mrb[0].mxu0
    %v445 = vadd.f32 0.0, %v444
    %v446 = vpop.f32.mrb[0].mxu0
    %447 = vdwg.mxu0
    %448 = vmatprep.subr.mxu0 0.0
    %449 = vmatpush1.msra.mxu0 %v259
    %450 = vmatprep.subr.mxu0 0.0
    %451 = vmatpush1.msra.mxu0 %v260
    %452 = vmatprep.subr.mxu0 0.0
    %453 = vmatpush1.msra.mxu0 %v261
    %454 = vmatprep.subr.mxu0 0.0
    %455 = vmatpush1.msra.mxu0 %v262
    %456 = vmatprep.subr.mxu0 0.0
    %457 = vmatpush1.msra.mxu0 %v263
    %458 = vmatprep.subr.mxu0 0.0
    %459 = vmatpush1.msra.mxu0 %v264
    %460 = vmatprep.subr.mxu0 0.0
    %461 = vmatpush1.msra.mxu0 %v265
    %462 = vmatprep.subr.mxu0 0.0
    %463 = vmatpush1.msra.mxu0 %v266
    %464 = vmatprep.subr.mxu0 0.0
    %465 = vmatpush1.msra.mxu0 %v267
    %466 = vmatprep.subr.mxu0 0.0
    %467 = vmatpush1.msra.mxu0 %v268
    %468 = vmatprep.subr.mxu0 0.0
    %469 = vmatpush1.msra.mxu0 %v269
    %470 = vmatprep.subr.mxu0 0.0
    %471 = vmatpush1.msra.mxu0 %v270
    %472 = vmatprep.subr.mxu0 0.0
    %473 = vmatpush1.msra.mxu0 %v271
    %474 = vmatprep.subr.mxu0 0.0
    %475 = vmatpush1.msra.mxu0 %v272
    %476 = vmatprep.subr.mxu0 0.0
    %477 = vmatpush1.msra.mxu0 %v273
    %478 = vmatprep.subr.mxu0 0.0
    %479 = vmatpush1.msra.mxu0 %v274
    %480 = vmatprep.subr.mxu0 0.0
    %481 = vmatpush1.msra.mxu0 0.0
    %482 = vmatprep.subr.mxu0 0.0
    %483 = vmatpush1.msra.mxu0 0.0
    %484 = vmatprep.subr.mxu0 0.0
    %485 = vmatpush1.msra.mxu0 0.0
    %486 = vmatprep.subr.mxu0 0.0
    %487 = vmatpush1.msra.mxu0 0.0
    %488 = vmatprep.subr.mxu0 0.0
    %489 = vmatpush1.msra.mxu0 0.0
    %490 = vmatprep.subr.mxu0 0.0
    %491 = vmatpush1.msra.mxu0 0.0
    %492 = vmatprep.subr.mxu0 0.0
    %493 = vmatpush1.msra.mxu0 0.0
    %494 = vmatprep.subr.mxu0 0.0
    %495 = vmatpush1.msra.mxu0 0.0
    %496 = vmatprep.subr.mxu0 0.0
    %497 = vmatpush1.msra.mxu0 0.0
    %498 = vmatprep.subr.mxu0 0.0
    %499 = vmatpush1.msra.mxu0 0.0
    %500 = vmatprep.subr.mxu0 0.0
    %501 = vmatpush1.msra.mxu0 0.0
    %502 = vmatprep.subr.mxu0 0.0
    %503 = vmatpush1.msra.mxu0 0.0
    %504 = vmatprep.subr.mxu0 0.0
    %505 = vmatpush1.msra.mxu0 0.0
    %506 = vmatprep.subr.mxu0 0.0
    %507 = vmatpush1.msra.mxu0 0.0
    %508 = vmatprep.subr.mxu0 0.0
    %509 = vmatpush1.msra.mxu0 0.0
    %510 = vmatprep.subr.mxu0 0.0
    %511 = vmatpush1.msra.mxu0 0.0
    %512 = vmatprep.mubr.f32.mxu0 0.0
    %513 = vmatmul.mubr.f32.gmra.mrb[0].mxu0 %v445
    %v514 = vpop.f32.mrb[0].mxu0
    %v515 = vadd.f32 0.0, %v514
    %v516 = vpop.f32.mrb[0].mxu0
    %517 = vdwg.mxu0
    %v518 = vmul.f32 %v445, %v445
    %519 = vmatprep.subr.mxu0 0.0
    %520 = vmatpush1.msra.mxu0 %v259
    %521 = vmatprep.subr.mxu0 0.0
    %522 = vmatpush1.msra.mxu0 %v260
    %523 = vmatprep.subr.mxu0 0.0
    %524 = vmatpush1.msra.mxu0 %v261
    %525 = vmatprep.subr.mxu0 0.0
    %526 = vmatpush1.msra.mxu0 %v262
    %527 = vmatprep.subr.mxu0 0.0
    %528 = vmatpush1.msra.mxu0 %v263
    %529 = vmatprep.subr.mxu0 0.0
    %530 = vmatpush1.msra.mxu0 %v264
    %531 = vmatprep.subr.mxu0 0.0
    %532 = vmatpush1.msra.mxu0 %v265
    %533 = vmatprep.subr.mxu0 0.0
    %534 = vmatpush1.msra.mxu0 %v266
    %535 = vmatprep.subr.mxu0 0.0
    %536 = vmatpush1.msra.mxu0 %v267
    %537 = vmatprep.subr.mxu0 0.0
    %538 = vmatpush1.msra.mxu0 %v268
    %539 = vmatprep.subr.mxu0 0.0
    %540 = vmatpush1.msra.mxu0 %v269
    %541 = vmatprep.subr.mxu0 0.0
    %542 = vmatpush1.msra.mxu0 %v270
    %543 = vmatprep.subr.mxu0 0.0
    %544 = vmatpush1.msra.mxu0 %v271
    %545 = vmatprep.subr.mxu0 0.0
    %546 = vmatpush1.msra.mxu0 %v272
    %547 = vmatprep.subr.mxu0 0.0
    %548 = vmatpush1.msra.mxu0 %v273
    %549 = vmatprep.subr.mxu0 0.0
    %550 = vmatpush1.msra.mxu0 %v274
    %551 = vmatprep.subr.mxu0 0.0
    %552 = vmatpush1.msra.mxu0 0.0
    %553 = vmatprep.subr.mxu0 0.0
    %554 = vmatpush1.msra.mxu0 0.0
    %555 = vmatprep.subr.mxu0 0.0
    %556 = vmatpush1.msra.mxu0 0.0
    %557 = vmatprep.subr.mxu0 0.0
    %558 = vmatpush1.msra.mxu0 0.0
    %559 = vmatprep.subr.mxu0 0.0
    %560 = vmatpush1.msra.mxu0 0.0
    %561 = vmatprep.subr.mxu0 0.0
    %562 = vmatpush1.msra.mxu0 0.0
    %563 = vmatprep.subr.mxu0 0.0
    %564 = vmatpush1.msra.mxu0 0.0
    %565 = vmatprep.subr.mxu0 0.0
    %566 = vmatpush1.msra.mxu0 0.0
    %567 = vmatprep.subr.mxu0 0.0
    %568 = vmatpush1.msra.mxu0 0.0
    %569 = vmatprep.subr.mxu0 0.0
    %570 = vmatpush1.msra.mxu0 0.0
    %571 = vmatprep.subr.mxu0 0.0
    %572 = vmatpush1.msra.mxu0 0.0
    %573 = vmatprep.subr.mxu0 0.0
    %574 = vmatpush1.msra.mxu0 0.0
    %575 = vmatprep.subr.mxu0 0.0
    %576 = vmatpush1.msra.mxu0 0.0
    %577 = vmatprep.subr.mxu0 0.0
    %578 = vmatpush1.msra.mxu0 0.0
    %579 = vmatprep.subr.mxu0 0.0
    %580 = vmatpush1.msra.mxu0 0.0
    %581 = vmatprep.subr.mxu0 0.0
    %582 = vmatpush1.msra.mxu0 0.0
    %583 = vmatprep.mubr.f32.mxu0 0.0
    %584 = vmatmul.mubr.f32.gmra.mrb[0].mxu0 %v518
    %v585 = vpop.f32.mrb[0].mxu0
    %v586 = vadd.f32 0.0, %v585
    %v587 = vpop.f32.mrb[0].mxu0
    %588 = vdwg.mxu0
    %vm589 = vcmask 15360
    %v590 = vsel %vm589, %v515, 0.0
    %v591 = vrot.slane %v590, 4
    %v592 = vadd.f32 %v590, %v591
    %v593 = vrot.slane %v592, 2
    %v594 = vadd.f32 %v592, %v593
    %v595 = vrot.slane %v594, 1
    %v596 = vadd.f32 %v594, %v595
    %v597 = vmul.f32 %v596, 0.00390625
    %v598 = vsel %vm589, %v586, 0.0
    %v599 = vrot.slane %v598, 4
    %v600 = vadd.f32 %v598, %v599
    %v601 = vrot.slane %v600, 2
    %v602 = vadd.f32 %v600, %v601
    %v603 = vrot.slane %v602, 1
    %v604 = vadd.f32 %v602, %v603
    %v605 = vmul.f32 %v604, 0.00390625
    %v606 = vmul.f32 %v597, %v597
    %v607 = vsub.f32 %v605, %v606
    %v608 = vadd.f32 %v607, 1e-05
    %v609 = vrsqrt.pop %v608
    %v611 = vsel %vm589, %v597, 0
    %vm613 = vcmask 1041408
    %v615 = vsel %vm613, %v275, 0
    %617 = vmatprep.subr.mxu0 0.0
    %618 = vmatpush1.msra.mxu0 %v615
    %619 = vmatprep.subr.mxu0 0.0
    %620 = vmatpush1.msra.mxu0 0.0
    %621 = vmatprep.subr.mxu0 0.0
    %622 = vmatpush1.msra.mxu0 0.0
    %623 = vmatprep.subr.mxu0 0.0
    %624 = vmatpush1.msra.mxu0 0.0
    %625 = vmatprep.subr.mxu0 0.0
    %626 = vmatpush1.msra.mxu0 0.0
    %627 = vmatprep.subr.mxu0 0.0
    %628 = vmatpush1.msra.mxu0 0.0
    %629 = vmatprep.subr.mxu0 0.0
    %630 = vmatpush1.msra.mxu0 0.0
    %631 = vmatprep.subr.mxu0 0.0
    %632 = vmatpush1.msra.mxu0 0.0
    %633 = vmatprep.subr.mxu0 0.0
    %634 = vmatpush1.msra.mxu0 0.0
    %635 = vmatprep.subr.mxu0 0.0
    %636 = vmatpush1.msra.mxu0 0.0
    %637 = vmatprep.subr.mxu0 0.0
    %638 = vmatpush1.msra.mxu0 0.0
    %639 = vmatprep.subr.mxu0 0.0
    %640 = vmatpush1.msra.mxu0 0.0
    %641 = vmatprep.subr.mxu0 0.0
    %642 = vmatpush1.msra.mxu0 0.0
    %643 = vmatprep.subr.mxu0 0.0
    %644 = vmatpush1.msra.mxu0 0.0
    %645 = vmatprep.subr.mxu0 0.0
    %646 = vmatpush1.msra.mxu0 0.0
    %647 = vmatprep.subr.mxu0 0.0
    %648 = vmatpush1.msra.mxu0 0.0
    %649 = vmatprep.subr.mxu0 0.0
    %650 = vmatpush1.msra.mxu0 0.0
    %651 = vmatprep.subr.mxu0 0.0
    %652 = vmatpush1.msra.mxu0 0.0
    %653 = vmatprep.subr.mxu0 0.0
    %654 = vmatpush1.msra.mxu0 0.0
    %655 = vmatprep.subr.mxu0 0.0
    %656 = vmatpush1.msra.mxu0 0.0
    %657 = vmatprep.subr.mxu0 0.0
    %658 = vmatpush1.msra.mxu0 0.0
    %659 = vmatprep.subr.mxu0 0.0
    %660 = vmatpush1.msra.mxu0 0.0
    %661 = vmatprep.subr.mxu0 0.0
    %662 = vmatpush1.msra.mxu0 0.0
    %663 = vmatprep.subr.mxu0 0.0
    %664 = vmatpush1.msra.mxu0 0.0
    %665 = vmatprep.subr.mxu0 0.0
    %666 = vmatpush1.msra.mxu0 0.0
    %667 = vmatprep.subr.mxu0 0.0
    %668 = vmatpush1.msra.mxu0 0.0
    %669 = vmatprep.subr.mxu0 0.0
    %670 = vmatpush1.msra.mxu0 0.0
    %671 = vmatprep.subr.mxu0 0.0
    %672 = vmatpush1.msra.mxu0 0.0
    %673 = vmatprep.subr.mxu0 0.0
    %674 = vmatpush1.msra.mxu0 0.0
    %675 = vmatprep.subr.mxu0 0.0
    %676 = vmatpush1.msra.mxu0 0.0
    %677 = vmatprep.subr.mxu0 0.0
    %678 = vmatpush1.msra.mxu0 0.0
    %679 = vmatprep.subr.mxu0 0.0
    %680 = vmatpush1.msra.mxu0 0.0
    %681 = vmatprep.mubr.f32.mxu0 0.0
    %682 = vmatmul.mubr.f32.gmra.mrb[0].mxu0 %v611
    %v683 = vpop.f32.mrb[0].mxu0
    %v684 = vadd.f32 0.0, %v683
    %v685 = vpop.f32.mrb[0].mxu0
    %686 = vdwg.mxu0
    %v688 = vsel %vm589, %v609, 0
    %690 = vmatprep.subr.mxu0 0.0
    %691 = vmatpush1.msra.mxu0 %v615
    %692 = vmatprep.subr.mxu0 0.0
    %693 = vmatpush1.msra.mxu0 0.0
    %694 = vmatprep.subr.mxu0 0.0
    %695 = vmatpush1.msra.mxu0 0.0
    %696 = vmatprep.subr.mxu0 0.0
    %697 = vmatpush1.msra.mxu0 0.0
    %698 = vmatprep.subr.mxu0 0.0
    %699 = vmatpush1.msra.mxu0 0.0
    %700 = vmatprep.subr.mxu0 0.0
    %701 = vmatpush1.msra.mxu0 0.0
    %702 = vmatprep.subr.mxu0 0.0
    %703 = vmatpush1.msra.mxu0 0.0
    %704 = vmatprep.subr.mxu0 0.0
    %705 = vmatpush1.msra.mxu0 0.0
    %706 = vmatprep.subr.mxu0 0.0
    %707 = vmatpush1.msra.mxu0 0.0
    %708 = vmatprep.subr.mxu0 0.0
    %709 = vmatpush1.msra.mxu0 0.0
    %710 = vmatprep.subr.mxu0 0.0
    %711 = vmatpush1.msra.mxu0 0.0
    %712 = vmatprep.subr.mxu0 0.0
    %713 = vmatpush1.msra.mxu0 0.0
    %714 = vmatprep.subr.mxu0 0.0
    %715 = vmatpush1.msra.mxu0 0.0
    %716 = vmatprep.subr.mxu0 0.0
    %717 = vmatpush1.msra.mxu0 0.0
    %718 = vmatprep.subr.mxu0 0.0
    %719 = vmatpush1.msra.mxu0 0.0
    %720 = vmatprep.subr.mxu0 0.0
    %721 = vmatpush1.msra.mxu0 0.0
    %722 = vmatprep.subr.mxu0 0.0
    %723 = vmatpush1.msra.mxu0 0.0
    %724 = vmatprep.subr.mxu0 0.0
    %725 = vmatpush1.msra.mxu0 0.0
    %726 = vmatprep.subr.mxu0 0.0
    %727 = vmatpush1.msra.mxu0 0.0
    %728 = vmatprep.subr.mxu0 0.0
    %729 = vmatpush1.msra.mxu0 0.0
    %730 = vmatprep.subr.mxu0 0.0
    %731 = vmatpush1.msra.mxu0 0.0
    %732 = vmatprep.subr.mxu0 0.0
    %733 = vmatpush1.msra.mxu0 0.0
    %734 = vmatprep.subr.mxu0 0.0
    %735 = vmatpush1.msra.mxu0 0.0
    %736 = vmatprep.subr.mxu0 0.0
    %737 = vmatpush1.msra.mxu0 0.0
    %738 = vmatprep.subr.mxu0 0.0
    %739 = vmatpush1.msra.mxu0 0.0
    %740 = vmatprep.subr.mxu0 0.0
    %741 = vmatpush1.msra.mxu0 0.0
    %742 = vmatprep.subr.mxu0 0.0
    %743 = vmatpush1.msra.mxu0 0.0
    %744 = vmatprep.subr.mxu0 0.0
    %745 = vmatpush1.msra.mxu0 0.0
    %746 = vmatprep.subr.mxu0 0.0
    %747 = vmatpush1.msra.mxu0 0.0
    %748 = vmatprep.subr.mxu0 0.0
    %749 = vmatpush1.msra.mxu0 0.0
    %750 = vmatprep.subr.mxu0 0.0
    %751 = vmatpush1.msra.mxu0 0.0
    %752 = vmatprep.subr.mxu0 0.0
    %753 = vmatpush1.msra.mxu0 0.0
    %754 = vmatprep.mubr.f32.mxu0 0.0
    %755 = vmatmul.mubr.f32.gmra.mrb[0].mxu0 %v688
    %v756 = vpop.f32.mrb[0].mxu0
    %v757 = vadd.f32 0.0, %v756
    %v758 = vpop.f32.mrb[0].mxu0
    %759 = vdwg.mxu0
    %v760 = vlaneseq
    %v761 = vshrl.u32 %v760, 7
    %v762 = vsub.s32 0, %v761
    %v763 = vrot.slane %v684, %v762
    %v764 = vsub.f32 %v445, %v763
    %v765 = vld [vmem:[#allocation13] sm:$0xff]
    %v766 = vlaneseq
    %v767 = vshrl.u32 %v766, 7
    %v768 = vsub.s32 0, %v767
    %v769 = vrot.slane %v757, %v768
    %771 = vset.pattern.permute.xlu0 0
    %772 = vperm.xlu0 %771, %v765
    %v773 = vpop.permute.xlu0 %772
    %v775 = vmul.f32 %v769, %v773
    %v776 = vmul.f32 %v764, %v775
    %v777 = vld [vmem:[#allocation14] sm:$0xff]
    %779 = vset.pattern.permute.xlu0 0
    %780 = vperm.xlu0 %779, %v777
    %v781 = vpop.permute.xlu0 %780
    %v783 = vadd.f32 %v776, %v781
    %v784 = vmul.f32 %v783, 0.5
    %v785 = vmul.f32 %v783, 0.70710677
    %vm786 = vcmp.ge.f32.partialorder %v785, 0.0
    %v787 = vsel %vm786, 1.0, -1.0
    %v788 = vand.u32 2147483647, %v785
    %v789 = vmul.f32 %v788, 0.3275911
    %v790 = vadd.f32 %v789, 1.0
    %v791 = vrcp.pop %v790
    %v792 = vmul.f32 1.0, %v791
    %v793 = vmul.f32 %v792, 1.0614054
    %v794 = vadd.f32 %v793, -1.4531521
    %v795 = vmul.f32 %v794, %v792
    %v796 = vadd.f32 %v795, 1.4214138
    %v797 = vmul.f32 %v796, %v792
    %v798 = vadd.f32 %v797, -0.28449672
    %v799 = vmul.f32 %v798, %v792
    %v800 = vadd.f32 %v799, 0.2548296
    %v801 = vmul.f32 %v800, %v792
    %v802 = vsub.f32 0.0, %v788
    %v803 = vmul.f32 %v802, %v788
    %v804 = vmul.f32 %v803, 1.442695
    %v805 = vpow.pop %v804
    %v806 = vmul.f32 %v801, %v805
    %v807 = vsub.f32 1.0, %v806
    %v808 = vmul.f32 %v787, %v807
    %v809 = vadd.f32 %v808, 1.0
    %v810 = vmul.f32 %v784, %v809
    %811 = vrot.lane.b32.xlu0 %v810, 9
    %v812 = vpop.permute.xlu0 %811
    %v813 = vmul.f32 %v812, %v307
    %814 = vrot.lane.b32.xlu0 %v810, 8
    %v815 = vpop.permute.xlu0 %814
    %v816 = vmul.f32 %v815, %v316
    %817 = vrot.lane.b32.xlu0 %v810, 7
    %v818 = vpop.permute.xlu0 %817
    %v819 = vmul.f32 %v818, %v325
    %820 = vrot.lane.b32.xlu0 %v810, 1
    %v821 = vpop.permute.xlu0 %820
    %v822 = vmul.f32 %v821, %v334
    %823 = vrot.lane.b32.xlu0 %v810, 127
    %v824 = vpop.permute.xlu0 %823
    %v825 = vmul.f32 %v824, %v343
    %826 = vrot.lane.b32.xlu0 %v810, 121
    %v827 = vpop.permute.xlu0 %826
    %v828 = vmul.f32 %v827, %v352
    %829 = vrot.lane.b32.xlu0 %v810, 120
    %v830 = vpop.permute.xlu0 %829
    %v831 = vmul.f32 %v830, %v361
    %832 = vrot.lane.b32.xlu0 %v810, 119
    %v833 = vpop.permute.xlu0 %832
    %v834 = vmul.f32 %v833, %v370
    %v835 = vld [vmem:[#allocation16] sm:$0xff]
    %v837 = vsel %vm374, %v835, 0
    %839 = vmatprep.subr.mxu0 0.0
    %840 = vmatpush1.msra.mxu0 %v813
    %841 = vmatprep.subr.mxu0 0.0
    %842 = vmatpush1.msra.mxu0 %v816
    %843 = vmatprep.subr.mxu0 0.0
    %844 = vmatpush1.msra.mxu0 %v819
    %845 = vmatprep.subr.mxu0 0.0
    %846 = vmatpush1.msra.mxu0 %v822
    %847 = vmatprep.subr.mxu0 0.0
    %848 = vmatpush1.msra.mxu0 %v810
    %849 = vmatprep.subr.mxu0 0.0
    %850 = vmatpush1.msra.mxu0 %v825
    %851 = vmatprep.subr.mxu0 0.0
    %852 = vmatpush1.msra.mxu0 %v828
    %853 = vmatprep.subr.mxu0 0.0
    %854 = vmatpush1.msra.mxu0 %v831
    %855 = vmatprep.subr.mxu0 0.0
    %856 = vmatpush1.msra.mxu0 %v834
    %857 = vmatprep.subr.mxu0 0.0
    %858 = vmatpush1.msra.mxu0 0.0
    %859 = vmatprep.subr.mxu0 0.0
    %860 = vmatpush1.msra.mxu0 0.0
    %861 = vmatprep.subr.mxu0 0.0
    %862 = vmatpush1.msra.mxu0 0.0
    %863 = vmatprep.subr.mxu0 0.0
    %864 = vmatpush1.msra.mxu0 0.0
    %865 = vmatprep.subr.mxu0 0.0
    %866 = vmatpush1.msra.mxu0 0.0
    %867 = vmatprep.subr.mxu0 0.0
    %868 = vmatpush1.msra.mxu0 0.0
    %869 = vmatprep.subr.mxu0 0.0
    %870 = vmatpush1.msra.mxu0 0.0
    %871 = vmatprep.subr.mxu0 0.0
    %872 = vmatpush1.msra.mxu0 0.0
    %873 = vmatprep.subr.mxu0 0.0
    %874 = vmatpush1.msra.mxu0 0.0
    %875 = vmatprep.subr.mxu0 0.0
    %876 = vmatpush1.msra.mxu0 0.0
    %877 = vmatprep.subr.mxu0 0.0
    %878 = vmatpush1.msra.mxu0 0.0
    %879 = vmatprep.subr.mxu0 0.0
    %880 = vmatpush1.msra.mxu0 0.0
    %881 = vmatprep.subr.mxu0 0.0
    %882 = vmatpush1.msra.mxu0 0.0
    %883 = vmatprep.subr.mxu0 0.0
    %884 = vmatpush1.msra.mxu0 0.0
    %885 = vmatprep.subr.mxu0 0.0
    %886 = vmatpush1.msra.mxu0 0.0
    %887 = vmatprep.subr.mxu0 0.0
    %888 = vmatpush1.msra.mxu0 0.0
    %889 = vmatprep.subr.mxu0 0.0
    %890 = vmatpush1.msra.mxu0 0.0
    %891 = vmatprep.subr.mxu0 0.0
    %892 = vmatpush1.msra.mxu0 0.0
    %893 = vmatprep.subr.mxu0 0.0
    %894 = vmatpush1.msra.mxu0 0.0
    %895 = vmatprep.subr.mxu0 0.0
    %896 = vmatpush1.msra.mxu0 0.0
    %897 = vmatprep.subr.mxu0 0.0
    %898 = vmatpush1.msra.mxu0 0.0
    %899 = vmatprep.subr.mxu0 0.0
    %900 = vmatpush1.msra.mxu0 0.0
    %901 = vmatprep.subr.mxu0 0.0
    %902 = vmatpush1.msra.mxu0 0.0
    %903 = vmatprep.mubr.f32.mxu0 0.0
    %904 = vmatmul.mubr.f32.gmra.mrb[0].mxu0 %v837
    %v905 = vpop.f32.mrb[0].mxu0
    %v906 = vadd.f32 0.0, %v905
    %v907 = vpop.f32.mrb[0].mxu0
    %908 = vdwg.mxu0
    %909 = vmatprep.subr.mxu0 0.0
    %910 = vmatpush1.msra.mxu0 %v259
    %911 = vmatprep.subr.mxu0 0.0
    %912 = vmatpush1.msra.mxu0 %v260
    %913 = vmatprep.subr.mxu0 0.0
    %914 = vmatpush1.msra.mxu0 %v261
    %915 = vmatprep.subr.mxu0 0.0
    %916 = vmatpush1.msra.mxu0 %v262
    %917 = vmatprep.subr.mxu0 0.0
    %918 = vmatpush1.msra.mxu0 %v263
    %919 = vmatprep.subr.mxu0 0.0
    %920 = vmatpush1.msra.mxu0 %v264
    %921 = vmatprep.subr.mxu0 0.0
    %922 = vmatpush1.msra.mxu0 %v265
    %923 = vmatprep.subr.mxu0 0.0
    %924 = vmatpush1.msra.mxu0 %v266
    %925 = vmatprep.subr.mxu0 0.0
    %926 = vmatpush1.msra.mxu0 %v267
    %927 = vmatprep.subr.mxu0 0.0
    %928 = vmatpush1.msra.mxu0 %v268
    %929 = vmatprep.subr.mxu0 0.0
    %930 = vmatpush1.msra.mxu0 %v269
    %931 = vmatprep.subr.mxu0 0.0
    %932 = vmatpush1.msra.mxu0 %v270
    %933 = vmatprep.subr.mxu0 0.0
    %934 = vmatpush1.msra.mxu0 %v271
    %935 = vmatprep.subr.mxu0 0.0
    %936 = vmatpush1.msra.mxu0 %v272
    %937 = vmatprep.subr.mxu0 0.0
    %938 = vmatpush1.msra.mxu0 %v273
    %939 = vmatprep.subr.mxu0 0.0
    %940 = vmatpush1.msra.mxu0 %v274
    %941 = vmatprep.subr.mxu0 0.0
    %942 = vmatpush1.msra.mxu0 0.0
    %943 = vmatprep.subr.mxu0 0.0
    %944 = vmatpush1.msra.mxu0 0.0
    %945 = vmatprep.subr.mxu0 0.0
    %946 = vmatpush1.msra.mxu0 0.0
    %947 = vmatprep.subr.mxu0 0.0
    %948 = vmatpush1.msra.mxu0 0.0
    %949 = vmatprep.subr.mxu0 0.0
    %950 = vmatpush1.msra.mxu0 0.0
    %951 = vmatprep.subr.mxu0 0.0
    %952 = vmatpush1.msra.mxu0 0.0
    %953 = vmatprep.subr.mxu0 0.0
    %954 = vmatpush1.msra.mxu0 0.0
    %955 = vmatprep.subr.mxu0 0.0
    %956 = vmatpush1.msra.mxu0 0.0
    %957 = vmatprep.subr.mxu0 0.0
    %958 = vmatpush1.msra.mxu0 0.0
    %959 = vmatprep.subr.mxu0 0.0
    %960 = vmatpush1.msra.mxu0 0.0
    %961 = vmatprep.subr.mxu0 0.0
    %962 = vmatpush1.msra.mxu0 0.0
    %963 = vmatprep.subr.mxu0 0.0
    %964 = vmatpush1.msra.mxu0 0.0
    %965 = vmatprep.subr.mxu0 0.0
    %966 = vmatpush1.msra.mxu0 0.0
    %967 = vmatprep.subr.mxu0 0.0
    %968 = vmatpush1.msra.mxu0 0.0
    %969 = vmatprep.subr.mxu0 0.0
    %970 = vmatpush1.msra.mxu0 0.0
    %971 = vmatprep.subr.mxu0 0.0
    %972 = vmatpush1.msra.mxu0 0.0
    %973 = vmatprep.mubr.f32.mxu0 0.0
    %974 = vmatmul.mubr.f32.gmra.mrb[0].mxu0 %v906
    %v975 = vpop.f32.mrb[0].mxu0
    %v976 = vadd.f32 0.0, %v975
    %v977 = vpop.f32.mrb[0].mxu0
    %978 = vdwg.mxu0
    %v979 = vmul.f32 %v906, %v906
    %980 = vmatprep.subr.mxu0 0.0
    %981 = vmatpush1.msra.mxu0 %v259
    %982 = vmatprep.subr.mxu0 0.0
    %983 = vmatpush1.msra.mxu0 %v260
    %984 = vmatprep.subr.mxu0 0.0
    %985 = vmatpush1.msra.mxu0 %v261
    %986 = vmatprep.subr.mxu0 0.0
    %987 = vmatpush1.msra.mxu0 %v262
    %988 = vmatprep.subr.mxu0 0.0
    %989 = vmatpush1.msra.mxu0 %v263
    %990 = vmatprep.subr.mxu0 0.0
    %991 = vmatpush1.msra.mxu0 %v264
    %992 = vmatprep.subr.mxu0 0.0
    %993 = vmatpush1.msra.mxu0 %v265
    %994 = vmatprep.subr.mxu0 0.0
    %995 = vmatpush1.msra.mxu0 %v266
    %996 = vmatprep.subr.mxu0 0.0
    %997 = vmatpush1.msra.mxu0 %v267
    %998 = vmatprep.subr.mxu0 0.0
    %999 = vmatpush1.msra.mxu0 %v268
    %1000 = vmatprep.subr.mxu0 0.0
    %1001 = vmatpush1.msra.mxu0 %v269
    %1002 = vmatprep.subr.mxu0 0.0
    %1003 = vmatpush1.msra.mxu0 %v270
    %1004 = vmatprep.subr.mxu0 0.0
    %1005 = vmatpush1.msra.mxu0 %v271
    %1006 = vmatprep.subr.mxu0 0.0
    %1007 = vmatpush1.msra.mxu0 %v272
    %1008 = vmatprep.subr.mxu0 0.0
    %1009 = vmatpush1.msra.mxu0 %v273
    %1010 = vmatprep.subr.mxu0 0.0
    %1011 = vmatpush1.msra.mxu0 %v274
    %1012 = vmatprep.subr.mxu0 0.0
    %1013 = vmatpush1.msra.mxu0 0.0
    %1014 = vmatprep.subr.mxu0 0.0
    %1015 = vmatpush1.msra.mxu0 0.0
    %1016 = vmatprep.subr.mxu0 0.0
    %1017 = vmatpush1.msra.mxu0 0.0
    %1018 = vmatprep.subr.mxu0 0.0
    %1019 = vmatpush1.msra.mxu0 0.0
    %1020 = vmatprep.subr.mxu0 0.0
    %1021 = vmatpush1.msra.mxu0 0.0
    %1022 = vmatprep.subr.mxu0 0.0
    %1023 = vmatpush1.msra.mxu0 0.0
    %1024 = vmatprep.subr.mxu0 0.0
    %1025 = vmatpush1.msra.mxu0 0.0
    %1026 = vmatprep.subr.mxu0 0.0
    %1027 = vmatpush1.msra.mxu0 0.0
    %1028 = vmatprep.subr.mxu0 0.0
    %1029 = vmatpush1.msra.mxu0 0.0
    %1030 = vmatprep.subr.mxu0 0.0
    %1031 = vmatpush1.msra.mxu0 0.0
    %1032 = vmatprep.subr.mxu0 0.0
    %1033 = vmatpush1.msra.mxu0 0.0
    %1034 = vmatprep.subr.mxu0 0.0
    %1035 = vmatpush1.msra.mxu0 0.0
    %1036 = vmatprep.subr.mxu0 0.0
    %1037 = vmatpush1.msra.mxu0 0.0
    %1038 = vmatprep.subr.mxu0 0.0
    %1039 = vmatpush1.msra.mxu0 0.0
    %1040 = vmatprep.subr.mxu0 0.0
    %1041 = vmatpush1.msra.mxu0 0.0
    %1042 = vmatprep.subr.mxu0 0.0
    %1043 = vmatpush1.msra.mxu0 0.0
    %1044 = vmatprep.mubr.f32.mxu0 0.0
    %1045 = vmatmul.mubr.f32.gmra.mrb[0].mxu0 %v979
    %v1046 = vpop.f32.mrb[0].mxu0
    %v1047 = vadd.f32 0.0, %v1046
    %v1048 = vpop.f32.mrb[0].mxu0
    %1049 = vdwg.mxu0
    %v1050 = vsel %vm589, %v976, 0.0
    %v1051 = vrot.slane %v1050, 4
    %v1052 = vadd.f32 %v1050, %v1051
    %v1053 = vrot.slane %v1052, 2
    %v1054 = vadd.f32 %v1052, %v1053
    %v1055 = vrot.slane %v1054, 1
    %v1056 = vadd.f32 %v1054, %v1055
    %v1057 = vmul.f32 %v1056, 0.00390625
    %v1058 = vsel %vm589, %v1047, 0.0
    %v1059 = vrot.slane %v1058, 4
    %v1060 = vadd.f32 %v1058, %v1059
    %v1061 = vrot.slane %v1060, 2
    %v1062 = vadd.f32 %v1060, %v1061
    %v1063 = vrot.slane %v1062, 1
    %v1064 = vadd.f32 %v1062, %v1063
    %v1065 = vmul.f32 %v1064, 0.00390625
    %v1066 = vmul.f32 %v1057, %v1057
    %v1067 = vsub.f32 %v1065, %v1066
    %v1068 = vadd.f32 %v1067, 1e-05
    %v1069 = vrsqrt.pop %v1068
    %v1071 = vsel %vm589, %v1057, 0
    %1073 = vmatprep.subr.mxu0 0.0
    %1074 = vmatpush1.msra.mxu0 %v615
    %1075 = vmatprep.subr.mxu0 0.0
    %1076 = vmatpush1.msra.mxu0 0.0
    %1077 = vmatprep.subr.mxu0 0.0
    %1078 = vmatpush1.msra.mxu0 0.0
    %1079 = vmatprep.subr.mxu0 0.0
    %1080 = vmatpush1.msra.mxu0 0.0
    %1081 = vmatprep.subr.mxu0 0.0
    %1082 = vmatpush1.msra.mxu0 0.0
    %1083 = vmatprep.subr.mxu0 0.0
    %1084 = vmatpush1.msra.mxu0 0.0
    %1085 = vmatprep.subr.mxu0 0.0
    %1086 = vmatpush1.msra.mxu0 0.0
    %1087 = vmatprep.subr.mxu0 0.0
    %1088 = vmatpush1.msra.mxu0 0.0
    %1089 = vmatprep.subr.mxu0 0.0
    %1090 = vmatpush1.msra.mxu0 0.0
    %1091 = vmatprep.subr.mxu0 0.0
    %1092 = vmatpush1.msra.mxu0 0.0
    %1093 = vmatprep.subr.mxu0 0.0
    %1094 = vmatpush1.msra.mxu0 0.0
    %1095 = vmatprep.subr.mxu0 0.0
    %1096 = vmatpush1.msra.mxu0 0.0
    %1097 = vmatprep.subr.mxu0 0.0
    %1098 = vmatpush1.msra.mxu0 0.0
    %1099 = vmatprep.subr.mxu0 0.0
    %1100 = vmatpush1.msra.mxu0 0.0
    %1101 = vmatprep.subr.mxu0 0.0
    %1102 = vmatpush1.msra.mxu0 0.0
    %1103 = vmatprep.subr.mxu0 0.0
    %1104 = vmatpush1.msra.mxu0 0.0
    %1105 = vmatprep.subr.mxu0 0.0
    %1106 = vmatpush1.msra.mxu0 0.0
    %1107 = vmatprep.subr.mxu0 0.0
    %1108 = vmatpush1.msra.mxu0 0.0
    %1109 = vmatprep.subr.mxu0 0.0
    %1110 = vmatpush1.msra.mxu0 0.0
    %1111 = vmatprep.subr.mxu0 0.0
    %1112 = vmatpush1.msra.mxu0 0.0
    %1113 = vmatprep.subr.mxu0 0.0
    %1114 = vmatpush1.msra.mxu0 0.0
    %1115 = vmatprep.subr.mxu0 0.0
    %1116 = vmatpush1.msra.mxu0 0.0
    %1117 = vmatprep.subr.mxu0 0.0
    %1118 = vmatpush1.msra.mxu0 0.0
    %1119 = vmatprep.subr.mxu0 0.0
    %1120 = vmatpush1.msra.mxu0 0.0
    %1121 = vmatprep.subr.mxu0 0.0
    %1122 = vmatpush1.msra.mxu0 0.0
    %1123 = vmatprep.subr.mxu0 0.0
    %1124 = vmatpush1.msra.mxu0 0.0
    %1125 = vmatprep.subr.mxu0 0.0
    %1126 = vmatpush1.msra.mxu0 0.0
    %1127 = vmatprep.subr.mxu0 0.0
    %1128 = vmatpush1.msra.mxu0 0.0
    %1129 = vmatprep.subr.mxu0 0.0
    %1130 = vmatpush1.msra.mxu0 0.0
    %1131 = vmatprep.subr.mxu0 0.0
    %1132 = vmatpush1.msra.mxu0 0.0
    %1133 = vmatprep.subr.mxu0 0.0
    %1134 = vmatpush1.msra.mxu0 0.0
    %1135 = vmatprep.subr.mxu0 0.0
    %1136 = vmatpush1.msra.mxu0 0.0
    %1137 = vmatprep.mubr.f32.mxu0 0.0
    %1138 = vmatmul.mubr.f32.gmra.mrb[0].mxu0 %v1071
    %v1139 = vpop.f32.mrb[0].mxu0
    %v1140 = vadd.f32 0.0, %v1139
    %v1141 = vpop.f32.mrb[0].mxu0
    %1142 = vdwg.mxu0
    %v1144 = vsel %vm589, %v1069, 0
    %1146 = vmatprep.subr.mxu0 0.0
    %1147 = vmatpush1.msra.mxu0 %v615
    %1148 = vmatprep.subr.mxu0 0.0
    %1149 = vmatpush1.msra.mxu0 0.0
    %1150 = vmatprep.subr.mxu0 0.0
    %1151 = vmatpush1.msra.mxu0 0.0
    %1152 = vmatprep.subr.mxu0 0.0
    %1153 = vmatpush1.msra.mxu0 0.0
    %1154 = vmatprep.subr.mxu0 0.0
    %1155 = vmatpush1.msra.mxu0 0.0
    %1156 = vmatprep.subr.mxu0 0.0
    %1157 = vmatpush1.msra.mxu0 0.0
    %1158 = vmatprep.subr.mxu0 0.0
    %1159 = vmatpush1.msra.mxu0 0.0
    %1160 = vmatprep.subr.mxu0 0.0
    %1161 = vmatpush1.msra.mxu0 0.0
    %1162 = vmatprep.subr.mxu0 0.0
    %1163 = vmatpush1.msra.mxu0 0.0
    %1164 = vmatprep.subr.mxu0 0.0
    %1165 = vmatpush1.msra.mxu0 0.0
    %1166 = vmatprep.subr.mxu0 0.0
    %1167 = vmatpush1.msra.mxu0 0.0
    %1168 = vmatprep.subr.mxu0 0.0
    %1169 = vmatpush1.msra.mxu0 0.0
    %1170 = vmatprep.subr.mxu0 0.0
    %1171 = vmatpush1.msra.mxu0 0.0
    %1172 = vmatprep.subr.mxu0 0.0
    %1173 = vmatpush1.msra.mxu0 0.0
    %1174 = vmatprep.subr.mxu0 0.0
    %1175 = vmatpush1.msra.mxu0 0.0
    %1176 = vmatprep.subr.mxu0 0.0
    %1177 = vmatpush1.msra.mxu0 0.0
    %1178 = vmatprep.subr.mxu0 0.0
    %1179 = vmatpush1.msra.mxu0 0.0
    %1180 = vmatprep.subr.mxu0 0.0
    %1181 = vmatpush1.msra.mxu0 0.0
    %1182 = vmatprep.subr.mxu0 0.0
    %1183 = vmatpush1.msra.mxu0 0.0
    %1184 = vmatprep.subr.mxu0 0.0
    %1185 = vmatpush1.msra.mxu0 0.0
    %1186 = vmatprep.subr.mxu0 0.0
    %1187 = vmatpush1.msra.mxu0 0.0
    %1188 = vmatprep.subr.mxu0 0.0
    %1189 = vmatpush1.msra.mxu0 0.0
    %1190 = vmatprep.subr.mxu0 0.0
    %1191 = vmatpush1.msra.mxu0 0.0
    %1192 = vmatprep.subr.mxu0 0.0
    %1193 = vmatpush1.msra.mxu0 0.0
    %1194 = vmatprep.subr.mxu0 0.0
    %1195 = vmatpush1.msra.mxu0 0.0
    %1196 = vmatprep.subr.mxu0 0.0
    %1197 = vmatpush1.msra.mxu0 0.0
    %1198 = vmatprep.subr.mxu0 0.0
    %1199 = vmatpush1.msra.mxu0 0.0
    %1200 = vmatprep.subr.mxu0 0.0
    %1201 = vmatpush1.msra.mxu0 0.0
    %1202 = vmatprep.subr.mxu0 0.0
    %1203 = vmatpush1.msra.mxu0 0.0
    %1204 = vmatprep.subr.mxu0 0.0
    %1205 = vmatpush1.msra.mxu0 0.0
    %1206 = vmatprep.subr.mxu0 0.0
    %1207 = vmatpush1.msra.mxu0 0.0
    %1208 = vmatprep.subr.mxu0 0.0
    %1209 = vmatpush1.msra.mxu0 0.0
    %1210 = vmatprep.mubr.f32.mxu0 0.0
    %1211 = vmatmul.mubr.f32.gmra.mrb[0].mxu0 %v1144
    %v1212 = vpop.f32.mrb[0].mxu0
    %v1213 = vadd.f32 0.0, %v1212
    %v1214 = vpop.f32.mrb[0].mxu0
    %1215 = vdwg.mxu0
    %v1216 = vlaneseq
    %v1217 = vshrl.u32 %v1216, 7
    %v1218 = vsub.s32 0, %v1217
    %v1219 = vrot.slane %v1140, %v1218
    %v1220 = vsub.f32 %v906, %v1219
    %v1221 = vld [vmem:[#allocation17] sm:$0xff]
    %v1222 = vlaneseq
    %v1223 = vshrl.u32 %v1222, 7
    %v1224 = vsub.s32 0, %v1223
    %v1225 = vrot.slane %v1213, %v1224
    %1227 = vset.pattern.permute.xlu0 0
    %1228 = vperm.xlu0 %1227, %v1221
    %v1229 = vpop.permute.xlu0 %1228
    %v1231 = vmul.f32 %v1225, %v1229
    %v1232 = vmul.f32 %v1220, %v1231
    %v1233 = vld [vmem:[#allocation19] sm:$0xff]
    %1235 = vset.pattern.permute.xlu0 0
    %1236 = vperm.xlu0 %1235, %v1233
    %v1237 = vpop.permute.xlu0 %1236
    %v1239 = vadd.f32 %v1232, %v1237
    %v1240 = vadd.f32 %v300, %v1239
    %v1241 = vmul.f32 %v1240, 0.5
    %v1242 = vmul.f32 %v1240, 0.70710677
    %vm1243 = vcmp.ge.f32.partialorder %v1242, 0.0
    %v1244 = vsel %vm1243, 1.0, -1.0
    %v1245 = vand.u32 2147483647, %v1242
    %v1246 = vmul.f32 %v1245, 0.3275911
    %v1247 = vadd.f32 %v1246, 1.0
    %v1248 = vrcp.pop %v1247
    %v1249 = vmul.f32 1.0, %v1248
    %v1250 = vmul.f32 %v1249, 1.0614054
    %v1251 = vadd.f32 %v1250, -1.4531521
    %v1252 = vmul.f32 %v1251, %v1249
    %v1253 = vadd.f32 %v1252, 1.4214138
    %v1254 = vmul.f32 %v1253, %v1249
    %v1255 = vadd.f32 %v1254, -0.28449672
    %v1256 = vmul.f32 %v1255, %v1249
    %v1257 = vadd.f32 %v1256, 0.2548296
    %v1258 = vmul.f32 %v1257, %v1249
    %v1259 = vsub.f32 0.0, %v1245
    %v1260 = vmul.f32 %v1259, %v1245
    %v1261 = vmul.f32 %v1260, 1.442695
    %v1262 = vpow.pop %v1261
    %v1263 = vmul.f32 %v1258, %v1262
    %v1264 = vsub.f32 1.0, %v1263
    %v1265 = vmul.f32 %v1244, %v1264
    %v1266 = vadd.f32 %v1265, 1.0
    %v1267 = vmul.f32 %v1241, %v1266
    %1268 = vrot.lane.b32.xlu0 %v1267, 9
    %v1269 = vpop.permute.xlu0 %1268
    %v1270 = vmul.f32 %v1269, %v307
    %1271 = vrot.lane.b32.xlu0 %v1267, 8
    %v1272 = vpop.permute.xlu0 %1271
    %v1273 = vmul.f32 %v1272, %v316
    %1274 = vrot.lane.b32.xlu0 %v1267, 7
    %v1275 = vpop.permute.xlu0 %1274
    %v1276 = vmul.f32 %v1275, %v325
    %1277 = vrot.lane.b32.xlu0 %v1267, 1
    %v1278 = vpop.permute.xlu0 %1277
    %v1279 = vmul.f32 %v1278, %v334
    %1280 = vrot.lane.b32.xlu0 %v1267, 127
    %v1281 = vpop.permute.xlu0 %1280
    %v1282 = vmul.f32 %v1281, %v343
    %1283 = vrot.lane.b32.xlu0 %v1267, 121
    %v1284 = vpop.permute.xlu0 %1283
    %v1285 = vmul.f32 %v1284, %v352
    %1286 = vrot.lane.b32.xlu0 %v1267, 120
    %v1287 = vpop.permute.xlu0 %1286
    %v1288 = vmul.f32 %v1287, %v361
    %1289 = vrot.lane.b32.xlu0 %v1267, 119
    %v1290 = vpop.permute.xlu0 %1289
    %v1291 = vmul.f32 %v1290, %v370
    %v1292 = vld [vmem:[#allocation20] sm:$0xff]
    %v1294 = vsel %vm374, %v1292, 0
    %1296 = vmatprep.subr.mxu0 0.0
    %1297 = vmatpush1.msra.mxu0 %v1270
    %1298 = vmatprep.subr.mxu0 0.0
    %1299 = vmatpush1.msra.mxu0 %v1273
    %1300 = vmatprep.subr.mxu0 0.0
    %1301 = vmatpush1.msra.mxu0 %v1276
    %1302 = vmatprep.subr.mxu0 0.0
    %1303 = vmatpush1.msra.mxu0 %v1279
    %1304 = vmatprep.subr.mxu0 0.0
    %1305 = vmatpush1.msra.mxu0 %v1267
    %1306 = vmatprep.subr.mxu0 0.0
    %1307 = vmatpush1.msra.mxu0 %v1282
    %1308 = vmatprep.subr.mxu0 0.0
    %1309 = vmatpush1.msra.mxu0 %v1285
    %1310 = vmatprep.subr.mxu0 0.0
    %1311 = vmatpush1.msra.mxu0 %v1288
    %1312 = vmatprep.subr.mxu0 0.0
    %1313 = vmatpush1.msra.mxu0 %v1291
    %1314 = vmatprep.subr.mxu0 0.0
    %1315 = vmatpush1.msra.mxu0 0.0
    %1316 = vmatprep.subr.mxu0 0.0
    %1317 = vmatpush1.msra.mxu0 0.0
    %1318 = vmatprep.subr.mxu0 0.0
    %1319 = vmatpush1.msra.mxu0 0.0
    %1320 = vmatprep.subr.mxu0 0.0
    %1321 = vmatpush1.msra.mxu0 0.0
    %1322 = vmatprep.subr.mxu0 0.0
    %1323 = vmatpush1.msra.mxu0 0.0
    %1324 = vmatprep.subr.mxu0 0.0
    %1325 = vmatpush1.msra.mxu0 0.0
    %1326 = vmatprep.subr.mxu0 0.0
    %1327 = vmatpush1.msra.mxu0 0.0
    %1328 = vmatprep.subr.mxu0 0.0
    %1329 = vmatpush1.msra.mxu0 0.0
    %1330 = vmatprep.subr.mxu0 0.0
    %1331 = vmatpush1.msra.mxu0 0.0
    %1332 = vmatprep.subr.mxu0 0.0
    %1333 = vmatpush1.msra.mxu0 0.0
    %1334 = vmatprep.subr.mxu0 0.0
    %1335 = vmatpush1.msra.mxu0 0.0
    %1336 = vmatprep.subr.mxu0 0.0
    %1337 = vmatpush1.msra.mxu0 0.0
    %1338 = vmatprep.subr.mxu0 0.0
    %1339 = vmatpush1.msra.mxu0 0.0
    %1340 = vmatprep.subr.mxu0 0.0
    %1341 = vmatpush1.msra.mxu0 0.0
    %1342 = vmatprep.subr.mxu0 0.0
    %1343 = vmatpush1.msra.mxu0 0.0
    %1344 = vmatprep.subr.mxu0 0.0
    %1345 = vmatpush1.msra.mxu0 0.0
    %1346 = vmatprep.subr.mxu0 0.0
    %1347 = vmatpush1.msra.mxu0 0.0
    %1348 = vmatprep.subr.mxu0 0.0
    %1349 = vmatpush1.msra.mxu0 0.0
    %1350 = vmatprep.subr.mxu0 0.0
    %1351 = vmatpush1.msra.mxu0 0.0
    %1352 = vmatprep.subr.mxu0 0.0
    %1353 = vmatpush1.msra.mxu0 0.0
    %1354 = vmatprep.subr.mxu0 0.0
    %1355 = vmatpush1.msra.mxu0 0.0
    %1356 = vmatprep.subr.mxu0 0.0
    %1357 = vmatpush1.msra.mxu0 0.0
    %1358 = vmatprep.subr.mxu0 0.0
    %1359 = vmatpush1.msra.mxu0 0.0
    %1360 = vmatprep.mubr.f32.mxu0 0.0
    %1361 = vmatmul.mubr.f32.gmra.mrb[0].mxu0 %v1294
    %v1362 = vpop.f32.mrb[0].mxu0
    %v1363 = vadd.f32 0.0, %v1362
    %v1364 = vpop.f32.mrb[0].mxu0
    %1365 = vdwg.mxu0
    %1366 = vmatprep.subr.mxu0 0.0
    %1367 = vmatpush1.msra.mxu0 %v259
    %1368 = vmatprep.subr.mxu0 0.0
    %1369 = vmatpush1.msra.mxu0 %v260
    %1370 = vmatprep.subr.mxu0 0.0
    %1371 = vmatpush1.msra.mxu0 %v261
    %1372 = vmatprep.subr.mxu0 0.0
    %1373 = vmatpush1.msra.mxu0 %v262
    %1374 = vmatprep.subr.mxu0 0.0
    %1375 = vmatpush1.msra.mxu0 %v263
    %1376 = vmatprep.subr.mxu0 0.0
    %1377 = vmatpush1.msra.mxu0 %v264
    %1378 = vmatprep.subr.mxu0 0.0
    %1379 = vmatpush1.msra.mxu0 %v265
    %1380 = vmatprep.subr.mxu0 0.0
    %1381 = vmatpush1.msra.mxu0 %v266
    %1382 = vmatprep.subr.mxu0 0.0
    %1383 = vmatpush1.msra.mxu0 %v267
    %1384 = vmatprep.subr.mxu0 0.0
    %1385 = vmatpush1.msra.mxu0 %v268
    %1386 = vmatprep.subr.mxu0 0.0
    %1387 = vmatpush1.msra.mxu0 %v269
    %1388 = vmatprep.subr.mxu0 0.0
    %1389 = vmatpush1.msra.mxu0 %v270
    %1390 = vmatprep.subr.mxu0 0.0
    %1391 = vmatpush1.msra.mxu0 %v271
    %1392 = vmatprep.subr.mxu0 0.0
    %1393 = vmatpush1.msra.mxu0 %v272
    %1394 = vmatprep.subr.mxu0 0.0
    %1395 = vmatpush1.msra.mxu0 %v273
    %1396 = vmatprep.subr.mxu0 0.0
    %1397 = vmatpush1.msra.mxu0 %v274
    %1398 = vmatprep.subr.mxu0 0.0
    %1399 = vmatpush1.msra.mxu0 0.0
    %1400 = vmatprep.subr.mxu0 0.0
    %1401 = vmatpush1.msra.mxu0 0.0
    %1402 = vmatprep.subr.mxu0 0.0
    %1403 = vmatpush1.msra.mxu0 0.0
    %1404 = vmatprep.subr.mxu0 0.0
    %1405 = vmatpush1.msra.mxu0 0.0
    %1406 = vmatprep.subr.mxu0 0.0
    %1407 = vmatpush1.msra.mxu0 0.0
    %1408 = vmatprep.subr.mxu0 0.0
    %1409 = vmatpush1.msra.mxu0 0.0
    %1410 = vmatprep.subr.mxu0 0.0
    %1411 = vmatpush1.msra.mxu0 0.0
    %1412 = vmatprep.subr.mxu0 0.0
    %1413 = vmatpush1.msra.mxu0 0.0
    %1414 = vmatprep.subr.mxu0 0.0
    %1415 = vmatpush1.msra.mxu0 0.0
    %1416 = vmatprep.subr.mxu0 0.0
    %1417 = vmatpush1.msra.mxu0 0.0
    %1418 = vmatprep.subr.mxu0 0.0
    %1419 = vmatpush1.msra.mxu0 0.0
    %1420 = vmatprep.subr.mxu0 0.0
    %1421 = vmatpush1.msra.mxu0 0.0
    %1422 = vmatprep.subr.mxu0 0.0
    %1423 = vmatpush1.msra.mxu0 0.0
    %1424 = vmatprep.subr.mxu0 0.0
    %1425 = vmatpush1.msra.mxu0 0.0
    %1426 = vmatprep.subr.mxu0 0.0
    %1427 = vmatpush1.msra.mxu0 0.0
    %1428 = vmatprep.subr.mxu0 0.0
    %1429 = vmatpush1.msra.mxu0 0.0
    %1430 = vmatprep.mubr.f32.mxu0 0.0
    %1431 = vmatmul.mubr.f32.gmra.mrb[0].mxu0 %v1363
    %v1432 = vpop.f32.mrb[0].mxu0
    %v1433 = vadd.f32 0.0, %v1432
    %v1434 = vpop.f32.mrb[0].mxu0
    %1435 = vdwg.mxu0
    %v1436 = vmul.f32 %v1363, %v1363
    %1437 = vmatprep.subr.mxu0 0.0
    %1438 = vmatpush1.msra.mxu0 %v259
    %1439 = vmatprep.subr.mxu0 0.0
    %1440 = vmatpush1.msra.mxu0 %v260
    %1441 = vmatprep.subr.mxu0 0.0
    %1442 = vmatpush1.msra.mxu0 %v261
    %1443 = vmatprep.subr.mxu0 0.0
    %1444 = vmatpush1.msra.mxu0 %v262
    %1445 = vmatprep.subr.mxu0 0.0
    %1446 = vmatpush1.msra.mxu0 %v263
    %1447 = vmatprep.subr.mxu0 0.0
    %1448 = vmatpush1.msra.mxu0 %v264
    %1449 = vmatprep.subr.mxu0 0.0
    %1450 = vmatpush1.msra.mxu0 %v265
    %1451 = vmatprep.subr.mxu0 0.0
    %1452 = vmatpush1.msra.mxu0 %v266
    %1453 = vmatprep.subr.mxu0 0.0
    %1454 = vmatpush1.msra.mxu0 %v267
    %1455 = vmatprep.subr.mxu0 0.0
    %1456 = vmatpush1.msra.mxu0 %v268
    %1457 = vmatprep.subr.mxu0 0.0
    %1458 = vmatpush1.msra.mxu0 %v269
    %1459 = vmatprep.subr.mxu0 0.0
    %1460 = vmatpush1.msra.mxu0 %v270
    %1461 = vmatprep.subr.mxu0 0.0
    %1462 = vmatpush1.msra.mxu0 %v271
    %1463 = vmatprep.subr.mxu0 0.0
    %1464 = vmatpush1.msra.mxu0 %v272
    %1465 = vmatprep.subr.mxu0 0.0
    %1466 = vmatpush1.msra.mxu0 %v273
    %1467 = vmatprep.subr.mxu0 0.0
    %1468 = vmatpush1.msra.mxu0 %v274
    %1469 = vmatprep.subr.mxu0 0.0
    %1470 = vmatpush1.msra.mxu0 0.0
    %1471 = vmatprep.subr.mxu0 0.0
    %1472 = vmatpush1.msra.mxu0 0.0
    %1473 = vmatprep.subr.mxu0 0.0
    %1474 = vmatpush1.msra.mxu0 0.0
    %1475 = vmatprep.subr.mxu0 0.0
    %1476 = vmatpush1.msra.mxu0 0.0
    %1477 = vmatprep.subr.mxu0 0.0
    %1478 = vmatpush1.msra.mxu0 0.0
    %1479 = vmatprep.subr.mxu0 0.0
    %1480 = vmatpush1.msra.mxu0 0.0
    %1481 = vmatprep.subr.mxu0 0.0
    %1482 = vmatpush1.msra.mxu0 0.0
    %1483 = vmatprep.subr.mxu0 0.0
    %1484 = vmatpush1.msra.mxu0 0.0
    %1485 = vmatprep.subr.mxu0 0.0
    %1486 = vmatpush1.msra.mxu0 0.0
    %1487 = vmatprep.subr.mxu0 0.0
    %1488 = vmatpush1.msra.mxu0 0.0
    %1489 = vmatprep.subr.mxu0 0.0
    %1490 = vmatpush1.msra.mxu0 0.0
    %1491 = vmatprep.subr.mxu0 0.0
    %1492 = vmatpush1.msra.mxu0 0.0
    %1493 = vmatprep.subr.mxu0 0.0
    %1494 = vmatpush1.msra.mxu0 0.0
    %1495 = vmatprep.subr.mxu0 0.0
    %1496 = vmatpush1.msra.mxu0 0.0
    %1497 = vmatprep.subr.mxu0 0.0
    %1498 = vmatpush1.msra.mxu0 0.0
    %1499 = vmatprep.subr.mxu0 0.0
    %1500 = vmatpush1.msra.mxu0 0.0
    %1501 = vmatprep.mubr.f32.mxu0 0.0
    %1502 = vmatmul.mubr.f32.gmra.mrb[0].mxu0 %v1436
    %v1503 = vpop.f32.mrb[0].mxu0
    %v1504 = vadd.f32 0.0, %v1503
    %v1505 = vpop.f32.mrb[0].mxu0
    %1506 = vdwg.mxu0
    %v1507 = vsel %vm589, %v1433, 0.0
    %v1508 = vrot.slane %v1507, 4
    %v1509 = vadd.f32 %v1507, %v1508
    %v1510 = vrot.slane %v1509, 2
    %v1511 = vadd.f32 %v1509, %v1510
    %v1512 = vrot.slane %v1511, 1
    %v1513 = vadd.f32 %v1511, %v1512
    %v1514 = vmul.f32 %v1513, 0.001953125
    %v1515 = vsel %vm589, %v1504, 0.0
    %v1516 = vrot.slane %v1515, 4
    %v1517 = vadd.f32 %v1515, %v1516
    %v1518 = vrot.slane %v1517, 2
    %v1519 = vadd.f32 %v1517, %v1518
    %v1520 = vrot.slane %v1519, 1
    %v1521 = vadd.f32 %v1519, %v1520
    %v1522 = vmul.f32 %v1521, 0.001953125
    %v1523 = vmul.f32 %v1514, %v1514
    %v1524 = vsub.f32 %v1522, %v1523
    %v1525 = vadd.f32 %v1524, 1e-05
    %v1526 = vrsqrt.pop %v1525
    %v1528 = vsel %vm589, %v1514, 0
    %1530 = vmatprep.subr.mxu0 0.0
    %1531 = vmatpush1.msra.mxu0 %v615
    %1532 = vmatprep.subr.mxu0 0.0
    %1533 = vmatpush1.msra.mxu0 0.0
    %1534 = vmatprep.subr.mxu0 0.0
    %1535 = vmatpush1.msra.mxu0 0.0
    %1536 = vmatprep.subr.mxu0 0.0
    %1537 = vmatpush1.msra.mxu0 0.0
    %1538 = vmatprep.subr.mxu0 0.0
    %1539 = vmatpush1.msra.mxu0 0.0
    %1540 = vmatprep.subr.mxu0 0.0
    %1541 = vmatpush1.msra.mxu0 0.0
    %1542 = vmatprep.subr.mxu0 0.0
    %1543 = vmatpush1.msra.mxu0 0.0
    %1544 = vmatprep.subr.mxu0 0.0
    %1545 = vmatpush1.msra.mxu0 0.0
    %1546 = vmatprep.subr.mxu0 0.0
    %1547 = vmatpush1.msra.mxu0 0.0
    %1548 = vmatprep.subr.mxu0 0.0
    %1549 = vmatpush1.msra.mxu0 0.0
    %1550 = vmatprep.subr.mxu0 0.0
    %1551 = vmatpush1.msra.mxu0 0.0
    %1552 = vmatprep.subr.mxu0 0.0
    %1553 = vmatpush1.msra.mxu0 0.0
    %1554 = vmatprep.subr.mxu0 0.0
    %1555 = vmatpush1.msra.mxu0 0.0
    %1556 = vmatprep.subr.mxu0 0.0
    %1557 = vmatpush1.msra.mxu0 0.0
    %1558 = vmatprep.subr.mxu0 0.0
    %1559 = vmatpush1.msra.mxu0 0.0
    %1560 = vmatprep.subr.mxu0 0.0
    %1561 = vmatpush1.msra.mxu0 0.0
    %1562 = vmatprep.subr.mxu0 0.0
    %1563 = vmatpush1.msra.mxu0 0.0
    %1564 = vmatprep.subr.mxu0 0.0
    %1565 = vmatpush1.msra.mxu0 0.0
    %1566 = vmatprep.subr.mxu0 0.0
    %1567 = vmatpush1.msra.mxu0 0.0
    %1568 = vmatprep.subr.mxu0 0.0
    %1569 = vmatpush1.msra.mxu0 0.0
    %1570 = vmatprep.subr.mxu0 0.0
    %1571 = vmatpush1.msra.mxu0 0.0
    %1572 = vmatprep.subr.mxu0 0.0
    %1573 = vmatpush1.msra.mxu0 0.0
    %1574 = vmatprep.subr.mxu0 0.0
    %1575 = vmatpush1.msra.mxu0 0.0
    %1576 = vmatprep.subr.mxu0 0.0
    %1577 = vmatpush1.msra.mxu0 0.0
    %1578 = vmatprep.subr.mxu0 0.0
    %1579 = vmatpush1.msra.mxu0 0.0
    %1580 = vmatprep.subr.mxu0 0.0
    %1581 = vmatpush1.msra.mxu0 0.0
    %1582 = vmatprep.subr.mxu0 0.0
    %1583 = vmatpush1.msra.mxu0 0.0
    %1584 = vmatprep.subr.mxu0 0.0
    %1585 = vmatpush1.msra.mxu0 0.0
    %1586 = vmatprep.subr.mxu0 0.0
    %1587 = vmatpush1.msra.mxu0 0.0
    %1588 = vmatprep.subr.mxu0 0.0
    %1589 = vmatpush1.msra.mxu0 0.0
    %1590 = vmatprep.subr.mxu0 0.0
    %1591 = vmatpush1.msra.mxu0 0.0
    %1592 = vmatprep.subr.mxu0 0.0
    %1593 = vmatpush1.msra.mxu0 0.0
    %1594 = vmatprep.mubr.f32.mxu0 0.0
    %1595 = vmatmul.mubr.f32.gmra.mrb[0].mxu0 %v1528
    %v1596 = vpop.f32.mrb[0].mxu0
    %v1597 = vadd.f32 0.0, %v1596
    %v1598 = vpop.f32.mrb[0].mxu0
    %1599 = vdwg.mxu0
    %v1601 = vsel %vm589, %v1526, 0
    %1603 = vmatprep.subr.mxu0 0.0
    %1604 = vmatpush1.msra.mxu0 %v615
    %1605 = vmatprep.subr.mxu0 0.0
    %1606 = vmatpush1.msra.mxu0 0.0
    %1607 = vmatprep.subr.mxu0 0.0
    %1608 = vmatpush1.msra.mxu0 0.0
    %1609 = vmatprep.subr.mxu0 0.0
    %1610 = vmatpush1.msra.mxu0 0.0
    %1611 = vmatprep.subr.mxu0 0.0
    %1612 = vmatpush1.msra.mxu0 0.0
    %1613 = vmatprep.subr.mxu0 0.0
    %1614 = vmatpush1.msra.mxu0 0.0
    %1615 = vmatprep.subr.mxu0 0.0
    %1616 = vmatpush1.msra.mxu0 0.0
    %1617 = vmatprep.subr.mxu0 0.0
    %1618 = vmatpush1.msra.mxu0 0.0
    %1619 = vmatprep.subr.mxu0 0.0
    %1620 = vmatpush1.msra.mxu0 0.0
    %1621 = vmatprep.subr.mxu0 0.0
    %1622 = vmatpush1.msra.mxu0 0.0
    %1623 = vmatprep.subr.mxu0 0.0
    %1624 = vmatpush1.msra.mxu0 0.0
    %1625 = vmatprep.subr.mxu0 0.0
    %1626 = vmatpush1.msra.mxu0 0.0
    %1627 = vmatprep.subr.mxu0 0.0
    %1628 = vmatpush1.msra.mxu0 0.0
    %1629 = vmatprep.subr.mxu0 0.0
    %1630 = vmatpush1.msra.mxu0 0.0
    %1631 = vmatprep.subr.mxu0 0.0
    %1632 = vmatpush1.msra.mxu0 0.0
    %1633 = vmatprep.subr.mxu0 0.0
    %1634 = vmatpush1.msra.mxu0 0.0
    %1635 = vmatprep.subr.mxu0 0.0
    %1636 = vmatpush1.msra.mxu0 0.0
    %1637 = vmatprep.subr.mxu0 0.0
    %1638 = vmatpush1.msra.mxu0 0.0
    %1639 = vmatprep.subr.mxu0 0.0
    %1640 = vmatpush1.msra.mxu0 0.0
    %1641 = vmatprep.subr.mxu0 0.0
    %1642 = vmatpush1.msra.mxu0 0.0
    %1643 = vmatprep.subr.mxu0 0.0
    %1644 = vmatpush1.msra.mxu0 0.0
    %1645 = vmatprep.subr.mxu0 0.0
    %1646 = vmatpush1.msra.mxu0 0.0
    %1647 = vmatprep.subr.mxu0 0.0
    %1648 = vmatpush1.msra.mxu0 0.0
    %1649 = vmatprep.subr.mxu0 0.0
    %1650 = vmatpush1.msra.mxu0 0.0
    %1651 = vmatprep.subr.mxu0 0.0
    %1652 = vmatpush1.msra.mxu0 0.0
    %1653 = vmatprep.subr.mxu0 0.0
    %1654 = vmatpush1.msra.mxu0 0.0
    %1655 = vmatprep.subr.mxu0 0.0
    %1656 = vmatpush1.msra.mxu0 0.0
    %1657 = vmatprep.subr.mxu0 0.0
    %1658 = vmatpush1.msra.mxu0 0.0
    %1659 = vmatprep.subr.mxu0 0.0
    %1660 = vmatpush1.msra.mxu0 0.0
    %1661 = vmatprep.subr.mxu0 0.0
    %1662 = vmatpush1.msra.mxu0 0.0
    %1663 = vmatprep.subr.mxu0 0.0
    %1664 = vmatpush1.msra.mxu0 0.0
    %1665 = vmatprep.subr.mxu0 0.0
    %1666 = vmatpush1.msra.mxu0 0.0
    %1667 = vmatprep.mubr.f32.mxu0 0.0
    %1668 = vmatmul.mubr.f32.gmra.mrb[0].mxu0 %v1601
    %v1669 = vpop.f32.mrb[0].mxu0
    %v1670 = vadd.f32 0.0, %v1669
    %v1671 = vpop.f32.mrb[0].mxu0
    %1672 = vdwg.mxu0
    %v1673 = vlaneseq
    %v1674 = vshrl.u32 %v1673, 7
    %v1675 = vsub.s32 0, %v1674
    %v1676 = vrot.slane %v1597, %v1675
    %v1677 = vsub.f32 %v1363, %v1676
    %v1678 = vld [vmem:[#allocation22] sm:$0xff]
    %v1679 = vlaneseq
    %v1680 = vshrl.u32 %v1679, 7
    %v1681 = vsub.s32 0, %v1680
    %v1682 = vrot.slane %v1670, %v1681
    %1684 = vset.pattern.permute.xlu0 0
    %1685 = vperm.xlu0 %1684, %v1678
    %v1686 = vpop.permute.xlu0 %1685
    %v1688 = vmul.f32 %v1682, %v1686
    %v1689 = vmul.f32 %v1677, %v1688
    %v1690 = vld [vmem:[#allocation23] sm:$0xff]
    %1692 = vset.pattern.permute.xlu0 0
    %1693 = vperm.xlu0 %1692, %v1690
    %v1694 = vpop.permute.xlu0 %1693
    %v1696 = vadd.f32 %v1689, %v1694
    %v1697 = vmul.f32 %v1696, 0.5
    %v1698 = vmul.f32 %v1696, 0.70710677
    %vm1699 = vcmp.ge.f32.partialorder %v1698, 0.0
    %v1700 = vsel %vm1699, 1.0, -1.0
    %v1701 = vand.u32 2147483647, %v1698
    %v1702 = vmul.f32 %v1701, 0.3275911
    %v1703 = vadd.f32 %v1702, 1.0
    %v1704 = vrcp.pop %v1703
    %v1705 = vmul.f32 1.0, %v1704
    %v1706 = vmul.f32 %v1705, 1.0614054
    %v1707 = vadd.f32 %v1706, -1.4531521
    %v1708 = vmul.f32 %v1707, %v1705
    %v1709 = vadd.f32 %v1708, 1.4214138
    %v1710 = vmul.f32 %v1709, %v1705
    %v1711 = vadd.f32 %v1710, -0.28449672
    %v1712 = vmul.f32 %v1711, %v1705
    %v1713 = vadd.f32 %v1712, 0.2548296
    %v1714 = vmul.f32 %v1713, %v1705
    %v1715 = vsub.f32 0.0, %v1701
    %v1716 = vmul.f32 %v1715, %v1701
    %v1717 = vmul.f32 %v1716, 1.442695
    %v1718 = vpow.pop %v1717
    %v1719 = vmul.f32 %v1714, %v1718
    %v1720 = vsub.f32 1.0, %v1719
    %v1721 = vmul.f32 %v1700, %v1720
    %v1722 = vadd.f32 %v1721, 1.0
    %v1723 = vmul.f32 %v1697, %v1722
    %1724 = vrot.lane.b32.xlu0 %v1723, 9
    %v1725 = vpop.permute.xlu0 %1724
    %v1726 = vmul.f32 %v1725, %v307
    %1727 = vrot.lane.b32.xlu0 %v1723, 8
    %v1728 = vpop.permute.xlu0 %1727
    %v1729 = vmul.f32 %v1728, %v316
    %1730 = vrot.lane.b32.xlu0 %v1723, 7
    %v1731 = vpop.permute.xlu0 %1730
    %v1732 = vmul.f32 %v1731, %v325
    %1733 = vrot.lane.b32.xlu0 %v1723, 1
    %v1734 = vpop.permute.xlu0 %1733
    %v1735 = vmul.f32 %v1734, %v334
    %1736 = vrot.lane.b32.xlu0 %v1723, 127
    %v1737 = vpop.permute.xlu0 %1736
    %v1738 = vmul.f32 %v1737, %v343
    %1739 = vrot.lane.b32.xlu0 %v1723, 121
    %v1740 = vpop.permute.xlu0 %1739
    %v1741 = vmul.f32 %v1740, %v352
    %1742 = vrot.lane.b32.xlu0 %v1723, 120
    %v1743 = vpop.permute.xlu0 %1742
    %v1744 = vmul.f32 %v1743, %v361
    %1745 = vrot.lane.b32.xlu0 %v1723, 119
    %v1746 = vpop.permute.xlu0 %1745
    %v1747 = vmul.f32 %v1746, %v370
    %v1748 = vld [vmem:[#allocation25] sm:$0xff]
    %v1750 = vsel %vm374, %v1748, 0
    %1752 = vmatprep.subr.mxu0 0.0
    %1753 = vmatpush1.msra.mxu0 %v1726
    %1754 = vmatprep.subr.mxu0 0.0
    %1755 = vmatpush1.msra.mxu0 %v1729
    %1756 = vmatprep.subr.mxu0 0.0
    %1757 = vmatpush1.msra.mxu0 %v1732
    %1758 = vmatprep.subr.mxu0 0.0
    %1759 = vmatpush1.msra.mxu0 %v1735
    %1760 = vmatprep.subr.mxu0 0.0
    %1761 = vmatpush1.msra.mxu0 %v1723
    %1762 = vmatprep.subr.mxu0 0.0
    %1763 = vmatpush1.msra.mxu0 %v1738
    %1764 = vmatprep.subr.mxu0 0.0
    %1765 = vmatpush1.msra.mxu0 %v1741
    %1766 = vmatprep.subr.mxu0 0.0
    %1767 = vmatpush1.msra.mxu0 %v1744
    %1768 = vmatprep.subr.mxu0 0.0
    %1769 = vmatpush1.msra.mxu0 %v1747
    %1770 = vmatprep.subr.mxu0 0.0
    %1771 = vmatpush1.msra.mxu0 0.0
    %1772 = vmatprep.subr.mxu0 0.0
    %1773 = vmatpush1.msra.mxu0 0.0
    %1774 = vmatprep.subr.mxu0 0.0
    %1775 = vmatpush1.msra.mxu0 0.0
    %1776 = vmatprep.subr.mxu0 0.0
    %1777 = vmatpush1.msra.mxu0 0.0
    %1778 = vmatprep.subr.mxu0 0.0
    %1779 = vmatpush1.msra.mxu0 0.0
    %1780 = vmatprep.subr.mxu0 0.0
    %1781 = vmatpush1.msra.mxu0 0.0
    %1782 = vmatprep.subr.mxu0 0.0
    %1783 = vmatpush1.msra.mxu0 0.0
    %1784 = vmatprep.subr.mxu0 0.0
    %1785 = vmatpush1.msra.mxu0 0.0
    %1786 = vmatprep.subr.mxu0 0.0
    %1787 = vmatpush1.msra.mxu0 0.0
    %1788 = vmatprep.subr.mxu0 0.0
    %1789 = vmatpush1.msra.mxu0 0.0
    %1790 = vmatprep.subr.mxu0 0.0
    %1791 = vmatpush1.msra.mxu0 0.0
    %1792 = vmatprep.subr.mxu0 0.0
    %1793 = vmatpush1.msra.mxu0 0.0
    %1794 = vmatprep.subr.mxu0 0.0
    %1795 = vmatpush1.msra.mxu0 0.0
    %1796 = vmatprep.subr.mxu0 0.0
    %1797 = vmatpush1.msra.mxu0 0.0
    %1798 = vmatprep.subr.mxu0 0.0
    %1799 = vmatpush1.msra.mxu0 0.0
    %1800 = vmatprep.subr.mxu0 0.0
    %1801 = vmatpush1.msra.mxu0 0.0
    %1802 = vmatprep.subr.mxu0 0.0
    %1803 = vmatpush1.msra.mxu0 0.0
    %1804 = vmatprep.subr.mxu0 0.0
    %1805 = vmatpush1.msra.mxu0 0.0
    %1806 = vmatprep.subr.mxu0 0.0
    %1807 = vmatpush1.msra.mxu0 0.0
    %1808 = vmatprep.subr.mxu0 0.0
    %1809 = vmatpush1.msra.mxu0 0.0
    %1810 = vmatprep.subr.mxu0 0.0
    %1811 = vmatpush1.msra.mxu0 0.0
    %1812 = vmatprep.subr.mxu0 0.0
    %1813 = vmatpush1.msra.mxu0 0.0
    %1814 = vmatprep.subr.mxu0 0.0
    %1815 = vmatpush1.msra.mxu0 0.0
    %1816 = vmatprep.mubr.f32.mxu0 0.0
    %1817 = vmatmul.mubr.f32.gmra.mrb[0].mxu0 %v1750
    %v1818 = vpop.f32.mrb[0].mxu0
    %v1819 = vadd.f32 0.0, %v1818
    %v1820 = vpop.f32.mrb[0].mxu0
    %1821 = vdwg.mxu0
    %1822 = vmatprep.subr.mxu0 0.0
    %1823 = vmatpush1.msra.mxu0 %v259
    %1824 = vmatprep.subr.mxu0 0.0
    %1825 = vmatpush1.msra.mxu0 %v260
    %1826 = vmatprep.subr.mxu0 0.0
    %1827 = vmatpush1.msra.mxu0 %v261
    %1828 = vmatprep.subr.mxu0 0.0
    %1829 = vmatpush1.msra.mxu0 %v262
    %1830 = vmatprep.subr.mxu0 0.0
    %1831 = vmatpush1.msra.mxu0 %v263
    %1832 = vmatprep.subr.mxu0 0.0
    %1833 = vmatpush1.msra.mxu0 %v264
    %1834 = vmatprep.subr.mxu0 0.0
    %1835 = vmatpush1.msra.mxu0 %v265
    %1836 = vmatprep.subr.mxu0 0.0
    %1837 = vmatpush1.msra.mxu0 %v266
    %1838 = vmatprep.subr.mxu0 0.0
    %1839 = vmatpush1.msra.mxu0 %v267
    %1840 = vmatprep.subr.mxu0 0.0
    %1841 = vmatpush1.msra.mxu0 %v268
    %1842 = vmatprep.subr.mxu0 0.0
    %1843 = vmatpush1.msra.mxu0 %v269
    %1844 = vmatprep.subr.mxu0 0.0
    %1845 = vmatpush1.msra.mxu0 %v270
    %1846 = vmatprep.subr.mxu0 0.0
    %1847 = vmatpush1.msra.mxu0 %v271
    %1848 = vmatprep.subr.mxu0 0.0
    %1849 = vmatpush1.msra.mxu0 %v272
    %1850 = vmatprep.subr.mxu0 0.0
    %1851 = vmatpush1.msra.mxu0 %v273
    %1852 = vmatprep.subr.mxu0 0.0
    %1853 = vmatpush1.msra.mxu0 %v274
    %1854 = vmatprep.subr.mxu0 0.0
    %1855 = vmatpush1.msra.mxu0 0.0
    %1856 = vmatprep.subr.mxu0 0.0
    %1857 = vmatpush1.msra.mxu0 0.0
    %1858 = vmatprep.subr.mxu0 0.0
    %1859 = vmatpush1.msra.mxu0 0.0
    %1860 = vmatprep.subr.mxu0 0.0
    %1861 = vmatpush1.msra.mxu0 0.0
    %1862 = vmatprep.subr.mxu0 0.0
    %1863 = vmatpush1.msra.mxu0 0.0
    %1864 = vmatprep.subr.mxu0 0.0
    %1865 = vmatpush1.msra.mxu0 0.0
    %1866 = vmatprep.subr.mxu0 0.0
    %1867 = vmatpush1.msra.mxu0 0.0
    %1868 = vmatprep.subr.mxu0 0.0
    %1869 = vmatpush1.msra.mxu0 0.0
    %1870 = vmatprep.subr.mxu0 0.0
    %1871 = vmatpush1.msra.mxu0 0.0
    %1872 = vmatprep.subr.mxu0 0.0
    %1873 = vmatpush1.msra.mxu0 0.0
    %1874 = vmatprep.subr.mxu0 0.0
    %1875 = vmatpush1.msra.mxu0 0.0
    %1876 = vmatprep.subr.mxu0 0.0
    %1877 = vmatpush1.msra.mxu0 0.0
    %1878 = vmatprep.subr.mxu0 0.0
    %1879 = vmatpush1.msra.mxu0 0.0
    %1880 = vmatprep.subr.mxu0 0.0
    %1881 = vmatpush1.msra.mxu0 0.0
    %1882 = vmatprep.subr.mxu0 0.0
    %1883 = vmatpush1.msra.mxu0 0.0
    %1884 = vmatprep.subr.mxu0 0.0
    %1885 = vmatpush1.msra.mxu0 0.0
    %1886 = vmatprep.mubr.f32.mxu0 0.0
    %1887 = vmatmul.mubr.f32.gmra.mrb[0].mxu0 %v1819
    %v1888 = vpop.f32.mrb[0].mxu0
    %v1889 = vadd.f32 0.0, %v1888
    %v1890 = vpop.f32.mrb[0].mxu0
    %1891 = vdwg.mxu0
    %v1892 = vmul.f32 %v1819, %v1819
    %1893 = vmatprep.subr.mxu0 0.0
    %1894 = vmatpush1.msra.mxu0 %v259
    %1895 = vmatprep.subr.mxu0 0.0
    %1896 = vmatpush1.msra.mxu0 %v260
    %1897 = vmatprep.subr.mxu0 0.0
    %1898 = vmatpush1.msra.mxu0 %v261
    %1899 = vmatprep.subr.mxu0 0.0
    %1900 = vmatpush1.msra.mxu0 %v262
    %1901 = vmatprep.subr.mxu0 0.0
    %1902 = vmatpush1.msra.mxu0 %v263
    %1903 = vmatprep.subr.mxu0 0.0
    %1904 = vmatpush1.msra.mxu0 %v264
    %1905 = vmatprep.subr.mxu0 0.0
    %1906 = vmatpush1.msra.mxu0 %v265
    %1907 = vmatprep.subr.mxu0 0.0
    %1908 = vmatpush1.msra.mxu0 %v266
    %1909 = vmatprep.subr.mxu0 0.0
    %1910 = vmatpush1.msra.mxu0 %v267
    %1911 = vmatprep.subr.mxu0 0.0
    %1912 = vmatpush1.msra.mxu0 %v268
    %1913 = vmatprep.subr.mxu0 0.0
    %1914 = vmatpush1.msra.mxu0 %v269
    %1915 = vmatprep.subr.mxu0 0.0
    %1916 = vmatpush1.msra.mxu0 %v270
    %1917 = vmatprep.subr.mxu0 0.0
    %1918 = vmatpush1.msra.mxu0 %v271
    %1919 = vmatprep.subr.mxu0 0.0
    %1920 = vmatpush1.msra.mxu0 %v272
    %1921 = vmatprep.subr.mxu0 0.0
    %1922 = vmatpush1.msra.mxu0 %v273
    %1923 = vmatprep.subr.mxu0 0.0
    %1924 = vmatpush1.msra.mxu0 %v274
    %1925 = vmatprep.subr.mxu0 0.0
    %1926 = vmatpush1.msra.mxu0 0.0
    %1927 = vmatprep.subr.mxu0 0.0
    %1928 = vmatpush1.msra.mxu0 0.0
    %1929 = vmatprep.subr.mxu0 0.0
    %1930 = vmatpush1.msra.mxu0 0.0
    %1931 = vmatprep.subr.mxu0 0.0
    %1932 = vmatpush1.msra.mxu0 0.0
    %1933 = vmatprep.subr.mxu0 0.0
    %1934 = vmatpush1.msra.mxu0 0.0
    %1935 = vmatprep.subr.mxu0 0.0
    %1936 = vmatpush1.msra.mxu0 0.0
    %1937 = vmatprep.subr.mxu0 0.0
    %1938 = vmatpush1.msra.mxu0 0.0
    %1939 = vmatprep.subr.mxu0 0.0
    %1940 = vmatpush1.msra.mxu0 0.0
    %1941 = vmatprep.subr.mxu0 0.0
    %1942 = vmatpush1.msra.mxu0 0.0
    %1943 = vmatprep.subr.mxu0 0.0
    %1944 = vmatpush1.msra.mxu0 0.0
    %1945 = vmatprep.subr.mxu0 0.0
    %1946 = vmatpush1.msra.mxu0 0.0
    %1947 = vmatprep.subr.mxu0 0.0
    %1948 = vmatpush1.msra.mxu0 0.0
    %1949 = vmatprep.subr.mxu0 0.0
    %1950 = vmatpush1.msra.mxu0 0.0
    %1951 = vmatprep.subr.mxu0 0.0
    %1952 = vmatpush1.msra.mxu0 0.0
    %1953 = vmatprep.subr.mxu0 0.0
    %1954 = vmatpush1.msra.mxu0 0.0
    %1955 = vmatprep.subr.mxu0 0.0
    %1956 = vmatpush1.msra.mxu0 0.0
    %1957 = vmatprep.mubr.f32.mxu0 0.0
    %1958 = vmatmul.mubr.f32.gmra.mrb[0].mxu0 %v1892
    %v1959 = vpop.f32.mrb[0].mxu0
    %v1960 = vadd.f32 0.0, %v1959
    %v1961 = vpop.f32.mrb[0].mxu0
    %1962 = vdwg.mxu0
    %v1963 = vsel %vm589, %v1889, 0.0
    %v1964 = vrot.slane %v1963, 4
    %v1965 = vadd.f32 %v1963, %v1964
    %v1966 = vrot.slane %v1965, 2
    %v1967 = vadd.f32 %v1965, %v1966
    %v1968 = vrot.slane %v1967, 1
    %v1969 = vadd.f32 %v1967, %v1968
    %v1970 = vmul.f32 %v1969, 0.001953125
    %v1971 = vsel %vm589, %v1960, 0.0
    %v1972 = vrot.slane %v1971, 4
    %v1973 = vadd.f32 %v1971, %v1972
    %v1974 = vrot.slane %v1973, 2
    %v1975 = vadd.f32 %v1973, %v1974
    %v1976 = vrot.slane %v1975, 1
    %v1977 = vadd.f32 %v1975, %v1976
    %v1978 = vmul.f32 %v1977, 0.001953125
    %v1979 = vmul.f32 %v1970, %v1970
    %v1980 = vsub.f32 %v1978, %v1979
    %v1981 = vadd.f32 %v1980, 1e-05
    %v1982 = vrsqrt.pop %v1981
    %v1984 = vsel %vm589, %v1970, 0
    %1986 = vmatprep.subr.mxu0 0.0
    %1987 = vmatpush1.msra.mxu0 %v615
    %1988 = vmatprep.subr.mxu0 0.0
    %1989 = vmatpush1.msra.mxu0 0.0
    %1990 = vmatprep.subr.mxu0 0.0
    %1991 = vmatpush1.msra.mxu0 0.0
    %1992 = vmatprep.subr.mxu0 0.0
    %1993 = vmatpush1.msra.mxu0 0.0
    %1994 = vmatprep.subr.mxu0 0.0
    %1995 = vmatpush1.msra.mxu0 0.0
    %1996 = vmatprep.subr.mxu0 0.0
    %1997 = vmatpush1.msra.mxu0 0.0
    %1998 = vmatprep.subr.mxu0 0.0
    %1999 = vmatpush1.msra.mxu0 0.0
    %2000 = vmatprep.subr.mxu0 0.0
    %2001 = vmatpush1.msra.mxu0 0.0
    %2002 = vmatprep.subr.mxu0 0.0
    %2003 = vmatpush1.msra.mxu0 0.0
    %2004 = vmatprep.subr.mxu0 0.0
    %2005 = vmatpush1.msra.mxu0 0.0
    %2006 = vmatprep.subr.mxu0 0.0
    %2007 = vmatpush1.msra.mxu0 0.0
    %2008 = vmatprep.subr.mxu0 0.0
    %2009 = vmatpush1.msra.mxu0 0.0
    %2010 = vmatprep.subr.mxu0 0.0
    %2011 = vmatpush1.msra.mxu0 0.0
    %2012 = vmatprep.subr.mxu0 0.0
    %2013 = vmatpush1.msra.mxu0 0.0
    %2014 = vmatprep.subr.mxu0 0.0
    %2015 = vmatpush1.msra.mxu0 0.0
    %2016 = vmatprep.subr.mxu0 0.0
    %2017 = vmatpush1.msra.mxu0 0.0
    %2018 = vmatprep.subr.mxu0 0.0
    %2019 = vmatpush1.msra.mxu0 0.0
    %2020 = vmatprep.subr.mxu0 0.0
    %2021 = vmatpush1.msra.mxu0 0.0
    %2022 = vmatprep.subr.mxu0 0.0
    %2023 = vmatpush1.msra.mxu0 0.0
    %2024 = vmatprep.subr.mxu0 0.0
    %2025 = vmatpush1.msra.mxu0 0.0
    %2026 = vmatprep.subr.mxu0 0.0
    %2027 = vmatpush1.msra.mxu0 0.0
    %2028 = vmatprep.subr.mxu0 0.0
    %2029 = vmatpush1.msra.mxu0 0.0
    %2030 = vmatprep.subr.mxu0 0.0
    %2031 = vmatpush1.msra.mxu0 0.0
    %2032 = vmatprep.subr.mxu0 0.0
    %2033 = vmatpush1.msra.mxu0 0.0
    %2034 = vmatprep.subr.mxu0 0.0
    %2035 = vmatpush1.msra.mxu0 0.0
    %2036 = vmatprep.subr.mxu0 0.0
    %2037 = vmatpush1.msra.mxu0 0.0
    %2038 = vmatprep.subr.mxu0 0.0
    %2039 = vmatpush1.msra.mxu0 0.0
    %2040 = vmatprep.subr.mxu0 0.0
    %2041 = vmatpush1.msra.mxu0 0.0
    %2042 = vmatprep.subr.mxu0 0.0
    %2043 = vmatpush1.msra.mxu0 0.0
    %2044 = vmatprep.subr.mxu0 0.0
    %2045 = vmatpush1.msra.mxu0 0.0
    %2046 = vmatprep.subr.mxu0 0.0
    %2047 = vmatpush1.msra.mxu0 0.0
    %2048 = vmatprep.subr.mxu0 0.0
    %2049 = vmatpush1.msra.mxu0 0.0
    %2050 = vmatprep.mubr.f32.mxu0 0.0
    %2051 = vmatmul.mubr.f32.gmra.mrb[0].mxu0 %v1984
    %v2052 = vpop.f32.mrb[0].mxu0
    %v2053 = vadd.f32 0.0, %v2052
    %v2054 = vpop.f32.mrb[0].mxu0
    %2055 = vdwg.mxu0
    %v2057 = vsel %vm589, %v1982, 0
    %2059 = vmatprep.subr.mxu0 0.0
    %2060 = vmatpush1.msra.mxu0 %v615
    %2061 = vmatprep.subr.mxu0 0.0
    %2062 = vmatpush1.msra.mxu0 0.0
    %2063 = vmatprep.subr.mxu0 0.0
    %2064 = vmatpush1.msra.mxu0 0.0
    %2065 = vmatprep.subr.mxu0 0.0
    %2066 = vmatpush1.msra.mxu0 0.0
    %2067 = vmatprep.subr.mxu0 0.0
    %2068 = vmatpush1.msra.mxu0 0.0
    %2069 = vmatprep.subr.mxu0 0.0
    %2070 = vmatpush1.msra.mxu0 0.0
    %2071 = vmatprep.subr.mxu0 0.0
    %2072 = vmatpush1.msra.mxu0 0.0
    %2073 = vmatprep.subr.mxu0 0.0
    %2074 = vmatpush1.msra.mxu0 0.0
    %2075 = vmatprep.subr.mxu0 0.0
    %2076 = vmatpush1.msra.mxu0 0.0
    %2077 = vmatprep.subr.mxu0 0.0
    %2078 = vmatpush1.msra.mxu0 0.0
    %2079 = vmatprep.subr.mxu0 0.0
    %2080 = vmatpush1.msra.mxu0 0.0
    %2081 = vmatprep.subr.mxu0 0.0
    %2082 = vmatpush1.msra.mxu0 0.0
    %2083 = vmatprep.subr.mxu0 0.0
    %2084 = vmatpush1.msra.mxu0 0.0
    %2085 = vmatprep.subr.mxu0 0.0
    %2086 = vmatpush1.msra.mxu0 0.0
    %2087 = vmatprep.subr.mxu0 0.0
    %2088 = vmatpush1.msra.mxu0 0.0
    %2089 = vmatprep.subr.mxu0 0.0
    %2090 = vmatpush1.msra.mxu0 0.0
    %2091 = vmatprep.subr.mxu0 0.0
    %2092 = vmatpush1.msra.mxu0 0.0
    %2093 = vmatprep.subr.mxu0 0.0
    %2094 = vmatpush1.msra.mxu0 0.0
    %2095 = vmatprep.subr.mxu0 0.0
    %2096 = vmatpush1.msra.mxu0 0.0
    %2097 = vmatprep.subr.mxu0 0.0
    %2098 = vmatpush1.msra.mxu0 0.0
    %2099 = vmatprep.subr.mxu0 0.0
    %2100 = vmatpush1.msra.mxu0 0.0
    %2101 = vmatprep.subr.mxu0 0.0
    %2102 = vmatpush1.msra.mxu0 0.0
    %2103 = vmatprep.subr.mxu0 0.0
    %2104 = vmatpush1.msra.mxu0 0.0
    %2105 = vmatprep.subr.mxu0 0.0
    %2106 = vmatpush1.msra.mxu0 0.0
    %2107 = vmatprep.subr.mxu0 0.0
    %2108 = vmatpush1.msra.mxu0 0.0
    %2109 = vmatprep.subr.mxu0 0.0
    %2110 = vmatpush1.msra.mxu0 0.0
    %2111 = vmatprep.subr.mxu0 0.0
    %2112 = vmatpush1.msra.mxu0 0.0
    %2113 = vmatprep.subr.mxu0 0.0
    %2114 = vmatpush1.msra.mxu0 0.0
    %2115 = vmatprep.subr.mxu0 0.0
    %2116 = vmatpush1.msra.mxu0 0.0
    %2117 = vmatprep.subr.mxu0 0.0
    %2118 = vmatpush1.msra.mxu0 0.0
    %2119 = vmatprep.subr.mxu0 0.0
    %2120 = vmatpush1.msra.mxu0 0.0
    %2121 = vmatprep.subr.mxu0 0.0
    %2122 = vmatpush1.msra.mxu0 0.0
    %2123 = vmatprep.mubr.f32.mxu0 0.0
    %2124 = vmatmul.mubr.f32.gmra.mrb[0].mxu0 %v2057
    %v2125 = vpop.f32.mrb[0].mxu0
    %v2126 = vadd.f32 0.0, %v2125
    %v2127 = vpop.f32.mrb[0].mxu0
    %2128 = vdwg.mxu0
    %v2129 = vlaneseq
    %v2130 = vshrl.u32 %v2129, 7
    %v2131 = vsub.s32 0, %v2130
    %v2132 = vrot.slane %v2053, %v2131
    %v2133 = vsub.f32 %v1819, %v2132
    %v2134 = vld [vmem:[#allocation26] sm:$0xff]
    %v2135 = vlaneseq
    %v2136 = vshrl.u32 %v2135, 7
    %v2137 = vsub.s32 0, %v2136
    %v2138 = vrot.slane %v2126, %v2137
    %2140 = vset.pattern.permute.xlu0 0
    %2141 = vperm.xlu0 %2140, %v2134
    %v2142 = vpop.permute.xlu0 %2141
    %v2144 = vmul.f32 %v2138, %v2142
    %v2145 = vmul.f32 %v2133, %v2144
    %v2146 = vld [vmem:[#allocation28] sm:$0xff]
    %2148 = vset.pattern.permute.xlu0 0
    %2149 = vperm.xlu0 %2148, %v2146
    %v2150 = vpop.permute.xlu0 %2149
    %v2152 = vadd.f32 %v2145, %v2150
    %v2153 = vld [vmem:[#allocation5] sm:$0xff]
    %v2155 = vsel %vm589, %v2153, 0
    %2157 = vmatprep.subr.mxu0 0.0
    %2158 = vmatpush1.msra.mxu0 %v615
    %2159 = vmatprep.subr.mxu0 0.0
    %2160 = vmatpush1.msra.mxu0 0.0
    %2161 = vmatprep.subr.mxu0 0.0
    %2162 = vmatpush1.msra.mxu0 0.0
    %2163 = vmatprep.subr.mxu0 0.0
    %2164 = vmatpush1.msra.mxu0 0.0
    %2165 = vmatprep.subr.mxu0 0.0
    %2166 = vmatpush1.msra.mxu0 0.0
    %2167 = vmatprep.subr.mxu0 0.0
    %2168 = vmatpush1.msra.mxu0 0.0
    %2169 = vmatprep.subr.mxu0 0.0
    %2170 = vmatpush1.msra.mxu0 0.0
    %2171 = vmatprep.subr.mxu0 0.0
    %2172 = vmatpush1.msra.mxu0 0.0
    %2173 = vmatprep.subr.mxu0 0.0
    %2174 = vmatpush1.msra.mxu0 0.0
    %2175 = vmatprep.subr.mxu0 0.0
    %2176 = vmatpush1.msra.mxu0 0.0
    %2177 = vmatprep.subr.mxu0 0.0
    %2178 = vmatpush1.msra.mxu0 0.0
    %2179 = vmatprep.subr.mxu0 0.0
    %2180 = vmatpush1.msra.mxu0 0.0
    %2181 = vmatprep.subr.mxu0 0.0
    %2182 = vmatpush1.msra.mxu0 0.0
    %2183 = vmatprep.subr.mxu0 0.0
    %2184 = vmatpush1.msra.mxu0 0.0
    %2185 = vmatprep.subr.mxu0 0.0
    %2186 = vmatpush1.msra.mxu0 0.0
    %2187 = vmatprep.subr.mxu0 0.0
    %2188 = vmatpush1.msra.mxu0 0.0
    %2189 = vmatprep.subr.mxu0 0.0
    %2190 = vmatpush1.msra.mxu0 0.0
    %2191 = vmatprep.subr.mxu0 0.0
    %2192 = vmatpush1.msra.mxu0 0.0
    %2193 = vmatprep.subr.mxu0 0.0
    %2194 = vmatpush1.msra.mxu0 0.0
    %2195 = vmatprep.subr.mxu0 0.0
    %2196 = vmatpush1.msra.mxu0 0.0
    %2197 = vmatprep.subr.mxu0 0.0
    %2198 = vmatpush1.msra.mxu0 0.0
    %2199 = vmatprep.subr.mxu0 0.0
    %2200 = vmatpush1.msra.mxu0 0.0
    %2201 = vmatprep.subr.mxu0 0.0
    %2202 = vmatpush1.msra.mxu0 0.0
    %2203 = vmatprep.subr.mxu0 0.0
    %2204 = vmatpush1.msra.mxu0 0.0
    %2205 = vmatprep.subr.mxu0 0.0
    %2206 = vmatpush1.msra.mxu0 0.0
    %2207 = vmatprep.subr.mxu0 0.0
    %2208 = vmatpush1.msra.mxu0 0.0
    %2209 = vmatprep.subr.mxu0 0.0
    %2210 = vmatpush1.msra.mxu0 0.0
    %2211 = vmatprep.subr.mxu0 0.0
    %2212 = vmatpush1.msra.mxu0 0.0
    %2213 = vmatprep.subr.mxu0 0.0
    %2214 = vmatpush1.msra.mxu0 0.0
    %2215 = vmatprep.subr.mxu0 0.0
    %2216 = vmatpush1.msra.mxu0 0.0
    %2217 = vmatprep.subr.mxu0 0.0
    %2218 = vmatpush1.msra.mxu0 0.0
    %2219 = vmatprep.subr.mxu0 0.0
    %2220 = vmatpush1.msra.mxu0 0.0
    %2221 = vmatprep.mubr.f32.mxu0 0.0
    %2222 = vmatmul.mubr.f32.gmra.mrb[0].mxu0 %v2155
    %v2223 = vpop.f32.mrb[0].mxu0
    %v2224 = vadd.f32 0.0, %v2223
    %v2225 = vpop.f32.mrb[0].mxu0
    %2226 = vdwg.mxu0
    %v2227 = vadd.f32 %v2152, %v2224
    %2228 = vst [vmem:[#allocation29] sm:$0xff] %v2227
    // Predicated region
    $region138: #{_down_impl.1} parent=1 // pred_check
      _
    $region139: #{_down_impl.1} parent=1 // pred_check_branch
      %2230 = sbr.rel (0) target = $region141
    $region140: #{_down_impl.1} parent=1 // pred_region
      %s2232 = ssub.s32 128, 128
      %2233 = vsyncadd [#allocation4], %s2232
      %s2235 = sshll.u32 [#allocation29], 4
      %s2236 = int_to_ptr.vmem [resolvable:$true] %s2235
      %2238 = dma.vmem_to_hbm [thread:$0]  %s2236, 128, %s17, [#allocation4]
    $region141: #{_down_impl.1} parent=1 // pred_fallthru
      _
    // Predicated region
    $region142: #{_down_impl.1} parent=1 // pred_check
      _
    $region143: #{_down_impl.1} parent=1 // pred_check_branch
      %2240 = sbr.rel (0) target = $region145
    $region144: #{_down_impl.1} parent=1 // pred_region
      %2241 = dma.done [#allocation4], 128
    $region145: #{_down_impl.1} parent=1 // pred_fallthru
      _
    %2242 = vsyncpa [#allocation3], 1
    %2243 = vsyncpa [#allocation6], 1
    %2244 = vsyncpa [#allocation9], 1
    %2245 = vsyncpa [#allocation12], 1
    %2246 = vsyncpa [#allocation15], 1
    %2247 = vsyncpa [#allocation18], 1
    %2248 = vsyncpa [#allocation21], 1
    %2249 = vsyncpa [#allocation24], 1
    %2250 = vsyncpa [#allocation27], 1
    %2251 = vsyncpa [#allocation4], 1

</llo_original>
